<compile_context>
chip_gen: v7x
topology: tpu7x:2x2x1
jax: 0.10.0
libtpu: 0.0.40
codegen_flags: <defaults>
</compile_context>

<pallas_src>
import math

import jax
import jax.numpy as jnp
from jax.experimental import pallas as pl
from jax.experimental.pallas import tpu as pltpu


# ----------------------------------------------------------------------------
# Fused discriminator kernel (single invocation, everything resident in VMEM).
# ----------------------------------------------------------------------------
def _make_kernel(T, Bp):
    def kernel(traj_ref, state_ref,
               th0, tc0, sh0, sc0, mh0, mc0,
               pos_bn_s, pos_bn_b, pos_w1, pos_b1, pos_w2, pos_b2,
               lig_bn_s, lig_bn_b, lig_w1, lig_b1, lig_w2, lig_b2,
               p_wx, p_wh, p_b,
               s_wx, s_wh, s_b,
               m_wxt, m_wxs, m_wh, m_b,
               mg_w1, mg_b1, mg_w2, mg_b2,
               out_ref):

        def embed(x, bn_s, bn_b, w1, b1, w2, b2):
            # nn.Sequential(BatchNorm1d, ReLU, Linear, ReLU, Linear, ReLU),
            # eval mode; BN pre-folded to scale/shift on the host.
            y = jnp.maximum(x * bn_s[...] + bn_b[...], 0.0)
            y = jnp.maximum(
                jnp.dot(y, w1[...], preferred_element_type=jnp.float32) + b1[...],
                0.0)
            y = jnp.maximum(
                jnp.dot(y, w2[...], preferred_element_type=jnp.float32) + b2[...],
                0.0)
            return y

        # --- phase 1: batched over all T*Bp rows (no recurrence) -------------
        x_pos = embed(traj_ref[...], pos_bn_s, pos_bn_b,
                      pos_w1, pos_b1, pos_w2, pos_b2)          # (T*Bp, 16)
        x_st = embed(state_ref[...], lig_bn_s, lig_bn_b,
                     lig_w1, lig_b1, lig_w2, lig_b2)           # (T*Bp, 16)
        # LSTM input projections for all timesteps at once (bias folded in).
        pre_pos_all = (jnp.dot(x_pos, p_wx[...],
                               preferred_element_type=jnp.float32) + p_b[...])
        pre_st_all = (jnp.dot(x_st, s_wx[...],
                              preferred_element_type=jnp.float32) + s_b[...])

        def lstm_gates(pre, c):
            # torch gate order i, f, g, o.
            H = c.shape[-1]
            i_g = jax.nn.sigmoid(pre[:, 0:H])
            f_g = jax.nn.sigmoid(pre[:, H:2 * H])
            g_g = jnp.tanh(pre[:, 2 * H:3 * H])
            o_g = jax.nn.sigmoid(pre[:, 3 * H:4 * H])
            c_new = f_g * c + i_g * g_g
            h_new = o_g * jnp.tanh(c_new)
            return h_new, c_new

        # --- phase 2: recurrence, h/c carried as values (vregs) ---------------
        t_h, t_c = th0[...], tc0[...]
        s_h, s_c = sh0[...], sc0[...]
        m_h, m_c = mh0[...], mc0[...]

        for t in range(T):                       # static, fully unrolled
            r0 = t * Bp                          # static row offset

            # pos_part_lstm
            pre = (pre_pos_all[r0:r0 + Bp, :]
                   + jnp.dot(t_h, p_wh[...],
                             preferred_element_type=jnp.float32))
            t_h, t_c = lstm_gates(pre, t_c)

            # state_part_lstm
            pre = (pre_st_all[r0:r0 + Bp, :]
                   + jnp.dot(s_h, s_wh[...],
                             preferred_element_type=jnp.float32))
            s_h, s_c = lstm_gates(pre, s_c)

            # merge_lstm on cat(t_h, s_h): split-weight form avoids lane concat.
            pre = (jnp.dot(t_h, m_wxt[...], preferred_element_type=jnp.float32)
                   + jnp.dot(s_h, m_wxs[...], preferred_element_type=jnp.float32)
                   + jnp.dot(m_h, m_wh[...], preferred_element_type=jnp.float32)
                   + m_b[...])
            m_h, m_c = lstm_gates(pre, m_c)

        # --- phase 3: merge_embedding head (Linear(64,32), Linear(32,1)) ------
        y = jnp.dot(m_h, mg_w1[...], preferred_element_type=jnp.float32) + mg_b1[...]
        y = jnp.dot(y, mg_w2[...], preferred_element_type=jnp.float32) + mg_b2[...]
        out_ref[...] = y

    return kernel


_WEIGHT_ORDER = (
    "pos_bn_s", "pos_bn_b", "pos_w1", "pos_b1", "pos_w2", "pos_b2",
    "lig_bn_s", "lig_bn_b", "lig_w1", "lig_b1", "lig_w2", "lig_b2",
    "p_wx", "p_wh", "p_b",
    "s_wx", "s_wh", "s_b",
    "m_wxt", "m_wxs", "m_wh", "m_b",
    "mg_w1", "mg_b1", "mg_w2", "mg_b2",
)


# ----------------------------------------------------------------------------
# Wrapper
# ----------------------------------------------------------------------------
def trajectory_discriminator_forward(params, traj, state, seq_start_end, rng):
    # traj: (T, B, 2), state: (T, B, light_input_size) -> (B, 1)
    del seq_start_end                     # present in torch signature, unused
    T, B, Cp = traj.shape
    Cs = state.shape[2]
    Bp = -(-B // 8) * 8                   # pad batch to a sublane multiple
    pad = Bp - B

    # Pad + flatten time/batch on the host so the kernel sees 2-D operands and
    # can do the per-timestep-independent matmuls as one big batched matmul.
    traj_p = jnp.pad(traj.astype(jnp.float32),
                     ((0, 0), (0, pad), (0, 0))).reshape(T * Bp, Cp)
    state_p = jnp.pad(state.astype(jnp.float32),
                      ((0, 0), (0, pad), (0, 0))).reshape(T * Bp, Cs)

    Hp = params["p_wh"].shape[0]          # part-LSTM hidden size
    Hm = params["m_wh"].shape[0]          # merge-LSTM hidden size

    # init_hidden_part_lstm / init_hidden_merge_lstm: randn initial states.
    ks = jax.random.split(rng, 6)
    init_states = [
        jax.random.normal(ks[0], (Bp, Hp), jnp.float32),
        jax.random.normal(ks[1], (Bp, Hp), jnp.float32),
        jax.random.normal(ks[2], (Bp, Hp), jnp.float32),
        jax.random.normal(ks[3], (Bp, Hp), jnp.float32),
        jax.random.normal(ks[4], (Bp, Hm), jnp.float32),
        jax.random.normal(ks[5], (Bp, Hm), jnp.float32),
    ]
    weights = [params[k] for k in _WEIGHT_ORDER]

    out_p = pl.pallas_call(
        _make_kernel(T, Bp),
        out_shape=jax.ShapeDtypeStruct((Bp, 1), jnp.float32),
        compiler_params=pltpu.CompilerParams(vmem_limit_bytes=32 << 20),
    )(traj_p, state_p, *init_states, *weights)
    return out_p[:B]


# ----------------------------------------------------------------------------
# Parameter initialization (shapes match the nn.Module __init__, stored
# transposed as (in, out) / (in, 4H) for row-major matmuls).
# ----------------------------------------------------------------------------
def init_params(key, cfg):
    keys = iter(jax.random.split(key, 32))

    def uniform(shape, s):
        return jax.random.uniform(next(keys), shape, jnp.float32, -s, s)

    def linear(fin, fout):
        s = 1.0 / math.sqrt(fin)
        return uniform((fin, fout), s), uniform((1, fout), s)

    def bn_fold(c):
        # eval-mode BatchNorm1d (gamma=1, beta=0, running_mean=0, running_var=1)
        # folded to scale / shift.
        gamma = jnp.ones((1, c), jnp.float32)
        beta = jnp.zeros((1, c), jnp.float32)
        rmean = jnp.zeros((1, c), jnp.float32)
        rvar = jnp.ones((1, c), jnp.float32)
        scale = gamma / jnp.sqrt(rvar + 1e-5)
        return scale, beta - rmean * scale

    def lstm(fin, hid):
        s = 1.0 / math.sqrt(hid)
        w_ih = uniform((fin, 4 * hid), s)
        w_hh = uniform((hid, 4 * hid), s)
        b = uniform((1, 4 * hid), s) + uniform((1, 4 * hid), s)   # b_ih + b_hh
        return w_ih, w_hh, b

    Hp = cfg["part_lstm_hidden_size"]
    Hm = cfg["merge_lstm_hidden_size"]

    p = {}
    # pos_embedding: BN(2), ReLU, Linear(2,32), ReLU, Linear(32,16), ReLU
    p["pos_bn_s"], p["pos_bn_b"] = bn_fold(2)
    p["pos_w1"], p["pos_b1"] = linear(2, 32)
    p["pos_w2"], p["pos_b2"] = linear(32, 16)
    # light_embedding: BN(4), ReLU, Linear(4,32), ReLU, Linear(32,16), ReLU
    p["lig_bn_s"], p["lig_bn_b"] = bn_fold(cfg["light_input_size"])
    p["lig_w1"], p["lig_b1"] = linear(cfg["light_input_size"], cfg["embedding_size"])
    p["lig_w2"], p["lig_b2"] = linear(cfg["embedding_size"], cfg["light_embedding_size"])
    # part LSTMs
    p["p_wx"], p["p_wh"], p["p_b"] = lstm(cfg["part_lstm_input_size"], Hp)
    p["s_wx"], p["s_wh"], p["s_b"] = lstm(cfg["part_lstm_input_size"], Hp)
    # merge LSTM: input weight split into the traj-h / state-h halves
    m_wx, p["m_wh"], p["m_b"] = lstm(cfg["merge_lstm_input_size"], Hm)
    p["m_wxt"], p["m_wxs"] = m_wx[:Hp], m_wx[Hp:]
    # merge_embedding: Linear(64,32), Linear(32,1)
    p["mg_w1"], p["mg_b1"] = linear(Hm, 32)
    p["mg_w2"], p["mg_b2"] = linear(32, 1)
    return p


if __name__ == "__main__":
    cfg = dict(
        obs_len=6, pred_len=2,
        part_lstm_input_size=16,          # = embedding output width
        part_lstm_hidden_size=32,
        merge_lstm_input_size=64,         # = 2 * part_lstm_hidden_size
        merge_lstm_hidden_size=64,        # merge_embedding expects 64
        dropout=0.0,
        light_input_size=4, embedding_size=32, light_embedding_size=16,
    )
    T = cfg["obs_len"] + cfg["pred_len"]
    batch = 5
    seq_start_end = [(0, 3), (3, 5)]

    key = jax.random.PRNGKey(0)
    pkey, dkey, hkey = jax.random.split(key, 3)
    params = init_params(pkey, cfg)

    d1, d2 = jax.random.split(dkey, 2)
    traj = jax.random.normal(d1, (T, batch, 2), jnp.float32)
    state = jax.random.uniform(d2, (T, batch, cfg["light_input_size"]),
                               jnp.float32, 0.0, 1.0)

    out = trajectory_discriminator_forward(params, traj, state, seq_start_end, hkey)
    out = jax.block_until_ready(out)
    assert out.shape == (batch, 1), out.shape
    assert bool(jnp.all(jnp.isfinite(out)))
    print("KERNEL_OK")
</pallas_src>

<mosaic_0001>
module attributes {stable_mosaic.version = 11 : i64} {
  func.func @kernel(%arg0: memref<64x2xf32, #tpu.memory_space<vmem>>, %arg1: memref<64x4xf32, #tpu.memory_space<vmem>>, %arg2: memref<8x32xf32, #tpu.memory_space<vmem>>, %arg3: memref<8x32xf32, #tpu.memory_space<vmem>>, %arg4: memref<8x32xf32, #tpu.memory_space<vmem>>, %arg5: memref<8x32xf32, #tpu.memory_space<vmem>>, %arg6: memref<8x64xf32, #tpu.memory_space<vmem>>, %arg7: memref<8x64xf32, #tpu.memory_space<vmem>>, %arg8: memref<1x2xf32, #tpu.memory_space<vmem>>, %arg9: memref<1x2xf32, #tpu.memory_space<vmem>>, %arg10: memref<2x32xf32, #tpu.memory_space<vmem>>, %arg11: memref<1x32xf32, #tpu.memory_space<vmem>>, %arg12: memref<32x16xf32, #tpu.memory_space<vmem>>, %arg13: memref<1x16xf32, #tpu.memory_space<vmem>>, %arg14: memref<1x4xf32, #tpu.memory_space<vmem>>, %arg15: memref<1x4xf32, #tpu.memory_space<vmem>>, %arg16: memref<4x32xf32, #tpu.memory_space<vmem>>, %arg17: memref<1x32xf32, #tpu.memory_space<vmem>>, %arg18: memref<32x16xf32, #tpu.memory_space<vmem>>, %arg19: memref<1x16xf32, #tpu.memory_space<vmem>>, %arg20: memref<16x128xf32, #tpu.memory_space<vmem>>, %arg21: memref<32x128xf32, #tpu.memory_space<vmem>>, %arg22: memref<1x128xf32, #tpu.memory_space<vmem>>, %arg23: memref<16x128xf32, #tpu.memory_space<vmem>>, %arg24: memref<32x128xf32, #tpu.memory_space<vmem>>, %arg25: memref<1x128xf32, #tpu.memory_space<vmem>>, %arg26: memref<32x256xf32, #tpu.memory_space<vmem>>, %arg27: memref<32x256xf32, #tpu.memory_space<vmem>>, %arg28: memref<64x256xf32, #tpu.memory_space<vmem>>, %arg29: memref<1x256xf32, #tpu.memory_space<vmem>>, %arg30: memref<64x32xf32, #tpu.memory_space<vmem>>, %arg31: memref<1x32xf32, #tpu.memory_space<vmem>>, %arg32: memref<32x1xf32, #tpu.memory_space<vmem>>, %arg33: memref<1x1xf32, #tpu.memory_space<vmem>>, %arg34: memref<8x1xf32, #tpu.memory_space<vmem>>) attributes {dimension_semantics = [], scalar_prefetch = 0 : i64, scratch_operands = 0 : i64, tpu.core_type = #tpu.core_type<tc>} {
    %c0 = arith.constant 0 : index
    %c0_0 = arith.constant 0 : index
    %0 = vector.load %arg0[%c0, %c0_0] : memref<64x2xf32, #tpu.memory_space<vmem>>, vector<64x2xf32>
    %c0_1 = arith.constant 0 : index
    %c0_2 = arith.constant 0 : index
    %1 = vector.load %arg8[%c0_1, %c0_2] : memref<1x2xf32, #tpu.memory_space<vmem>>, vector<1x2xf32>
    %2 = vector.broadcast %1 : vector<1x2xf32> to vector<64x2xf32>
    %3 = arith.mulf %0, %2 : vector<64x2xf32>
    %c0_3 = arith.constant 0 : index
    %c0_4 = arith.constant 0 : index
    %4 = vector.load %arg9[%c0_3, %c0_4] : memref<1x2xf32, #tpu.memory_space<vmem>>, vector<1x2xf32>
    %5 = vector.broadcast %4 : vector<1x2xf32> to vector<64x2xf32>
    %6 = arith.addf %3, %5 : vector<64x2xf32>
    %cst = arith.constant 0.000000e+00 : f32
    %7 = vector.broadcast %cst : f32 to vector<64x2xf32>
    %8 = arith.maximumf %6, %7 : vector<64x2xf32>
    %c0_5 = arith.constant 0 : index
    %c0_6 = arith.constant 0 : index
    %9 = vector.load %arg10[%c0_5, %c0_6] : memref<2x32xf32, #tpu.memory_space<vmem>>, vector<2x32xf32>
    %cst_7 = arith.constant dense<0.000000e+00> : vector<64x32xf32>
    %10 = tpu.matmul %8, %9, %cst_7 {dimension_numbers = #tpu.dot_dimension_numbers<[1], [0], [0], [1], [0, 0, 1, 1], [], []>} : vector<64x2xf32>, vector<2x32xf32>, vector<64x32xf32> -> vector<64x32xf32>
    %c0_8 = arith.constant 0 : index
    %c0_9 = arith.constant 0 : index
    %11 = vector.load %arg11[%c0_8, %c0_9] : memref<1x32xf32, #tpu.memory_space<vmem>>, vector<1x32xf32>
    %12 = vector.broadcast %11 : vector<1x32xf32> to vector<64x32xf32>
    %13 = arith.addf %10, %12 : vector<64x32xf32>
    %cst_10 = arith.constant 0.000000e+00 : f32
    %14 = vector.broadcast %cst_10 : f32 to vector<64x32xf32>
    %15 = arith.maximumf %13, %14 : vector<64x32xf32>
    %c0_11 = arith.constant 0 : index
    %c0_12 = arith.constant 0 : index
    %16 = vector.load %arg12[%c0_11, %c0_12] : memref<32x16xf32, #tpu.memory_space<vmem>>, vector<32x16xf32>
    %cst_13 = arith.constant dense<0.000000e+00> : vector<64x16xf32>
    %17 = tpu.matmul %15, %16, %cst_13 {dimension_numbers = #tpu.dot_dimension_numbers<[1], [0], [0], [1], [0, 0, 1, 1], [], []>} : vector<64x32xf32>, vector<32x16xf32>, vector<64x16xf32> -> vector<64x16xf32>
    %c0_14 = arith.constant 0 : index
    %c0_15 = arith.constant 0 : index
    %18 = vector.load %arg13[%c0_14, %c0_15] : memref<1x16xf32, #tpu.memory_space<vmem>>, vector<1x16xf32>
    %19 = vector.broadcast %18 : vector<1x16xf32> to vector<64x16xf32>
    %20 = arith.addf %17, %19 : vector<64x16xf32>
    %cst_16 = arith.constant 0.000000e+00 : f32
    %21 = vector.broadcast %cst_16 : f32 to vector<64x16xf32>
    %22 = arith.maximumf %20, %21 : vector<64x16xf32>
    %c0_17 = arith.constant 0 : index
    %c0_18 = arith.constant 0 : index
    %23 = vector.load %arg1[%c0_17, %c0_18] : memref<64x4xf32, #tpu.memory_space<vmem>>, vector<64x4xf32>
    %c0_19 = arith.constant 0 : index
    %c0_20 = arith.constant 0 : index
    %24 = vector.load %arg14[%c0_19, %c0_20] : memref<1x4xf32, #tpu.memory_space<vmem>>, vector<1x4xf32>
    %25 = vector.broadcast %24 : vector<1x4xf32> to vector<64x4xf32>
    %26 = arith.mulf %23, %25 : vector<64x4xf32>
    %c0_21 = arith.constant 0 : index
    %c0_22 = arith.constant 0 : index
    %27 = vector.load %arg15[%c0_21, %c0_22] : memref<1x4xf32, #tpu.memory_space<vmem>>, vector<1x4xf32>
    %28 = vector.broadcast %27 : vector<1x4xf32> to vector<64x4xf32>
    %29 = arith.addf %26, %28 : vector<64x4xf32>
    %cst_23 = arith.constant 0.000000e+00 : f32
    %30 = vector.broadcast %cst_23 : f32 to vector<64x4xf32>
    %31 = arith.maximumf %29, %30 : vector<64x4xf32>
    %c0_24 = arith.constant 0 : index
    %c0_25 = arith.constant 0 : index
    %32 = vector.load %arg16[%c0_24, %c0_25] : memref<4x32xf32, #tpu.memory_space<vmem>>, vector<4x32xf32>
    %cst_26 = arith.constant dense<0.000000e+00> : vector<64x32xf32>
    %33 = tpu.matmul %31, %32, %cst_26 {dimension_numbers = #tpu.dot_dimension_numbers<[1], [0], [0], [1], [0, 0, 1, 1], [], []>} : vector<64x4xf32>, vector<4x32xf32>, vector<64x32xf32> -> vector<64x32xf32>
    %c0_27 = arith.constant 0 : index
    %c0_28 = arith.constant 0 : index
    %34 = vector.load %arg17[%c0_27, %c0_28] : memref<1x32xf32, #tpu.memory_space<vmem>>, vector<1x32xf32>
    %35 = vector.broadcast %34 : vector<1x32xf32> to vector<64x32xf32>
    %36 = arith.addf %33, %35 : vector<64x32xf32>
    %cst_29 = arith.constant 0.000000e+00 : f32
    %37 = vector.broadcast %cst_29 : f32 to vector<64x32xf32>
    %38 = arith.maximumf %36, %37 : vector<64x32xf32>
    %c0_30 = arith.constant 0 : index
    %c0_31 = arith.constant 0 : index
    %39 = vector.load %arg18[%c0_30, %c0_31] : memref<32x16xf32, #tpu.memory_space<vmem>>, vector<32x16xf32>
    %cst_32 = arith.constant dense<0.000000e+00> : vector<64x16xf32>
    %40 = tpu.matmul %38, %39, %cst_32 {dimension_numbers = #tpu.dot_dimension_numbers<[1], [0], [0], [1], [0, 0, 1, 1], [], []>} : vector<64x32xf32>, vector<32x16xf32>, vector<64x16xf32> -> vector<64x16xf32>
    %c0_33 = arith.constant 0 : index
    %c0_34 = arith.constant 0 : index
    %41 = vector.load %arg19[%c0_33, %c0_34] : memref<1x16xf32, #tpu.memory_space<vmem>>, vector<1x16xf32>
    %42 = vector.broadcast %41 : vector<1x16xf32> to vector<64x16xf32>
    %43 = arith.addf %40, %42 : vector<64x16xf32>
    %cst_35 = arith.constant 0.000000e+00 : f32
    %44 = vector.broadcast %cst_35 : f32 to vector<64x16xf32>
    %45 = arith.maximumf %43, %44 : vector<64x16xf32>
    %c0_36 = arith.constant 0 : index
    %c0_37 = arith.constant 0 : index
    %46 = vector.load %arg20[%c0_36, %c0_37] : memref<16x128xf32, #tpu.memory_space<vmem>>, vector<16x128xf32>
    %cst_38 = arith.constant dense<0.000000e+00> : vector<64x128xf32>
    %47 = tpu.matmul %22, %46, %cst_38 {dimension_numbers = #tpu.dot_dimension_numbers<[1], [0], [0], [1], [0, 0, 1, 1], [], []>} : vector<64x16xf32>, vector<16x128xf32>, vector<64x128xf32> -> vector<64x128xf32>
    %c0_39 = arith.constant 0 : index
    %c0_40 = arith.constant 0 : index
    %48 = vector.load %arg22[%c0_39, %c0_40] : memref<1x128xf32, #tpu.memory_space<vmem>>, vector<1x128xf32>
    %49 = vector.broadcast %48 : vector<1x128xf32> to vector<64x128xf32>
    %50 = arith.addf %47, %49 : vector<64x128xf32>
    %c0_41 = arith.constant 0 : index
    %c0_42 = arith.constant 0 : index
    %51 = vector.load %arg23[%c0_41, %c0_42] : memref<16x128xf32, #tpu.memory_space<vmem>>, vector<16x128xf32>
    %cst_43 = arith.constant dense<0.000000e+00> : vector<64x128xf32>
    %52 = tpu.matmul %45, %51, %cst_43 {dimension_numbers = #tpu.dot_dimension_numbers<[1], [0], [0], [1], [0, 0, 1, 1], [], []>} : vector<64x16xf32>, vector<16x128xf32>, vector<64x128xf32> -> vector<64x128xf32>
    %c0_44 = arith.constant 0 : index
    %c0_45 = arith.constant 0 : index
    %53 = vector.load %arg25[%c0_44, %c0_45] : memref<1x128xf32, #tpu.memory_space<vmem>>, vector<1x128xf32>
    %54 = vector.broadcast %53 : vector<1x128xf32> to vector<64x128xf32>
    %55 = arith.addf %52, %54 : vector<64x128xf32>
    %c0_46 = arith.constant 0 : index
    %c0_47 = arith.constant 0 : index
    %56 = vector.load %arg2[%c0_46, %c0_47] : memref<8x32xf32, #tpu.memory_space<vmem>>, vector<8x32xf32>
    %c0_48 = arith.constant 0 : index
    %c0_49 = arith.constant 0 : index
    %57 = vector.load %arg3[%c0_48, %c0_49] : memref<8x32xf32, #tpu.memory_space<vmem>>, vector<8x32xf32>
    %c0_50 = arith.constant 0 : index
    %c0_51 = arith.constant 0 : index
    %58 = vector.load %arg4[%c0_50, %c0_51] : memref<8x32xf32, #tpu.memory_space<vmem>>, vector<8x32xf32>
    %c0_52 = arith.constant 0 : index
    %c0_53 = arith.constant 0 : index
    %59 = vector.load %arg5[%c0_52, %c0_53] : memref<8x32xf32, #tpu.memory_space<vmem>>, vector<8x32xf32>
    %c0_54 = arith.constant 0 : index
    %c0_55 = arith.constant 0 : index
    %60 = vector.load %arg6[%c0_54, %c0_55] : memref<8x64xf32, #tpu.memory_space<vmem>>, vector<8x64xf32>
    %c0_56 = arith.constant 0 : index
    %c0_57 = arith.constant 0 : index
    %61 = vector.load %arg7[%c0_56, %c0_57] : memref<8x64xf32, #tpu.memory_space<vmem>>, vector<8x64xf32>
    %62 = vector.extract_strided_slice %50 {offsets = [0, 0], sizes = [8, 128], strides = [1, 1]} : vector<64x128xf32> to vector<8x128xf32>
    %c0_58 = arith.constant 0 : index
    %c0_59 = arith.constant 0 : index
    %63 = vector.load %arg21[%c0_58, %c0_59] : memref<32x128xf32, #tpu.memory_space<vmem>>, vector<32x128xf32>
    %cst_60 = arith.constant dense<0.000000e+00> : vector<8x128xf32>
    %64 = tpu.matmul %56, %63, %cst_60 {dimension_numbers = #tpu.dot_dimension_numbers<[1], [0], [0], [1], [0, 0, 1, 1], [], []>} : vector<8x32xf32>, vector<32x128xf32>, vector<8x128xf32> -> vector<8x128xf32>
    %65 = arith.addf %62, %64 : vector<8x128xf32>
    %66 = vector.extract_strided_slice %65 {offsets = [0, 0], sizes = [8, 32], strides = [1, 1]} : vector<8x128xf32> to vector<8x32xf32>
    %67 = arith.negf %66 : vector<8x32xf32>
    %68 = math.exp %67 : vector<8x32xf32>
    %cst_61 = arith.constant 1.000000e+00 : f32
    %69 = vector.broadcast %cst_61 : f32 to vector<8x32xf32>
    %70 = arith.addf %69, %68 : vector<8x32xf32>
    %71 = arith.divf %69, %70 : vector<8x32xf32>
    %72 = vector.extract_strided_slice %65 {offsets = [0, 32], sizes = [8, 32], strides = [1, 1]} : vector<8x128xf32> to vector<8x32xf32>
    %73 = arith.negf %72 : vector<8x32xf32>
    %74 = math.exp %73 : vector<8x32xf32>
    %cst_62 = arith.constant 1.000000e+00 : f32
    %75 = vector.broadcast %cst_62 : f32 to vector<8x32xf32>
    %76 = arith.addf %75, %74 : vector<8x32xf32>
    %77 = arith.divf %75, %76 : vector<8x32xf32>
    %78 = vector.extract_strided_slice %65 {offsets = [0, 64], sizes = [8, 32], strides = [1, 1]} : vector<8x128xf32> to vector<8x32xf32>
    %79 = math.tanh %78 : vector<8x32xf32>
    %80 = vector.extract_strided_slice %65 {offsets = [0, 96], sizes = [8, 32], strides = [1, 1]} : vector<8x128xf32> to vector<8x32xf32>
    %81 = arith.negf %80 : vector<8x32xf32>
    %82 = math.exp %81 : vector<8x32xf32>
    %cst_63 = arith.constant 1.000000e+00 : f32
    %83 = vector.broadcast %cst_63 : f32 to vector<8x32xf32>
    %84 = arith.addf %83, %82 : vector<8x32xf32>
    %85 = arith.divf %83, %84 : vector<8x32xf32>
    %86 = arith.mulf %77, %57 : vector<8x32xf32>
    %87 = arith.mulf %71, %79 : vector<8x32xf32>
    %88 = arith.addf %86, %87 : vector<8x32xf32>
    %89 = math.tanh %88 : vector<8x32xf32>
    %90 = arith.mulf %85, %89 : vector<8x32xf32>
    %91 = vector.extract_strided_slice %55 {offsets = [0, 0], sizes = [8, 128], strides = [1, 1]} : vector<64x128xf32> to vector<8x128xf32>
    %c0_64 = arith.constant 0 : index
    %c0_65 = arith.constant 0 : index
    %92 = vector.load %arg24[%c0_64, %c0_65] : memref<32x128xf32, #tpu.memory_space<vmem>>, vector<32x128xf32>
    %cst_66 = arith.constant dense<0.000000e+00> : vector<8x128xf32>
    %93 = tpu.matmul %58, %92, %cst_66 {dimension_numbers = #tpu.dot_dimension_numbers<[1], [0], [0], [1], [0, 0, 1, 1], [], []>} : vector<8x32xf32>, vector<32x128xf32>, vector<8x128xf32> -> vector<8x128xf32>
    %94 = arith.addf %91, %93 : vector<8x128xf32>
    %95 = vector.extract_strided_slice %94 {offsets = [0, 0], sizes = [8, 32], strides = [1, 1]} : vector<8x128xf32> to vector<8x32xf32>
    %96 = arith.negf %95 : vector<8x32xf32>
    %97 = math.exp %96 : vector<8x32xf32>
    %cst_67 = arith.constant 1.000000e+00 : f32
    %98 = vector.broadcast %cst_67 : f32 to vector<8x32xf32>
    %99 = arith.addf %98, %97 : vector<8x32xf32>
    %100 = arith.divf %98, %99 : vector<8x32xf32>
    %101 = vector.extract_strided_slice %94 {offsets = [0, 32], sizes = [8, 32], strides = [1, 1]} : vector<8x128xf32> to vector<8x32xf32>
    %102 = arith.negf %101 : vector<8x32xf32>
    %103 = math.exp %102 : vector<8x32xf32>
    %cst_68 = arith.constant 1.000000e+00 : f32
    %104 = vector.broadcast %cst_68 : f32 to vector<8x32xf32>
    %105 = arith.addf %104, %103 : vector<8x32xf32>
    %106 = arith.divf %104, %105 : vector<8x32xf32>
    %107 = vector.extract_strided_slice %94 {offsets = [0, 64], sizes = [8, 32], strides = [1, 1]} : vector<8x128xf32> to vector<8x32xf32>
    %108 = math.tanh %107 : vector<8x32xf32>
    %109 = vector.extract_strided_slice %94 {offsets = [0, 96], sizes = [8, 32], strides = [1, 1]} : vector<8x128xf32> to vector<8x32xf32>
    %110 = arith.negf %109 : vector<8x32xf32>
    %111 = math.exp %110 : vector<8x32xf32>
    %cst_69 = arith.constant 1.000000e+00 : f32
    %112 = vector.broadcast %cst_69 : f32 to vector<8x32xf32>
    %113 = arith.addf %112, %111 : vector<8x32xf32>
    %114 = arith.divf %112, %113 : vector<8x32xf32>
    %115 = arith.mulf %106, %59 : vector<8x32xf32>
    %116 = arith.mulf %100, %108 : vector<8x32xf32>
    %117 = arith.addf %115, %116 : vector<8x32xf32>
    %118 = math.tanh %117 : vector<8x32xf32>
    %119 = arith.mulf %114, %118 : vector<8x32xf32>
    %c0_70 = arith.constant 0 : index
    %c0_71 = arith.constant 0 : index
    %120 = vector.load %arg26[%c0_70, %c0_71] : memref<32x256xf32, #tpu.memory_space<vmem>>, vector<32x256xf32>
    %cst_72 = arith.constant dense<0.000000e+00> : vector<8x256xf32>
    %121 = tpu.matmul %90, %120, %cst_72 {dimension_numbers = #tpu.dot_dimension_numbers<[1], [0], [0], [1], [0, 0, 1, 1], [], []>} : vector<8x32xf32>, vector<32x256xf32>, vector<8x256xf32> -> vector<8x256xf32>
    %c0_73 = arith.constant 0 : index
    %c0_74 = arith.constant 0 : index
    %122 = vector.load %arg27[%c0_73, %c0_74] : memref<32x256xf32, #tpu.memory_space<vmem>>, vector<32x256xf32>
    %cst_75 = arith.constant dense<0.000000e+00> : vector<8x256xf32>
    %123 = tpu.matmul %119, %122, %cst_75 {dimension_numbers = #tpu.dot_dimension_numbers<[1], [0], [0], [1], [0, 0, 1, 1], [], []>} : vector<8x32xf32>, vector<32x256xf32>, vector<8x256xf32> -> vector<8x256xf32>
    %124 = arith.addf %121, %123 : vector<8x256xf32>
    %c0_76 = arith.constant 0 : index
    %c0_77 = arith.constant 0 : index
    %125 = vector.load %arg28[%c0_76, %c0_77] : memref<64x256xf32, #tpu.memory_space<vmem>>, vector<64x256xf32>
    %cst_78 = arith.constant dense<0.000000e+00> : vector<8x256xf32>
    %126 = tpu.matmul %60, %125, %cst_78 {dimension_numbers = #tpu.dot_dimension_numbers<[1], [0], [0], [1], [0, 0, 1, 1], [], []>} : vector<8x64xf32>, vector<64x256xf32>, vector<8x256xf32> -> vector<8x256xf32>
    %127 = arith.addf %124, %126 : vector<8x256xf32>
    %c0_79 = arith.constant 0 : index
    %c0_80 = arith.constant 0 : index
    %128 = vector.load %arg29[%c0_79, %c0_80] : memref<1x256xf32, #tpu.memory_space<vmem>>, vector<1x256xf32>
    %129 = vector.broadcast %128 : vector<1x256xf32> to vector<8x256xf32>
    %130 = arith.addf %127, %129 : vector<8x256xf32>
    %131 = vector.extract_strided_slice %130 {offsets = [0, 0], sizes = [8, 64], strides = [1, 1]} : vector<8x256xf32> to vector<8x64xf32>
    %132 = arith.negf %131 : vector<8x64xf32>
    %133 = math.exp %132 : vector<8x64xf32>
    %cst_81 = arith.constant 1.000000e+00 : f32
    %134 = vector.broadcast %cst_81 : f32 to vector<8x64xf32>
    %135 = arith.addf %134, %133 : vector<8x64xf32>
    %136 = arith.divf %134, %135 : vector<8x64xf32>
    %137 = vector.extract_strided_slice %130 {offsets = [0, 64], sizes = [8, 64], strides = [1, 1]} : vector<8x256xf32> to vector<8x64xf32>
    %138 = arith.negf %137 : vector<8x64xf32>
    %139 = math.exp %138 : vector<8x64xf32>
    %cst_82 = arith.constant 1.000000e+00 : f32
    %140 = vector.broadcast %cst_82 : f32 to vector<8x64xf32>
    %141 = arith.addf %140, %139 : vector<8x64xf32>
    %142 = arith.divf %140, %141 : vector<8x64xf32>
    %143 = vector.extract_strided_slice %130 {offsets = [0, 128], sizes = [8, 64], strides = [1, 1]} : vector<8x256xf32> to vector<8x64xf32>
    %144 = math.tanh %143 : vector<8x64xf32>
    %145 = vector.extract_strided_slice %130 {offsets = [0, 192], sizes = [8, 64], strides = [1, 1]} : vector<8x256xf32> to vector<8x64xf32>
    %146 = arith.negf %145 : vector<8x64xf32>
    %147 = math.exp %146 : vector<8x64xf32>
    %cst_83 = arith.constant 1.000000e+00 : f32
    %148 = vector.broadcast %cst_83 : f32 to vector<8x64xf32>
    %149 = arith.addf %148, %147 : vector<8x64xf32>
    %150 = arith.divf %148, %149 : vector<8x64xf32>
    %151 = arith.mulf %142, %61 : vector<8x64xf32>
    %152 = arith.mulf %136, %144 : vector<8x64xf32>
    %153 = arith.addf %151, %152 : vector<8x64xf32>
    %154 = math.tanh %153 : vector<8x64xf32>
    %155 = arith.mulf %150, %154 : vector<8x64xf32>
    %156 = vector.extract_strided_slice %50 {offsets = [8, 0], sizes = [8, 128], strides = [1, 1]} : vector<64x128xf32> to vector<8x128xf32>
    %c0_84 = arith.constant 0 : index
    %c0_85 = arith.constant 0 : index
    %157 = vector.load %arg21[%c0_84, %c0_85] : memref<32x128xf32, #tpu.memory_space<vmem>>, vector<32x128xf32>
    %cst_86 = arith.constant dense<0.000000e+00> : vector<8x128xf32>
    %158 = tpu.matmul %90, %157, %cst_86 {dimension_numbers = #tpu.dot_dimension_numbers<[1], [0], [0], [1], [0, 0, 1, 1], [], []>} : vector<8x32xf32>, vector<32x128xf32>, vector<8x128xf32> -> vector<8x128xf32>
    %159 = arith.addf %156, %158 : vector<8x128xf32>
    %160 = vector.extract_strided_slice %159 {offsets = [0, 0], sizes = [8, 32], strides = [1, 1]} : vector<8x128xf32> to vector<8x32xf32>
    %161 = arith.negf %160 : vector<8x32xf32>
    %162 = math.exp %161 : vector<8x32xf32>
    %cst_87 = arith.constant 1.000000e+00 : f32
    %163 = vector.broadcast %cst_87 : f32 to vector<8x32xf32>
    %164 = arith.addf %163, %162 : vector<8x32xf32>
    %165 = arith.divf %163, %164 : vector<8x32xf32>
    %166 = vector.extract_strided_slice %159 {offsets = [0, 32], sizes = [8, 32], strides = [1, 1]} : vector<8x128xf32> to vector<8x32xf32>
    %167 = arith.negf %166 : vector<8x32xf32>
    %168 = math.exp %167 : vector<8x32xf32>
    %cst_88 = arith.constant 1.000000e+00 : f32
    %169 = vector.broadcast %cst_88 : f32 to vector<8x32xf32>
    %170 = arith.addf %169, %168 : vector<8x32xf32>
    %171 = arith.divf %169, %170 : vector<8x32xf32>
    %172 = vector.extract_strided_slice %159 {offsets = [0, 64], sizes = [8, 32], strides = [1, 1]} : vector<8x128xf32> to vector<8x32xf32>
    %173 = math.tanh %172 : vector<8x32xf32>
    %174 = vector.extract_strided_slice %159 {offsets = [0, 96], sizes = [8, 32], strides = [1, 1]} : vector<8x128xf32> to vector<8x32xf32>
    %175 = arith.negf %174 : vector<8x32xf32>
    %176 = math.exp %175 : vector<8x32xf32>
    %cst_89 = arith.constant 1.000000e+00 : f32
    %177 = vector.broadcast %cst_89 : f32 to vector<8x32xf32>
    %178 = arith.addf %177, %176 : vector<8x32xf32>
    %179 = arith.divf %177, %178 : vector<8x32xf32>
    %180 = arith.mulf %171, %88 : vector<8x32xf32>
    %181 = arith.mulf %165, %173 : vector<8x32xf32>
    %182 = arith.addf %180, %181 : vector<8x32xf32>
    %183 = math.tanh %182 : vector<8x32xf32>
    %184 = arith.mulf %179, %183 : vector<8x32xf32>
    %185 = vector.extract_strided_slice %55 {offsets = [8, 0], sizes = [8, 128], strides = [1, 1]} : vector<64x128xf32> to vector<8x128xf32>
    %c0_90 = arith.constant 0 : index
    %c0_91 = arith.constant 0 : index
    %186 = vector.load %arg24[%c0_90, %c0_91] : memref<32x128xf32, #tpu.memory_space<vmem>>, vector<32x128xf32>
    %cst_92 = arith.constant dense<0.000000e+00> : vector<8x128xf32>
    %187 = tpu.matmul %119, %186, %cst_92 {dimension_numbers = #tpu.dot_dimension_numbers<[1], [0], [0], [1], [0, 0, 1, 1], [], []>} : vector<8x32xf32>, vector<32x128xf32>, vector<8x128xf32> -> vector<8x128xf32>
    %188 = arith.addf %185, %187 : vector<8x128xf32>
    %189 = vector.extract_strided_slice %188 {offsets = [0, 0], sizes = [8, 32], strides = [1, 1]} : vector<8x128xf32> to vector<8x32xf32>
    %190 = arith.negf %189 : vector<8x32xf32>
    %191 = math.exp %190 : vector<8x32xf32>
    %cst_93 = arith.constant 1.000000e+00 : f32
    %192 = vector.broadcast %cst_93 : f32 to vector<8x32xf32>
    %193 = arith.addf %192, %191 : vector<8x32xf32>
    %194 = arith.divf %192, %193 : vector<8x32xf32>
    %195 = vector.extract_strided_slice %188 {offsets = [0, 32], sizes = [8, 32], strides = [1, 1]} : vector<8x128xf32> to vector<8x32xf32>
    %196 = arith.negf %195 : vector<8x32xf32>
    %197 = math.exp %196 : vector<8x32xf32>
    %cst_94 = arith.constant 1.000000e+00 : f32
    %198 = vector.broadcast %cst_94 : f32 to vector<8x32xf32>
    %199 = arith.addf %198, %197 : vector<8x32xf32>
    %200 = arith.divf %198, %199 : vector<8x32xf32>
    %201 = vector.extract_strided_slice %188 {offsets = [0, 64], sizes = [8, 32], strides = [1, 1]} : vector<8x128xf32> to vector<8x32xf32>
    %202 = math.tanh %201 : vector<8x32xf32>
    %203 = vector.extract_strided_slice %188 {offsets = [0, 96], sizes = [8, 32], strides = [1, 1]} : vector<8x128xf32> to vector<8x32xf32>
    %204 = arith.negf %203 : vector<8x32xf32>
    %205 = math.exp %204 : vector<8x32xf32>
    %cst_95 = arith.constant 1.000000e+00 : f32
    %206 = vector.broadcast %cst_95 : f32 to vector<8x32xf32>
    %207 = arith.addf %206, %205 : vector<8x32xf32>
    %208 = arith.divf %206, %207 : vector<8x32xf32>
    %209 = arith.mulf %200, %117 : vector<8x32xf32>
    %210 = arith.mulf %194, %202 : vector<8x32xf32>
    %211 = arith.addf %209, %210 : vector<8x32xf32>
    %212 = math.tanh %211 : vector<8x32xf32>
    %213 = arith.mulf %208, %212 : vector<8x32xf32>
    %c0_96 = arith.constant 0 : index
    %c0_97 = arith.constant 0 : index
    %214 = vector.load %arg26[%c0_96, %c0_97] : memref<32x256xf32, #tpu.memory_space<vmem>>, vector<32x256xf32>
    %cst_98 = arith.constant dense<0.000000e+00> : vector<8x256xf32>
    %215 = tpu.matmul %184, %214, %cst_98 {dimension_numbers = #tpu.dot_dimension_numbers<[1], [0], [0], [1], [0, 0, 1, 1], [], []>} : vector<8x32xf32>, vector<32x256xf32>, vector<8x256xf32> -> vector<8x256xf32>
    %c0_99 = arith.constant 0 : index
    %c0_100 = arith.constant 0 : index
    %216 = vector.load %arg27[%c0_99, %c0_100] : memref<32x256xf32, #tpu.memory_space<vmem>>, vector<32x256xf32>
    %cst_101 = arith.constant dense<0.000000e+00> : vector<8x256xf32>
    %217 = tpu.matmul %213, %216, %cst_101 {dimension_numbers = #tpu.dot_dimension_numbers<[1], [0], [0], [1], [0, 0, 1, 1], [], []>} : vector<8x32xf32>, vector<32x256xf32>, vector<8x256xf32> -> vector<8x256xf32>
    %218 = arith.addf %215, %217 : vector<8x256xf32>
    %c0_102 = arith.constant 0 : index
    %c0_103 = arith.constant 0 : index
    %219 = vector.load %arg28[%c0_102, %c0_103] : memref<64x256xf32, #tpu.memory_space<vmem>>, vector<64x256xf32>
    %cst_104 = arith.constant dense<0.000000e+00> : vector<8x256xf32>
    %220 = tpu.matmul %155, %219, %cst_104 {dimension_numbers = #tpu.dot_dimension_numbers<[1], [0], [0], [1], [0, 0, 1, 1], [], []>} : vector<8x64xf32>, vector<64x256xf32>, vector<8x256xf32> -> vector<8x256xf32>
    %221 = arith.addf %218, %220 : vector<8x256xf32>
    %c0_105 = arith.constant 0 : index
    %c0_106 = arith.constant 0 : index
    %222 = vector.load %arg29[%c0_105, %c0_106] : memref<1x256xf32, #tpu.memory_space<vmem>>, vector<1x256xf32>
    %223 = vector.broadcast %222 : vector<1x256xf32> to vector<8x256xf32>
    %224 = arith.addf %221, %223 : vector<8x256xf32>
    %225 = vector.extract_strided_slice %224 {offsets = [0, 0], sizes = [8, 64], strides = [1, 1]} : vector<8x256xf32> to vector<8x64xf32>
    %226 = arith.negf %225 : vector<8x64xf32>
    %227 = math.exp %226 : vector<8x64xf32>
    %cst_107 = arith.constant 1.000000e+00 : f32
    %228 = vector.broadcast %cst_107 : f32 to vector<8x64xf32>
    %229 = arith.addf %228, %227 : vector<8x64xf32>
    %230 = arith.divf %228, %229 : vector<8x64xf32>
    %231 = vector.extract_strided_slice %224 {offsets = [0, 64], sizes = [8, 64], strides = [1, 1]} : vector<8x256xf32> to vector<8x64xf32>
    %232 = arith.negf %231 : vector<8x64xf32>
    %233 = math.exp %232 : vector<8x64xf32>
    %cst_108 = arith.constant 1.000000e+00 : f32
    %234 = vector.broadcast %cst_108 : f32 to vector<8x64xf32>
    %235 = arith.addf %234, %233 : vector<8x64xf32>
    %236 = arith.divf %234, %235 : vector<8x64xf32>
    %237 = vector.extract_strided_slice %224 {offsets = [0, 128], sizes = [8, 64], strides = [1, 1]} : vector<8x256xf32> to vector<8x64xf32>
    %238 = math.tanh %237 : vector<8x64xf32>
    %239 = vector.extract_strided_slice %224 {offsets = [0, 192], sizes = [8, 64], strides = [1, 1]} : vector<8x256xf32> to vector<8x64xf32>
    %240 = arith.negf %239 : vector<8x64xf32>
    %241 = math.exp %240 : vector<8x64xf32>
    %cst_109 = arith.constant 1.000000e+00 : f32
    %242 = vector.broadcast %cst_109 : f32 to vector<8x64xf32>
    %243 = arith.addf %242, %241 : vector<8x64xf32>
    %244 = arith.divf %242, %243 : vector<8x64xf32>
    %245 = arith.mulf %236, %153 : vector<8x64xf32>
    %246 = arith.mulf %230, %238 : vector<8x64xf32>
    %247 = arith.addf %245, %246 : vector<8x64xf32>
    %248 = math.tanh %247 : vector<8x64xf32>
    %249 = arith.mulf %244, %248 : vector<8x64xf32>
    %250 = vector.extract_strided_slice %50 {offsets = [16, 0], sizes = [8, 128], strides = [1, 1]} : vector<64x128xf32> to vector<8x128xf32>
    %c0_110 = arith.constant 0 : index
    %c0_111 = arith.constant 0 : index
    %251 = vector.load %arg21[%c0_110, %c0_111] : memref<32x128xf32, #tpu.memory_space<vmem>>, vector<32x128xf32>
    %cst_112 = arith.constant dense<0.000000e+00> : vector<8x128xf32>
    %252 = tpu.matmul %184, %251, %cst_112 {dimension_numbers = #tpu.dot_dimension_numbers<[1], [0], [0], [1], [0, 0, 1, 1], [], []>} : vector<8x32xf32>, vector<32x128xf32>, vector<8x128xf32> -> vector<8x128xf32>
    %253 = arith.addf %250, %252 : vector<8x128xf32>
    %254 = vector.extract_strided_slice %253 {offsets = [0, 0], sizes = [8, 32], strides = [1, 1]} : vector<8x128xf32> to vector<8x32xf32>
    %255 = arith.negf %254 : vector<8x32xf32>
    %256 = math.exp %255 : vector<8x32xf32>
    %cst_113 = arith.constant 1.000000e+00 : f32
    %257 = vector.broadcast %cst_113 : f32 to vector<8x32xf32>
    %258 = arith.addf %257, %256 : vector<8x32xf32>
    %259 = arith.divf %257, %258 : vector<8x32xf32>
    %260 = vector.extract_strided_slice %253 {offsets = [0, 32], sizes = [8, 32], strides = [1, 1]} : vector<8x128xf32> to vector<8x32xf32>
    %261 = arith.negf %260 : vector<8x32xf32>
    %262 = math.exp %261 : vector<8x32xf32>
    %cst_114 = arith.constant 1.000000e+00 : f32
    %263 = vector.broadcast %cst_114 : f32 to vector<8x32xf32>
    %264 = arith.addf %263, %262 : vector<8x32xf32>
    %265 = arith.divf %263, %264 : vector<8x32xf32>
    %266 = vector.extract_strided_slice %253 {offsets = [0, 64], sizes = [8, 32], strides = [1, 1]} : vector<8x128xf32> to vector<8x32xf32>
    %267 = math.tanh %266 : vector<8x32xf32>
    %268 = vector.extract_strided_slice %253 {offsets = [0, 96], sizes = [8, 32], strides = [1, 1]} : vector<8x128xf32> to vector<8x32xf32>
    %269 = arith.negf %268 : vector<8x32xf32>
    %270 = math.exp %269 : vector<8x32xf32>
    %cst_115 = arith.constant 1.000000e+00 : f32
    %271 = vector.broadcast %cst_115 : f32 to vector<8x32xf32>
    %272 = arith.addf %271, %270 : vector<8x32xf32>
    %273 = arith.divf %271, %272 : vector<8x32xf32>
    %274 = arith.mulf %265, %182 : vector<8x32xf32>
    %275 = arith.mulf %259, %267 : vector<8x32xf32>
    %276 = arith.addf %274, %275 : vector<8x32xf32>
    %277 = math.tanh %276 : vector<8x32xf32>
    %278 = arith.mulf %273, %277 : vector<8x32xf32>
    %279 = vector.extract_strided_slice %55 {offsets = [16, 0], sizes = [8, 128], strides = [1, 1]} : vector<64x128xf32> to vector<8x128xf32>
    %c0_116 = arith.constant 0 : index
    %c0_117 = arith.constant 0 : index
    %280 = vector.load %arg24[%c0_116, %c0_117] : memref<32x128xf32, #tpu.memory_space<vmem>>, vector<32x128xf32>
    %cst_118 = arith.constant dense<0.000000e+00> : vector<8x128xf32>
    %281 = tpu.matmul %213, %280, %cst_118 {dimension_numbers = #tpu.dot_dimension_numbers<[1], [0], [0], [1], [0, 0, 1, 1], [], []>} : vector<8x32xf32>, vector<32x128xf32>, vector<8x128xf32> -> vector<8x128xf32>
    %282 = arith.addf %279, %281 : vector<8x128xf32>
    %283 = vector.extract_strided_slice %282 {offsets = [0, 0], sizes = [8, 32], strides = [1, 1]} : vector<8x128xf32> to vector<8x32xf32>
    %284 = arith.negf %283 : vector<8x32xf32>
    %285 = math.exp %284 : vector<8x32xf32>
    %cst_119 = arith.constant 1.000000e+00 : f32
    %286 = vector.broadcast %cst_119 : f32 to vector<8x32xf32>
    %287 = arith.addf %286, %285 : vector<8x32xf32>
    %288 = arith.divf %286, %287 : vector<8x32xf32>
    %289 = vector.extract_strided_slice %282 {offsets = [0, 32], sizes = [8, 32], strides = [1, 1]} : vector<8x128xf32> to vector<8x32xf32>
    %290 = arith.negf %289 : vector<8x32xf32>
    %291 = math.exp %290 : vector<8x32xf32>
    %cst_120 = arith.constant 1.000000e+00 : f32
    %292 = vector.broadcast %cst_120 : f32 to vector<8x32xf32>
    %293 = arith.addf %292, %291 : vector<8x32xf32>
    %294 = arith.divf %292, %293 : vector<8x32xf32>
    %295 = vector.extract_strided_slice %282 {offsets = [0, 64], sizes = [8, 32], strides = [1, 1]} : vector<8x128xf32> to vector<8x32xf32>
    %296 = math.tanh %295 : vector<8x32xf32>
    %297 = vector.extract_strided_slice %282 {offsets = [0, 96], sizes = [8, 32], strides = [1, 1]} : vector<8x128xf32> to vector<8x32xf32>
    %298 = arith.negf %297 : vector<8x32xf32>
    %299 = math.exp %298 : vector<8x32xf32>
    %cst_121 = arith.constant 1.000000e+00 : f32
    %300 = vector.broadcast %cst_121 : f32 to vector<8x32xf32>
    %301 = arith.addf %300, %299 : vector<8x32xf32>
    %302 = arith.divf %300, %301 : vector<8x32xf32>
    %303 = arith.mulf %294, %211 : vector<8x32xf32>
    %304 = arith.mulf %288, %296 : vector<8x32xf32>
    %305 = arith.addf %303, %304 : vector<8x32xf32>
    %306 = math.tanh %305 : vector<8x32xf32>
    %307 = arith.mulf %302, %306 : vector<8x32xf32>
    %c0_122 = arith.constant 0 : index
    %c0_123 = arith.constant 0 : index
    %308 = vector.load %arg26[%c0_122, %c0_123] : memref<32x256xf32, #tpu.memory_space<vmem>>, vector<32x256xf32>
    %cst_124 = arith.constant dense<0.000000e+00> : vector<8x256xf32>
    %309 = tpu.matmul %278, %308, %cst_124 {dimension_numbers = #tpu.dot_dimension_numbers<[1], [0], [0], [1], [0, 0, 1, 1], [], []>} : vector<8x32xf32>, vector<32x256xf32>, vector<8x256xf32> -> vector<8x256xf32>
    %c0_125 = arith.constant 0 : index
    %c0_126 = arith.constant 0 : index
    %310 = vector.load %arg27[%c0_125, %c0_126] : memref<32x256xf32, #tpu.memory_space<vmem>>, vector<32x256xf32>
    %cst_127 = arith.constant dense<0.000000e+00> : vector<8x256xf32>
    %311 = tpu.matmul %307, %310, %cst_127 {dimension_numbers = #tpu.dot_dimension_numbers<[1], [0], [0], [1], [0, 0, 1, 1], [], []>} : vector<8x32xf32>, vector<32x256xf32>, vector<8x256xf32> -> vector<8x256xf32>
    %312 = arith.addf %309, %311 : vector<8x256xf32>
    %c0_128 = arith.constant 0 : index
    %c0_129 = arith.constant 0 : index
    %313 = vector.load %arg28[%c0_128, %c0_129] : memref<64x256xf32, #tpu.memory_space<vmem>>, vector<64x256xf32>
    %cst_130 = arith.constant dense<0.000000e+00> : vector<8x256xf32>
    %314 = tpu.matmul %249, %313, %cst_130 {dimension_numbers = #tpu.dot_dimension_numbers<[1], [0], [0], [1], [0, 0, 1, 1], [], []>} : vector<8x64xf32>, vector<64x256xf32>, vector<8x256xf32> -> vector<8x256xf32>
    %315 = arith.addf %312, %314 : vector<8x256xf32>
    %c0_131 = arith.constant 0 : index
    %c0_132 = arith.constant 0 : index
    %316 = vector.load %arg29[%c0_131, %c0_132] : memref<1x256xf32, #tpu.memory_space<vmem>>, vector<1x256xf32>
    %317 = vector.broadcast %316 : vector<1x256xf32> to vector<8x256xf32>
    %318 = arith.addf %315, %317 : vector<8x256xf32>
    %319 = vector.extract_strided_slice %318 {offsets = [0, 0], sizes = [8, 64], strides = [1, 1]} : vector<8x256xf32> to vector<8x64xf32>
    %320 = arith.negf %319 : vector<8x64xf32>
    %321 = math.exp %320 : vector<8x64xf32>
    %cst_133 = arith.constant 1.000000e+00 : f32
    %322 = vector.broadcast %cst_133 : f32 to vector<8x64xf32>
    %323 = arith.addf %322, %321 : vector<8x64xf32>
    %324 = arith.divf %322, %323 : vector<8x64xf32>
    %325 = vector.extract_strided_slice %318 {offsets = [0, 64], sizes = [8, 64], strides = [1, 1]} : vector<8x256xf32> to vector<8x64xf32>
    %326 = arith.negf %325 : vector<8x64xf32>
    %327 = math.exp %326 : vector<8x64xf32>
    %cst_134 = arith.constant 1.000000e+00 : f32
    %328 = vector.broadcast %cst_134 : f32 to vector<8x64xf32>
    %329 = arith.addf %328, %327 : vector<8x64xf32>
    %330 = arith.divf %328, %329 : vector<8x64xf32>
    %331 = vector.extract_strided_slice %318 {offsets = [0, 128], sizes = [8, 64], strides = [1, 1]} : vector<8x256xf32> to vector<8x64xf32>
    %332 = math.tanh %331 : vector<8x64xf32>
    %333 = vector.extract_strided_slice %318 {offsets = [0, 192], sizes = [8, 64], strides = [1, 1]} : vector<8x256xf32> to vector<8x64xf32>
    %334 = arith.negf %333 : vector<8x64xf32>
    %335 = math.exp %334 : vector<8x64xf32>
    %cst_135 = arith.constant 1.000000e+00 : f32
    %336 = vector.broadcast %cst_135 : f32 to vector<8x64xf32>
    %337 = arith.addf %336, %335 : vector<8x64xf32>
    %338 = arith.divf %336, %337 : vector<8x64xf32>
    %339 = arith.mulf %330, %247 : vector<8x64xf32>
    %340 = arith.mulf %324, %332 : vector<8x64xf32>
    %341 = arith.addf %339, %340 : vector<8x64xf32>
    %342 = math.tanh %341 : vector<8x64xf32>
    %343 = arith.mulf %338, %342 : vector<8x64xf32>
    %344 = vector.extract_strided_slice %50 {offsets = [24, 0], sizes = [8, 128], strides = [1, 1]} : vector<64x128xf32> to vector<8x128xf32>
    %c0_136 = arith.constant 0 : index
    %c0_137 = arith.constant 0 : index
    %345 = vector.load %arg21[%c0_136, %c0_137] : memref<32x128xf32, #tpu.memory_space<vmem>>, vector<32x128xf32>
    %cst_138 = arith.constant dense<0.000000e+00> : vector<8x128xf32>
    %346 = tpu.matmul %278, %345, %cst_138 {dimension_numbers = #tpu.dot_dimension_numbers<[1], [0], [0], [1], [0, 0, 1, 1], [], []>} : vector<8x32xf32>, vector<32x128xf32>, vector<8x128xf32> -> vector<8x128xf32>
    %347 = arith.addf %344, %346 : vector<8x128xf32>
    %348 = vector.extract_strided_slice %347 {offsets = [0, 0], sizes = [8, 32], strides = [1, 1]} : vector<8x128xf32> to vector<8x32xf32>
    %349 = arith.negf %348 : vector<8x32xf32>
    %350 = math.exp %349 : vector<8x32xf32>
    %cst_139 = arith.constant 1.000000e+00 : f32
    %351 = vector.broadcast %cst_139 : f32 to vector<8x32xf32>
    %352 = arith.addf %351, %350 : vector<8x32xf32>
    %353 = arith.divf %351, %352 : vector<8x32xf32>
    %354 = vector.extract_strided_slice %347 {offsets = [0, 32], sizes = [8, 32], strides = [1, 1]} : vector<8x128xf32> to vector<8x32xf32>
    %355 = arith.negf %354 : vector<8x32xf32>
    %356 = math.exp %355 : vector<8x32xf32>
    %cst_140 = arith.constant 1.000000e+00 : f32
    %357 = vector.broadcast %cst_140 : f32 to vector<8x32xf32>
    %358 = arith.addf %357, %356 : vector<8x32xf32>
    %359 = arith.divf %357, %358 : vector<8x32xf32>
    %360 = vector.extract_strided_slice %347 {offsets = [0, 64], sizes = [8, 32], strides = [1, 1]} : vector<8x128xf32> to vector<8x32xf32>
    %361 = math.tanh %360 : vector<8x32xf32>
    %362 = vector.extract_strided_slice %347 {offsets = [0, 96], sizes = [8, 32], strides = [1, 1]} : vector<8x128xf32> to vector<8x32xf32>
    %363 = arith.negf %362 : vector<8x32xf32>
    %364 = math.exp %363 : vector<8x32xf32>
    %cst_141 = arith.constant 1.000000e+00 : f32
    %365 = vector.broadcast %cst_141 : f32 to vector<8x32xf32>
    %366 = arith.addf %365, %364 : vector<8x32xf32>
    %367 = arith.divf %365, %366 : vector<8x32xf32>
    %368 = arith.mulf %359, %276 : vector<8x32xf32>
    %369 = arith.mulf %353, %361 : vector<8x32xf32>
    %370 = arith.addf %368, %369 : vector<8x32xf32>
    %371 = math.tanh %370 : vector<8x32xf32>
    %372 = arith.mulf %367, %371 : vector<8x32xf32>
    %373 = vector.extract_strided_slice %55 {offsets = [24, 0], sizes = [8, 128], strides = [1, 1]} : vector<64x128xf32> to vector<8x128xf32>
    %c0_142 = arith.constant 0 : index
    %c0_143 = arith.constant 0 : index
    %374 = vector.load %arg24[%c0_142, %c0_143] : memref<32x128xf32, #tpu.memory_space<vmem>>, vector<32x128xf32>
    %cst_144 = arith.constant dense<0.000000e+00> : vector<8x128xf32>
    %375 = tpu.matmul %307, %374, %cst_144 {dimension_numbers = #tpu.dot_dimension_numbers<[1], [0], [0], [1], [0, 0, 1, 1], [], []>} : vector<8x32xf32>, vector<32x128xf32>, vector<8x128xf32> -> vector<8x128xf32>
    %376 = arith.addf %373, %375 : vector<8x128xf32>
    %377 = vector.extract_strided_slice %376 {offsets = [0, 0], sizes = [8, 32], strides = [1, 1]} : vector<8x128xf32> to vector<8x32xf32>
    %378 = arith.negf %377 : vector<8x32xf32>
    %379 = math.exp %378 : vector<8x32xf32>
    %cst_145 = arith.constant 1.000000e+00 : f32
    %380 = vector.broadcast %cst_145 : f32 to vector<8x32xf32>
    %381 = arith.addf %380, %379 : vector<8x32xf32>
    %382 = arith.divf %380, %381 : vector<8x32xf32>
    %383 = vector.extract_strided_slice %376 {offsets = [0, 32], sizes = [8, 32], strides = [1, 1]} : vector<8x128xf32> to vector<8x32xf32>
    %384 = arith.negf %383 : vector<8x32xf32>
    %385 = math.exp %384 : vector<8x32xf32>
    %cst_146 = arith.constant 1.000000e+00 : f32
    %386 = vector.broadcast %cst_146 : f32 to vector<8x32xf32>
    %387 = arith.addf %386, %385 : vector<8x32xf32>
    %388 = arith.divf %386, %387 : vector<8x32xf32>
    %389 = vector.extract_strided_slice %376 {offsets = [0, 64], sizes = [8, 32], strides = [1, 1]} : vector<8x128xf32> to vector<8x32xf32>
    %390 = math.tanh %389 : vector<8x32xf32>
    %391 = vector.extract_strided_slice %376 {offsets = [0, 96], sizes = [8, 32], strides = [1, 1]} : vector<8x128xf32> to vector<8x32xf32>
    %392 = arith.negf %391 : vector<8x32xf32>
    %393 = math.exp %392 : vector<8x32xf32>
    %cst_147 = arith.constant 1.000000e+00 : f32
    %394 = vector.broadcast %cst_147 : f32 to vector<8x32xf32>
    %395 = arith.addf %394, %393 : vector<8x32xf32>
    %396 = arith.divf %394, %395 : vector<8x32xf32>
    %397 = arith.mulf %388, %305 : vector<8x32xf32>
    %398 = arith.mulf %382, %390 : vector<8x32xf32>
    %399 = arith.addf %397, %398 : vector<8x32xf32>
    %400 = math.tanh %399 : vector<8x32xf32>
    %401 = arith.mulf %396, %400 : vector<8x32xf32>
    %c0_148 = arith.constant 0 : index
    %c0_149 = arith.constant 0 : index
    %402 = vector.load %arg26[%c0_148, %c0_149] : memref<32x256xf32, #tpu.memory_space<vmem>>, vector<32x256xf32>
    %cst_150 = arith.constant dense<0.000000e+00> : vector<8x256xf32>
    %403 = tpu.matmul %372, %402, %cst_150 {dimension_numbers = #tpu.dot_dimension_numbers<[1], [0], [0], [1], [0, 0, 1, 1], [], []>} : vector<8x32xf32>, vector<32x256xf32>, vector<8x256xf32> -> vector<8x256xf32>
    %c0_151 = arith.constant 0 : index
    %c0_152 = arith.constant 0 : index
    %404 = vector.load %arg27[%c0_151, %c0_152] : memref<32x256xf32, #tpu.memory_space<vmem>>, vector<32x256xf32>
    %cst_153 = arith.constant dense<0.000000e+00> : vector<8x256xf32>
    %405 = tpu.matmul %401, %404, %cst_153 {dimension_numbers = #tpu.dot_dimension_numbers<[1], [0], [0], [1], [0, 0, 1, 1], [], []>} : vector<8x32xf32>, vector<32x256xf32>, vector<8x256xf32> -> vector<8x256xf32>
    %406 = arith.addf %403, %405 : vector<8x256xf32>
    %c0_154 = arith.constant 0 : index
    %c0_155 = arith.constant 0 : index
    %407 = vector.load %arg28[%c0_154, %c0_155] : memref<64x256xf32, #tpu.memory_space<vmem>>, vector<64x256xf32>
    %cst_156 = arith.constant dense<0.000000e+00> : vector<8x256xf32>
    %408 = tpu.matmul %343, %407, %cst_156 {dimension_numbers = #tpu.dot_dimension_numbers<[1], [0], [0], [1], [0, 0, 1, 1], [], []>} : vector<8x64xf32>, vector<64x256xf32>, vector<8x256xf32> -> vector<8x256xf32>
    %409 = arith.addf %406, %408 : vector<8x256xf32>
    %c0_157 = arith.constant 0 : index
    %c0_158 = arith.constant 0 : index
    %410 = vector.load %arg29[%c0_157, %c0_158] : memref<1x256xf32, #tpu.memory_space<vmem>>, vector<1x256xf32>
    %411 = vector.broadcast %410 : vector<1x256xf32> to vector<8x256xf32>
    %412 = arith.addf %409, %411 : vector<8x256xf32>
    %413 = vector.extract_strided_slice %412 {offsets = [0, 0], sizes = [8, 64], strides = [1, 1]} : vector<8x256xf32> to vector<8x64xf32>
    %414 = arith.negf %413 : vector<8x64xf32>
    %415 = math.exp %414 : vector<8x64xf32>
    %cst_159 = arith.constant 1.000000e+00 : f32
    %416 = vector.broadcast %cst_159 : f32 to vector<8x64xf32>
    %417 = arith.addf %416, %415 : vector<8x64xf32>
    %418 = arith.divf %416, %417 : vector<8x64xf32>
    %419 = vector.extract_strided_slice %412 {offsets = [0, 64], sizes = [8, 64], strides = [1, 1]} : vector<8x256xf32> to vector<8x64xf32>
    %420 = arith.negf %419 : vector<8x64xf32>
    %421 = math.exp %420 : vector<8x64xf32>
    %cst_160 = arith.constant 1.000000e+00 : f32
    %422 = vector.broadcast %cst_160 : f32 to vector<8x64xf32>
    %423 = arith.addf %422, %421 : vector<8x64xf32>
    %424 = arith.divf %422, %423 : vector<8x64xf32>
    %425 = vector.extract_strided_slice %412 {offsets = [0, 128], sizes = [8, 64], strides = [1, 1]} : vector<8x256xf32> to vector<8x64xf32>
    %426 = math.tanh %425 : vector<8x64xf32>
    %427 = vector.extract_strided_slice %412 {offsets = [0, 192], sizes = [8, 64], strides = [1, 1]} : vector<8x256xf32> to vector<8x64xf32>
    %428 = arith.negf %427 : vector<8x64xf32>
    %429 = math.exp %428 : vector<8x64xf32>
    %cst_161 = arith.constant 1.000000e+00 : f32
    %430 = vector.broadcast %cst_161 : f32 to vector<8x64xf32>
    %431 = arith.addf %430, %429 : vector<8x64xf32>
    %432 = arith.divf %430, %431 : vector<8x64xf32>
    %433 = arith.mulf %424, %341 : vector<8x64xf32>
    %434 = arith.mulf %418, %426 : vector<8x64xf32>
    %435 = arith.addf %433, %434 : vector<8x64xf32>
    %436 = math.tanh %435 : vector<8x64xf32>
    %437 = arith.mulf %432, %436 : vector<8x64xf32>
    %438 = vector.extract_strided_slice %50 {offsets = [32, 0], sizes = [8, 128], strides = [1, 1]} : vector<64x128xf32> to vector<8x128xf32>
    %c0_162 = arith.constant 0 : index
    %c0_163 = arith.constant 0 : index
    %439 = vector.load %arg21[%c0_162, %c0_163] : memref<32x128xf32, #tpu.memory_space<vmem>>, vector<32x128xf32>
    %cst_164 = arith.constant dense<0.000000e+00> : vector<8x128xf32>
    %440 = tpu.matmul %372, %439, %cst_164 {dimension_numbers = #tpu.dot_dimension_numbers<[1], [0], [0], [1], [0, 0, 1, 1], [], []>} : vector<8x32xf32>, vector<32x128xf32>, vector<8x128xf32> -> vector<8x128xf32>
    %441 = arith.addf %438, %440 : vector<8x128xf32>
    %442 = vector.extract_strided_slice %441 {offsets = [0, 0], sizes = [8, 32], strides = [1, 1]} : vector<8x128xf32> to vector<8x32xf32>
    %443 = arith.negf %442 : vector<8x32xf32>
    %444 = math.exp %443 : vector<8x32xf32>
    %cst_165 = arith.constant 1.000000e+00 : f32
    %445 = vector.broadcast %cst_165 : f32 to vector<8x32xf32>
    %446 = arith.addf %445, %444 : vector<8x32xf32>
    %447 = arith.divf %445, %446 : vector<8x32xf32>
    %448 = vector.extract_strided_slice %441 {offsets = [0, 32], sizes = [8, 32], strides = [1, 1]} : vector<8x128xf32> to vector<8x32xf32>
    %449 = arith.negf %448 : vector<8x32xf32>
    %450 = math.exp %449 : vector<8x32xf32>
    %cst_166 = arith.constant 1.000000e+00 : f32
    %451 = vector.broadcast %cst_166 : f32 to vector<8x32xf32>
    %452 = arith.addf %451, %450 : vector<8x32xf32>
    %453 = arith.divf %451, %452 : vector<8x32xf32>
    %454 = vector.extract_strided_slice %441 {offsets = [0, 64], sizes = [8, 32], strides = [1, 1]} : vector<8x128xf32> to vector<8x32xf32>
    %455 = math.tanh %454 : vector<8x32xf32>
    %456 = vector.extract_strided_slice %441 {offsets = [0, 96], sizes = [8, 32], strides = [1, 1]} : vector<8x128xf32> to vector<8x32xf32>
    %457 = arith.negf %456 : vector<8x32xf32>
    %458 = math.exp %457 : vector<8x32xf32>
    %cst_167 = arith.constant 1.000000e+00 : f32
    %459 = vector.broadcast %cst_167 : f32 to vector<8x32xf32>
    %460 = arith.addf %459, %458 : vector<8x32xf32>
    %461 = arith.divf %459, %460 : vector<8x32xf32>
    %462 = arith.mulf %453, %370 : vector<8x32xf32>
    %463 = arith.mulf %447, %455 : vector<8x32xf32>
    %464 = arith.addf %462, %463 : vector<8x32xf32>
    %465 = math.tanh %464 : vector<8x32xf32>
    %466 = arith.mulf %461, %465 : vector<8x32xf32>
    %467 = vector.extract_strided_slice %55 {offsets = [32, 0], sizes = [8, 128], strides = [1, 1]} : vector<64x128xf32> to vector<8x128xf32>
    %c0_168 = arith.constant 0 : index
    %c0_169 = arith.constant 0 : index
    %468 = vector.load %arg24[%c0_168, %c0_169] : memref<32x128xf32, #tpu.memory_space<vmem>>, vector<32x128xf32>
    %cst_170 = arith.constant dense<0.000000e+00> : vector<8x128xf32>
    %469 = tpu.matmul %401, %468, %cst_170 {dimension_numbers = #tpu.dot_dimension_numbers<[1], [0], [0], [1], [0, 0, 1, 1], [], []>} : vector<8x32xf32>, vector<32x128xf32>, vector<8x128xf32> -> vector<8x128xf32>
    %470 = arith.addf %467, %469 : vector<8x128xf32>
    %471 = vector.extract_strided_slice %470 {offsets = [0, 0], sizes = [8, 32], strides = [1, 1]} : vector<8x128xf32> to vector<8x32xf32>
    %472 = arith.negf %471 : vector<8x32xf32>
    %473 = math.exp %472 : vector<8x32xf32>
    %cst_171 = arith.constant 1.000000e+00 : f32
    %474 = vector.broadcast %cst_171 : f32 to vector<8x32xf32>
    %475 = arith.addf %474, %473 : vector<8x32xf32>
    %476 = arith.divf %474, %475 : vector<8x32xf32>
    %477 = vector.extract_strided_slice %470 {offsets = [0, 32], sizes = [8, 32], strides = [1, 1]} : vector<8x128xf32> to vector<8x32xf32>
    %478 = arith.negf %477 : vector<8x32xf32>
    %479 = math.exp %478 : vector<8x32xf32>
    %cst_172 = arith.constant 1.000000e+00 : f32
    %480 = vector.broadcast %cst_172 : f32 to vector<8x32xf32>
    %481 = arith.addf %480, %479 : vector<8x32xf32>
    %482 = arith.divf %480, %481 : vector<8x32xf32>
    %483 = vector.extract_strided_slice %470 {offsets = [0, 64], sizes = [8, 32], strides = [1, 1]} : vector<8x128xf32> to vector<8x32xf32>
    %484 = math.tanh %483 : vector<8x32xf32>
    %485 = vector.extract_strided_slice %470 {offsets = [0, 96], sizes = [8, 32], strides = [1, 1]} : vector<8x128xf32> to vector<8x32xf32>
    %486 = arith.negf %485 : vector<8x32xf32>
    %487 = math.exp %486 : vector<8x32xf32>
    %cst_173 = arith.constant 1.000000e+00 : f32
    %488 = vector.broadcast %cst_173 : f32 to vector<8x32xf32>
    %489 = arith.addf %488, %487 : vector<8x32xf32>
    %490 = arith.divf %488, %489 : vector<8x32xf32>
    %491 = arith.mulf %482, %399 : vector<8x32xf32>
    %492 = arith.mulf %476, %484 : vector<8x32xf32>
    %493 = arith.addf %491, %492 : vector<8x32xf32>
    %494 = math.tanh %493 : vector<8x32xf32>
    %495 = arith.mulf %490, %494 : vector<8x32xf32>
    %c0_174 = arith.constant 0 : index
    %c0_175 = arith.constant 0 : index
    %496 = vector.load %arg26[%c0_174, %c0_175] : memref<32x256xf32, #tpu.memory_space<vmem>>, vector<32x256xf32>
    %cst_176 = arith.constant dense<0.000000e+00> : vector<8x256xf32>
    %497 = tpu.matmul %466, %496, %cst_176 {dimension_numbers = #tpu.dot_dimension_numbers<[1], [0], [0], [1], [0, 0, 1, 1], [], []>} : vector<8x32xf32>, vector<32x256xf32>, vector<8x256xf32> -> vector<8x256xf32>
    %c0_177 = arith.constant 0 : index
    %c0_178 = arith.constant 0 : index
    %498 = vector.load %arg27[%c0_177, %c0_178] : memref<32x256xf32, #tpu.memory_space<vmem>>, vector<32x256xf32>
    %cst_179 = arith.constant dense<0.000000e+00> : vector<8x256xf32>
    %499 = tpu.matmul %495, %498, %cst_179 {dimension_numbers = #tpu.dot_dimension_numbers<[1], [0], [0], [1], [0, 0, 1, 1], [], []>} : vector<8x32xf32>, vector<32x256xf32>, vector<8x256xf32> -> vector<8x256xf32>
    %500 = arith.addf %497, %499 : vector<8x256xf32>
    %c0_180 = arith.constant 0 : index
    %c0_181 = arith.constant 0 : index
    %501 = vector.load %arg28[%c0_180, %c0_181] : memref<64x256xf32, #tpu.memory_space<vmem>>, vector<64x256xf32>
    %cst_182 = arith.constant dense<0.000000e+00> : vector<8x256xf32>
    %502 = tpu.matmul %437, %501, %cst_182 {dimension_numbers = #tpu.dot_dimension_numbers<[1], [0], [0], [1], [0, 0, 1, 1], [], []>} : vector<8x64xf32>, vector<64x256xf32>, vector<8x256xf32> -> vector<8x256xf32>
    %503 = arith.addf %500, %502 : vector<8x256xf32>
    %c0_183 = arith.constant 0 : index
    %c0_184 = arith.constant 0 : index
    %504 = vector.load %arg29[%c0_183, %c0_184] : memref<1x256xf32, #tpu.memory_space<vmem>>, vector<1x256xf32>
    %505 = vector.broadcast %504 : vector<1x256xf32> to vector<8x256xf32>
    %506 = arith.addf %503, %505 : vector<8x256xf32>
    %507 = vector.extract_strided_slice %506 {offsets = [0, 0], sizes = [8, 64], strides = [1, 1]} : vector<8x256xf32> to vector<8x64xf32>
    %508 = arith.negf %507 : vector<8x64xf32>
    %509 = math.exp %508 : vector<8x64xf32>
    %cst_185 = arith.constant 1.000000e+00 : f32
    %510 = vector.broadcast %cst_185 : f32 to vector<8x64xf32>
    %511 = arith.addf %510, %509 : vector<8x64xf32>
    %512 = arith.divf %510, %511 : vector<8x64xf32>
    %513 = vector.extract_strided_slice %506 {offsets = [0, 64], sizes = [8, 64], strides = [1, 1]} : vector<8x256xf32> to vector<8x64xf32>
    %514 = arith.negf %513 : vector<8x64xf32>
    %515 = math.exp %514 : vector<8x64xf32>
    %cst_186 = arith.constant 1.000000e+00 : f32
    %516 = vector.broadcast %cst_186 : f32 to vector<8x64xf32>
    %517 = arith.addf %516, %515 : vector<8x64xf32>
    %518 = arith.divf %516, %517 : vector<8x64xf32>
    %519 = vector.extract_strided_slice %506 {offsets = [0, 128], sizes = [8, 64], strides = [1, 1]} : vector<8x256xf32> to vector<8x64xf32>
    %520 = math.tanh %519 : vector<8x64xf32>
    %521 = vector.extract_strided_slice %506 {offsets = [0, 192], sizes = [8, 64], strides = [1, 1]} : vector<8x256xf32> to vector<8x64xf32>
    %522 = arith.negf %521 : vector<8x64xf32>
    %523 = math.exp %522 : vector<8x64xf32>
    %cst_187 = arith.constant 1.000000e+00 : f32
    %524 = vector.broadcast %cst_187 : f32 to vector<8x64xf32>
    %525 = arith.addf %524, %523 : vector<8x64xf32>
    %526 = arith.divf %524, %525 : vector<8x64xf32>
    %527 = arith.mulf %518, %435 : vector<8x64xf32>
    %528 = arith.mulf %512, %520 : vector<8x64xf32>
    %529 = arith.addf %527, %528 : vector<8x64xf32>
    %530 = math.tanh %529 : vector<8x64xf32>
    %531 = arith.mulf %526, %530 : vector<8x64xf32>
    %532 = vector.extract_strided_slice %50 {offsets = [40, 0], sizes = [8, 128], strides = [1, 1]} : vector<64x128xf32> to vector<8x128xf32>
    %c0_188 = arith.constant 0 : index
    %c0_189 = arith.constant 0 : index
    %533 = vector.load %arg21[%c0_188, %c0_189] : memref<32x128xf32, #tpu.memory_space<vmem>>, vector<32x128xf32>
    %cst_190 = arith.constant dense<0.000000e+00> : vector<8x128xf32>
    %534 = tpu.matmul %466, %533, %cst_190 {dimension_numbers = #tpu.dot_dimension_numbers<[1], [0], [0], [1], [0, 0, 1, 1], [], []>} : vector<8x32xf32>, vector<32x128xf32>, vector<8x128xf32> -> vector<8x128xf32>
    %535 = arith.addf %532, %534 : vector<8x128xf32>
    %536 = vector.extract_strided_slice %535 {offsets = [0, 0], sizes = [8, 32], strides = [1, 1]} : vector<8x128xf32> to vector<8x32xf32>
    %537 = arith.negf %536 : vector<8x32xf32>
    %538 = math.exp %537 : vector<8x32xf32>
    %cst_191 = arith.constant 1.000000e+00 : f32
    %539 = vector.broadcast %cst_191 : f32 to vector<8x32xf32>
    %540 = arith.addf %539, %538 : vector<8x32xf32>
    %541 = arith.divf %539, %540 : vector<8x32xf32>
    %542 = vector.extract_strided_slice %535 {offsets = [0, 32], sizes = [8, 32], strides = [1, 1]} : vector<8x128xf32> to vector<8x32xf32>
    %543 = arith.negf %542 : vector<8x32xf32>
    %544 = math.exp %543 : vector<8x32xf32>
    %cst_192 = arith.constant 1.000000e+00 : f32
    %545 = vector.broadcast %cst_192 : f32 to vector<8x32xf32>
    %546 = arith.addf %545, %544 : vector<8x32xf32>
    %547 = arith.divf %545, %546 : vector<8x32xf32>
    %548 = vector.extract_strided_slice %535 {offsets = [0, 64], sizes = [8, 32], strides = [1, 1]} : vector<8x128xf32> to vector<8x32xf32>
    %549 = math.tanh %548 : vector<8x32xf32>
    %550 = vector.extract_strided_slice %535 {offsets = [0, 96], sizes = [8, 32], strides = [1, 1]} : vector<8x128xf32> to vector<8x32xf32>
    %551 = arith.negf %550 : vector<8x32xf32>
    %552 = math.exp %551 : vector<8x32xf32>
    %cst_193 = arith.constant 1.000000e+00 : f32
    %553 = vector.broadcast %cst_193 : f32 to vector<8x32xf32>
    %554 = arith.addf %553, %552 : vector<8x32xf32>
    %555 = arith.divf %553, %554 : vector<8x32xf32>
    %556 = arith.mulf %547, %464 : vector<8x32xf32>
    %557 = arith.mulf %541, %549 : vector<8x32xf32>
    %558 = arith.addf %556, %557 : vector<8x32xf32>
    %559 = math.tanh %558 : vector<8x32xf32>
    %560 = arith.mulf %555, %559 : vector<8x32xf32>
    %561 = vector.extract_strided_slice %55 {offsets = [40, 0], sizes = [8, 128], strides = [1, 1]} : vector<64x128xf32> to vector<8x128xf32>
    %c0_194 = arith.constant 0 : index
    %c0_195 = arith.constant 0 : index
    %562 = vector.load %arg24[%c0_194, %c0_195] : memref<32x128xf32, #tpu.memory_space<vmem>>, vector<32x128xf32>
    %cst_196 = arith.constant dense<0.000000e+00> : vector<8x128xf32>
    %563 = tpu.matmul %495, %562, %cst_196 {dimension_numbers = #tpu.dot_dimension_numbers<[1], [0], [0], [1], [0, 0, 1, 1], [], []>} : vector<8x32xf32>, vector<32x128xf32>, vector<8x128xf32> -> vector<8x128xf32>
    %564 = arith.addf %561, %563 : vector<8x128xf32>
    %565 = vector.extract_strided_slice %564 {offsets = [0, 0], sizes = [8, 32], strides = [1, 1]} : vector<8x128xf32> to vector<8x32xf32>
    %566 = arith.negf %565 : vector<8x32xf32>
    %567 = math.exp %566 : vector<8x32xf32>
    %cst_197 = arith.constant 1.000000e+00 : f32
    %568 = vector.broadcast %cst_197 : f32 to vector<8x32xf32>
    %569 = arith.addf %568, %567 : vector<8x32xf32>
    %570 = arith.divf %568, %569 : vector<8x32xf32>
    %571 = vector.extract_strided_slice %564 {offsets = [0, 32], sizes = [8, 32], strides = [1, 1]} : vector<8x128xf32> to vector<8x32xf32>
    %572 = arith.negf %571 : vector<8x32xf32>
    %573 = math.exp %572 : vector<8x32xf32>
    %cst_198 = arith.constant 1.000000e+00 : f32
    %574 = vector.broadcast %cst_198 : f32 to vector<8x32xf32>
    %575 = arith.addf %574, %573 : vector<8x32xf32>
    %576 = arith.divf %574, %575 : vector<8x32xf32>
    %577 = vector.extract_strided_slice %564 {offsets = [0, 64], sizes = [8, 32], strides = [1, 1]} : vector<8x128xf32> to vector<8x32xf32>
    %578 = math.tanh %577 : vector<8x32xf32>
    %579 = vector.extract_strided_slice %564 {offsets = [0, 96], sizes = [8, 32], strides = [1, 1]} : vector<8x128xf32> to vector<8x32xf32>
    %580 = arith.negf %579 : vector<8x32xf32>
    %581 = math.exp %580 : vector<8x32xf32>
    %cst_199 = arith.constant 1.000000e+00 : f32
    %582 = vector.broadcast %cst_199 : f32 to vector<8x32xf32>
    %583 = arith.addf %582, %581 : vector<8x32xf32>
    %584 = arith.divf %582, %583 : vector<8x32xf32>
    %585 = arith.mulf %576, %493 : vector<8x32xf32>
    %586 = arith.mulf %570, %578 : vector<8x32xf32>
    %587 = arith.addf %585, %586 : vector<8x32xf32>
    %588 = math.tanh %587 : vector<8x32xf32>
    %589 = arith.mulf %584, %588 : vector<8x32xf32>
    %c0_200 = arith.constant 0 : index
    %c0_201 = arith.constant 0 : index
    %590 = vector.load %arg26[%c0_200, %c0_201] : memref<32x256xf32, #tpu.memory_space<vmem>>, vector<32x256xf32>
    %cst_202 = arith.constant dense<0.000000e+00> : vector<8x256xf32>
    %591 = tpu.matmul %560, %590, %cst_202 {dimension_numbers = #tpu.dot_dimension_numbers<[1], [0], [0], [1], [0, 0, 1, 1], [], []>} : vector<8x32xf32>, vector<32x256xf32>, vector<8x256xf32> -> vector<8x256xf32>
    %c0_203 = arith.constant 0 : index
    %c0_204 = arith.constant 0 : index
    %592 = vector.load %arg27[%c0_203, %c0_204] : memref<32x256xf32, #tpu.memory_space<vmem>>, vector<32x256xf32>
    %cst_205 = arith.constant dense<0.000000e+00> : vector<8x256xf32>
    %593 = tpu.matmul %589, %592, %cst_205 {dimension_numbers = #tpu.dot_dimension_numbers<[1], [0], [0], [1], [0, 0, 1, 1], [], []>} : vector<8x32xf32>, vector<32x256xf32>, vector<8x256xf32> -> vector<8x256xf32>
    %594 = arith.addf %591, %593 : vector<8x256xf32>
    %c0_206 = arith.constant 0 : index
    %c0_207 = arith.constant 0 : index
    %595 = vector.load %arg28[%c0_206, %c0_207] : memref<64x256xf32, #tpu.memory_space<vmem>>, vector<64x256xf32>
    %cst_208 = arith.constant dense<0.000000e+00> : vector<8x256xf32>
    %596 = tpu.matmul %531, %595, %cst_208 {dimension_numbers = #tpu.dot_dimension_numbers<[1], [0], [0], [1], [0, 0, 1, 1], [], []>} : vector<8x64xf32>, vector<64x256xf32>, vector<8x256xf32> -> vector<8x256xf32>
    %597 = arith.addf %594, %596 : vector<8x256xf32>
    %c0_209 = arith.constant 0 : index
    %c0_210 = arith.constant 0 : index
    %598 = vector.load %arg29[%c0_209, %c0_210] : memref<1x256xf32, #tpu.memory_space<vmem>>, vector<1x256xf32>
    %599 = vector.broadcast %598 : vector<1x256xf32> to vector<8x256xf32>
    %600 = arith.addf %597, %599 : vector<8x256xf32>
    %601 = vector.extract_strided_slice %600 {offsets = [0, 0], sizes = [8, 64], strides = [1, 1]} : vector<8x256xf32> to vector<8x64xf32>
    %602 = arith.negf %601 : vector<8x64xf32>
    %603 = math.exp %602 : vector<8x64xf32>
    %cst_211 = arith.constant 1.000000e+00 : f32
    %604 = vector.broadcast %cst_211 : f32 to vector<8x64xf32>
    %605 = arith.addf %604, %603 : vector<8x64xf32>
    %606 = arith.divf %604, %605 : vector<8x64xf32>
    %607 = vector.extract_strided_slice %600 {offsets = [0, 64], sizes = [8, 64], strides = [1, 1]} : vector<8x256xf32> to vector<8x64xf32>
    %608 = arith.negf %607 : vector<8x64xf32>
    %609 = math.exp %608 : vector<8x64xf32>
    %cst_212 = arith.constant 1.000000e+00 : f32
    %610 = vector.broadcast %cst_212 : f32 to vector<8x64xf32>
    %611 = arith.addf %610, %609 : vector<8x64xf32>
    %612 = arith.divf %610, %611 : vector<8x64xf32>
    %613 = vector.extract_strided_slice %600 {offsets = [0, 128], sizes = [8, 64], strides = [1, 1]} : vector<8x256xf32> to vector<8x64xf32>
    %614 = math.tanh %613 : vector<8x64xf32>
    %615 = vector.extract_strided_slice %600 {offsets = [0, 192], sizes = [8, 64], strides = [1, 1]} : vector<8x256xf32> to vector<8x64xf32>
    %616 = arith.negf %615 : vector<8x64xf32>
    %617 = math.exp %616 : vector<8x64xf32>
    %cst_213 = arith.constant 1.000000e+00 : f32
    %618 = vector.broadcast %cst_213 : f32 to vector<8x64xf32>
    %619 = arith.addf %618, %617 : vector<8x64xf32>
    %620 = arith.divf %618, %619 : vector<8x64xf32>
    %621 = arith.mulf %612, %529 : vector<8x64xf32>
    %622 = arith.mulf %606, %614 : vector<8x64xf32>
    %623 = arith.addf %621, %622 : vector<8x64xf32>
    %624 = math.tanh %623 : vector<8x64xf32>
    %625 = arith.mulf %620, %624 : vector<8x64xf32>
    %626 = vector.extract_strided_slice %50 {offsets = [48, 0], sizes = [8, 128], strides = [1, 1]} : vector<64x128xf32> to vector<8x128xf32>
    %c0_214 = arith.constant 0 : index
    %c0_215 = arith.constant 0 : index
    %627 = vector.load %arg21[%c0_214, %c0_215] : memref<32x128xf32, #tpu.memory_space<vmem>>, vector<32x128xf32>
    %cst_216 = arith.constant dense<0.000000e+00> : vector<8x128xf32>
    %628 = tpu.matmul %560, %627, %cst_216 {dimension_numbers = #tpu.dot_dimension_numbers<[1], [0], [0], [1], [0, 0, 1, 1], [], []>} : vector<8x32xf32>, vector<32x128xf32>, vector<8x128xf32> -> vector<8x128xf32>
    %629 = arith.addf %626, %628 : vector<8x128xf32>
    %630 = vector.extract_strided_slice %629 {offsets = [0, 0], sizes = [8, 32], strides = [1, 1]} : vector<8x128xf32> to vector<8x32xf32>
    %631 = arith.negf %630 : vector<8x32xf32>
    %632 = math.exp %631 : vector<8x32xf32>
    %cst_217 = arith.constant 1.000000e+00 : f32
    %633 = vector.broadcast %cst_217 : f32 to vector<8x32xf32>
    %634 = arith.addf %633, %632 : vector<8x32xf32>
    %635 = arith.divf %633, %634 : vector<8x32xf32>
    %636 = vector.extract_strided_slice %629 {offsets = [0, 32], sizes = [8, 32], strides = [1, 1]} : vector<8x128xf32> to vector<8x32xf32>
    %637 = arith.negf %636 : vector<8x32xf32>
    %638 = math.exp %637 : vector<8x32xf32>
    %cst_218 = arith.constant 1.000000e+00 : f32
    %639 = vector.broadcast %cst_218 : f32 to vector<8x32xf32>
    %640 = arith.addf %639, %638 : vector<8x32xf32>
    %641 = arith.divf %639, %640 : vector<8x32xf32>
    %642 = vector.extract_strided_slice %629 {offsets = [0, 64], sizes = [8, 32], strides = [1, 1]} : vector<8x128xf32> to vector<8x32xf32>
    %643 = math.tanh %642 : vector<8x32xf32>
    %644 = vector.extract_strided_slice %629 {offsets = [0, 96], sizes = [8, 32], strides = [1, 1]} : vector<8x128xf32> to vector<8x32xf32>
    %645 = arith.negf %644 : vector<8x32xf32>
    %646 = math.exp %645 : vector<8x32xf32>
    %cst_219 = arith.constant 1.000000e+00 : f32
    %647 = vector.broadcast %cst_219 : f32 to vector<8x32xf32>
    %648 = arith.addf %647, %646 : vector<8x32xf32>
    %649 = arith.divf %647, %648 : vector<8x32xf32>
    %650 = arith.mulf %641, %558 : vector<8x32xf32>
    %651 = arith.mulf %635, %643 : vector<8x32xf32>
    %652 = arith.addf %650, %651 : vector<8x32xf32>
    %653 = math.tanh %652 : vector<8x32xf32>
    %654 = arith.mulf %649, %653 : vector<8x32xf32>
    %655 = vector.extract_strided_slice %55 {offsets = [48, 0], sizes = [8, 128], strides = [1, 1]} : vector<64x128xf32> to vector<8x128xf32>
    %c0_220 = arith.constant 0 : index
    %c0_221 = arith.constant 0 : index
    %656 = vector.load %arg24[%c0_220, %c0_221] : memref<32x128xf32, #tpu.memory_space<vmem>>, vector<32x128xf32>
    %cst_222 = arith.constant dense<0.000000e+00> : vector<8x128xf32>
    %657 = tpu.matmul %589, %656, %cst_222 {dimension_numbers = #tpu.dot_dimension_numbers<[1], [0], [0], [1], [0, 0, 1, 1], [], []>} : vector<8x32xf32>, vector<32x128xf32>, vector<8x128xf32> -> vector<8x128xf32>
    %658 = arith.addf %655, %657 : vector<8x128xf32>
    %659 = vector.extract_strided_slice %658 {offsets = [0, 0], sizes = [8, 32], strides = [1, 1]} : vector<8x128xf32> to vector<8x32xf32>
    %660 = arith.negf %659 : vector<8x32xf32>
    %661 = math.exp %660 : vector<8x32xf32>
    %cst_223 = arith.constant 1.000000e+00 : f32
    %662 = vector.broadcast %cst_223 : f32 to vector<8x32xf32>
    %663 = arith.addf %662, %661 : vector<8x32xf32>
    %664 = arith.divf %662, %663 : vector<8x32xf32>
    %665 = vector.extract_strided_slice %658 {offsets = [0, 32], sizes = [8, 32], strides = [1, 1]} : vector<8x128xf32> to vector<8x32xf32>
    %666 = arith.negf %665 : vector<8x32xf32>
    %667 = math.exp %666 : vector<8x32xf32>
    %cst_224 = arith.constant 1.000000e+00 : f32
    %668 = vector.broadcast %cst_224 : f32 to vector<8x32xf32>
    %669 = arith.addf %668, %667 : vector<8x32xf32>
    %670 = arith.divf %668, %669 : vector<8x32xf32>
    %671 = vector.extract_strided_slice %658 {offsets = [0, 64], sizes = [8, 32], strides = [1, 1]} : vector<8x128xf32> to vector<8x32xf32>
    %672 = math.tanh %671 : vector<8x32xf32>
    %673 = vector.extract_strided_slice %658 {offsets = [0, 96], sizes = [8, 32], strides = [1, 1]} : vector<8x128xf32> to vector<8x32xf32>
    %674 = arith.negf %673 : vector<8x32xf32>
    %675 = math.exp %674 : vector<8x32xf32>
    %cst_225 = arith.constant 1.000000e+00 : f32
    %676 = vector.broadcast %cst_225 : f32 to vector<8x32xf32>
    %677 = arith.addf %676, %675 : vector<8x32xf32>
    %678 = arith.divf %676, %677 : vector<8x32xf32>
    %679 = arith.mulf %670, %587 : vector<8x32xf32>
    %680 = arith.mulf %664, %672 : vector<8x32xf32>
    %681 = arith.addf %679, %680 : vector<8x32xf32>
    %682 = math.tanh %681 : vector<8x32xf32>
    %683 = arith.mulf %678, %682 : vector<8x32xf32>
    %c0_226 = arith.constant 0 : index
    %c0_227 = arith.constant 0 : index
    %684 = vector.load %arg26[%c0_226, %c0_227] : memref<32x256xf32, #tpu.memory_space<vmem>>, vector<32x256xf32>
    %cst_228 = arith.constant dense<0.000000e+00> : vector<8x256xf32>
    %685 = tpu.matmul %654, %684, %cst_228 {dimension_numbers = #tpu.dot_dimension_numbers<[1], [0], [0], [1], [0, 0, 1, 1], [], []>} : vector<8x32xf32>, vector<32x256xf32>, vector<8x256xf32> -> vector<8x256xf32>
    %c0_229 = arith.constant 0 : index
    %c0_230 = arith.constant 0 : index
    %686 = vector.load %arg27[%c0_229, %c0_230] : memref<32x256xf32, #tpu.memory_space<vmem>>, vector<32x256xf32>
    %cst_231 = arith.constant dense<0.000000e+00> : vector<8x256xf32>
    %687 = tpu.matmul %683, %686, %cst_231 {dimension_numbers = #tpu.dot_dimension_numbers<[1], [0], [0], [1], [0, 0, 1, 1], [], []>} : vector<8x32xf32>, vector<32x256xf32>, vector<8x256xf32> -> vector<8x256xf32>
    %688 = arith.addf %685, %687 : vector<8x256xf32>
    %c0_232 = arith.constant 0 : index
    %c0_233 = arith.constant 0 : index
    %689 = vector.load %arg28[%c0_232, %c0_233] : memref<64x256xf32, #tpu.memory_space<vmem>>, vector<64x256xf32>
    %cst_234 = arith.constant dense<0.000000e+00> : vector<8x256xf32>
    %690 = tpu.matmul %625, %689, %cst_234 {dimension_numbers = #tpu.dot_dimension_numbers<[1], [0], [0], [1], [0, 0, 1, 1], [], []>} : vector<8x64xf32>, vector<64x256xf32>, vector<8x256xf32> -> vector<8x256xf32>
    %691 = arith.addf %688, %690 : vector<8x256xf32>
    %c0_235 = arith.constant 0 : index
    %c0_236 = arith.constant 0 : index
    %692 = vector.load %arg29[%c0_235, %c0_236] : memref<1x256xf32, #tpu.memory_space<vmem>>, vector<1x256xf32>
    %693 = vector.broadcast %692 : vector<1x256xf32> to vector<8x256xf32>
    %694 = arith.addf %691, %693 : vector<8x256xf32>
    %695 = vector.extract_strided_slice %694 {offsets = [0, 0], sizes = [8, 64], strides = [1, 1]} : vector<8x256xf32> to vector<8x64xf32>
    %696 = arith.negf %695 : vector<8x64xf32>
    %697 = math.exp %696 : vector<8x64xf32>
    %cst_237 = arith.constant 1.000000e+00 : f32
    %698 = vector.broadcast %cst_237 : f32 to vector<8x64xf32>
    %699 = arith.addf %698, %697 : vector<8x64xf32>
    %700 = arith.divf %698, %699 : vector<8x64xf32>
    %701 = vector.extract_strided_slice %694 {offsets = [0, 64], sizes = [8, 64], strides = [1, 1]} : vector<8x256xf32> to vector<8x64xf32>
    %702 = arith.negf %701 : vector<8x64xf32>
    %703 = math.exp %702 : vector<8x64xf32>
    %cst_238 = arith.constant 1.000000e+00 : f32
    %704 = vector.broadcast %cst_238 : f32 to vector<8x64xf32>
    %705 = arith.addf %704, %703 : vector<8x64xf32>
    %706 = arith.divf %704, %705 : vector<8x64xf32>
    %707 = vector.extract_strided_slice %694 {offsets = [0, 128], sizes = [8, 64], strides = [1, 1]} : vector<8x256xf32> to vector<8x64xf32>
    %708 = math.tanh %707 : vector<8x64xf32>
    %709 = vector.extract_strided_slice %694 {offsets = [0, 192], sizes = [8, 64], strides = [1, 1]} : vector<8x256xf32> to vector<8x64xf32>
    %710 = arith.negf %709 : vector<8x64xf32>
    %711 = math.exp %710 : vector<8x64xf32>
    %cst_239 = arith.constant 1.000000e+00 : f32
    %712 = vector.broadcast %cst_239 : f32 to vector<8x64xf32>
    %713 = arith.addf %712, %711 : vector<8x64xf32>
    %714 = arith.divf %712, %713 : vector<8x64xf32>
    %715 = arith.mulf %706, %623 : vector<8x64xf32>
    %716 = arith.mulf %700, %708 : vector<8x64xf32>
    %717 = arith.addf %715, %716 : vector<8x64xf32>
    %718 = math.tanh %717 : vector<8x64xf32>
    %719 = arith.mulf %714, %718 : vector<8x64xf32>
    %720 = vector.extract_strided_slice %50 {offsets = [56, 0], sizes = [8, 128], strides = [1, 1]} : vector<64x128xf32> to vector<8x128xf32>
    %c0_240 = arith.constant 0 : index
    %c0_241 = arith.constant 0 : index
    %721 = vector.load %arg21[%c0_240, %c0_241] : memref<32x128xf32, #tpu.memory_space<vmem>>, vector<32x128xf32>
    %cst_242 = arith.constant dense<0.000000e+00> : vector<8x128xf32>
    %722 = tpu.matmul %654, %721, %cst_242 {dimension_numbers = #tpu.dot_dimension_numbers<[1], [0], [0], [1], [0, 0, 1, 1], [], []>} : vector<8x32xf32>, vector<32x128xf32>, vector<8x128xf32> -> vector<8x128xf32>
    %723 = arith.addf %720, %722 : vector<8x128xf32>
    %724 = vector.extract_strided_slice %723 {offsets = [0, 0], sizes = [8, 32], strides = [1, 1]} : vector<8x128xf32> to vector<8x32xf32>
    %725 = arith.negf %724 : vector<8x32xf32>
    %726 = math.exp %725 : vector<8x32xf32>
    %cst_243 = arith.constant 1.000000e+00 : f32
    %727 = vector.broadcast %cst_243 : f32 to vector<8x32xf32>
    %728 = arith.addf %727, %726 : vector<8x32xf32>
    %729 = arith.divf %727, %728 : vector<8x32xf32>
    %730 = vector.extract_strided_slice %723 {offsets = [0, 32], sizes = [8, 32], strides = [1, 1]} : vector<8x128xf32> to vector<8x32xf32>
    %731 = arith.negf %730 : vector<8x32xf32>
    %732 = math.exp %731 : vector<8x32xf32>
    %cst_244 = arith.constant 1.000000e+00 : f32
    %733 = vector.broadcast %cst_244 : f32 to vector<8x32xf32>
    %734 = arith.addf %733, %732 : vector<8x32xf32>
    %735 = arith.divf %733, %734 : vector<8x32xf32>
    %736 = vector.extract_strided_slice %723 {offsets = [0, 64], sizes = [8, 32], strides = [1, 1]} : vector<8x128xf32> to vector<8x32xf32>
    %737 = math.tanh %736 : vector<8x32xf32>
    %738 = vector.extract_strided_slice %723 {offsets = [0, 96], sizes = [8, 32], strides = [1, 1]} : vector<8x128xf32> to vector<8x32xf32>
    %739 = arith.negf %738 : vector<8x32xf32>
    %740 = math.exp %739 : vector<8x32xf32>
    %cst_245 = arith.constant 1.000000e+00 : f32
    %741 = vector.broadcast %cst_245 : f32 to vector<8x32xf32>
    %742 = arith.addf %741, %740 : vector<8x32xf32>
    %743 = arith.divf %741, %742 : vector<8x32xf32>
    %744 = arith.mulf %735, %652 : vector<8x32xf32>
    %745 = arith.mulf %729, %737 : vector<8x32xf32>
    %746 = arith.addf %744, %745 : vector<8x32xf32>
    %747 = math.tanh %746 : vector<8x32xf32>
    %748 = arith.mulf %743, %747 : vector<8x32xf32>
    %749 = vector.extract_strided_slice %55 {offsets = [56, 0], sizes = [8, 128], strides = [1, 1]} : vector<64x128xf32> to vector<8x128xf32>
    %c0_246 = arith.constant 0 : index
    %c0_247 = arith.constant 0 : index
    %750 = vector.load %arg24[%c0_246, %c0_247] : memref<32x128xf32, #tpu.memory_space<vmem>>, vector<32x128xf32>
    %cst_248 = arith.constant dense<0.000000e+00> : vector<8x128xf32>
    %751 = tpu.matmul %683, %750, %cst_248 {dimension_numbers = #tpu.dot_dimension_numbers<[1], [0], [0], [1], [0, 0, 1, 1], [], []>} : vector<8x32xf32>, vector<32x128xf32>, vector<8x128xf32> -> vector<8x128xf32>
    %752 = arith.addf %749, %751 : vector<8x128xf32>
    %753 = vector.extract_strided_slice %752 {offsets = [0, 0], sizes = [8, 32], strides = [1, 1]} : vector<8x128xf32> to vector<8x32xf32>
    %754 = arith.negf %753 : vector<8x32xf32>
    %755 = math.exp %754 : vector<8x32xf32>
    %cst_249 = arith.constant 1.000000e+00 : f32
    %756 = vector.broadcast %cst_249 : f32 to vector<8x32xf32>
    %757 = arith.addf %756, %755 : vector<8x32xf32>
    %758 = arith.divf %756, %757 : vector<8x32xf32>
    %759 = vector.extract_strided_slice %752 {offsets = [0, 32], sizes = [8, 32], strides = [1, 1]} : vector<8x128xf32> to vector<8x32xf32>
    %760 = arith.negf %759 : vector<8x32xf32>
    %761 = math.exp %760 : vector<8x32xf32>
    %cst_250 = arith.constant 1.000000e+00 : f32
    %762 = vector.broadcast %cst_250 : f32 to vector<8x32xf32>
    %763 = arith.addf %762, %761 : vector<8x32xf32>
    %764 = arith.divf %762, %763 : vector<8x32xf32>
    %765 = vector.extract_strided_slice %752 {offsets = [0, 64], sizes = [8, 32], strides = [1, 1]} : vector<8x128xf32> to vector<8x32xf32>
    %766 = math.tanh %765 : vector<8x32xf32>
    %767 = vector.extract_strided_slice %752 {offsets = [0, 96], sizes = [8, 32], strides = [1, 1]} : vector<8x128xf32> to vector<8x32xf32>
    %768 = arith.negf %767 : vector<8x32xf32>
    %769 = math.exp %768 : vector<8x32xf32>
    %cst_251 = arith.constant 1.000000e+00 : f32
    %770 = vector.broadcast %cst_251 : f32 to vector<8x32xf32>
    %771 = arith.addf %770, %769 : vector<8x32xf32>
    %772 = arith.divf %770, %771 : vector<8x32xf32>
    %773 = arith.mulf %764, %681 : vector<8x32xf32>
    %774 = arith.mulf %758, %766 : vector<8x32xf32>
    %775 = arith.addf %773, %774 : vector<8x32xf32>
    %776 = math.tanh %775 : vector<8x32xf32>
    %777 = arith.mulf %772, %776 : vector<8x32xf32>
    %c0_252 = arith.constant 0 : index
    %c0_253 = arith.constant 0 : index
    %778 = vector.load %arg26[%c0_252, %c0_253] : memref<32x256xf32, #tpu.memory_space<vmem>>, vector<32x256xf32>
    %cst_254 = arith.constant dense<0.000000e+00> : vector<8x256xf32>
    %779 = tpu.matmul %748, %778, %cst_254 {dimension_numbers = #tpu.dot_dimension_numbers<[1], [0], [0], [1], [0, 0, 1, 1], [], []>} : vector<8x32xf32>, vector<32x256xf32>, vector<8x256xf32> -> vector<8x256xf32>
    %c0_255 = arith.constant 0 : index
    %c0_256 = arith.constant 0 : index
    %780 = vector.load %arg27[%c0_255, %c0_256] : memref<32x256xf32, #tpu.memory_space<vmem>>, vector<32x256xf32>
    %cst_257 = arith.constant dense<0.000000e+00> : vector<8x256xf32>
    %781 = tpu.matmul %777, %780, %cst_257 {dimension_numbers = #tpu.dot_dimension_numbers<[1], [0], [0], [1], [0, 0, 1, 1], [], []>} : vector<8x32xf32>, vector<32x256xf32>, vector<8x256xf32> -> vector<8x256xf32>
    %782 = arith.addf %779, %781 : vector<8x256xf32>
    %c0_258 = arith.constant 0 : index
    %c0_259 = arith.constant 0 : index
    %783 = vector.load %arg28[%c0_258, %c0_259] : memref<64x256xf32, #tpu.memory_space<vmem>>, vector<64x256xf32>
    %cst_260 = arith.constant dense<0.000000e+00> : vector<8x256xf32>
    %784 = tpu.matmul %719, %783, %cst_260 {dimension_numbers = #tpu.dot_dimension_numbers<[1], [0], [0], [1], [0, 0, 1, 1], [], []>} : vector<8x64xf32>, vector<64x256xf32>, vector<8x256xf32> -> vector<8x256xf32>
    %785 = arith.addf %782, %784 : vector<8x256xf32>
    %c0_261 = arith.constant 0 : index
    %c0_262 = arith.constant 0 : index
    %786 = vector.load %arg29[%c0_261, %c0_262] : memref<1x256xf32, #tpu.memory_space<vmem>>, vector<1x256xf32>
    %787 = vector.broadcast %786 : vector<1x256xf32> to vector<8x256xf32>
    %788 = arith.addf %785, %787 : vector<8x256xf32>
    %789 = vector.extract_strided_slice %788 {offsets = [0, 0], sizes = [8, 64], strides = [1, 1]} : vector<8x256xf32> to vector<8x64xf32>
    %790 = arith.negf %789 : vector<8x64xf32>
    %791 = math.exp %790 : vector<8x64xf32>
    %cst_263 = arith.constant 1.000000e+00 : f32
    %792 = vector.broadcast %cst_263 : f32 to vector<8x64xf32>
    %793 = arith.addf %792, %791 : vector<8x64xf32>
    %794 = arith.divf %792, %793 : vector<8x64xf32>
    %795 = vector.extract_strided_slice %788 {offsets = [0, 64], sizes = [8, 64], strides = [1, 1]} : vector<8x256xf32> to vector<8x64xf32>
    %796 = arith.negf %795 : vector<8x64xf32>
    %797 = math.exp %796 : vector<8x64xf32>
    %cst_264 = arith.constant 1.000000e+00 : f32
    %798 = vector.broadcast %cst_264 : f32 to vector<8x64xf32>
    %799 = arith.addf %798, %797 : vector<8x64xf32>
    %800 = arith.divf %798, %799 : vector<8x64xf32>
    %801 = vector.extract_strided_slice %788 {offsets = [0, 128], sizes = [8, 64], strides = [1, 1]} : vector<8x256xf32> to vector<8x64xf32>
    %802 = math.tanh %801 : vector<8x64xf32>
    %803 = vector.extract_strided_slice %788 {offsets = [0, 192], sizes = [8, 64], strides = [1, 1]} : vector<8x256xf32> to vector<8x64xf32>
    %804 = arith.negf %803 : vector<8x64xf32>
    %805 = math.exp %804 : vector<8x64xf32>
    %cst_265 = arith.constant 1.000000e+00 : f32
    %806 = vector.broadcast %cst_265 : f32 to vector<8x64xf32>
    %807 = arith.addf %806, %805 : vector<8x64xf32>
    %808 = arith.divf %806, %807 : vector<8x64xf32>
    %809 = arith.mulf %800, %717 : vector<8x64xf32>
    %810 = arith.mulf %794, %802 : vector<8x64xf32>
    %811 = arith.addf %809, %810 : vector<8x64xf32>
    %812 = math.tanh %811 : vector<8x64xf32>
    %813 = arith.mulf %808, %812 : vector<8x64xf32>
    %c0_266 = arith.constant 0 : index
    %c0_267 = arith.constant 0 : index
    %814 = vector.load %arg30[%c0_266, %c0_267] : memref<64x32xf32, #tpu.memory_space<vmem>>, vector<64x32xf32>
    %cst_268 = arith.constant dense<0.000000e+00> : vector<8x32xf32>
    %815 = tpu.matmul %813, %814, %cst_268 {dimension_numbers = #tpu.dot_dimension_numbers<[1], [0], [0], [1], [0, 0, 1, 1], [], []>} : vector<8x64xf32>, vector<64x32xf32>, vector<8x32xf32> -> vector<8x32xf32>
    %c0_269 = arith.constant 0 : index
    %c0_270 = arith.constant 0 : index
    %816 = vector.load %arg31[%c0_269, %c0_270] : memref<1x32xf32, #tpu.memory_space<vmem>>, vector<1x32xf32>
    %817 = vector.broadcast %816 : vector<1x32xf32> to vector<8x32xf32>
    %818 = arith.addf %815, %817 : vector<8x32xf32>
    %c0_271 = arith.constant 0 : index
    %c0_272 = arith.constant 0 : index
    %819 = vector.load %arg32[%c0_271, %c0_272] : memref<32x1xf32, #tpu.memory_space<vmem>>, vector<32x1xf32>
    %cst_273 = arith.constant dense<0.000000e+00> : vector<8x1xf32>
    %820 = tpu.matmul %818, %819, %cst_273 {dimension_numbers = #tpu.dot_dimension_numbers<[1], [0], [0], [1], [0, 0, 1, 1], [], []>} : vector<8x32xf32>, vector<32x1xf32>, vector<8x1xf32> -> vector<8x1xf32>
    %c0_274 = arith.constant 0 : index
    %c0_275 = arith.constant 0 : index
    %821 = vector.load %arg33[%c0_274, %c0_275] : memref<1x1xf32, #tpu.memory_space<vmem>>, vector<1x1xf32>
    %822 = vector.broadcast %821 : vector<1x1xf32> to vector<8x1xf32>
    %823 = arith.addf %820, %822 : vector<8x1xf32>
    %c0_276 = arith.constant 0 : index
    %c0_277 = arith.constant 0 : index
    %824 = vector.load %arg34[%c0_276, %c0_277] : memref<8x1xf32, #tpu.memory_space<vmem>>, vector<8x1xf32>
    tpu.vector_store %arg34[%c0_276, %c0_277], %823 {strides = array<i32>} : memref<8x1xf32, #tpu.memory_space<vmem>>, vector<8x1xf32>,
    return
  }
}

</mosaic_0001>

<llo_original>
// kernel: tpu_custom_call.1
$region0: #{tpu_custom_call.1}
  #allocation0 [shape = 'u32[]', space=smem, size = 0x4, offset = 0x4, fixed_abs, tag = 'smem constant byte address 0x4 - core index']
  #allocation1 [shape = 'u32[144,128]{1,0:T(1,128)}', space=vmem, size = 0x12000, scoped, tag = 'internal scratch']
  #allocation2 [shape = 'f32[1,1]{1,0:T(1,128)S(1)}', space=vmem, size = 0x200, scoped, tag = 'scoped memory for tpu_custom_call.1']
  %s0 = inlined_call_operand.smem [shape: u32[35], index: -1, kind: input, shape index: {}]
  %s1 = sld [smem:[%s0]]
  %s2 = scalar_lea.smem %s0, 1
  %s3 = sld [smem:[%s2]]
  %s4 = scalar_lea.smem %s0, 2
  %s5 = sld [smem:[%s4]]
  %s6 = scalar_lea.smem %s0, 3
  %s7 = sld [smem:[%s6]]
  %s8 = scalar_lea.smem %s0, 4
  %s9 = sld [smem:[%s8]]
  %s10 = scalar_lea.smem %s0, 5
  %s11 = sld [smem:[%s10]]
  %s12 = scalar_lea.smem %s0, 6
  %s13 = sld [smem:[%s12]]
  %s14 = scalar_lea.smem %s0, 7
  %s15 = sld [smem:[%s14]]
  %s16 = scalar_lea.smem %s0, 8
  %s17 = sld [smem:[%s16]]
  %s18 = scalar_lea.smem %s0, 9
  %s19 = sld [smem:[%s18]]
  %s20 = scalar_lea.smem %s0, 10
  %s21 = sld [smem:[%s20]]
  %s22 = scalar_lea.smem %s0, 11
  %s23 = sld [smem:[%s22]]
  %s24 = scalar_lea.smem %s0, 12
  %s25 = sld [smem:[%s24]]
  %s26 = scalar_lea.smem %s0, 13
  %s27 = sld [smem:[%s26]]
  %s28 = scalar_lea.smem %s0, 14
  %s29 = sld [smem:[%s28]]
  %s30 = scalar_lea.smem %s0, 15
  %s31 = sld [smem:[%s30]]
  %s32 = scalar_lea.smem %s0, 16
  %s33 = sld [smem:[%s32]]
  %s34 = scalar_lea.smem %s0, 17
  %s35 = sld [smem:[%s34]]
  %s36 = scalar_lea.smem %s0, 18
  %s37 = sld [smem:[%s36]]
  %s38 = scalar_lea.smem %s0, 19
  %s39 = sld [smem:[%s38]]
  %s40 = scalar_lea.smem %s0, 20
  %s41 = sld [smem:[%s40]]
  %s42 = scalar_lea.smem %s0, 21
  %s43 = sld [smem:[%s42]]
  %s44 = scalar_lea.smem %s0, 22
  %s45 = sld [smem:[%s44]]
  %s46 = scalar_lea.smem %s0, 23
  %s47 = sld [smem:[%s46]]
  %s48 = scalar_lea.smem %s0, 24
  %s49 = sld [smem:[%s48]]
  %s50 = scalar_lea.smem %s0, 25
  %s51 = sld [smem:[%s50]]
  %s52 = scalar_lea.smem %s0, 26
  %s53 = sld [smem:[%s52]]
  %s54 = scalar_lea.smem %s0, 27
  %s55 = sld [smem:[%s54]]
  %s56 = scalar_lea.smem %s0, 28
  %s57 = sld [smem:[%s56]]
  %s58 = scalar_lea.smem %s0, 29
  %s59 = sld [smem:[%s58]]
  %s60 = scalar_lea.smem %s0, 30
  %s61 = sld [smem:[%s60]]
  %s62 = scalar_lea.smem %s0, 31
  %s63 = sld [smem:[%s62]]
  %s64 = scalar_lea.smem %s0, 32
  %s65 = sld [smem:[%s64]]
  %s66 = scalar_lea.smem %s0, 33
  %s67 = sld [smem:[%s66]]
  %s68 = scalar_lea.smem %s0, 34
  %s69 = sld [smem:[%s68]]
  %s70 = sld [smem:[#allocation0]]
  $region194: #{tpu_custom_call.1} parent=0
    _
  %s72 = ssub.s32 1, %s70
  %s73 = scalar_select 0, %s72, %s70
  %v74 = vstv %s67
  %75 = vst [vmem:[#allocation2] sm:$0x1] %v74
  $region1: #{tpu_custom_call.1} parent=0
    #allocation3 [shape = 'u8[4096]{0}', space=vmem, size = 0x1000, scoped, tag = 'input window, operand 2, single buffered']
    #allocation4 [shape = 's32[1]{0}', space=sflag, size = 0x4, scoped, tag = 'scoped memory for tpu_custom_call.1']
    #allocation5 [shape = 'u8[4096]{0}', space=vmem, size = 0x1000, scoped, tag = 'input window, operand 3, single buffered']
    #allocation6 [shape = 's32[1]{0}', space=sflag, size = 0x4, scoped, tag = 'scoped memory for tpu_custom_call.1']
    #allocation7 [shape = 'u8[4096]{0}', space=vmem, size = 0x1000, scoped, tag = 'input window, operand 4, single buffered']
    #allocation8 [shape = 'u8[4096]{0}', space=vmem, size = 0x1000, scoped, tag = 'input window, operand 5, single buffered']
    #allocation9 [shape = 's32[1]{0}', space=sflag, size = 0x4, scoped, tag = 'scoped memory for tpu_custom_call.1']
    #allocation10 [shape = 'u8[4096]{0}', space=vmem, size = 0x1000, scoped, tag = 'input window, operand 6, single buffered']
    #allocation11 [shape = 'u8[4096]{0}', space=vmem, size = 0x1000, scoped, tag = 'input window, operand 7, single buffered']
    #allocation12 [shape = 's32[1]{0}', space=sflag, size = 0x4, scoped, tag = 'scoped memory for tpu_custom_call.1']
    #allocation13 [shape = 'u8[512]{0}', space=vmem, size = 0x400, scoped, tag = 'input window, operand 9, single buffered']
    #allocation14 [shape = 'u8[512]{0}', space=vmem, size = 0x400, scoped, tag = 'input window, operand 11, single buffered']
    #allocation15 [shape = 's32[1]{0}', space=sflag, size = 0x4, scoped, tag = 'scoped memory for tpu_custom_call.1']
    #allocation16 [shape = 'u8[512]{0}', space=vmem, size = 0x400, scoped, tag = 'input window, operand 13, single buffered']
    #allocation17 [shape = 'u8[512]{0}', space=vmem, size = 0x400, scoped, tag = 'input window, operand 14, single buffered']
    #allocation18 [shape = 's32[1]{0}', space=sflag, size = 0x4, scoped, tag = 'scoped memory for tpu_custom_call.1']
    #allocation19 [shape = 'u8[512]{0}', space=vmem, size = 0x400, scoped, tag = 'input window, operand 15, single buffered']
    #allocation20 [shape = 'u8[2048]{0}', space=vmem, size = 0x800, scoped, tag = 'input window, operand 16, single buffered']
    #allocation21 [shape = 's32[1]{0}', space=sflag, size = 0x4, scoped, tag = 'scoped memory for tpu_custom_call.1']
    %76 = vsyncpa [#allocation4], 0
    %77 = vsyncpa [#allocation6], 0
    %78 = vsyncpa [#allocation9], 0
    %79 = vsyncpa [#allocation12], 0
    %80 = vsyncpa [#allocation15], 0
    %81 = vsyncpa [#allocation18], 0
    %82 = vsyncpa [#allocation21], 0
    // Predicated region
    $region2: #{tpu_custom_call.1} parent=1 // pred_check
      _
    $region3: #{tpu_custom_call.1} parent=1 // pred_check_branch
      %84 = sbr.rel (0) target = $region5
    $region4: #{tpu_custom_call.1} parent=1 // pred_region
      _
    $region5: #{tpu_custom_call.1} parent=1 // pred_fallthru
      _
    // Predicated region
    $region6: #{tpu_custom_call.1} parent=1 // pred_check
      _
    $region7: #{tpu_custom_call.1} parent=1 // pred_check_branch
      %86 = sbr.rel (0) target = $region9
    $region8: #{tpu_custom_call.1} parent=1 // pred_region
      _
    $region9: #{tpu_custom_call.1} parent=1 // pred_fallthru
      _
    // Predicated region
    $region10: #{tpu_custom_call.1} parent=1 // pred_check
      _
    $region11: #{tpu_custom_call.1} parent=1 // pred_check_branch
      %88 = sbr.rel (0) target = $region13
    $region12: #{tpu_custom_call.1} parent=1 // pred_region
      %s90 = ssub.s32 128, 128
      %91 = vsyncadd [#allocation4], %s90
      %s93 = sshll.u32 [#allocation3], 4
      %s94 = int_to_ptr.vmem [resolvable:$true] %s93
      %96 = dma.hbm_to_vmem [thread:$0]  %s5, 128, %s94, [#allocation4]
    $region13: #{tpu_custom_call.1} parent=1 // pred_fallthru
      _
    // Predicated region
    $region14: #{tpu_custom_call.1} parent=1 // pred_check
      _
    $region15: #{tpu_custom_call.1} parent=1 // pred_check_branch
      %98 = sbr.rel (0) target = $region17
    $region16: #{tpu_custom_call.1} parent=1 // pred_region
      %s100 = ssub.s32 128, 128
      %101 = vsyncadd [#allocation6], %s100
      %s103 = sshll.u32 [#allocation5], 4
      %s104 = int_to_ptr.vmem [resolvable:$true] %s103
      %106 = dma.hbm_to_vmem [thread:$0]  %s7, 128, %s104, [#allocation6]
    $region17: #{tpu_custom_call.1} parent=1 // pred_fallthru
      _
    // Predicated region
    $region18: #{tpu_custom_call.1} parent=1 // pred_check
      _
    $region19: #{tpu_custom_call.1} parent=1 // pred_check_branch
      %108 = sbr.rel (0) target = $region21
    $region20: #{tpu_custom_call.1} parent=1 // pred_region
      %s110 = ssub.s32 128, 128
      %111 = vsyncadd [#allocation6], %s110
      %s113 = sshll.u32 [#allocation7], 4
      %s114 = int_to_ptr.vmem [resolvable:$true] %s113
      %116 = dma.hbm_to_vmem [thread:$0]  %s9, 128, %s114, [#allocation6]
    $region21: #{tpu_custom_call.1} parent=1 // pred_fallthru
      _
    // Predicated region
    $region22: #{tpu_custom_call.1} parent=1 // pred_check
      _
    $region23: #{tpu_custom_call.1} parent=1 // pred_check_branch
      %118 = sbr.rel (0) target = $region25
    $region24: #{tpu_custom_call.1} parent=1 // pred_region
      %s120 = ssub.s32 128, 128
      %121 = vsyncadd [#allocation9], %s120
      %s123 = sshll.u32 [#allocation8], 4
      %s124 = int_to_ptr.vmem [resolvable:$true] %s123
      %126 = dma.hbm_to_vmem [thread:$0]  %s11, 128, %s124, [#allocation9]
    $region25: #{tpu_custom_call.1} parent=1 // pred_fallthru
      _
    // Predicated region
    $region26: #{tpu_custom_call.1} parent=1 // pred_check
      _
    $region27: #{tpu_custom_call.1} parent=1 // pred_check_branch
      %128 = sbr.rel (0) target = $region29
    $region28: #{tpu_custom_call.1} parent=1 // pred_region
      %s130 = ssub.s32 128, 128
      %131 = vsyncadd [#allocation9], %s130
      %s133 = sshll.u32 [#allocation10], 4
      %s134 = int_to_ptr.vmem [resolvable:$true] %s133
      %136 = dma.hbm_to_vmem [thread:$0]  %s13, 128, %s134, [#allocation9]
    $region29: #{tpu_custom_call.1} parent=1 // pred_fallthru
      _
    // Predicated region
    $region30: #{tpu_custom_call.1} parent=1 // pred_check
      _
    $region31: #{tpu_custom_call.1} parent=1 // pred_check_branch
      %138 = sbr.rel (0) target = $region33
    $region32: #{tpu_custom_call.1} parent=1 // pred_region
      %s140 = ssub.s32 128, 128
      %141 = vsyncadd [#allocation12], %s140
      %s143 = sshll.u32 [#allocation11], 4
      %s144 = int_to_ptr.vmem [resolvable:$true] %s143
      %146 = dma.hbm_to_vmem [thread:$0]  %s15, 128, %s144, [#allocation12]
    $region33: #{tpu_custom_call.1} parent=1 // pred_fallthru
      _
    // Predicated region
    $region34: #{tpu_custom_call.1} parent=1 // pred_check
      _
    $region35: #{tpu_custom_call.1} parent=1 // pred_check_branch
      %148 = sbr.rel (0) target = $region37
    $region36: #{tpu_custom_call.1} parent=1 // pred_region
      _
    $region37: #{tpu_custom_call.1} parent=1 // pred_fallthru
      _
    // Predicated region
    $region38: #{tpu_custom_call.1} parent=1 // pred_check
      _
    $region39: #{tpu_custom_call.1} parent=1 // pred_check_branch
      %150 = sbr.rel (0) target = $region41
    $region40: #{tpu_custom_call.1} parent=1 // pred_region
      %s152 = ssub.s32 16, 16
      %153 = vsyncadd [#allocation12], %s152
      %s155 = sshll.u32 [#allocation13], 4
      %s156 = int_to_ptr.vmem [resolvable:$true] %s155
      %158 = dma.hbm_to_vmem [thread:$0]  %s19, 16, %s156, [#allocation12]
    $region41: #{tpu_custom_call.1} parent=1 // pred_fallthru
      _
    // Predicated region
    $region42: #{tpu_custom_call.1} parent=1 // pred_check
      _
    $region43: #{tpu_custom_call.1} parent=1 // pred_check_branch
      %160 = sbr.rel (0) target = $region45
    $region44: #{tpu_custom_call.1} parent=1 // pred_region
      _
    $region45: #{tpu_custom_call.1} parent=1 // pred_fallthru
      _
    // Predicated region
    $region46: #{tpu_custom_call.1} parent=1 // pred_check
      _
    $region47: #{tpu_custom_call.1} parent=1 // pred_check_branch
      %162 = sbr.rel (0) target = $region49
    $region48: #{tpu_custom_call.1} parent=1 // pred_region
      %s164 = ssub.s32 16, 16
      %165 = vsyncadd [#allocation15], %s164
      %s167 = sshll.u32 [#allocation14], 4
      %s168 = int_to_ptr.vmem [resolvable:$true] %s167
      %170 = dma.hbm_to_vmem [thread:$0]  %s23, 16, %s168, [#allocation15]
    $region49: #{tpu_custom_call.1} parent=1 // pred_fallthru
      _
    // Predicated region
    $region50: #{tpu_custom_call.1} parent=1 // pred_check
      _
    $region51: #{tpu_custom_call.1} parent=1 // pred_check_branch
      %172 = sbr.rel (0) target = $region53
    $region52: #{tpu_custom_call.1} parent=1 // pred_region
      _
    $region53: #{tpu_custom_call.1} parent=1 // pred_fallthru
      _
    // Predicated region
    $region54: #{tpu_custom_call.1} parent=1 // pred_check
      _
    $region55: #{tpu_custom_call.1} parent=1 // pred_check_branch
      %174 = sbr.rel (0) target = $region57
    $region56: #{tpu_custom_call.1} parent=1 // pred_region
      %s176 = ssub.s32 16, 16
      %177 = vsyncadd [#allocation15], %s176
      %s179 = sshll.u32 [#allocation16], 4
      %s180 = int_to_ptr.vmem [resolvable:$true] %s179
      %182 = dma.hbm_to_vmem [thread:$0]  %s27, 16, %s180, [#allocation15]
    $region57: #{tpu_custom_call.1} parent=1 // pred_fallthru
      _
    // Predicated region
    $region58: #{tpu_custom_call.1} parent=1 // pred_check
      _
    $region59: #{tpu_custom_call.1} parent=1 // pred_check_branch
      %184 = sbr.rel (0) target = $region61
    $region60: #{tpu_custom_call.1} parent=1 // pred_region
      %s186 = ssub.s32 16, 16
      %187 = vsyncadd [#allocation18], %s186
      %s189 = sshll.u32 [#allocation17], 4
      %s190 = int_to_ptr.vmem [resolvable:$true] %s189
      %192 = dma.hbm_to_vmem [thread:$0]  %s29, 16, %s190, [#allocation18]
    $region61: #{tpu_custom_call.1} parent=1 // pred_fallthru
      _
    // Predicated region
    $region62: #{tpu_custom_call.1} parent=1 // pred_check
      _
    $region63: #{tpu_custom_call.1} parent=1 // pred_check_branch
      %194 = sbr.rel (0) target = $region65
    $region64: #{tpu_custom_call.1} parent=1 // pred_region
      %s196 = ssub.s32 16, 16
      %197 = vsyncadd [#allocation18], %s196
      %s199 = sshll.u32 [#allocation19], 4
      %s200 = int_to_ptr.vmem [resolvable:$true] %s199
      %202 = dma.hbm_to_vmem [thread:$0]  %s31, 16, %s200, [#allocation18]
    $region65: #{tpu_custom_call.1} parent=1 // pred_fallthru
      _
    // Predicated region
    $region66: #{tpu_custom_call.1} parent=1 // pred_check
      _
    $region67: #{tpu_custom_call.1} parent=1 // pred_check_branch
      %204 = sbr.rel (0) target = $region69
    $region68: #{tpu_custom_call.1} parent=1 // pred_region
      %s206 = ssub.s32 64, 64
      %207 = vsyncadd [#allocation21], %s206
      %s209 = sshll.u32 [#allocation20], 4
      %s210 = int_to_ptr.vmem [resolvable:$true] %s209
      %212 = dma.hbm_to_vmem [thread:$0]  %s33, 64, %s210, [#allocation21]
    $region69: #{tpu_custom_call.1} parent=1 // pred_fallthru
      _
    // Predicated region
    $region70: #{tpu_custom_call.1} parent=1 // pred_check
      _
    $region71: #{tpu_custom_call.1} parent=1 // pred_check_branch
      %214 = sbr.rel (0) target = $region73
    $region72: #{tpu_custom_call.1} parent=1 // pred_region
      _
    $region73: #{tpu_custom_call.1} parent=1 // pred_fallthru
      _
    // Predicated region
    $region74: #{tpu_custom_call.1} parent=1 // pred_check
      _
    $region75: #{tpu_custom_call.1} parent=1 // pred_check_branch
      %216 = sbr.rel (0) target = $region77
    $region76: #{tpu_custom_call.1} parent=1 // pred_region
      _
    $region77: #{tpu_custom_call.1} parent=1 // pred_fallthru
      _
    // Predicated region
    $region78: #{tpu_custom_call.1} parent=1 // pred_check
      _
    $region79: #{tpu_custom_call.1} parent=1 // pred_check_branch
      %218 = sbr.rel (0) target = $region81
    $region80: #{tpu_custom_call.1} parent=1 // pred_region
      _
    $region81: #{tpu_custom_call.1} parent=1 // pred_fallthru
      _
    // Predicated region
    $region82: #{tpu_custom_call.1} parent=1 // pred_check
      _
    $region83: #{tpu_custom_call.1} parent=1 // pred_check_branch
      %220 = sbr.rel (0) target = $region85
    $region84: #{tpu_custom_call.1} parent=1 // pred_region
      _
    $region85: #{tpu_custom_call.1} parent=1 // pred_fallthru
      _
    // Predicated region
    $region86: #{tpu_custom_call.1} parent=1 // pred_check
      _
    $region87: #{tpu_custom_call.1} parent=1 // pred_check_branch
      %222 = sbr.rel (0) target = $region89
    $region88: #{tpu_custom_call.1} parent=1 // pred_region
      _
    $region89: #{tpu_custom_call.1} parent=1 // pred_fallthru
      _
    // Predicated region
    $region90: #{tpu_custom_call.1} parent=1 // pred_check
      _
    $region91: #{tpu_custom_call.1} parent=1 // pred_check_branch
      %224 = sbr.rel (0) target = $region93
    $region92: #{tpu_custom_call.1} parent=1 // pred_region
      _
    $region93: #{tpu_custom_call.1} parent=1 // pred_fallthru
      _
    // Predicated region
    $region94: #{tpu_custom_call.1} parent=1 // pred_check
      _
    $region95: #{tpu_custom_call.1} parent=1 // pred_check_branch
      %226 = sbr.rel (0) target = $region97
    $region96: #{tpu_custom_call.1} parent=1 // pred_region
      _
    $region97: #{tpu_custom_call.1} parent=1 // pred_fallthru
      _
    // Predicated region
    $region98: #{tpu_custom_call.1} parent=1 // pred_check
      _
    $region99: #{tpu_custom_call.1} parent=1 // pred_check_branch
      %228 = sbr.rel (0) target = $region101
    $region100: #{tpu_custom_call.1} parent=1 // pred_region
      _
    $region101: #{tpu_custom_call.1} parent=1 // pred_fallthru
      _
    // Predicated region
    $region102: #{tpu_custom_call.1} parent=1 // pred_check
      _
    $region103: #{tpu_custom_call.1} parent=1 // pred_check_branch
      %230 = sbr.rel (0) target = $region105
    $region104: #{tpu_custom_call.1} parent=1 // pred_region
      _
    $region105: #{tpu_custom_call.1} parent=1 // pred_fallthru
      _
    // Predicated region
    $region106: #{tpu_custom_call.1} parent=1 // pred_check
      _
    $region107: #{tpu_custom_call.1} parent=1 // pred_check_branch
      %232 = sbr.rel (0) target = $region109
    $region108: #{tpu_custom_call.1} parent=1 // pred_region
      _
    $region109: #{tpu_custom_call.1} parent=1 // pred_fallthru
      _
    // Predicated region
    $region110: #{tpu_custom_call.1} parent=1 // pred_check
      _
    $region111: #{tpu_custom_call.1} parent=1 // pred_check_branch
      %234 = sbr.rel (0) target = $region113
    $region112: #{tpu_custom_call.1} parent=1 // pred_region
      _
    $region113: #{tpu_custom_call.1} parent=1 // pred_fallthru
      _
    // Predicated region
    $region114: #{tpu_custom_call.1} parent=1 // pred_check
      _
    $region115: #{tpu_custom_call.1} parent=1 // pred_check_branch
      %236 = sbr.rel (0) target = $region117
    $region116: #{tpu_custom_call.1} parent=1 // pred_region
      _
    $region117: #{tpu_custom_call.1} parent=1 // pred_fallthru
      _
    // Predicated region
    $region118: #{tpu_custom_call.1} parent=1 // pred_check
      _
    $region119: #{tpu_custom_call.1} parent=1 // pred_check_branch
      %238 = sbr.rel (0) target = $region121
    $region120: #{tpu_custom_call.1} parent=1 // pred_region
      _
    $region121: #{tpu_custom_call.1} parent=1 // pred_fallthru
      _
    // Predicated region
    $region122: #{tpu_custom_call.1} parent=1 // pred_check
      _
    $region123: #{tpu_custom_call.1} parent=1 // pred_check_branch
      %240 = sbr.rel (0) target = $region125
    $region124: #{tpu_custom_call.1} parent=1 // pred_region
      _
    $region125: #{tpu_custom_call.1} parent=1 // pred_fallthru
      _
    // Predicated region
    $region126: #{tpu_custom_call.1} parent=1 // pred_check
      _
    $region127: #{tpu_custom_call.1} parent=1 // pred_check_branch
      %242 = sbr.rel (0) target = $region129
    $region128: #{tpu_custom_call.1} parent=1 // pred_region
      _
    $region129: #{tpu_custom_call.1} parent=1 // pred_fallthru
      _
    // Predicated region
    $region130: #{tpu_custom_call.1} parent=1 // pred_check
      _
    $region131: #{tpu_custom_call.1} parent=1 // pred_check_branch
      %244 = sbr.rel (0) target = $region133
    $region132: #{tpu_custom_call.1} parent=1 // pred_region
      _
    $region133: #{tpu_custom_call.1} parent=1 // pred_fallthru
      _
    // Predicated region
    $region134: #{tpu_custom_call.1} parent=1 // pred_check
      _
    $region135: #{tpu_custom_call.1} parent=1 // pred_check_branch
      %246 = sbr.rel (0) target = $region137
    $region136: #{tpu_custom_call.1} parent=1 // pred_region
      _
    $region137: #{tpu_custom_call.1} parent=1 // pred_fallthru
      _
    // Predicated region
    $region138: #{tpu_custom_call.1} parent=1 // pred_check
      _
    $region139: #{tpu_custom_call.1} parent=1 // pred_check_branch
      %248 = sbr.rel (0) target = $region141
    $region140: #{tpu_custom_call.1} parent=1 // pred_region
      %249 = dma.done [#allocation4], 128
    $region141: #{tpu_custom_call.1} parent=1 // pred_fallthru
      _
    // Predicated region
    $region142: #{tpu_custom_call.1} parent=1 // pred_check
      _
    $region143: #{tpu_custom_call.1} parent=1 // pred_check_branch
      %251 = sbr.rel (0) target = $region145
    $region144: #{tpu_custom_call.1} parent=1 // pred_region
      %252 = dma.done [#allocation6], 128
    $region145: #{tpu_custom_call.1} parent=1 // pred_fallthru
      _
    // Predicated region
    $region146: #{tpu_custom_call.1} parent=1 // pred_check
      _
    $region147: #{tpu_custom_call.1} parent=1 // pred_check_branch
      %254 = sbr.rel (0) target = $region149
    $region148: #{tpu_custom_call.1} parent=1 // pred_region
      %255 = dma.done [#allocation6], 128
    $region149: #{tpu_custom_call.1} parent=1 // pred_fallthru
      _
    // Predicated region
    $region150: #{tpu_custom_call.1} parent=1 // pred_check
      _
    $region151: #{tpu_custom_call.1} parent=1 // pred_check_branch
      %257 = sbr.rel (0) target = $region153
    $region152: #{tpu_custom_call.1} parent=1 // pred_region
      %258 = dma.done [#allocation9], 128
    $region153: #{tpu_custom_call.1} parent=1 // pred_fallthru
      _
    // Predicated region
    $region154: #{tpu_custom_call.1} parent=1 // pred_check
      _
    $region155: #{tpu_custom_call.1} parent=1 // pred_check_branch
      %260 = sbr.rel (0) target = $region157
    $region156: #{tpu_custom_call.1} parent=1 // pred_region
      %261 = dma.done [#allocation9], 128
    $region157: #{tpu_custom_call.1} parent=1 // pred_fallthru
      _
    // Predicated region
    $region158: #{tpu_custom_call.1} parent=1 // pred_check
      _
    $region159: #{tpu_custom_call.1} parent=1 // pred_check_branch
      %263 = sbr.rel (0) target = $region161
    $region160: #{tpu_custom_call.1} parent=1 // pred_region
      %264 = dma.done [#allocation12], 128
    $region161: #{tpu_custom_call.1} parent=1 // pred_fallthru
      _
    // Predicated region
    $region162: #{tpu_custom_call.1} parent=1 // pred_check
      _
    $region163: #{tpu_custom_call.1} parent=1 // pred_check_branch
      %266 = sbr.rel (0) target = $region165
    $region164: #{tpu_custom_call.1} parent=1 // pred_region
      %267 = dma.done [#allocation12], 16
    $region165: #{tpu_custom_call.1} parent=1 // pred_fallthru
      _
    // Predicated region
    $region166: #{tpu_custom_call.1} parent=1 // pred_check
      _
    $region167: #{tpu_custom_call.1} parent=1 // pred_check_branch
      %269 = sbr.rel (0) target = $region169
    $region168: #{tpu_custom_call.1} parent=1 // pred_region
      %270 = dma.done [#allocation15], 16
    $region169: #{tpu_custom_call.1} parent=1 // pred_fallthru
      _
    // Predicated region
    $region170: #{tpu_custom_call.1} parent=1 // pred_check
      _
    $region171: #{tpu_custom_call.1} parent=1 // pred_check_branch
      %272 = sbr.rel (0) target = $region173
    $region172: #{tpu_custom_call.1} parent=1 // pred_region
      %273 = dma.done [#allocation15], 16
    $region173: #{tpu_custom_call.1} parent=1 // pred_fallthru
      _
    // Predicated region
    $region174: #{tpu_custom_call.1} parent=1 // pred_check
      _
    $region175: #{tpu_custom_call.1} parent=1 // pred_check_branch
      %275 = sbr.rel (0) target = $region177
    $region176: #{tpu_custom_call.1} parent=1 // pred_region
      %276 = dma.done [#allocation18], 16
    $region177: #{tpu_custom_call.1} parent=1 // pred_fallthru
      _
    // Predicated region
    $region178: #{tpu_custom_call.1} parent=1 // pred_check
      _
    $region179: #{tpu_custom_call.1} parent=1 // pred_check_branch
      %278 = sbr.rel (0) target = $region181
    $region180: #{tpu_custom_call.1} parent=1 // pred_region
      %279 = dma.done [#allocation18], 16
    $region181: #{tpu_custom_call.1} parent=1 // pred_fallthru
      _
    // Predicated region
    $region182: #{tpu_custom_call.1} parent=1 // pred_check
      _
    $region183: #{tpu_custom_call.1} parent=1 // pred_check_branch
      %281 = sbr.rel (0) target = $region185
    $region184: #{tpu_custom_call.1} parent=1 // pred_region
      %282 = dma.done [#allocation21], 64
    $region185: #{tpu_custom_call.1} parent=1 // pred_fallthru
      _
    %v283 = vld [vmem:[%s1] sm:$0xff]
    %v284 = vld [vmem:[%s1 + $0x8] sm:$0xff]
    %v285 = vld [vmem:[%s1 + $0x10] sm:$0xff]
    %v286 = vld [vmem:[%s1 + $0x18] sm:$0xff]
    %v287 = vld [vmem:[%s1 + $0x20] sm:$0xff]
    %v288 = vld [vmem:[%s1 + $0x28] sm:$0xff]
    %v289 = vld [vmem:[%s1 + $0x30] sm:$0xff]
    %v290 = vld [vmem:[%s1 + $0x38] sm:$0xff]
    %v291 = vld [vmem:[%s17] sm:$0x1]
    %v293 = vlaneseq
    %v294 = vshrl.u32 %v293, 7
    %v295 = vsub.s32 0, %v294
    %v296 = vrot.slane %v291, %v295
    %v298 = vmul.f32 %v283, %v296
    %v299 = vmul.f32 %v284, %v296
    %v300 = vmul.f32 %v285, %v296
    %v301 = vmul.f32 %v286, %v296
    %v302 = vmul.f32 %v287, %v296
    %v303 = vmul.f32 %v288, %v296
    %v304 = vmul.f32 %v289, %v296
    %v305 = vmul.f32 %v290, %v296
    %v306 = vld [vmem:[#allocation13] sm:$0x1]
    %v308 = vlaneseq
    %v309 = vshrl.u32 %v308, 7
    %v310 = vsub.s32 0, %v309
    %v311 = vrot.slane %v306, %v310
    %v313 = vadd.f32 %v298, %v311
    %v314 = vadd.f32 %v299, %v311
    %v315 = vadd.f32 %v300, %v311
    %v316 = vadd.f32 %v301, %v311
    %v317 = vadd.f32 %v302, %v311
    %v318 = vadd.f32 %v303, %v311
    %v319 = vadd.f32 %v304, %v311
    %v320 = vadd.f32 %v305, %v311
    %v321 = vmax.f32 %v313, 0.0
    %v322 = vmax.f32 %v314, 0.0
    %v323 = vmax.f32 %v315, 0.0
    %v324 = vmax.f32 %v316, 0.0
    %v325 = vmax.f32 %v317, 0.0
    %v326 = vmax.f32 %v318, 0.0
    %v327 = vmax.f32 %v319, 0.0
    %v328 = vmax.f32 %v320, 0.0
    %v329 = vld [vmem:[%s21] sm:$0x3]
    %v330 = vld [vmem:[#allocation14] sm:$0x1]
    %v332 = vlaneseq
    %v333 = vshrl.u32 %v332, 7
    %v334 = vsub.s32 0, %v333
    %v335 = vrot.slane %v330, %v334
    %vm337 = vcmask 15360
    %v339 = vsel %vm337, %v321, 0
    %v342 = vsel %vm337, %v322, 0
    %v345 = vsel %vm337, %v323, 0
    %v348 = vsel %vm337, %v324, 0
    %v351 = vsel %vm337, %v325, 0
    %v354 = vsel %vm337, %v326, 0
    %v357 = vsel %vm337, %v327, 0
    %v360 = vsel %vm337, %v328, 0
    %vm362 = vcmask 1041408
    %v364 = vsel %vm362, %v329, 0
    %366 = vmatprep.subr.mxu0 0.0
    %367 = vmatpush1.msra.mxu0 %v364
    %368 = vmatprep.subr.mxu0 0.0
    %369 = vmatpush1.msra.mxu0 0.0
    %370 = vmatprep.subr.mxu0 0.0
    %371 = vmatpush1.msra.mxu0 0.0
    %372 = vmatprep.subr.mxu0 0.0
    %373 = vmatpush1.msra.mxu0 0.0
    %374 = vmatprep.subr.mxu0 0.0
    %375 = vmatpush1.msra.mxu0 0.0
    %376 = vmatprep.subr.mxu0 0.0
    %377 = vmatpush1.msra.mxu0 0.0
    %378 = vmatprep.subr.mxu0 0.0
    %379 = vmatpush1.msra.mxu0 0.0
    %380 = vmatprep.subr.mxu0 0.0
    %381 = vmatpush1.msra.mxu0 0.0
    %382 = vmatprep.subr.mxu0 0.0
    %383 = vmatpush1.msra.mxu0 0.0
    %384 = vmatprep.subr.mxu0 0.0
    %385 = vmatpush1.msra.mxu0 0.0
    %386 = vmatprep.subr.mxu0 0.0
    %387 = vmatpush1.msra.mxu0 0.0
    %388 = vmatprep.subr.mxu0 0.0
    %389 = vmatpush1.msra.mxu0 0.0
    %390 = vmatprep.subr.mxu0 0.0
    %391 = vmatpush1.msra.mxu0 0.0
    %392 = vmatprep.subr.mxu0 0.0
    %393 = vmatpush1.msra.mxu0 0.0
    %394 = vmatprep.subr.mxu0 0.0
    %395 = vmatpush1.msra.mxu0 0.0
    %396 = vmatprep.subr.mxu0 0.0
    %397 = vmatpush1.msra.mxu0 0.0
    %398 = vmatprep.subr.mxu0 0.0
    %399 = vmatpush1.msra.mxu0 0.0
    %400 = vmatprep.subr.mxu0 0.0
    %401 = vmatpush1.msra.mxu0 0.0
    %402 = vmatprep.subr.mxu0 0.0
    %403 = vmatpush1.msra.mxu0 0.0
    %404 = vmatprep.subr.mxu0 0.0
    %405 = vmatpush1.msra.mxu0 0.0
    %406 = vmatprep.subr.mxu0 0.0
    %407 = vmatpush1.msra.mxu0 0.0
    %408 = vmatprep.subr.mxu0 0.0
    %409 = vmatpush1.msra.mxu0 0.0
    %410 = vmatprep.subr.mxu0 0.0
    %411 = vmatpush1.msra.mxu0 0.0
    %412 = vmatprep.subr.mxu0 0.0
    %413 = vmatpush1.msra.mxu0 0.0
    %414 = vmatprep.subr.mxu0 0.0
    %415 = vmatpush1.msra.mxu0 0.0
    %416 = vmatprep.subr.mxu0 0.0
    %417 = vmatpush1.msra.mxu0 0.0
    %418 = vmatprep.subr.mxu0 0.0
    %419 = vmatpush1.msra.mxu0 0.0
    %420 = vmatprep.subr.mxu0 0.0
    %421 = vmatpush1.msra.mxu0 0.0
    %422 = vmatprep.subr.mxu0 0.0
    %423 = vmatpush1.msra.mxu0 0.0
    %424 = vmatprep.subr.mxu0 0.0
    %425 = vmatpush1.msra.mxu0 0.0
    %426 = vmatprep.subr.mxu0 0.0
    %427 = vmatpush1.msra.mxu0 0.0
    %428 = vmatprep.subr.mxu0 0.0
    %429 = vmatpush1.msra.mxu0 0.0
    %430 = vmatprep.mubr.f32.mxu0 0.0
    %431 = vmatmul.mubr.f32.gmra.mrb[0].mxu0 %v339
    %v432 = vpop.f32.mrb[0].mxu0
    %v433 = vadd.f32 %v335, %v432
    %v434 = vpop.f32.mrb[0].mxu0
    %435 = vmatprep.mubr.f32.mxu0 0.0
    %436 = vmatmul.mubr.f32.gmra.mrb[0].mxu0 %v342
    %v437 = vpop.f32.mrb[0].mxu0
    %v438 = vadd.f32 %v335, %v437
    %v439 = vpop.f32.mrb[0].mxu0
    %440 = vmatprep.mubr.f32.mxu0 0.0
    %441 = vmatmul.mubr.f32.gmra.mrb[0].mxu0 %v345
    %v442 = vpop.f32.mrb[0].mxu0
    %v443 = vadd.f32 %v335, %v442
    %v444 = vpop.f32.mrb[0].mxu0
    %445 = vmatprep.mubr.f32.mxu0 0.0
    %446 = vmatmul.mubr.f32.gmra.mrb[0].mxu0 %v348
    %v447 = vpop.f32.mrb[0].mxu0
    %v448 = vadd.f32 %v335, %v447
    %v449 = vpop.f32.mrb[0].mxu0
    %450 = vmatprep.mubr.f32.mxu0 0.0
    %451 = vmatmul.mubr.f32.gmra.mrb[0].mxu0 %v351
    %v452 = vpop.f32.mrb[0].mxu0
    %v453 = vadd.f32 %v335, %v452
    %v454 = vpop.f32.mrb[0].mxu0
    %455 = vmatprep.mubr.f32.mxu0 0.0
    %456 = vmatmul.mubr.f32.gmra.mrb[0].mxu0 %v354
    %v457 = vpop.f32.mrb[0].mxu0
    %v458 = vadd.f32 %v335, %v457
    %v459 = vpop.f32.mrb[0].mxu0
    %460 = vmatprep.mubr.f32.mxu0 0.0
    %461 = vmatmul.mubr.f32.gmra.mrb[0].mxu0 %v357
    %v462 = vpop.f32.mrb[0].mxu0
    %v463 = vadd.f32 %v335, %v462
    %v464 = vpop.f32.mrb[0].mxu0
    %465 = vmatprep.mubr.f32.mxu0 0.0
    %466 = vmatmul.mubr.f32.gmra.mrb[0].mxu0 %v360
    %v467 = vpop.f32.mrb[0].mxu0
    %v468 = vadd.f32 %v335, %v467
    %v469 = vpop.f32.mrb[0].mxu0
    %470 = vdwg.mxu0
    %v471 = vmax.f32 %v433, 0.0
    %v472 = vmax.f32 %v438, 0.0
    %v473 = vmax.f32 %v443, 0.0
    %v474 = vmax.f32 %v448, 0.0
    %v475 = vmax.f32 %v453, 0.0
    %v476 = vmax.f32 %v458, 0.0
    %v477 = vmax.f32 %v463, 0.0
    %v478 = vmax.f32 %v468, 0.0
    %v479 = vld [vmem:[%s25] sm:$0xff]
    %v480 = vld [vmem:[%s25 + $0x8] sm:$0xff]
    %v481 = vld [vmem:[%s25 + $0x10] sm:$0xff]
    %v482 = vld [vmem:[%s25 + $0x18] sm:$0xff]
    %v483 = vld [vmem:[#allocation16] sm:$0x1]
    %v485 = vlaneseq
    %v486 = vshrl.u32 %v485, 7
    %v487 = vsub.s32 0, %v486
    %v488 = vrot.slane %v483, %v487
    %vm490 = vcmask 261120
    %v492 = vsel %vm490, %v471, 0
    %v495 = vsel %vm490, %v472, 0
    %v498 = vsel %vm490, %v473, 0
    %v501 = vsel %vm490, %v474, 0
    %v504 = vsel %vm490, %v475, 0
    %v507 = vsel %vm490, %v476, 0
    %v510 = vsel %vm490, %v477, 0
    %v513 = vsel %vm490, %v478, 0
    %515 = vmatprep.subr.mxu0 0.0
    %516 = vmatpush1.msra.mxu0 %v479
    %517 = vmatprep.subr.mxu0 0.0
    %518 = vmatpush1.msra.mxu0 %v480
    %519 = vmatprep.subr.mxu0 0.0
    %520 = vmatpush1.msra.mxu0 %v481
    %521 = vmatprep.subr.mxu0 0.0
    %522 = vmatpush1.msra.mxu0 %v482
    %523 = vmatprep.subr.mxu0 0.0
    %524 = vmatpush1.msra.mxu0 0.0
    %525 = vmatprep.subr.mxu0 0.0
    %526 = vmatpush1.msra.mxu0 0.0
    %527 = vmatprep.subr.mxu0 0.0
    %528 = vmatpush1.msra.mxu0 0.0
    %529 = vmatprep.subr.mxu0 0.0
    %530 = vmatpush1.msra.mxu0 0.0
    %531 = vmatprep.subr.mxu0 0.0
    %532 = vmatpush1.msra.mxu0 0.0
    %533 = vmatprep.subr.mxu0 0.0
    %534 = vmatpush1.msra.mxu0 0.0
    %535 = vmatprep.subr.mxu0 0.0
    %536 = vmatpush1.msra.mxu0 0.0
    %537 = vmatprep.subr.mxu0 0.0
    %538 = vmatpush1.msra.mxu0 0.0
    %539 = vmatprep.subr.mxu0 0.0
    %540 = vmatpush1.msra.mxu0 0.0
    %541 = vmatprep.subr.mxu0 0.0
    %542 = vmatpush1.msra.mxu0 0.0
    %543 = vmatprep.subr.mxu0 0.0
    %544 = vmatpush1.msra.mxu0 0.0
    %545 = vmatprep.subr.mxu0 0.0
    %546 = vmatpush1.msra.mxu0 0.0
    %547 = vmatprep.subr.mxu0 0.0
    %548 = vmatpush1.msra.mxu0 0.0
    %549 = vmatprep.subr.mxu0 0.0
    %550 = vmatpush1.msra.mxu0 0.0
    %551 = vmatprep.subr.mxu0 0.0
    %552 = vmatpush1.msra.mxu0 0.0
    %553 = vmatprep.subr.mxu0 0.0
    %554 = vmatpush1.msra.mxu0 0.0
    %555 = vmatprep.subr.mxu0 0.0
    %556 = vmatpush1.msra.mxu0 0.0
    %557 = vmatprep.subr.mxu0 0.0
    %558 = vmatpush1.msra.mxu0 0.0
    %559 = vmatprep.subr.mxu0 0.0
    %560 = vmatpush1.msra.mxu0 0.0
    %561 = vmatprep.subr.mxu0 0.0
    %562 = vmatpush1.msra.mxu0 0.0
    %563 = vmatprep.subr.mxu0 0.0
    %564 = vmatpush1.msra.mxu0 0.0
    %565 = vmatprep.subr.mxu0 0.0
    %566 = vmatpush1.msra.mxu0 0.0
    %567 = vmatprep.subr.mxu0 0.0
    %568 = vmatpush1.msra.mxu0 0.0
    %569 = vmatprep.subr.mxu0 0.0
    %570 = vmatpush1.msra.mxu0 0.0
    %571 = vmatprep.subr.mxu0 0.0
    %572 = vmatpush1.msra.mxu0 0.0
    %573 = vmatprep.subr.mxu0 0.0
    %574 = vmatpush1.msra.mxu0 0.0
    %575 = vmatprep.subr.mxu0 0.0
    %576 = vmatpush1.msra.mxu0 0.0
    %577 = vmatprep.subr.mxu0 0.0
    %578 = vmatpush1.msra.mxu0 0.0
    %579 = vmatprep.mubr.f32.mxu0 0.0
    %580 = vmatmul.mubr.f32.gmra.mrb[0].mxu0 %v492
    %v581 = vpop.f32.mrb[0].mxu0
    %v582 = vadd.f32 %v488, %v581
    %v583 = vpop.f32.mrb[0].mxu0
    %584 = vmatprep.mubr.f32.mxu0 0.0
    %585 = vmatmul.mubr.f32.gmra.mrb[0].mxu0 %v495
    %v586 = vpop.f32.mrb[0].mxu0
    %v587 = vadd.f32 %v488, %v586
    %v588 = vpop.f32.mrb[0].mxu0
    %589 = vmatprep.mubr.f32.mxu0 0.0
    %590 = vmatmul.mubr.f32.gmra.mrb[0].mxu0 %v498
    %v591 = vpop.f32.mrb[0].mxu0
    %v592 = vadd.f32 %v488, %v591
    %v593 = vpop.f32.mrb[0].mxu0
    %594 = vmatprep.mubr.f32.mxu0 0.0
    %595 = vmatmul.mubr.f32.gmra.mrb[0].mxu0 %v501
    %v596 = vpop.f32.mrb[0].mxu0
    %v597 = vadd.f32 %v488, %v596
    %v598 = vpop.f32.mrb[0].mxu0
    %599 = vmatprep.mubr.f32.mxu0 0.0
    %600 = vmatmul.mubr.f32.gmra.mrb[0].mxu0 %v504
    %v601 = vpop.f32.mrb[0].mxu0
    %v602 = vadd.f32 %v488, %v601
    %v603 = vpop.f32.mrb[0].mxu0
    %604 = vmatprep.mubr.f32.mxu0 0.0
    %605 = vmatmul.mubr.f32.gmra.mrb[0].mxu0 %v507
    %v606 = vpop.f32.mrb[0].mxu0
    %v607 = vadd.f32 %v488, %v606
    %v608 = vpop.f32.mrb[0].mxu0
    %609 = vmatprep.mubr.f32.mxu0 0.0
    %610 = vmatmul.mubr.f32.gmra.mrb[0].mxu0 %v510
    %v611 = vpop.f32.mrb[0].mxu0
    %v612 = vadd.f32 %v488, %v611
    %v613 = vpop.f32.mrb[0].mxu0
    %614 = vmatprep.mubr.f32.mxu0 0.0
    %615 = vmatmul.mubr.f32.gmra.mrb[0].mxu0 %v513
    %v616 = vpop.f32.mrb[0].mxu0
    %v617 = vadd.f32 %v488, %v616
    %v618 = vpop.f32.mrb[0].mxu0
    %619 = vdwg.mxu0
    %v620 = vmax.f32 %v582, 0.0
    %v621 = vmax.f32 %v587, 0.0
    %v622 = vmax.f32 %v592, 0.0
    %v623 = vmax.f32 %v597, 0.0
    %v624 = vmax.f32 %v602, 0.0
    %v625 = vmax.f32 %v607, 0.0
    %v626 = vmax.f32 %v612, 0.0
    %v627 = vmax.f32 %v617, 0.0
    %v628 = vld [vmem:[%s3] sm:$0xff]
    %v629 = vld [vmem:[%s3 + $0x8] sm:$0xff]
    %v630 = vld [vmem:[%s3 + $0x10] sm:$0xff]
    %v631 = vld [vmem:[%s3 + $0x18] sm:$0xff]
    %v632 = vld [vmem:[%s3 + $0x20] sm:$0xff]
    %v633 = vld [vmem:[%s3 + $0x28] sm:$0xff]
    %v634 = vld [vmem:[%s3 + $0x30] sm:$0xff]
    %v635 = vld [vmem:[%s3 + $0x38] sm:$0xff]
    %v636 = vld [vmem:[#allocation17] sm:$0x1]
    %v638 = vlaneseq
    %v639 = vshrl.u32 %v638, 7
    %v640 = vsub.s32 0, %v639
    %v641 = vrot.slane %v636, %v640
    %v643 = vmul.f32 %v628, %v641
    %v644 = vmul.f32 %v629, %v641
    %v645 = vmul.f32 %v630, %v641
    %v646 = vmul.f32 %v631, %v641
    %v647 = vmul.f32 %v632, %v641
    %v648 = vmul.f32 %v633, %v641
    %v649 = vmul.f32 %v634, %v641
    %v650 = vmul.f32 %v635, %v641
    %v651 = vld [vmem:[#allocation19] sm:$0x1]
    %v653 = vlaneseq
    %v654 = vshrl.u32 %v653, 7
    %v655 = vsub.s32 0, %v654
    %v656 = vrot.slane %v651, %v655
    %v658 = vadd.f32 %v643, %v656
    %v659 = vadd.f32 %v644, %v656
    %v660 = vadd.f32 %v645, %v656
    %v661 = vadd.f32 %v646, %v656
    %v662 = vadd.f32 %v647, %v656
    %v663 = vadd.f32 %v648, %v656
    %v664 = vadd.f32 %v649, %v656
    %v665 = vadd.f32 %v650, %v656
    %v666 = vmax.f32 %v658, 0.0
    %v667 = vmax.f32 %v659, 0.0
    %v668 = vmax.f32 %v660, 0.0
    %v669 = vmax.f32 %v661, 0.0
    %v670 = vmax.f32 %v662, 0.0
    %v671 = vmax.f32 %v663, 0.0
    %v672 = vmax.f32 %v664, 0.0
    %v673 = vmax.f32 %v665, 0.0
    %v674 = vld [vmem:[#allocation20] sm:$0xf]
    %v675 = vld [vmem:[%s35] sm:$0x1]
    %v677 = vlaneseq
    %v678 = vshrl.u32 %v677, 7
    %v679 = vsub.s32 0, %v678
    %v680 = vrot.slane %v675, %v679
    %vm682 = vcmask 31744
    %v684 = vsel %vm682, %v666, 0
    %v687 = vsel %vm682, %v667, 0
    %v690 = vsel %vm682, %v668, 0
    %v693 = vsel %vm682, %v669, 0
    %v696 = vsel %vm682, %v670, 0
    %v699 = vsel %vm682, %v671, 0
    %v702 = vsel %vm682, %v672, 0
    %v705 = vsel %vm682, %v673, 0
    %vm707 = vcmask 1043456
    %v709 = vsel %vm707, %v674, 0
    %711 = vmatprep.subr.mxu0 0.0
    %712 = vmatpush1.msra.mxu0 %v709
    %713 = vmatprep.subr.mxu0 0.0
    %714 = vmatpush1.msra.mxu0 0.0
    %715 = vmatprep.subr.mxu0 0.0
    %716 = vmatpush1.msra.mxu0 0.0
    %717 = vmatprep.subr.mxu0 0.0
    %718 = vmatpush1.msra.mxu0 0.0
    %719 = vmatprep.subr.mxu0 0.0
    %720 = vmatpush1.msra.mxu0 0.0
    %721 = vmatprep.subr.mxu0 0.0
    %722 = vmatpush1.msra.mxu0 0.0
    %723 = vmatprep.subr.mxu0 0.0
    %724 = vmatpush1.msra.mxu0 0.0
    %725 = vmatprep.subr.mxu0 0.0
    %726 = vmatpush1.msra.mxu0 0.0
    %727 = vmatprep.subr.mxu0 0.0
    %728 = vmatpush1.msra.mxu0 0.0
    %729 = vmatprep.subr.mxu0 0.0
    %730 = vmatpush1.msra.mxu0 0.0
    %731 = vmatprep.subr.mxu0 0.0
    %732 = vmatpush1.msra.mxu0 0.0
    %733 = vmatprep.subr.mxu0 0.0
    %734 = vmatpush1.msra.mxu0 0.0
    %735 = vmatprep.subr.mxu0 0.0
    %736 = vmatpush1.msra.mxu0 0.0
    %737 = vmatprep.subr.mxu0 0.0
    %738 = vmatpush1.msra.mxu0 0.0
    %739 = vmatprep.subr.mxu0 0.0
    %740 = vmatpush1.msra.mxu0 0.0
    %741 = vmatprep.subr.mxu0 0.0
    %742 = vmatpush1.msra.mxu0 0.0
    %743 = vmatprep.subr.mxu0 0.0
    %744 = vmatpush1.msra.mxu0 0.0
    %745 = vmatprep.subr.mxu0 0.0
    %746 = vmatpush1.msra.mxu0 0.0
    %747 = vmatprep.subr.mxu0 0.0
    %748 = vmatpush1.msra.mxu0 0.0
    %749 = vmatprep.subr.mxu0 0.0
    %750 = vmatpush1.msra.mxu0 0.0
    %751 = vmatprep.subr.mxu0 0.0
    %752 = vmatpush1.msra.mxu0 0.0
    %753 = vmatprep.subr.mxu0 0.0
    %754 = vmatpush1.msra.mxu0 0.0
    %755 = vmatprep.subr.mxu0 0.0
    %756 = vmatpush1.msra.mxu0 0.0
    %757 = vmatprep.subr.mxu0 0.0
    %758 = vmatpush1.msra.mxu0 0.0
    %759 = vmatprep.subr.mxu0 0.0
    %760 = vmatpush1.msra.mxu0 0.0
    %761 = vmatprep.subr.mxu0 0.0
    %762 = vmatpush1.msra.mxu0 0.0
    %763 = vmatprep.subr.mxu0 0.0
    %764 = vmatpush1.msra.mxu0 0.0
    %765 = vmatprep.subr.mxu0 0.0
    %766 = vmatpush1.msra.mxu0 0.0
    %767 = vmatprep.subr.mxu0 0.0
    %768 = vmatpush1.msra.mxu0 0.0
    %769 = vmatprep.subr.mxu0 0.0
    %770 = vmatpush1.msra.mxu0 0.0
    %771 = vmatprep.subr.mxu0 0.0
    %772 = vmatpush1.msra.mxu0 0.0
    %773 = vmatprep.subr.mxu0 0.0
    %774 = vmatpush1.msra.mxu0 0.0
    %775 = vmatprep.mubr.f32.mxu0 0.0
    %776 = vmatmul.mubr.f32.gmra.mrb[0].mxu0 %v684
    %v777 = vpop.f32.mrb[0].mxu0
    %v778 = vadd.f32 %v680, %v777
    %v779 = vpop.f32.mrb[0].mxu0
    %780 = vmatprep.mubr.f32.mxu0 0.0
    %781 = vmatmul.mubr.f32.gmra.mrb[0].mxu0 %v687
    %v782 = vpop.f32.mrb[0].mxu0
    %v783 = vadd.f32 %v680, %v782
    %v784 = vpop.f32.mrb[0].mxu0
    %785 = vmatprep.mubr.f32.mxu0 0.0
    %786 = vmatmul.mubr.f32.gmra.mrb[0].mxu0 %v690
    %v787 = vpop.f32.mrb[0].mxu0
    %v788 = vadd.f32 %v680, %v787
    %v789 = vpop.f32.mrb[0].mxu0
    %790 = vmatprep.mubr.f32.mxu0 0.0
    %791 = vmatmul.mubr.f32.gmra.mrb[0].mxu0 %v693
    %v792 = vpop.f32.mrb[0].mxu0
    %v793 = vadd.f32 %v680, %v792
    %v794 = vpop.f32.mrb[0].mxu0
    %795 = vmatprep.mubr.f32.mxu0 0.0
    %796 = vmatmul.mubr.f32.gmra.mrb[0].mxu0 %v696
    %v797 = vpop.f32.mrb[0].mxu0
    %v798 = vadd.f32 %v680, %v797
    %v799 = vpop.f32.mrb[0].mxu0
    %800 = vmatprep.mubr.f32.mxu0 0.0
    %801 = vmatmul.mubr.f32.gmra.mrb[0].mxu0 %v699
    %v802 = vpop.f32.mrb[0].mxu0
    %v803 = vadd.f32 %v680, %v802
    %v804 = vpop.f32.mrb[0].mxu0
    %805 = vmatprep.mubr.f32.mxu0 0.0
    %806 = vmatmul.mubr.f32.gmra.mrb[0].mxu0 %v702
    %v807 = vpop.f32.mrb[0].mxu0
    %v808 = vadd.f32 %v680, %v807
    %v809 = vpop.f32.mrb[0].mxu0
    %810 = vmatprep.mubr.f32.mxu0 0.0
    %811 = vmatmul.mubr.f32.gmra.mrb[0].mxu0 %v705
    %v812 = vpop.f32.mrb[0].mxu0
    %v813 = vadd.f32 %v680, %v812
    %v814 = vpop.f32.mrb[0].mxu0
    %815 = vdwg.mxu0
    %v816 = vmax.f32 %v778, 0.0
    %v817 = vmax.f32 %v783, 0.0
    %v818 = vmax.f32 %v788, 0.0
    %v819 = vmax.f32 %v793, 0.0
    %v820 = vmax.f32 %v798, 0.0
    %v821 = vmax.f32 %v803, 0.0
    %v822 = vmax.f32 %v808, 0.0
    %v823 = vmax.f32 %v813, 0.0
    %v824 = vld [vmem:[%s37] sm:$0xff]
    %v825 = vld [vmem:[%s37 + $0x8] sm:$0xff]
    %v826 = vld [vmem:[%s37 + $0x10] sm:$0xff]
    %v827 = vld [vmem:[%s37 + $0x18] sm:$0xff]
    %v828 = vld [vmem:[%s39] sm:$0x1]
    %v830 = vlaneseq
    %v831 = vshrl.u32 %v830, 7
    %v832 = vsub.s32 0, %v831
    %v833 = vrot.slane %v828, %v832
    %v836 = vsel %vm490, %v816, 0
    %v839 = vsel %vm490, %v817, 0
    %v842 = vsel %vm490, %v818, 0
    %v845 = vsel %vm490, %v819, 0
    %v848 = vsel %vm490, %v820, 0
    %v851 = vsel %vm490, %v821, 0
    %v854 = vsel %vm490, %v822, 0
    %v857 = vsel %vm490, %v823, 0
    %859 = vmatprep.subr.mxu0 0.0
    %860 = vmatpush1.msra.mxu0 %v824
    %861 = vmatprep.subr.mxu0 0.0
    %862 = vmatpush1.msra.mxu0 %v825
    %863 = vmatprep.subr.mxu0 0.0
    %864 = vmatpush1.msra.mxu0 %v826
    %865 = vmatprep.subr.mxu0 0.0
    %866 = vmatpush1.msra.mxu0 %v827
    %867 = vmatprep.subr.mxu0 0.0
    %868 = vmatpush1.msra.mxu0 0.0
    %869 = vmatprep.subr.mxu0 0.0
    %870 = vmatpush1.msra.mxu0 0.0
    %871 = vmatprep.subr.mxu0 0.0
    %872 = vmatpush1.msra.mxu0 0.0
    %873 = vmatprep.subr.mxu0 0.0
    %874 = vmatpush1.msra.mxu0 0.0
    %875 = vmatprep.subr.mxu0 0.0
    %876 = vmatpush1.msra.mxu0 0.0
    %877 = vmatprep.subr.mxu0 0.0
    %878 = vmatpush1.msra.mxu0 0.0
    %879 = vmatprep.subr.mxu0 0.0
    %880 = vmatpush1.msra.mxu0 0.0
    %881 = vmatprep.subr.mxu0 0.0
    %882 = vmatpush1.msra.mxu0 0.0
    %883 = vmatprep.subr.mxu0 0.0
    %884 = vmatpush1.msra.mxu0 0.0
    %885 = vmatprep.subr.mxu0 0.0
    %886 = vmatpush1.msra.mxu0 0.0
    %887 = vmatprep.subr.mxu0 0.0
    %888 = vmatpush1.msra.mxu0 0.0
    %889 = vmatprep.subr.mxu0 0.0
    %890 = vmatpush1.msra.mxu0 0.0
    %891 = vmatprep.subr.mxu0 0.0
    %892 = vmatpush1.msra.mxu0 0.0
    %893 = vmatprep.subr.mxu0 0.0
    %894 = vmatpush1.msra.mxu0 0.0
    %895 = vmatprep.subr.mxu0 0.0
    %896 = vmatpush1.msra.mxu0 0.0
    %897 = vmatprep.subr.mxu0 0.0
    %898 = vmatpush1.msra.mxu0 0.0
    %899 = vmatprep.subr.mxu0 0.0
    %900 = vmatpush1.msra.mxu0 0.0
    %901 = vmatprep.subr.mxu0 0.0
    %902 = vmatpush1.msra.mxu0 0.0
    %903 = vmatprep.subr.mxu0 0.0
    %904 = vmatpush1.msra.mxu0 0.0
    %905 = vmatprep.subr.mxu0 0.0
    %906 = vmatpush1.msra.mxu0 0.0
    %907 = vmatprep.subr.mxu0 0.0
    %908 = vmatpush1.msra.mxu0 0.0
    %909 = vmatprep.subr.mxu0 0.0
    %910 = vmatpush1.msra.mxu0 0.0
    %911 = vmatprep.subr.mxu0 0.0
    %912 = vmatpush1.msra.mxu0 0.0
    %913 = vmatprep.subr.mxu0 0.0
    %914 = vmatpush1.msra.mxu0 0.0
    %915 = vmatprep.subr.mxu0 0.0
    %916 = vmatpush1.msra.mxu0 0.0
    %917 = vmatprep.subr.mxu0 0.0
    %918 = vmatpush1.msra.mxu0 0.0
    %919 = vmatprep.subr.mxu0 0.0
    %920 = vmatpush1.msra.mxu0 0.0
    %921 = vmatprep.subr.mxu0 0.0
    %922 = vmatpush1.msra.mxu0 0.0
    %923 = vmatprep.mubr.f32.mxu0 0.0
    %924 = vmatmul.mubr.f32.gmra.mrb[0].mxu0 %v836
    %v925 = vpop.f32.mrb[0].mxu0
    %v926 = vadd.f32 %v833, %v925
    %v927 = vpop.f32.mrb[0].mxu0
    %928 = vmatprep.mubr.f32.mxu0 0.0
    %929 = vmatmul.mubr.f32.gmra.mrb[0].mxu0 %v839
    %v930 = vpop.f32.mrb[0].mxu0
    %v931 = vadd.f32 %v833, %v930
    %v932 = vpop.f32.mrb[0].mxu0
    %933 = vmatprep.mubr.f32.mxu0 0.0
    %934 = vmatmul.mubr.f32.gmra.mrb[0].mxu0 %v842
    %v935 = vpop.f32.mrb[0].mxu0
    %v936 = vadd.f32 %v833, %v935
    %v937 = vpop.f32.mrb[0].mxu0
    %938 = vmatprep.mubr.f32.mxu0 0.0
    %939 = vmatmul.mubr.f32.gmra.mrb[0].mxu0 %v845
    %v940 = vpop.f32.mrb[0].mxu0
    %v941 = vadd.f32 %v833, %v940
    %v942 = vpop.f32.mrb[0].mxu0
    %943 = vmatprep.mubr.f32.mxu0 0.0
    %944 = vmatmul.mubr.f32.gmra.mrb[0].mxu0 %v848
    %v945 = vpop.f32.mrb[0].mxu0
    %v946 = vadd.f32 %v833, %v945
    %v947 = vpop.f32.mrb[0].mxu0
    %948 = vmatprep.mubr.f32.mxu0 0.0
    %949 = vmatmul.mubr.f32.gmra.mrb[0].mxu0 %v851
    %v950 = vpop.f32.mrb[0].mxu0
    %v951 = vadd.f32 %v833, %v950
    %v952 = vpop.f32.mrb[0].mxu0
    %953 = vmatprep.mubr.f32.mxu0 0.0
    %954 = vmatmul.mubr.f32.gmra.mrb[0].mxu0 %v854
    %v955 = vpop.f32.mrb[0].mxu0
    %v956 = vadd.f32 %v833, %v955
    %v957 = vpop.f32.mrb[0].mxu0
    %958 = vmatprep.mubr.f32.mxu0 0.0
    %959 = vmatmul.mubr.f32.gmra.mrb[0].mxu0 %v857
    %v960 = vpop.f32.mrb[0].mxu0
    %v961 = vadd.f32 %v833, %v960
    %v962 = vpop.f32.mrb[0].mxu0
    %963 = vdwg.mxu0
    %v964 = vmax.f32 %v926, 0.0
    %v965 = vmax.f32 %v931, 0.0
    %v966 = vmax.f32 %v936, 0.0
    %v967 = vmax.f32 %v941, 0.0
    %v968 = vmax.f32 %v946, 0.0
    %v969 = vmax.f32 %v951, 0.0
    %v970 = vmax.f32 %v956, 0.0
    %v971 = vmax.f32 %v961, 0.0
    %v972 = vld [vmem:[%s41] sm:$0xff]
    %v973 = vld [vmem:[%s41 + $0x8] sm:$0xff]
    %v974 = vld [vmem:[%s45] sm:$0x1]
    %v976 = vlaneseq
    %v977 = vshrl.u32 %v976, 7
    %v978 = vsub.s32 0, %v977
    %v979 = vrot.slane %v974, %v978
    %vm981 = vcmask 130048
    %v983 = vsel %vm981, %v620, 0
    %v986 = vsel %vm981, %v621, 0
    %v989 = vsel %vm981, %v622, 0
    %v992 = vsel %vm981, %v623, 0
    %v995 = vsel %vm981, %v624, 0
    %v998 = vsel %vm981, %v625, 0
    %v1001 = vsel %vm981, %v626, 0
    %v1004 = vsel %vm981, %v627, 0
    %1006 = vmatprep.subr.mxu0 0.0
    %1007 = vmatpush1.msra.mxu0 %v972
    %1008 = vmatprep.subr.mxu0 0.0
    %1009 = vmatpush1.msra.mxu0 %v973
    %1010 = vmatprep.subr.mxu0 0.0
    %1011 = vmatpush1.msra.mxu0 0.0
    %1012 = vmatprep.subr.mxu0 0.0
    %1013 = vmatpush1.msra.mxu0 0.0
    %1014 = vmatprep.subr.mxu0 0.0
    %1015 = vmatpush1.msra.mxu0 0.0
    %1016 = vmatprep.subr.mxu0 0.0
    %1017 = vmatpush1.msra.mxu0 0.0
    %1018 = vmatprep.subr.mxu0 0.0
    %1019 = vmatpush1.msra.mxu0 0.0
    %1020 = vmatprep.subr.mxu0 0.0
    %1021 = vmatpush1.msra.mxu0 0.0
    %1022 = vmatprep.subr.mxu0 0.0
    %1023 = vmatpush1.msra.mxu0 0.0
    %1024 = vmatprep.subr.mxu0 0.0
    %1025 = vmatpush1.msra.mxu0 0.0
    %1026 = vmatprep.subr.mxu0 0.0
    %1027 = vmatpush1.msra.mxu0 0.0
    %1028 = vmatprep.subr.mxu0 0.0
    %1029 = vmatpush1.msra.mxu0 0.0
    %1030 = vmatprep.subr.mxu0 0.0
    %1031 = vmatpush1.msra.mxu0 0.0
    %1032 = vmatprep.subr.mxu0 0.0
    %1033 = vmatpush1.msra.mxu0 0.0
    %1034 = vmatprep.subr.mxu0 0.0
    %1035 = vmatpush1.msra.mxu0 0.0
    %1036 = vmatprep.subr.mxu0 0.0
    %1037 = vmatpush1.msra.mxu0 0.0
    %1038 = vmatprep.subr.mxu0 0.0
    %1039 = vmatpush1.msra.mxu0 0.0
    %1040 = vmatprep.subr.mxu0 0.0
    %1041 = vmatpush1.msra.mxu0 0.0
    %1042 = vmatprep.subr.mxu0 0.0
    %1043 = vmatpush1.msra.mxu0 0.0
    %1044 = vmatprep.subr.mxu0 0.0
    %1045 = vmatpush1.msra.mxu0 0.0
    %1046 = vmatprep.subr.mxu0 0.0
    %1047 = vmatpush1.msra.mxu0 0.0
    %1048 = vmatprep.subr.mxu0 0.0
    %1049 = vmatpush1.msra.mxu0 0.0
    %1050 = vmatprep.subr.mxu0 0.0
    %1051 = vmatpush1.msra.mxu0 0.0
    %1052 = vmatprep.subr.mxu0 0.0
    %1053 = vmatpush1.msra.mxu0 0.0
    %1054 = vmatprep.subr.mxu0 0.0
    %1055 = vmatpush1.msra.mxu0 0.0
    %1056 = vmatprep.subr.mxu0 0.0
    %1057 = vmatpush1.msra.mxu0 0.0
    %1058 = vmatprep.subr.mxu0 0.0
    %1059 = vmatpush1.msra.mxu0 0.0
    %1060 = vmatprep.subr.mxu0 0.0
    %1061 = vmatpush1.msra.mxu0 0.0
    %1062 = vmatprep.subr.mxu0 0.0
    %1063 = vmatpush1.msra.mxu0 0.0
    %1064 = vmatprep.subr.mxu0 0.0
    %1065 = vmatpush1.msra.mxu0 0.0
    %1066 = vmatprep.subr.mxu0 0.0
    %1067 = vmatpush1.msra.mxu0 0.0
    %1068 = vmatprep.subr.mxu0 0.0
    %1069 = vmatpush1.msra.mxu0 0.0
    %1070 = vmatprep.mubr.f32.mxu0 0.0
    %1071 = vmatmul.mubr.f32.gmra.mrb[0].mxu0 %v983
    %v1072 = vpop.f32.mrb[0].mxu0
    %v1073 = vadd.f32 %v979, %v1072
    %v1074 = vpop.f32.mrb[0].mxu0
    %1075 = vmatprep.mubr.f32.mxu0 0.0
    %1076 = vmatmul.mubr.f32.gmra.mrb[0].mxu0 %v986
    %v1077 = vpop.f32.mrb[0].mxu0
    %v1078 = vadd.f32 %v979, %v1077
    %v1079 = vpop.f32.mrb[0].mxu0
    %1080 = vmatprep.mubr.f32.mxu0 0.0
    %1081 = vmatmul.mubr.f32.gmra.mrb[0].mxu0 %v989
    %v1082 = vpop.f32.mrb[0].mxu0
    %v1083 = vadd.f32 %v979, %v1082
    %v1084 = vpop.f32.mrb[0].mxu0
    %1085 = vmatprep.mubr.f32.mxu0 0.0
    %1086 = vmatmul.mubr.f32.gmra.mrb[0].mxu0 %v992
    %v1087 = vpop.f32.mrb[0].mxu0
    %v1088 = vadd.f32 %v979, %v1087
    %v1089 = vpop.f32.mrb[0].mxu0
    %1090 = vmatprep.mubr.f32.mxu0 0.0
    %1091 = vmatmul.mubr.f32.gmra.mrb[0].mxu0 %v995
    %v1092 = vpop.f32.mrb[0].mxu0
    %v1093 = vadd.f32 %v979, %v1092
    %v1094 = vpop.f32.mrb[0].mxu0
    %1095 = vmatprep.mubr.f32.mxu0 0.0
    %1096 = vmatmul.mubr.f32.gmra.mrb[0].mxu0 %v998
    %v1097 = vpop.f32.mrb[0].mxu0
    %v1098 = vadd.f32 %v979, %v1097
    %v1099 = vpop.f32.mrb[0].mxu0
    %1100 = vmatprep.mubr.f32.mxu0 0.0
    %1101 = vmatmul.mubr.f32.gmra.mrb[0].mxu0 %v1001
    %v1102 = vpop.f32.mrb[0].mxu0
    %v1103 = vadd.f32 %v979, %v1102
    %v1104 = vpop.f32.mrb[0].mxu0
    %1105 = vmatprep.mubr.f32.mxu0 0.0
    %1106 = vmatmul.mubr.f32.gmra.mrb[0].mxu0 %v1004
    %v1107 = vpop.f32.mrb[0].mxu0
    %v1108 = vadd.f32 %v979, %v1107
    %v1109 = vpop.f32.mrb[0].mxu0
    %1110 = vdwg.mxu0
    %v1111 = vld [vmem:[%s47] sm:$0xff]
    %v1112 = vld [vmem:[%s47 + $0x8] sm:$0xff]
    %v1113 = vld [vmem:[%s51] sm:$0x1]
    %v1115 = vlaneseq
    %v1116 = vshrl.u32 %v1115, 7
    %v1117 = vsub.s32 0, %v1116
    %v1118 = vrot.slane %v1113, %v1117
    %v1121 = vsel %vm981, %v964, 0
    %v1124 = vsel %vm981, %v965, 0
    %v1127 = vsel %vm981, %v966, 0
    %v1130 = vsel %vm981, %v967, 0
    %v1133 = vsel %vm981, %v968, 0
    %v1136 = vsel %vm981, %v969, 0
    %v1139 = vsel %vm981, %v970, 0
    %v1142 = vsel %vm981, %v971, 0
    %1144 = vmatprep.subr.mxu0 0.0
    %1145 = vmatpush1.msra.mxu0 %v1111
    %1146 = vmatprep.subr.mxu0 0.0
    %1147 = vmatpush1.msra.mxu0 %v1112
    %1148 = vmatprep.subr.mxu0 0.0
    %1149 = vmatpush1.msra.mxu0 0.0
    %1150 = vmatprep.subr.mxu0 0.0
    %1151 = vmatpush1.msra.mxu0 0.0
    %1152 = vmatprep.subr.mxu0 0.0
    %1153 = vmatpush1.msra.mxu0 0.0
    %1154 = vmatprep.subr.mxu0 0.0
    %1155 = vmatpush1.msra.mxu0 0.0
    %1156 = vmatprep.subr.mxu0 0.0
    %1157 = vmatpush1.msra.mxu0 0.0
    %1158 = vmatprep.subr.mxu0 0.0
    %1159 = vmatpush1.msra.mxu0 0.0
    %1160 = vmatprep.subr.mxu0 0.0
    %1161 = vmatpush1.msra.mxu0 0.0
    %1162 = vmatprep.subr.mxu0 0.0
    %1163 = vmatpush1.msra.mxu0 0.0
    %1164 = vmatprep.subr.mxu0 0.0
    %1165 = vmatpush1.msra.mxu0 0.0
    %1166 = vmatprep.subr.mxu0 0.0
    %1167 = vmatpush1.msra.mxu0 0.0
    %1168 = vmatprep.subr.mxu0 0.0
    %1169 = vmatpush1.msra.mxu0 0.0
    %1170 = vmatprep.subr.mxu0 0.0
    %1171 = vmatpush1.msra.mxu0 0.0
    %1172 = vmatprep.subr.mxu0 0.0
    %1173 = vmatpush1.msra.mxu0 0.0
    %1174 = vmatprep.subr.mxu0 0.0
    %1175 = vmatpush1.msra.mxu0 0.0
    %1176 = vmatprep.subr.mxu0 0.0
    %1177 = vmatpush1.msra.mxu0 0.0
    %1178 = vmatprep.subr.mxu0 0.0
    %1179 = vmatpush1.msra.mxu0 0.0
    %1180 = vmatprep.subr.mxu0 0.0
    %1181 = vmatpush1.msra.mxu0 0.0
    %1182 = vmatprep.subr.mxu0 0.0
    %1183 = vmatpush1.msra.mxu0 0.0
    %1184 = vmatprep.subr.mxu0 0.0
    %1185 = vmatpush1.msra.mxu0 0.0
    %1186 = vmatprep.subr.mxu0 0.0
    %1187 = vmatpush1.msra.mxu0 0.0
    %1188 = vmatprep.subr.mxu0 0.0
    %1189 = vmatpush1.msra.mxu0 0.0
    %1190 = vmatprep.subr.mxu0 0.0
    %1191 = vmatpush1.msra.mxu0 0.0
    %1192 = vmatprep.subr.mxu0 0.0
    %1193 = vmatpush1.msra.mxu0 0.0
    %1194 = vmatprep.subr.mxu0 0.0
    %1195 = vmatpush1.msra.mxu0 0.0
    %1196 = vmatprep.subr.mxu0 0.0
    %1197 = vmatpush1.msra.mxu0 0.0
    %1198 = vmatprep.subr.mxu0 0.0
    %1199 = vmatpush1.msra.mxu0 0.0
    %1200 = vmatprep.subr.mxu0 0.0
    %1201 = vmatpush1.msra.mxu0 0.0
    %1202 = vmatprep.subr.mxu0 0.0
    %1203 = vmatpush1.msra.mxu0 0.0
    %1204 = vmatprep.subr.mxu0 0.0
    %1205 = vmatpush1.msra.mxu0 0.0
    %1206 = vmatprep.subr.mxu0 0.0
    %1207 = vmatpush1.msra.mxu0 0.0
    %1208 = vmatprep.mubr.f32.mxu0 0.0
    %1209 = vmatmul.mubr.f32.gmra.mrb[0].mxu0 %v1121
    %v1210 = vpop.f32.mrb[0].mxu0
    %v1211 = vadd.f32 %v1118, %v1210
    %v1212 = vpop.f32.mrb[0].mxu0
    %1213 = vmatprep.mubr.f32.mxu0 0.0
    %1214 = vmatmul.mubr.f32.gmra.mrb[0].mxu0 %v1124
    %v1215 = vpop.f32.mrb[0].mxu0
    %v1216 = vadd.f32 %v1118, %v1215
    %v1217 = vpop.f32.mrb[0].mxu0
    %1218 = vmatprep.mubr.f32.mxu0 0.0
    %1219 = vmatmul.mubr.f32.gmra.mrb[0].mxu0 %v1127
    %v1220 = vpop.f32.mrb[0].mxu0
    %v1221 = vadd.f32 %v1118, %v1220
    %v1222 = vpop.f32.mrb[0].mxu0
    %1223 = vmatprep.mubr.f32.mxu0 0.0
    %1224 = vmatmul.mubr.f32.gmra.mrb[0].mxu0 %v1130
    %v1225 = vpop.f32.mrb[0].mxu0
    %v1226 = vadd.f32 %v1118, %v1225
    %v1227 = vpop.f32.mrb[0].mxu0
    %1228 = vmatprep.mubr.f32.mxu0 0.0
    %1229 = vmatmul.mubr.f32.gmra.mrb[0].mxu0 %v1133
    %v1230 = vpop.f32.mrb[0].mxu0
    %v1231 = vadd.f32 %v1118, %v1230
    %v1232 = vpop.f32.mrb[0].mxu0
    %1233 = vmatprep.mubr.f32.mxu0 0.0
    %1234 = vmatmul.mubr.f32.gmra.mrb[0].mxu0 %v1136
    %v1235 = vpop.f32.mrb[0].mxu0
    %v1236 = vadd.f32 %v1118, %v1235
    %v1237 = vpop.f32.mrb[0].mxu0
    %1238 = vmatprep.mubr.f32.mxu0 0.0
    %1239 = vmatmul.mubr.f32.gmra.mrb[0].mxu0 %v1139
    %v1240 = vpop.f32.mrb[0].mxu0
    %v1241 = vadd.f32 %v1118, %v1240
    %v1242 = vpop.f32.mrb[0].mxu0
    %1243 = vmatprep.mubr.f32.mxu0 0.0
    %1244 = vmatmul.mubr.f32.gmra.mrb[0].mxu0 %v1142
    %v1245 = vpop.f32.mrb[0].mxu0
    %v1246 = vadd.f32 %v1118, %v1245
    %v1247 = vpop.f32.mrb[0].mxu0
    %1248 = vdwg.mxu0
    %v1249 = vld [vmem:[#allocation3] sm:$0xff]
    %v1250 = vld [vmem:[#allocation5] sm:$0xff]
    %v1251 = vld [vmem:[#allocation7] sm:$0xff]
    %v1252 = vld [vmem:[#allocation8] sm:$0xff]
    %v1253 = vld [vmem:[#allocation10] sm:$0xff]
    %v1254 = vld [vmem:[#allocation11] sm:$0xff]
    %v1255 = vld [vmem:[%s43] sm:$0xff]
    %v1256 = vld [vmem:[%s43 + $0x8] sm:$0xff]
    %v1257 = vld [vmem:[%s43 + $0x10] sm:$0xff]
    %v1258 = vld [vmem:[%s43 + $0x18] sm:$0xff]
    %v1260 = vsel %vm490, %v1249, 0
    %1262 = vmatprep.subr.mxu0 0.0
    %1263 = vmatpush1.msra.mxu0 %v1255
    %1264 = vmatprep.subr.mxu0 0.0
    %1265 = vmatpush1.msra.mxu0 %v1256
    %1266 = vmatprep.subr.mxu0 0.0
    %1267 = vmatpush1.msra.mxu0 %v1257
    %1268 = vmatprep.subr.mxu0 0.0
    %1269 = vmatpush1.msra.mxu0 %v1258
    %1270 = vmatprep.subr.mxu0 0.0
    %1271 = vmatpush1.msra.mxu0 0.0
    %1272 = vmatprep.subr.mxu0 0.0
    %1273 = vmatpush1.msra.mxu0 0.0
    %1274 = vmatprep.subr.mxu0 0.0
    %1275 = vmatpush1.msra.mxu0 0.0
    %1276 = vmatprep.subr.mxu0 0.0
    %1277 = vmatpush1.msra.mxu0 0.0
    %1278 = vmatprep.subr.mxu0 0.0
    %1279 = vmatpush1.msra.mxu0 0.0
    %1280 = vmatprep.subr.mxu0 0.0
    %1281 = vmatpush1.msra.mxu0 0.0
    %1282 = vmatprep.subr.mxu0 0.0
    %1283 = vmatpush1.msra.mxu0 0.0
    %1284 = vmatprep.subr.mxu0 0.0
    %1285 = vmatpush1.msra.mxu0 0.0
    %1286 = vmatprep.subr.mxu0 0.0
    %1287 = vmatpush1.msra.mxu0 0.0
    %1288 = vmatprep.subr.mxu0 0.0
    %1289 = vmatpush1.msra.mxu0 0.0
    %1290 = vmatprep.subr.mxu0 0.0
    %1291 = vmatpush1.msra.mxu0 0.0
    %1292 = vmatprep.subr.mxu0 0.0
    %1293 = vmatpush1.msra.mxu0 0.0
    %1294 = vmatprep.subr.mxu0 0.0
    %1295 = vmatpush1.msra.mxu0 0.0
    %1296 = vmatprep.subr.mxu0 0.0
    %1297 = vmatpush1.msra.mxu0 0.0
    %1298 = vmatprep.subr.mxu0 0.0
    %1299 = vmatpush1.msra.mxu0 0.0
    %1300 = vmatprep.subr.mxu0 0.0
    %1301 = vmatpush1.msra.mxu0 0.0
    %1302 = vmatprep.subr.mxu0 0.0
    %1303 = vmatpush1.msra.mxu0 0.0
    %1304 = vmatprep.subr.mxu0 0.0
    %1305 = vmatpush1.msra.mxu0 0.0
    %1306 = vmatprep.subr.mxu0 0.0
    %1307 = vmatpush1.msra.mxu0 0.0
    %1308 = vmatprep.subr.mxu0 0.0
    %1309 = vmatpush1.msra.mxu0 0.0
    %1310 = vmatprep.subr.mxu0 0.0
    %1311 = vmatpush1.msra.mxu0 0.0
    %1312 = vmatprep.subr.mxu0 0.0
    %1313 = vmatpush1.msra.mxu0 0.0
    %1314 = vmatprep.subr.mxu0 0.0
    %1315 = vmatpush1.msra.mxu0 0.0
    %1316 = vmatprep.subr.mxu0 0.0
    %1317 = vmatpush1.msra.mxu0 0.0
    %1318 = vmatprep.subr.mxu0 0.0
    %1319 = vmatpush1.msra.mxu0 0.0
    %1320 = vmatprep.subr.mxu0 0.0
    %1321 = vmatpush1.msra.mxu0 0.0
    %1322 = vmatprep.subr.mxu0 0.0
    %1323 = vmatpush1.msra.mxu0 0.0
    %1324 = vmatprep.subr.mxu0 0.0
    %1325 = vmatpush1.msra.mxu0 0.0
    %1326 = vmatprep.mubr.f32.mxu0 0.0
    %1327 = vmatmul.mubr.f32.gmra.mrb[0].mxu0 %v1260
    %v1328 = vpop.f32.mrb[0].mxu0
    %v1329 = vadd.f32 0.0, %v1328
    %v1330 = vpop.f32.mrb[0].mxu0
    %1331 = vdwg.mxu0
    %v1332 = vadd.f32 %v1073, %v1329
    %v1333 = vxor.u32 %v1332, 2147483648
    %v1334 = vmul.f32 %v1333, 1.442695
    %v1335 = vpow.pop %v1334
    %v1336 = vadd.f32 %v1335, 1.0
    %v1337 = vrcp.pop %v1336
    %v1338 = vmul.f32 1.0, %v1337
    %v1339 = vtanh.pop %v1332
    %1341 = vrot.lane.b32.xlu0 %v1250, 32
    %v1342 = vpop.permute.xlu0 %1341
    %v1344 = vmul.f32 %v1338, %v1342
    %1346 = vrot.lane.b32.xlu0 %v1339, 64
    %v1347 = vpop.permute.xlu0 %1346
    %v1349 = vmul.f32 %v1338, %v1347
    %1351 = vrot.lane.b32.xlu0 %v1349, 32
    %v1352 = vpop.permute.xlu0 %1351
    %v1354 = vadd.f32 %v1344, %v1352
    %v1355 = vtanh.pop %v1354
    %1357 = vrot.lane.b32.xlu0 %v1355, 64
    %v1358 = vpop.permute.xlu0 %1357
    %v1360 = vmul.f32 %v1338, %v1358
    %v1361 = vld [vmem:[%s49] sm:$0xff]
    %v1362 = vld [vmem:[%s49 + $0x8] sm:$0xff]
    %v1363 = vld [vmem:[%s49 + $0x10] sm:$0xff]
    %v1364 = vld [vmem:[%s49 + $0x18] sm:$0xff]
    %v1366 = vsel %vm490, %v1251, 0
    %1368 = vmatprep.subr.mxu0 0.0
    %1369 = vmatpush1.msra.mxu0 %v1361
    %1370 = vmatprep.subr.mxu0 0.0
    %1371 = vmatpush1.msra.mxu0 %v1362
    %1372 = vmatprep.subr.mxu0 0.0
    %1373 = vmatpush1.msra.mxu0 %v1363
    %1374 = vmatprep.subr.mxu0 0.0
    %1375 = vmatpush1.msra.mxu0 %v1364
    %1376 = vmatprep.subr.mxu0 0.0
    %1377 = vmatpush1.msra.mxu0 0.0
    %1378 = vmatprep.subr.mxu0 0.0
    %1379 = vmatpush1.msra.mxu0 0.0
    %1380 = vmatprep.subr.mxu0 0.0
    %1381 = vmatpush1.msra.mxu0 0.0
    %1382 = vmatprep.subr.mxu0 0.0
    %1383 = vmatpush1.msra.mxu0 0.0
    %1384 = vmatprep.subr.mxu0 0.0
    %1385 = vmatpush1.msra.mxu0 0.0
    %1386 = vmatprep.subr.mxu0 0.0
    %1387 = vmatpush1.msra.mxu0 0.0
    %1388 = vmatprep.subr.mxu0 0.0
    %1389 = vmatpush1.msra.mxu0 0.0
    %1390 = vmatprep.subr.mxu0 0.0
    %1391 = vmatpush1.msra.mxu0 0.0
    %1392 = vmatprep.subr.mxu0 0.0
    %1393 = vmatpush1.msra.mxu0 0.0
    %1394 = vmatprep.subr.mxu0 0.0
    %1395 = vmatpush1.msra.mxu0 0.0
    %1396 = vmatprep.subr.mxu0 0.0
    %1397 = vmatpush1.msra.mxu0 0.0
    %1398 = vmatprep.subr.mxu0 0.0
    %1399 = vmatpush1.msra.mxu0 0.0
    %1400 = vmatprep.subr.mxu0 0.0
    %1401 = vmatpush1.msra.mxu0 0.0
    %1402 = vmatprep.subr.mxu0 0.0
    %1403 = vmatpush1.msra.mxu0 0.0
    %1404 = vmatprep.subr.mxu0 0.0
    %1405 = vmatpush1.msra.mxu0 0.0
    %1406 = vmatprep.subr.mxu0 0.0
    %1407 = vmatpush1.msra.mxu0 0.0
    %1408 = vmatprep.subr.mxu0 0.0
    %1409 = vmatpush1.msra.mxu0 0.0
    %1410 = vmatprep.subr.mxu0 0.0
    %1411 = vmatpush1.msra.mxu0 0.0
    %1412 = vmatprep.subr.mxu0 0.0
    %1413 = vmatpush1.msra.mxu0 0.0
    %1414 = vmatprep.subr.mxu0 0.0
    %1415 = vmatpush1.msra.mxu0 0.0
    %1416 = vmatprep.subr.mxu0 0.0
    %1417 = vmatpush1.msra.mxu0 0.0
    %1418 = vmatprep.subr.mxu0 0.0
    %1419 = vmatpush1.msra.mxu0 0.0
    %1420 = vmatprep.subr.mxu0 0.0
    %1421 = vmatpush1.msra.mxu0 0.0
    %1422 = vmatprep.subr.mxu0 0.0
    %1423 = vmatpush1.msra.mxu0 0.0
    %1424 = vmatprep.subr.mxu0 0.0
    %1425 = vmatpush1.msra.mxu0 0.0
    %1426 = vmatprep.subr.mxu0 0.0
    %1427 = vmatpush1.msra.mxu0 0.0
    %1428 = vmatprep.subr.mxu0 0.0
    %1429 = vmatpush1.msra.mxu0 0.0
    %1430 = vmatprep.subr.mxu0 0.0
    %1431 = vmatpush1.msra.mxu0 0.0
    %1432 = vmatprep.mubr.f32.mxu0 0.0
    %1433 = vmatmul.mubr.f32.gmra.mrb[0].mxu0 %v1366
    %v1434 = vpop.f32.mrb[0].mxu0
    %v1435 = vadd.f32 0.0, %v1434
    %v1436 = vpop.f32.mrb[0].mxu0
    %1437 = vdwg.mxu0
    %v1438 = vadd.f32 %v1211, %v1435
    %v1439 = vxor.u32 %v1438, 2147483648
    %v1440 = vmul.f32 %v1439, 1.442695
    %v1441 = vpow.pop %v1440
    %v1442 = vadd.f32 %v1441, 1.0
    %v1443 = vrcp.pop %v1442
    %v1444 = vmul.f32 1.0, %v1443
    %v1445 = vtanh.pop %v1438
    %1447 = vrot.lane.b32.xlu0 %v1252, 32
    %v1448 = vpop.permute.xlu0 %1447
    %v1450 = vmul.f32 %v1444, %v1448
    %1452 = vrot.lane.b32.xlu0 %v1445, 64
    %v1453 = vpop.permute.xlu0 %1452
    %v1455 = vmul.f32 %v1444, %v1453
    %1457 = vrot.lane.b32.xlu0 %v1455, 32
    %v1458 = vpop.permute.xlu0 %1457
    %v1460 = vadd.f32 %v1450, %v1458
    %v1461 = vtanh.pop %v1460
    %1463 = vrot.lane.b32.xlu0 %v1461, 64
    %v1464 = vpop.permute.xlu0 %1463
    %v1466 = vmul.f32 %v1444, %v1464
    %v1467 = vld [vmem:[%s53] sm:$0xff]
    %v1468 = vld [vmem:[%s53 + $0x8] sm:$0xff]
    %v1469 = vld [vmem:[%s53 + $0x10] sm:$0xff]
    %v1470 = vld [vmem:[%s53 + $0x18] sm:$0xff]
    %v1471 = vld [vmem:[%s53 + $0x20] sm:$0xff]
    %v1472 = vld [vmem:[%s53 + $0x28] sm:$0xff]
    %v1473 = vld [vmem:[%s53 + $0x30] sm:$0xff]
    %v1474 = vld [vmem:[%s53 + $0x38] sm:$0xff]
    %v1475 = vld [vmem:[%s55] sm:$0xff]
    %v1476 = vld [vmem:[%s55 + $0x8] sm:$0xff]
    %v1477 = vld [vmem:[%s55 + $0x10] sm:$0xff]
    %v1478 = vld [vmem:[%s55 + $0x18] sm:$0xff]
    %v1479 = vld [vmem:[%s55 + $0x20] sm:$0xff]
    %v1480 = vld [vmem:[%s55 + $0x28] sm:$0xff]
    %v1481 = vld [vmem:[%s55 + $0x30] sm:$0xff]
    %v1482 = vld [vmem:[%s55 + $0x38] sm:$0xff]
    %1484 = vrot.lane.b32.xlu0 %v1466, 32
    %v1485 = vpop.permute.xlu0 %1484
    %v1486 = vsel %vm490, %v1485, 0
    %1488 = vmatprep.subr.mxu0 %v1476
    %1489 = vmatpush1.msra.mxu0 %v1475
    %1490 = vmatprep.subr.mxu0 %v1478
    %1491 = vmatpush1.msra.mxu0 %v1477
    %1492 = vmatprep.subr.mxu0 %v1480
    %1493 = vmatpush1.msra.mxu0 %v1479
    %1494 = vmatprep.subr.mxu0 %v1482
    %1495 = vmatpush1.msra.mxu0 %v1481
    %1496 = vmatprep.subr.mxu0 0.0
    %1497 = vmatpush1.msra.mxu0 0.0
    %1498 = vmatprep.subr.mxu0 0.0
    %1499 = vmatpush1.msra.mxu0 0.0
    %1500 = vmatprep.subr.mxu0 0.0
    %1501 = vmatpush1.msra.mxu0 0.0
    %1502 = vmatprep.subr.mxu0 0.0
    %1503 = vmatpush1.msra.mxu0 0.0
    %1504 = vmatprep.subr.mxu0 0.0
    %1505 = vmatpush1.msra.mxu0 0.0
    %1506 = vmatprep.subr.mxu0 0.0
    %1507 = vmatpush1.msra.mxu0 0.0
    %1508 = vmatprep.subr.mxu0 0.0
    %1509 = vmatpush1.msra.mxu0 0.0
    %1510 = vmatprep.subr.mxu0 0.0
    %1511 = vmatpush1.msra.mxu0 0.0
    %1512 = vmatprep.subr.mxu0 0.0
    %1513 = vmatpush1.msra.mxu0 0.0
    %1514 = vmatprep.subr.mxu0 0.0
    %1515 = vmatpush1.msra.mxu0 0.0
    %1516 = vmatprep.subr.mxu0 0.0
    %1517 = vmatpush1.msra.mxu0 0.0
    %1518 = vmatprep.subr.mxu0 0.0
    %1519 = vmatpush1.msra.mxu0 0.0
    %1520 = vmatprep.subr.mxu0 0.0
    %1521 = vmatpush1.msra.mxu0 0.0
    %1522 = vmatprep.subr.mxu0 0.0
    %1523 = vmatpush1.msra.mxu0 0.0
    %1524 = vmatprep.subr.mxu0 0.0
    %1525 = vmatpush1.msra.mxu0 0.0
    %1526 = vmatprep.subr.mxu0 0.0
    %1527 = vmatpush1.msra.mxu0 0.0
    %1528 = vmatprep.subr.mxu0 0.0
    %1529 = vmatpush1.msra.mxu0 0.0
    %1530 = vmatprep.subr.mxu0 0.0
    %1531 = vmatpush1.msra.mxu0 0.0
    %1532 = vmatprep.subr.mxu0 0.0
    %1533 = vmatpush1.msra.mxu0 0.0
    %1534 = vmatprep.subr.mxu0 0.0
    %1535 = vmatpush1.msra.mxu0 0.0
    %1536 = vmatprep.subr.mxu0 0.0
    %1537 = vmatpush1.msra.mxu0 0.0
    %1538 = vmatprep.subr.mxu0 0.0
    %1539 = vmatpush1.msra.mxu0 0.0
    %1540 = vmatprep.subr.mxu0 0.0
    %1541 = vmatpush1.msra.mxu0 0.0
    %1542 = vmatprep.subr.mxu0 0.0
    %1543 = vmatpush1.msra.mxu0 0.0
    %1544 = vmatprep.subr.mxu0 0.0
    %1545 = vmatpush1.msra.mxu0 0.0
    %1546 = vmatprep.subr.mxu0 0.0
    %1547 = vmatpush1.msra.mxu0 0.0
    %1548 = vmatprep.subr.mxu0 0.0
    %1549 = vmatpush1.msra.mxu0 0.0
    %1550 = vmatprep.subr.mxu0 0.0
    %1551 = vmatpush1.msra.mxu0 0.0
    %1552 = vmatprep.mubr.f32.mxu0 0.0
    %1553 = vmatmul.mubr.f32.gmra.mrb[0].mxu0 %v1486
    %v1554 = vpop.f32.mrb[0].mxu0
    %v1555 = vadd.f32 0.0, %v1554
    %v1556 = vpop.f32.mrb[0].mxu0
    %v1557 = vadd.f32 0.0, %v1556
    %1558 = vdwg.mxu0
    %1560 = vrot.lane.b32.xlu0 %v1360, 32
    %v1561 = vpop.permute.xlu0 %1560
    %v1562 = vsel %vm490, %v1561, 0
    %1564 = vmatprep.subr.mxu0 %v1468
    %1565 = vmatpush1.msra.mxu0 %v1467
    %1566 = vmatprep.subr.mxu0 %v1470
    %1567 = vmatpush1.msra.mxu0 %v1469
    %1568 = vmatprep.subr.mxu0 %v1472
    %1569 = vmatpush1.msra.mxu0 %v1471
    %1570 = vmatprep.subr.mxu0 %v1474
    %1571 = vmatpush1.msra.mxu0 %v1473
    %1572 = vmatprep.subr.mxu0 0.0
    %1573 = vmatpush1.msra.mxu0 0.0
    %1574 = vmatprep.subr.mxu0 0.0
    %1575 = vmatpush1.msra.mxu0 0.0
    %1576 = vmatprep.subr.mxu0 0.0
    %1577 = vmatpush1.msra.mxu0 0.0
    %1578 = vmatprep.subr.mxu0 0.0
    %1579 = vmatpush1.msra.mxu0 0.0
    %1580 = vmatprep.subr.mxu0 0.0
    %1581 = vmatpush1.msra.mxu0 0.0
    %1582 = vmatprep.subr.mxu0 0.0
    %1583 = vmatpush1.msra.mxu0 0.0
    %1584 = vmatprep.subr.mxu0 0.0
    %1585 = vmatpush1.msra.mxu0 0.0
    %1586 = vmatprep.subr.mxu0 0.0
    %1587 = vmatpush1.msra.mxu0 0.0
    %1588 = vmatprep.subr.mxu0 0.0
    %1589 = vmatpush1.msra.mxu0 0.0
    %1590 = vmatprep.subr.mxu0 0.0
    %1591 = vmatpush1.msra.mxu0 0.0
    %1592 = vmatprep.subr.mxu0 0.0
    %1593 = vmatpush1.msra.mxu0 0.0
    %1594 = vmatprep.subr.mxu0 0.0
    %1595 = vmatpush1.msra.mxu0 0.0
    %1596 = vmatprep.subr.mxu0 0.0
    %1597 = vmatpush1.msra.mxu0 0.0
    %1598 = vmatprep.subr.mxu0 0.0
    %1599 = vmatpush1.msra.mxu0 0.0
    %1600 = vmatprep.subr.mxu0 0.0
    %1601 = vmatpush1.msra.mxu0 0.0
    %1602 = vmatprep.subr.mxu0 0.0
    %1603 = vmatpush1.msra.mxu0 0.0
    %1604 = vmatprep.subr.mxu0 0.0
    %1605 = vmatpush1.msra.mxu0 0.0
    %1606 = vmatprep.subr.mxu0 0.0
    %1607 = vmatpush1.msra.mxu0 0.0
    %1608 = vmatprep.subr.mxu0 0.0
    %1609 = vmatpush1.msra.mxu0 0.0
    %1610 = vmatprep.subr.mxu0 0.0
    %1611 = vmatpush1.msra.mxu0 0.0
    %1612 = vmatprep.subr.mxu0 0.0
    %1613 = vmatpush1.msra.mxu0 0.0
    %1614 = vmatprep.subr.mxu0 0.0
    %1615 = vmatpush1.msra.mxu0 0.0
    %1616 = vmatprep.subr.mxu0 0.0
    %1617 = vmatpush1.msra.mxu0 0.0
    %1618 = vmatprep.subr.mxu0 0.0
    %1619 = vmatpush1.msra.mxu0 0.0
    %1620 = vmatprep.subr.mxu0 0.0
    %1621 = vmatpush1.msra.mxu0 0.0
    %1622 = vmatprep.subr.mxu0 0.0
    %1623 = vmatpush1.msra.mxu0 0.0
    %1624 = vmatprep.subr.mxu0 0.0
    %1625 = vmatpush1.msra.mxu0 0.0
    %1626 = vmatprep.subr.mxu0 0.0
    %1627 = vmatpush1.msra.mxu0 0.0
    %1628 = vmatprep.mubr.f32.mxu0 0.0
    %1629 = vmatmul.mubr.f32.gmra.mrb[0].mxu0 %v1562
    %v1630 = vpop.f32.mrb[0].mxu0
    %v1631 = vadd.f32 %v1555, %v1630
    %v1632 = vpop.f32.mrb[0].mxu0
    %v1633 = vadd.f32 %v1557, %v1632
    %1634 = vdwg.mxu0
    %v1635 = vld [vmem:[%s57] sm:$0xff]
    %v1636 = vld [vmem:[%s57 + $0x8] sm:$0xff]
    %v1637 = vld [vmem:[%s57 + $0x10] sm:$0xff]
    %v1638 = vld [vmem:[%s57 + $0x18] sm:$0xff]
    %v1639 = vld [vmem:[%s57 + $0x20] sm:$0xff]
    %v1640 = vld [vmem:[%s57 + $0x28] sm:$0xff]
    %v1641 = vld [vmem:[%s57 + $0x30] sm:$0xff]
    %v1642 = vld [vmem:[%s57 + $0x38] sm:$0xff]
    %v1643 = vld [vmem:[%s57 + $0x40] sm:$0xff]
    %v1644 = vld [vmem:[%s57 + $0x48] sm:$0xff]
    %v1645 = vld [vmem:[%s57 + $0x50] sm:$0xff]
    %v1646 = vld [vmem:[%s57 + $0x58] sm:$0xff]
    %v1647 = vld [vmem:[%s57 + $0x60] sm:$0xff]
    %v1648 = vld [vmem:[%s57 + $0x68] sm:$0xff]
    %v1649 = vld [vmem:[%s57 + $0x70] sm:$0xff]
    %v1650 = vld [vmem:[%s57 + $0x78] sm:$0xff]
    %vm1651 = vcmask 523264
    %v1653 = vsel %vm1651, %v1253, 0
    %1655 = vmatprep.subr.mxu0 %v1636
    %1656 = vmatpush1.msra.mxu0 %v1635
    %1657 = vmatprep.subr.mxu0 %v1638
    %1658 = vmatpush1.msra.mxu0 %v1637
    %1659 = vmatprep.subr.mxu0 %v1640
    %1660 = vmatpush1.msra.mxu0 %v1639
    %1661 = vmatprep.subr.mxu0 %v1642
    %1662 = vmatpush1.msra.mxu0 %v1641
    %1663 = vmatprep.subr.mxu0 %v1644
    %1664 = vmatpush1.msra.mxu0 %v1643
    %1665 = vmatprep.subr.mxu0 %v1646
    %1666 = vmatpush1.msra.mxu0 %v1645
    %1667 = vmatprep.subr.mxu0 %v1648
    %1668 = vmatpush1.msra.mxu0 %v1647
    %1669 = vmatprep.subr.mxu0 %v1650
    %1670 = vmatpush1.msra.mxu0 %v1649
    %1671 = vmatprep.subr.mxu0 0.0
    %1672 = vmatpush1.msra.mxu0 0.0
    %1673 = vmatprep.subr.mxu0 0.0
    %1674 = vmatpush1.msra.mxu0 0.0
    %1675 = vmatprep.subr.mxu0 0.0
    %1676 = vmatpush1.msra.mxu0 0.0
    %1677 = vmatprep.subr.mxu0 0.0
    %1678 = vmatpush1.msra.mxu0 0.0
    %1679 = vmatprep.subr.mxu0 0.0
    %1680 = vmatpush1.msra.mxu0 0.0
    %1681 = vmatprep.subr.mxu0 0.0
    %1682 = vmatpush1.msra.mxu0 0.0
    %1683 = vmatprep.subr.mxu0 0.0
    %1684 = vmatpush1.msra.mxu0 0.0
    %1685 = vmatprep.subr.mxu0 0.0
    %1686 = vmatpush1.msra.mxu0 0.0
    %1687 = vmatprep.subr.mxu0 0.0
    %1688 = vmatpush1.msra.mxu0 0.0
    %1689 = vmatprep.subr.mxu0 0.0
    %1690 = vmatpush1.msra.mxu0 0.0
    %1691 = vmatprep.subr.mxu0 0.0
    %1692 = vmatpush1.msra.mxu0 0.0
    %1693 = vmatprep.subr.mxu0 0.0
    %1694 = vmatpush1.msra.mxu0 0.0
    %1695 = vmatprep.subr.mxu0 0.0
    %1696 = vmatpush1.msra.mxu0 0.0
    %1697 = vmatprep.subr.mxu0 0.0
    %1698 = vmatpush1.msra.mxu0 0.0
    %1699 = vmatprep.subr.mxu0 0.0
    %1700 = vmatpush1.msra.mxu0 0.0
    %1701 = vmatprep.subr.mxu0 0.0
    %1702 = vmatpush1.msra.mxu0 0.0
    %1703 = vmatprep.subr.mxu0 0.0
    %1704 = vmatpush1.msra.mxu0 0.0
    %1705 = vmatprep.subr.mxu0 0.0
    %1706 = vmatpush1.msra.mxu0 0.0
    %1707 = vmatprep.subr.mxu0 0.0
    %1708 = vmatpush1.msra.mxu0 0.0
    %1709 = vmatprep.subr.mxu0 0.0
    %1710 = vmatpush1.msra.mxu0 0.0
    %1711 = vmatprep.subr.mxu0 0.0
    %1712 = vmatpush1.msra.mxu0 0.0
    %1713 = vmatprep.subr.mxu0 0.0
    %1714 = vmatpush1.msra.mxu0 0.0
    %1715 = vmatprep.subr.mxu0 0.0
    %1716 = vmatpush1.msra.mxu0 0.0
    %1717 = vmatprep.subr.mxu0 0.0
    %1718 = vmatpush1.msra.mxu0 0.0
    %1719 = vmatprep.mubr.f32.mxu0 0.0
    %1720 = vmatmul.mubr.f32.gmra.mrb[0].mxu0 %v1653
    %v1721 = vpop.f32.mrb[0].mxu0
    %v1722 = vadd.f32 0.0, %v1721
    %v1723 = vpop.f32.mrb[0].mxu0
    %v1724 = vadd.f32 0.0, %v1723
    %1725 = vdwg.mxu0
    %v1726 = vadd.f32 %v1631, %v1722
    %v1727 = vadd.f32 %v1633, %v1724
    %v1728 = vld [vmem:[%s59] sm:$0x3]
    %v1730 = vlaneseq
    %v1731 = vshrl.u32 %v1730, 7
    %v1732 = vsub.s32 0, %v1731
    %v1733 = vrot.slane %v1728, %v1732
    %v1734 = vlaneseq
    %v1735 = vshrl.u32 %v1734, 7
    %v1736 = vsub.s32 1, %v1735
    %v1737 = vrot.slane %v1728, %v1736
    %v1740 = vadd.f32 %v1726, %v1733
    %v1741 = vadd.f32 %v1727, %v1737
    %v1742 = vxor.u32 %v1740, 2147483648
    %v1743 = vmul.f32 %v1742, 1.442695
    %v1744 = vpow.pop %v1743
    %v1745 = vadd.f32 %v1744, 1.0
    %v1746 = vrcp.pop %v1745
    %v1747 = vmul.f32 1.0, %v1746
    %v1748 = vtanh.pop %v1741
    %v1749 = vxor.u32 %v1741, 2147483648
    %v1750 = vmul.f32 %v1749, 1.442695
    %v1751 = vpow.pop %v1750
    %v1752 = vadd.f32 %v1751, 1.0
    %v1753 = vrcp.pop %v1752
    %v1754 = vmul.f32 1.0, %v1753
    %1756 = vrot.lane.b32.xlu0 %v1254, 64
    %v1757 = vpop.permute.xlu0 %1756
    %v1759 = vmul.f32 %v1747, %v1757
    %v1760 = vmul.f32 %v1747, %v1748
    %1762 = vrot.lane.b32.xlu0 %v1760, 64
    %v1763 = vpop.permute.xlu0 %1762
    %v1765 = vadd.f32 %v1759, %v1763
    %v1766 = vtanh.pop %v1765
    %v1767 = vmul.f32 %v1754, %v1766
    %1768 = vmatprep.subr.mxu0 0.0
    %1769 = vmatpush1.msra.mxu0 %v1255
    %1770 = vmatprep.subr.mxu0 0.0
    %1771 = vmatpush1.msra.mxu0 %v1256
    %1772 = vmatprep.subr.mxu0 0.0
    %1773 = vmatpush1.msra.mxu0 %v1257
    %1774 = vmatprep.subr.mxu0 0.0
    %1775 = vmatpush1.msra.mxu0 %v1258
    %1776 = vmatprep.subr.mxu0 0.0
    %1777 = vmatpush1.msra.mxu0 0.0
    %1778 = vmatprep.subr.mxu0 0.0
    %1779 = vmatpush1.msra.mxu0 0.0
    %1780 = vmatprep.subr.mxu0 0.0
    %1781 = vmatpush1.msra.mxu0 0.0
    %1782 = vmatprep.subr.mxu0 0.0
    %1783 = vmatpush1.msra.mxu0 0.0
    %1784 = vmatprep.subr.mxu0 0.0
    %1785 = vmatpush1.msra.mxu0 0.0
    %1786 = vmatprep.subr.mxu0 0.0
    %1787 = vmatpush1.msra.mxu0 0.0
    %1788 = vmatprep.subr.mxu0 0.0
    %1789 = vmatpush1.msra.mxu0 0.0
    %1790 = vmatprep.subr.mxu0 0.0
    %1791 = vmatpush1.msra.mxu0 0.0
    %1792 = vmatprep.subr.mxu0 0.0
    %1793 = vmatpush1.msra.mxu0 0.0
    %1794 = vmatprep.subr.mxu0 0.0
    %1795 = vmatpush1.msra.mxu0 0.0
    %1796 = vmatprep.subr.mxu0 0.0
    %1797 = vmatpush1.msra.mxu0 0.0
    %1798 = vmatprep.subr.mxu0 0.0
    %1799 = vmatpush1.msra.mxu0 0.0
    %1800 = vmatprep.subr.mxu0 0.0
    %1801 = vmatpush1.msra.mxu0 0.0
    %1802 = vmatprep.subr.mxu0 0.0
    %1803 = vmatpush1.msra.mxu0 0.0
    %1804 = vmatprep.subr.mxu0 0.0
    %1805 = vmatpush1.msra.mxu0 0.0
    %1806 = vmatprep.subr.mxu0 0.0
    %1807 = vmatpush1.msra.mxu0 0.0
    %1808 = vmatprep.subr.mxu0 0.0
    %1809 = vmatpush1.msra.mxu0 0.0
    %1810 = vmatprep.subr.mxu0 0.0
    %1811 = vmatpush1.msra.mxu0 0.0
    %1812 = vmatprep.subr.mxu0 0.0
    %1813 = vmatpush1.msra.mxu0 0.0
    %1814 = vmatprep.subr.mxu0 0.0
    %1815 = vmatpush1.msra.mxu0 0.0
    %1816 = vmatprep.subr.mxu0 0.0
    %1817 = vmatpush1.msra.mxu0 0.0
    %1818 = vmatprep.subr.mxu0 0.0
    %1819 = vmatpush1.msra.mxu0 0.0
    %1820 = vmatprep.subr.mxu0 0.0
    %1821 = vmatpush1.msra.mxu0 0.0
    %1822 = vmatprep.subr.mxu0 0.0
    %1823 = vmatpush1.msra.mxu0 0.0
    %1824 = vmatprep.subr.mxu0 0.0
    %1825 = vmatpush1.msra.mxu0 0.0
    %1826 = vmatprep.subr.mxu0 0.0
    %1827 = vmatpush1.msra.mxu0 0.0
    %1828 = vmatprep.subr.mxu0 0.0
    %1829 = vmatpush1.msra.mxu0 0.0
    %1830 = vmatprep.subr.mxu0 0.0
    %1831 = vmatpush1.msra.mxu0 0.0
    %1832 = vmatprep.mubr.f32.mxu0 0.0
    %1833 = vmatmul.mubr.f32.gmra.mrb[0].mxu0 %v1562
    %v1834 = vpop.f32.mrb[0].mxu0
    %v1835 = vadd.f32 0.0, %v1834
    %v1836 = vpop.f32.mrb[0].mxu0
    %1837 = vdwg.mxu0
    %v1838 = vadd.f32 %v1078, %v1835
    %v1839 = vxor.u32 %v1838, 2147483648
    %v1840 = vmul.f32 %v1839, 1.442695
    %v1841 = vpow.pop %v1840
    %v1842 = vadd.f32 %v1841, 1.0
    %v1843 = vrcp.pop %v1842
    %v1844 = vmul.f32 1.0, %v1843
    %v1845 = vtanh.pop %v1838
    %v1846 = vmul.f32 %v1844, %v1354
    %1848 = vrot.lane.b32.xlu0 %v1845, 64
    %v1849 = vpop.permute.xlu0 %1848
    %v1851 = vmul.f32 %v1844, %v1849
    %1853 = vrot.lane.b32.xlu0 %v1851, 32
    %v1854 = vpop.permute.xlu0 %1853
    %v1856 = vadd.f32 %v1846, %v1854
    %v1857 = vtanh.pop %v1856
    %1859 = vrot.lane.b32.xlu0 %v1857, 64
    %v1860 = vpop.permute.xlu0 %1859
    %v1862 = vmul.f32 %v1844, %v1860
    %1863 = vmatprep.subr.mxu0 0.0
    %1864 = vmatpush1.msra.mxu0 %v1361
    %1865 = vmatprep.subr.mxu0 0.0
    %1866 = vmatpush1.msra.mxu0 %v1362
    %1867 = vmatprep.subr.mxu0 0.0
    %1868 = vmatpush1.msra.mxu0 %v1363
    %1869 = vmatprep.subr.mxu0 0.0
    %1870 = vmatpush1.msra.mxu0 %v1364
    %1871 = vmatprep.subr.mxu0 0.0
    %1872 = vmatpush1.msra.mxu0 0.0
    %1873 = vmatprep.subr.mxu0 0.0
    %1874 = vmatpush1.msra.mxu0 0.0
    %1875 = vmatprep.subr.mxu0 0.0
    %1876 = vmatpush1.msra.mxu0 0.0
    %1877 = vmatprep.subr.mxu0 0.0
    %1878 = vmatpush1.msra.mxu0 0.0
    %1879 = vmatprep.subr.mxu0 0.0
    %1880 = vmatpush1.msra.mxu0 0.0
    %1881 = vmatprep.subr.mxu0 0.0
    %1882 = vmatpush1.msra.mxu0 0.0
    %1883 = vmatprep.subr.mxu0 0.0
    %1884 = vmatpush1.msra.mxu0 0.0
    %1885 = vmatprep.subr.mxu0 0.0
    %1886 = vmatpush1.msra.mxu0 0.0
    %1887 = vmatprep.subr.mxu0 0.0
    %1888 = vmatpush1.msra.mxu0 0.0
    %1889 = vmatprep.subr.mxu0 0.0
    %1890 = vmatpush1.msra.mxu0 0.0
    %1891 = vmatprep.subr.mxu0 0.0
    %1892 = vmatpush1.msra.mxu0 0.0
    %1893 = vmatprep.subr.mxu0 0.0
    %1894 = vmatpush1.msra.mxu0 0.0
    %1895 = vmatprep.subr.mxu0 0.0
    %1896 = vmatpush1.msra.mxu0 0.0
    %1897 = vmatprep.subr.mxu0 0.0
    %1898 = vmatpush1.msra.mxu0 0.0
    %1899 = vmatprep.subr.mxu0 0.0
    %1900 = vmatpush1.msra.mxu0 0.0
    %1901 = vmatprep.subr.mxu0 0.0
    %1902 = vmatpush1.msra.mxu0 0.0
    %1903 = vmatprep.subr.mxu0 0.0
    %1904 = vmatpush1.msra.mxu0 0.0
    %1905 = vmatprep.subr.mxu0 0.0
    %1906 = vmatpush1.msra.mxu0 0.0
    %1907 = vmatprep.subr.mxu0 0.0
    %1908 = vmatpush1.msra.mxu0 0.0
    %1909 = vmatprep.subr.mxu0 0.0
    %1910 = vmatpush1.msra.mxu0 0.0
    %1911 = vmatprep.subr.mxu0 0.0
    %1912 = vmatpush1.msra.mxu0 0.0
    %1913 = vmatprep.subr.mxu0 0.0
    %1914 = vmatpush1.msra.mxu0 0.0
    %1915 = vmatprep.subr.mxu0 0.0
    %1916 = vmatpush1.msra.mxu0 0.0
    %1917 = vmatprep.subr.mxu0 0.0
    %1918 = vmatpush1.msra.mxu0 0.0
    %1919 = vmatprep.subr.mxu0 0.0
    %1920 = vmatpush1.msra.mxu0 0.0
    %1921 = vmatprep.subr.mxu0 0.0
    %1922 = vmatpush1.msra.mxu0 0.0
    %1923 = vmatprep.subr.mxu0 0.0
    %1924 = vmatpush1.msra.mxu0 0.0
    %1925 = vmatprep.subr.mxu0 0.0
    %1926 = vmatpush1.msra.mxu0 0.0
    %1927 = vmatprep.mubr.f32.mxu0 0.0
    %1928 = vmatmul.mubr.f32.gmra.mrb[0].mxu0 %v1486
    %v1929 = vpop.f32.mrb[0].mxu0
    %v1930 = vadd.f32 0.0, %v1929
    %v1931 = vpop.f32.mrb[0].mxu0
    %1932 = vdwg.mxu0
    %v1933 = vadd.f32 %v1216, %v1930
    %v1934 = vxor.u32 %v1933, 2147483648
    %v1935 = vmul.f32 %v1934, 1.442695
    %v1936 = vpow.pop %v1935
    %v1937 = vadd.f32 %v1936, 1.0
    %v1938 = vrcp.pop %v1937
    %v1939 = vmul.f32 1.0, %v1938
    %v1940 = vtanh.pop %v1933
    %v1941 = vmul.f32 %v1939, %v1460
    %1943 = vrot.lane.b32.xlu0 %v1940, 64
    %v1944 = vpop.permute.xlu0 %1943
    %v1946 = vmul.f32 %v1939, %v1944
    %1948 = vrot.lane.b32.xlu0 %v1946, 32
    %v1949 = vpop.permute.xlu0 %1948
    %v1951 = vadd.f32 %v1941, %v1949
    %v1952 = vtanh.pop %v1951
    %1954 = vrot.lane.b32.xlu0 %v1952, 64
    %v1955 = vpop.permute.xlu0 %1954
    %v1957 = vmul.f32 %v1939, %v1955
    %1959 = vrot.lane.b32.xlu0 %v1957, 32
    %v1960 = vpop.permute.xlu0 %1959
    %v1961 = vsel %vm490, %v1960, 0
    %1963 = vmatprep.subr.mxu0 %v1476
    %1964 = vmatpush1.msra.mxu0 %v1475
    %1965 = vmatprep.subr.mxu0 %v1478
    %1966 = vmatpush1.msra.mxu0 %v1477
    %1967 = vmatprep.subr.mxu0 %v1480
    %1968 = vmatpush1.msra.mxu0 %v1479
    %1969 = vmatprep.subr.mxu0 %v1482
    %1970 = vmatpush1.msra.mxu0 %v1481
    %1971 = vmatprep.subr.mxu0 0.0
    %1972 = vmatpush1.msra.mxu0 0.0
    %1973 = vmatprep.subr.mxu0 0.0
    %1974 = vmatpush1.msra.mxu0 0.0
    %1975 = vmatprep.subr.mxu0 0.0
    %1976 = vmatpush1.msra.mxu0 0.0
    %1977 = vmatprep.subr.mxu0 0.0
    %1978 = vmatpush1.msra.mxu0 0.0
    %1979 = vmatprep.subr.mxu0 0.0
    %1980 = vmatpush1.msra.mxu0 0.0
    %1981 = vmatprep.subr.mxu0 0.0
    %1982 = vmatpush1.msra.mxu0 0.0
    %1983 = vmatprep.subr.mxu0 0.0
    %1984 = vmatpush1.msra.mxu0 0.0
    %1985 = vmatprep.subr.mxu0 0.0
    %1986 = vmatpush1.msra.mxu0 0.0
    %1987 = vmatprep.subr.mxu0 0.0
    %1988 = vmatpush1.msra.mxu0 0.0
    %1989 = vmatprep.subr.mxu0 0.0
    %1990 = vmatpush1.msra.mxu0 0.0
    %1991 = vmatprep.subr.mxu0 0.0
    %1992 = vmatpush1.msra.mxu0 0.0
    %1993 = vmatprep.subr.mxu0 0.0
    %1994 = vmatpush1.msra.mxu0 0.0
    %1995 = vmatprep.subr.mxu0 0.0
    %1996 = vmatpush1.msra.mxu0 0.0
    %1997 = vmatprep.subr.mxu0 0.0
    %1998 = vmatpush1.msra.mxu0 0.0
    %1999 = vmatprep.subr.mxu0 0.0
    %2000 = vmatpush1.msra.mxu0 0.0
    %2001 = vmatprep.subr.mxu0 0.0
    %2002 = vmatpush1.msra.mxu0 0.0
    %2003 = vmatprep.subr.mxu0 0.0
    %2004 = vmatpush1.msra.mxu0 0.0
    %2005 = vmatprep.subr.mxu0 0.0
    %2006 = vmatpush1.msra.mxu0 0.0
    %2007 = vmatprep.subr.mxu0 0.0
    %2008 = vmatpush1.msra.mxu0 0.0
    %2009 = vmatprep.subr.mxu0 0.0
    %2010 = vmatpush1.msra.mxu0 0.0
    %2011 = vmatprep.subr.mxu0 0.0
    %2012 = vmatpush1.msra.mxu0 0.0
    %2013 = vmatprep.subr.mxu0 0.0
    %2014 = vmatpush1.msra.mxu0 0.0
    %2015 = vmatprep.subr.mxu0 0.0
    %2016 = vmatpush1.msra.mxu0 0.0
    %2017 = vmatprep.subr.mxu0 0.0
    %2018 = vmatpush1.msra.mxu0 0.0
    %2019 = vmatprep.subr.mxu0 0.0
    %2020 = vmatpush1.msra.mxu0 0.0
    %2021 = vmatprep.subr.mxu0 0.0
    %2022 = vmatpush1.msra.mxu0 0.0
    %2023 = vmatprep.subr.mxu0 0.0
    %2024 = vmatpush1.msra.mxu0 0.0
    %2025 = vmatprep.subr.mxu0 0.0
    %2026 = vmatpush1.msra.mxu0 0.0
    %2027 = vmatprep.mubr.f32.mxu0 0.0
    %2028 = vmatmul.mubr.f32.gmra.mrb[0].mxu0 %v1961
    %v2029 = vpop.f32.mrb[0].mxu0
    %v2030 = vadd.f32 0.0, %v2029
    %v2031 = vpop.f32.mrb[0].mxu0
    %v2032 = vadd.f32 0.0, %v2031
    %2033 = vdwg.mxu0
    %2035 = vrot.lane.b32.xlu0 %v1862, 32
    %v2036 = vpop.permute.xlu0 %2035
    %v2037 = vsel %vm490, %v2036, 0
    %2039 = vmatprep.subr.mxu0 %v1468
    %2040 = vmatpush1.msra.mxu0 %v1467
    %2041 = vmatprep.subr.mxu0 %v1470
    %2042 = vmatpush1.msra.mxu0 %v1469
    %2043 = vmatprep.subr.mxu0 %v1472
    %2044 = vmatpush1.msra.mxu0 %v1471
    %2045 = vmatprep.subr.mxu0 %v1474
    %2046 = vmatpush1.msra.mxu0 %v1473
    %2047 = vmatprep.subr.mxu0 0.0
    %2048 = vmatpush1.msra.mxu0 0.0
    %2049 = vmatprep.subr.mxu0 0.0
    %2050 = vmatpush1.msra.mxu0 0.0
    %2051 = vmatprep.subr.mxu0 0.0
    %2052 = vmatpush1.msra.mxu0 0.0
    %2053 = vmatprep.subr.mxu0 0.0
    %2054 = vmatpush1.msra.mxu0 0.0
    %2055 = vmatprep.subr.mxu0 0.0
    %2056 = vmatpush1.msra.mxu0 0.0
    %2057 = vmatprep.subr.mxu0 0.0
    %2058 = vmatpush1.msra.mxu0 0.0
    %2059 = vmatprep.subr.mxu0 0.0
    %2060 = vmatpush1.msra.mxu0 0.0
    %2061 = vmatprep.subr.mxu0 0.0
    %2062 = vmatpush1.msra.mxu0 0.0
    %2063 = vmatprep.subr.mxu0 0.0
    %2064 = vmatpush1.msra.mxu0 0.0
    %2065 = vmatprep.subr.mxu0 0.0
    %2066 = vmatpush1.msra.mxu0 0.0
    %2067 = vmatprep.subr.mxu0 0.0
    %2068 = vmatpush1.msra.mxu0 0.0
    %2069 = vmatprep.subr.mxu0 0.0
    %2070 = vmatpush1.msra.mxu0 0.0
    %2071 = vmatprep.subr.mxu0 0.0
    %2072 = vmatpush1.msra.mxu0 0.0
    %2073 = vmatprep.subr.mxu0 0.0
    %2074 = vmatpush1.msra.mxu0 0.0
    %2075 = vmatprep.subr.mxu0 0.0
    %2076 = vmatpush1.msra.mxu0 0.0
    %2077 = vmatprep.subr.mxu0 0.0
    %2078 = vmatpush1.msra.mxu0 0.0
    %2079 = vmatprep.subr.mxu0 0.0
    %2080 = vmatpush1.msra.mxu0 0.0
    %2081 = vmatprep.subr.mxu0 0.0
    %2082 = vmatpush1.msra.mxu0 0.0
    %2083 = vmatprep.subr.mxu0 0.0
    %2084 = vmatpush1.msra.mxu0 0.0
    %2085 = vmatprep.subr.mxu0 0.0
    %2086 = vmatpush1.msra.mxu0 0.0
    %2087 = vmatprep.subr.mxu0 0.0
    %2088 = vmatpush1.msra.mxu0 0.0
    %2089 = vmatprep.subr.mxu0 0.0
    %2090 = vmatpush1.msra.mxu0 0.0
    %2091 = vmatprep.subr.mxu0 0.0
    %2092 = vmatpush1.msra.mxu0 0.0
    %2093 = vmatprep.subr.mxu0 0.0
    %2094 = vmatpush1.msra.mxu0 0.0
    %2095 = vmatprep.subr.mxu0 0.0
    %2096 = vmatpush1.msra.mxu0 0.0
    %2097 = vmatprep.subr.mxu0 0.0
    %2098 = vmatpush1.msra.mxu0 0.0
    %2099 = vmatprep.subr.mxu0 0.0
    %2100 = vmatpush1.msra.mxu0 0.0
    %2101 = vmatprep.subr.mxu0 0.0
    %2102 = vmatpush1.msra.mxu0 0.0
    %2103 = vmatprep.mubr.f32.mxu0 0.0
    %2104 = vmatmul.mubr.f32.gmra.mrb[0].mxu0 %v2037
    %v2105 = vpop.f32.mrb[0].mxu0
    %v2106 = vadd.f32 %v2030, %v2105
    %v2107 = vpop.f32.mrb[0].mxu0
    %v2108 = vadd.f32 %v2032, %v2107
    %2109 = vdwg.mxu0
    %2111 = vrot.lane.b32.xlu0 %v1767, 64
    %v2112 = vpop.permute.xlu0 %2111
    %v2113 = vsel %vm1651, %v2112, 0
    %2115 = vmatprep.subr.mxu0 %v1636
    %2116 = vmatpush1.msra.mxu0 %v1635
    %2117 = vmatprep.subr.mxu0 %v1638
    %2118 = vmatpush1.msra.mxu0 %v1637
    %2119 = vmatprep.subr.mxu0 %v1640
    %2120 = vmatpush1.msra.mxu0 %v1639
    %2121 = vmatprep.subr.mxu0 %v1642
    %2122 = vmatpush1.msra.mxu0 %v1641
    %2123 = vmatprep.subr.mxu0 %v1644
    %2124 = vmatpush1.msra.mxu0 %v1643
    %2125 = vmatprep.subr.mxu0 %v1646
    %2126 = vmatpush1.msra.mxu0 %v1645
    %2127 = vmatprep.subr.mxu0 %v1648
    %2128 = vmatpush1.msra.mxu0 %v1647
    %2129 = vmatprep.subr.mxu0 %v1650
    %2130 = vmatpush1.msra.mxu0 %v1649
    %2131 = vmatprep.subr.mxu0 0.0
    %2132 = vmatpush1.msra.mxu0 0.0
    %2133 = vmatprep.subr.mxu0 0.0
    %2134 = vmatpush1.msra.mxu0 0.0
    %2135 = vmatprep.subr.mxu0 0.0
    %2136 = vmatpush1.msra.mxu0 0.0
    %2137 = vmatprep.subr.mxu0 0.0
    %2138 = vmatpush1.msra.mxu0 0.0
    %2139 = vmatprep.subr.mxu0 0.0
    %2140 = vmatpush1.msra.mxu0 0.0
    %2141 = vmatprep.subr.mxu0 0.0
    %2142 = vmatpush1.msra.mxu0 0.0
    %2143 = vmatprep.subr.mxu0 0.0
    %2144 = vmatpush1.msra.mxu0 0.0
    %2145 = vmatprep.subr.mxu0 0.0
    %2146 = vmatpush1.msra.mxu0 0.0
    %2147 = vmatprep.subr.mxu0 0.0
    %2148 = vmatpush1.msra.mxu0 0.0
    %2149 = vmatprep.subr.mxu0 0.0
    %2150 = vmatpush1.msra.mxu0 0.0
    %2151 = vmatprep.subr.mxu0 0.0
    %2152 = vmatpush1.msra.mxu0 0.0
    %2153 = vmatprep.subr.mxu0 0.0
    %2154 = vmatpush1.msra.mxu0 0.0
    %2155 = vmatprep.subr.mxu0 0.0
    %2156 = vmatpush1.msra.mxu0 0.0
    %2157 = vmatprep.subr.mxu0 0.0
    %2158 = vmatpush1.msra.mxu0 0.0
    %2159 = vmatprep.subr.mxu0 0.0
    %2160 = vmatpush1.msra.mxu0 0.0
    %2161 = vmatprep.subr.mxu0 0.0
    %2162 = vmatpush1.msra.mxu0 0.0
    %2163 = vmatprep.subr.mxu0 0.0
    %2164 = vmatpush1.msra.mxu0 0.0
    %2165 = vmatprep.subr.mxu0 0.0
    %2166 = vmatpush1.msra.mxu0 0.0
    %2167 = vmatprep.subr.mxu0 0.0
    %2168 = vmatpush1.msra.mxu0 0.0
    %2169 = vmatprep.subr.mxu0 0.0
    %2170 = vmatpush1.msra.mxu0 0.0
    %2171 = vmatprep.subr.mxu0 0.0
    %2172 = vmatpush1.msra.mxu0 0.0
    %2173 = vmatprep.subr.mxu0 0.0
    %2174 = vmatpush1.msra.mxu0 0.0
    %2175 = vmatprep.subr.mxu0 0.0
    %2176 = vmatpush1.msra.mxu0 0.0
    %2177 = vmatprep.subr.mxu0 0.0
    %2178 = vmatpush1.msra.mxu0 0.0
    %2179 = vmatprep.mubr.f32.mxu0 0.0
    %2180 = vmatmul.mubr.f32.gmra.mrb[0].mxu0 %v2113
    %v2181 = vpop.f32.mrb[0].mxu0
    %v2182 = vadd.f32 0.0, %v2181
    %v2183 = vpop.f32.mrb[0].mxu0
    %v2184 = vadd.f32 0.0, %v2183
    %2185 = vdwg.mxu0
    %v2186 = vadd.f32 %v2106, %v2182
    %v2187 = vadd.f32 %v2108, %v2184
    %v2188 = vadd.f32 %v2186, %v1733
    %v2189 = vadd.f32 %v2187, %v1737
    %v2190 = vxor.u32 %v2188, 2147483648
    %v2191 = vmul.f32 %v2190, 1.442695
    %v2192 = vpow.pop %v2191
    %v2193 = vadd.f32 %v2192, 1.0
    %v2194 = vrcp.pop %v2193
    %v2195 = vmul.f32 1.0, %v2194
    %v2196 = vtanh.pop %v2189
    %v2197 = vxor.u32 %v2189, 2147483648
    %v2198 = vmul.f32 %v2197, 1.442695
    %v2199 = vpow.pop %v2198
    %v2200 = vadd.f32 %v2199, 1.0
    %v2201 = vrcp.pop %v2200
    %v2202 = vmul.f32 1.0, %v2201
    %v2203 = vmul.f32 %v2195, %v1765
    %v2204 = vmul.f32 %v2195, %v2196
    %2206 = vrot.lane.b32.xlu0 %v2204, 64
    %v2207 = vpop.permute.xlu0 %2206
    %v2209 = vadd.f32 %v2203, %v2207
    %v2210 = vtanh.pop %v2209
    %v2211 = vmul.f32 %v2202, %v2210
    %2212 = vmatprep.subr.mxu0 0.0
    %2213 = vmatpush1.msra.mxu0 %v1255
    %2214 = vmatprep.subr.mxu0 0.0
    %2215 = vmatpush1.msra.mxu0 %v1256
    %2216 = vmatprep.subr.mxu0 0.0
    %2217 = vmatpush1.msra.mxu0 %v1257
    %2218 = vmatprep.subr.mxu0 0.0
    %2219 = vmatpush1.msra.mxu0 %v1258
    %2220 = vmatprep.subr.mxu0 0.0
    %2221 = vmatpush1.msra.mxu0 0.0
    %2222 = vmatprep.subr.mxu0 0.0
    %2223 = vmatpush1.msra.mxu0 0.0
    %2224 = vmatprep.subr.mxu0 0.0
    %2225 = vmatpush1.msra.mxu0 0.0
    %2226 = vmatprep.subr.mxu0 0.0
    %2227 = vmatpush1.msra.mxu0 0.0
    %2228 = vmatprep.subr.mxu0 0.0
    %2229 = vmatpush1.msra.mxu0 0.0
    %2230 = vmatprep.subr.mxu0 0.0
    %2231 = vmatpush1.msra.mxu0 0.0
    %2232 = vmatprep.subr.mxu0 0.0
    %2233 = vmatpush1.msra.mxu0 0.0
    %2234 = vmatprep.subr.mxu0 0.0
    %2235 = vmatpush1.msra.mxu0 0.0
    %2236 = vmatprep.subr.mxu0 0.0
    %2237 = vmatpush1.msra.mxu0 0.0
    %2238 = vmatprep.subr.mxu0 0.0
    %2239 = vmatpush1.msra.mxu0 0.0
    %2240 = vmatprep.subr.mxu0 0.0
    %2241 = vmatpush1.msra.mxu0 0.0
    %2242 = vmatprep.subr.mxu0 0.0
    %2243 = vmatpush1.msra.mxu0 0.0
    %2244 = vmatprep.subr.mxu0 0.0
    %2245 = vmatpush1.msra.mxu0 0.0
    %2246 = vmatprep.subr.mxu0 0.0
    %2247 = vmatpush1.msra.mxu0 0.0
    %2248 = vmatprep.subr.mxu0 0.0
    %2249 = vmatpush1.msra.mxu0 0.0
    %2250 = vmatprep.subr.mxu0 0.0
    %2251 = vmatpush1.msra.mxu0 0.0
    %2252 = vmatprep.subr.mxu0 0.0
    %2253 = vmatpush1.msra.mxu0 0.0
    %2254 = vmatprep.subr.mxu0 0.0
    %2255 = vmatpush1.msra.mxu0 0.0
    %2256 = vmatprep.subr.mxu0 0.0
    %2257 = vmatpush1.msra.mxu0 0.0
    %2258 = vmatprep.subr.mxu0 0.0
    %2259 = vmatpush1.msra.mxu0 0.0
    %2260 = vmatprep.subr.mxu0 0.0
    %2261 = vmatpush1.msra.mxu0 0.0
    %2262 = vmatprep.subr.mxu0 0.0
    %2263 = vmatpush1.msra.mxu0 0.0
    %2264 = vmatprep.subr.mxu0 0.0
    %2265 = vmatpush1.msra.mxu0 0.0
    %2266 = vmatprep.subr.mxu0 0.0
    %2267 = vmatpush1.msra.mxu0 0.0
    %2268 = vmatprep.subr.mxu0 0.0
    %2269 = vmatpush1.msra.mxu0 0.0
    %2270 = vmatprep.subr.mxu0 0.0
    %2271 = vmatpush1.msra.mxu0 0.0
    %2272 = vmatprep.subr.mxu0 0.0
    %2273 = vmatpush1.msra.mxu0 0.0
    %2274 = vmatprep.subr.mxu0 0.0
    %2275 = vmatpush1.msra.mxu0 0.0
    %2276 = vmatprep.mubr.f32.mxu0 0.0
    %2277 = vmatmul.mubr.f32.gmra.mrb[0].mxu0 %v2037
    %v2278 = vpop.f32.mrb[0].mxu0
    %v2279 = vadd.f32 0.0, %v2278
    %v2280 = vpop.f32.mrb[0].mxu0
    %2281 = vdwg.mxu0
    %v2282 = vadd.f32 %v1083, %v2279
    %v2283 = vxor.u32 %v2282, 2147483648
    %v2284 = vmul.f32 %v2283, 1.442695
    %v2285 = vpow.pop %v2284
    %v2286 = vadd.f32 %v2285, 1.0
    %v2287 = vrcp.pop %v2286
    %v2288 = vmul.f32 1.0, %v2287
    %v2289 = vtanh.pop %v2282
    %v2290 = vmul.f32 %v2288, %v1856
    %2292 = vrot.lane.b32.xlu0 %v2289, 64
    %v2293 = vpop.permute.xlu0 %2292
    %v2295 = vmul.f32 %v2288, %v2293
    %2297 = vrot.lane.b32.xlu0 %v2295, 32
    %v2298 = vpop.permute.xlu0 %2297
    %v2300 = vadd.f32 %v2290, %v2298
    %v2301 = vtanh.pop %v2300
    %2303 = vrot.lane.b32.xlu0 %v2301, 64
    %v2304 = vpop.permute.xlu0 %2303
    %v2306 = vmul.f32 %v2288, %v2304
    %2307 = vmatprep.subr.mxu0 0.0
    %2308 = vmatpush1.msra.mxu0 %v1361
    %2309 = vmatprep.subr.mxu0 0.0
    %2310 = vmatpush1.msra.mxu0 %v1362
    %2311 = vmatprep.subr.mxu0 0.0
    %2312 = vmatpush1.msra.mxu0 %v1363
    %2313 = vmatprep.subr.mxu0 0.0
    %2314 = vmatpush1.msra.mxu0 %v1364
    %2315 = vmatprep.subr.mxu0 0.0
    %2316 = vmatpush1.msra.mxu0 0.0
    %2317 = vmatprep.subr.mxu0 0.0
    %2318 = vmatpush1.msra.mxu0 0.0
    %2319 = vmatprep.subr.mxu0 0.0
    %2320 = vmatpush1.msra.mxu0 0.0
    %2321 = vmatprep.subr.mxu0 0.0
    %2322 = vmatpush1.msra.mxu0 0.0
    %2323 = vmatprep.subr.mxu0 0.0
    %2324 = vmatpush1.msra.mxu0 0.0
    %2325 = vmatprep.subr.mxu0 0.0
    %2326 = vmatpush1.msra.mxu0 0.0
    %2327 = vmatprep.subr.mxu0 0.0
    %2328 = vmatpush1.msra.mxu0 0.0
    %2329 = vmatprep.subr.mxu0 0.0
    %2330 = vmatpush1.msra.mxu0 0.0
    %2331 = vmatprep.subr.mxu0 0.0
    %2332 = vmatpush1.msra.mxu0 0.0
    %2333 = vmatprep.subr.mxu0 0.0
    %2334 = vmatpush1.msra.mxu0 0.0
    %2335 = vmatprep.subr.mxu0 0.0
    %2336 = vmatpush1.msra.mxu0 0.0
    %2337 = vmatprep.subr.mxu0 0.0
    %2338 = vmatpush1.msra.mxu0 0.0
    %2339 = vmatprep.subr.mxu0 0.0
    %2340 = vmatpush1.msra.mxu0 0.0
    %2341 = vmatprep.subr.mxu0 0.0
    %2342 = vmatpush1.msra.mxu0 0.0
    %2343 = vmatprep.subr.mxu0 0.0
    %2344 = vmatpush1.msra.mxu0 0.0
    %2345 = vmatprep.subr.mxu0 0.0
    %2346 = vmatpush1.msra.mxu0 0.0
    %2347 = vmatprep.subr.mxu0 0.0
    %2348 = vmatpush1.msra.mxu0 0.0
    %2349 = vmatprep.subr.mxu0 0.0
    %2350 = vmatpush1.msra.mxu0 0.0
    %2351 = vmatprep.subr.mxu0 0.0
    %2352 = vmatpush1.msra.mxu0 0.0
    %2353 = vmatprep.subr.mxu0 0.0
    %2354 = vmatpush1.msra.mxu0 0.0
    %2355 = vmatprep.subr.mxu0 0.0
    %2356 = vmatpush1.msra.mxu0 0.0
    %2357 = vmatprep.subr.mxu0 0.0
    %2358 = vmatpush1.msra.mxu0 0.0
    %2359 = vmatprep.subr.mxu0 0.0
    %2360 = vmatpush1.msra.mxu0 0.0
    %2361 = vmatprep.subr.mxu0 0.0
    %2362 = vmatpush1.msra.mxu0 0.0
    %2363 = vmatprep.subr.mxu0 0.0
    %2364 = vmatpush1.msra.mxu0 0.0
    %2365 = vmatprep.subr.mxu0 0.0
    %2366 = vmatpush1.msra.mxu0 0.0
    %2367 = vmatprep.subr.mxu0 0.0
    %2368 = vmatpush1.msra.mxu0 0.0
    %2369 = vmatprep.subr.mxu0 0.0
    %2370 = vmatpush1.msra.mxu0 0.0
    %2371 = vmatprep.mubr.f32.mxu0 0.0
    %2372 = vmatmul.mubr.f32.gmra.mrb[0].mxu0 %v1961
    %v2373 = vpop.f32.mrb[0].mxu0
    %v2374 = vadd.f32 0.0, %v2373
    %v2375 = vpop.f32.mrb[0].mxu0
    %2376 = vdwg.mxu0
    %v2377 = vadd.f32 %v1221, %v2374
    %v2378 = vxor.u32 %v2377, 2147483648
    %v2379 = vmul.f32 %v2378, 1.442695
    %v2380 = vpow.pop %v2379
    %v2381 = vadd.f32 %v2380, 1.0
    %v2382 = vrcp.pop %v2381
    %v2383 = vmul.f32 1.0, %v2382
    %v2384 = vtanh.pop %v2377
    %v2385 = vmul.f32 %v2383, %v1951
    %2387 = vrot.lane.b32.xlu0 %v2384, 64
    %v2388 = vpop.permute.xlu0 %2387
    %v2390 = vmul.f32 %v2383, %v2388
    %2392 = vrot.lane.b32.xlu0 %v2390, 32
    %v2393 = vpop.permute.xlu0 %2392
    %v2395 = vadd.f32 %v2385, %v2393
    %v2396 = vtanh.pop %v2395
    %2398 = vrot.lane.b32.xlu0 %v2396, 64
    %v2399 = vpop.permute.xlu0 %2398
    %v2401 = vmul.f32 %v2383, %v2399
    %2403 = vrot.lane.b32.xlu0 %v2401, 32
    %v2404 = vpop.permute.xlu0 %2403
    %v2405 = vsel %vm490, %v2404, 0
    %2407 = vmatprep.subr.mxu0 %v1476
    %2408 = vmatpush1.msra.mxu0 %v1475
    %2409 = vmatprep.subr.mxu0 %v1478
    %2410 = vmatpush1.msra.mxu0 %v1477
    %2411 = vmatprep.subr.mxu0 %v1480
    %2412 = vmatpush1.msra.mxu0 %v1479
    %2413 = vmatprep.subr.mxu0 %v1482
    %2414 = vmatpush1.msra.mxu0 %v1481
    %2415 = vmatprep.subr.mxu0 0.0
    %2416 = vmatpush1.msra.mxu0 0.0
    %2417 = vmatprep.subr.mxu0 0.0
    %2418 = vmatpush1.msra.mxu0 0.0
    %2419 = vmatprep.subr.mxu0 0.0
    %2420 = vmatpush1.msra.mxu0 0.0
    %2421 = vmatprep.subr.mxu0 0.0
    %2422 = vmatpush1.msra.mxu0 0.0
    %2423 = vmatprep.subr.mxu0 0.0
    %2424 = vmatpush1.msra.mxu0 0.0
    %2425 = vmatprep.subr.mxu0 0.0
    %2426 = vmatpush1.msra.mxu0 0.0
    %2427 = vmatprep.subr.mxu0 0.0
    %2428 = vmatpush1.msra.mxu0 0.0
    %2429 = vmatprep.subr.mxu0 0.0
    %2430 = vmatpush1.msra.mxu0 0.0
    %2431 = vmatprep.subr.mxu0 0.0
    %2432 = vmatpush1.msra.mxu0 0.0
    %2433 = vmatprep.subr.mxu0 0.0
    %2434 = vmatpush1.msra.mxu0 0.0
    %2435 = vmatprep.subr.mxu0 0.0
    %2436 = vmatpush1.msra.mxu0 0.0
    %2437 = vmatprep.subr.mxu0 0.0
    %2438 = vmatpush1.msra.mxu0 0.0
    %2439 = vmatprep.subr.mxu0 0.0
    %2440 = vmatpush1.msra.mxu0 0.0
    %2441 = vmatprep.subr.mxu0 0.0
    %2442 = vmatpush1.msra.mxu0 0.0
    %2443 = vmatprep.subr.mxu0 0.0
    %2444 = vmatpush1.msra.mxu0 0.0
    %2445 = vmatprep.subr.mxu0 0.0
    %2446 = vmatpush1.msra.mxu0 0.0
    %2447 = vmatprep.subr.mxu0 0.0
    %2448 = vmatpush1.msra.mxu0 0.0
    %2449 = vmatprep.subr.mxu0 0.0
    %2450 = vmatpush1.msra.mxu0 0.0
    %2451 = vmatprep.subr.mxu0 0.0
    %2452 = vmatpush1.msra.mxu0 0.0
    %2453 = vmatprep.subr.mxu0 0.0
    %2454 = vmatpush1.msra.mxu0 0.0
    %2455 = vmatprep.subr.mxu0 0.0
    %2456 = vmatpush1.msra.mxu0 0.0
    %2457 = vmatprep.subr.mxu0 0.0
    %2458 = vmatpush1.msra.mxu0 0.0
    %2459 = vmatprep.subr.mxu0 0.0
    %2460 = vmatpush1.msra.mxu0 0.0
    %2461 = vmatprep.subr.mxu0 0.0
    %2462 = vmatpush1.msra.mxu0 0.0
    %2463 = vmatprep.subr.mxu0 0.0
    %2464 = vmatpush1.msra.mxu0 0.0
    %2465 = vmatprep.subr.mxu0 0.0
    %2466 = vmatpush1.msra.mxu0 0.0
    %2467 = vmatprep.subr.mxu0 0.0
    %2468 = vmatpush1.msra.mxu0 0.0
    %2469 = vmatprep.subr.mxu0 0.0
    %2470 = vmatpush1.msra.mxu0 0.0
    %2471 = vmatprep.mubr.f32.mxu0 0.0
    %2472 = vmatmul.mubr.f32.gmra.mrb[0].mxu0 %v2405
    %v2473 = vpop.f32.mrb[0].mxu0
    %v2474 = vadd.f32 0.0, %v2473
    %v2475 = vpop.f32.mrb[0].mxu0
    %v2476 = vadd.f32 0.0, %v2475
    %2477 = vdwg.mxu0
    %2479 = vrot.lane.b32.xlu0 %v2306, 32
    %v2480 = vpop.permute.xlu0 %2479
    %v2481 = vsel %vm490, %v2480, 0
    %2483 = vmatprep.subr.mxu0 %v1468
    %2484 = vmatpush1.msra.mxu0 %v1467
    %2485 = vmatprep.subr.mxu0 %v1470
    %2486 = vmatpush1.msra.mxu0 %v1469
    %2487 = vmatprep.subr.mxu0 %v1472
    %2488 = vmatpush1.msra.mxu0 %v1471
    %2489 = vmatprep.subr.mxu0 %v1474
    %2490 = vmatpush1.msra.mxu0 %v1473
    %2491 = vmatprep.subr.mxu0 0.0
    %2492 = vmatpush1.msra.mxu0 0.0
    %2493 = vmatprep.subr.mxu0 0.0
    %2494 = vmatpush1.msra.mxu0 0.0
    %2495 = vmatprep.subr.mxu0 0.0
    %2496 = vmatpush1.msra.mxu0 0.0
    %2497 = vmatprep.subr.mxu0 0.0
    %2498 = vmatpush1.msra.mxu0 0.0
    %2499 = vmatprep.subr.mxu0 0.0
    %2500 = vmatpush1.msra.mxu0 0.0
    %2501 = vmatprep.subr.mxu0 0.0
    %2502 = vmatpush1.msra.mxu0 0.0
    %2503 = vmatprep.subr.mxu0 0.0
    %2504 = vmatpush1.msra.mxu0 0.0
    %2505 = vmatprep.subr.mxu0 0.0
    %2506 = vmatpush1.msra.mxu0 0.0
    %2507 = vmatprep.subr.mxu0 0.0
    %2508 = vmatpush1.msra.mxu0 0.0
    %2509 = vmatprep.subr.mxu0 0.0
    %2510 = vmatpush1.msra.mxu0 0.0
    %2511 = vmatprep.subr.mxu0 0.0
    %2512 = vmatpush1.msra.mxu0 0.0
    %2513 = vmatprep.subr.mxu0 0.0
    %2514 = vmatpush1.msra.mxu0 0.0
    %2515 = vmatprep.subr.mxu0 0.0
    %2516 = vmatpush1.msra.mxu0 0.0
    %2517 = vmatprep.subr.mxu0 0.0
    %2518 = vmatpush1.msra.mxu0 0.0
    %2519 = vmatprep.subr.mxu0 0.0
    %2520 = vmatpush1.msra.mxu0 0.0
    %2521 = vmatprep.subr.mxu0 0.0
    %2522 = vmatpush1.msra.mxu0 0.0
    %2523 = vmatprep.subr.mxu0 0.0
    %2524 = vmatpush1.msra.mxu0 0.0
    %2525 = vmatprep.subr.mxu0 0.0
    %2526 = vmatpush1.msra.mxu0 0.0
    %2527 = vmatprep.subr.mxu0 0.0
    %2528 = vmatpush1.msra.mxu0 0.0
    %2529 = vmatprep.subr.mxu0 0.0
    %2530 = vmatpush1.msra.mxu0 0.0
    %2531 = vmatprep.subr.mxu0 0.0
    %2532 = vmatpush1.msra.mxu0 0.0
    %2533 = vmatprep.subr.mxu0 0.0
    %2534 = vmatpush1.msra.mxu0 0.0
    %2535 = vmatprep.subr.mxu0 0.0
    %2536 = vmatpush1.msra.mxu0 0.0
    %2537 = vmatprep.subr.mxu0 0.0
    %2538 = vmatpush1.msra.mxu0 0.0
    %2539 = vmatprep.subr.mxu0 0.0
    %2540 = vmatpush1.msra.mxu0 0.0
    %2541 = vmatprep.subr.mxu0 0.0
    %2542 = vmatpush1.msra.mxu0 0.0
    %2543 = vmatprep.subr.mxu0 0.0
    %2544 = vmatpush1.msra.mxu0 0.0
    %2545 = vmatprep.subr.mxu0 0.0
    %2546 = vmatpush1.msra.mxu0 0.0
    %2547 = vmatprep.mubr.f32.mxu0 0.0
    %2548 = vmatmul.mubr.f32.gmra.mrb[0].mxu0 %v2481
    %v2549 = vpop.f32.mrb[0].mxu0
    %v2550 = vadd.f32 %v2474, %v2549
    %v2551 = vpop.f32.mrb[0].mxu0
    %v2552 = vadd.f32 %v2476, %v2551
    %2553 = vdwg.mxu0
    %2555 = vrot.lane.b32.xlu0 %v2211, 64
    %v2556 = vpop.permute.xlu0 %2555
    %v2557 = vsel %vm1651, %v2556, 0
    %2559 = vmatprep.subr.mxu0 %v1636
    %2560 = vmatpush1.msra.mxu0 %v1635
    %2561 = vmatprep.subr.mxu0 %v1638
    %2562 = vmatpush1.msra.mxu0 %v1637
    %2563 = vmatprep.subr.mxu0 %v1640
    %2564 = vmatpush1.msra.mxu0 %v1639
    %2565 = vmatprep.subr.mxu0 %v1642
    %2566 = vmatpush1.msra.mxu0 %v1641
    %2567 = vmatprep.subr.mxu0 %v1644
    %2568 = vmatpush1.msra.mxu0 %v1643
    %2569 = vmatprep.subr.mxu0 %v1646
    %2570 = vmatpush1.msra.mxu0 %v1645
    %2571 = vmatprep.subr.mxu0 %v1648
    %2572 = vmatpush1.msra.mxu0 %v1647
    %2573 = vmatprep.subr.mxu0 %v1650
    %2574 = vmatpush1.msra.mxu0 %v1649
    %2575 = vmatprep.subr.mxu0 0.0
    %2576 = vmatpush1.msra.mxu0 0.0
    %2577 = vmatprep.subr.mxu0 0.0
    %2578 = vmatpush1.msra.mxu0 0.0
    %2579 = vmatprep.subr.mxu0 0.0
    %2580 = vmatpush1.msra.mxu0 0.0
    %2581 = vmatprep.subr.mxu0 0.0
    %2582 = vmatpush1.msra.mxu0 0.0
    %2583 = vmatprep.subr.mxu0 0.0
    %2584 = vmatpush1.msra.mxu0 0.0
    %2585 = vmatprep.subr.mxu0 0.0
    %2586 = vmatpush1.msra.mxu0 0.0
    %2587 = vmatprep.subr.mxu0 0.0
    %2588 = vmatpush1.msra.mxu0 0.0
    %2589 = vmatprep.subr.mxu0 0.0
    %2590 = vmatpush1.msra.mxu0 0.0
    %2591 = vmatprep.subr.mxu0 0.0
    %2592 = vmatpush1.msra.mxu0 0.0
    %2593 = vmatprep.subr.mxu0 0.0
    %2594 = vmatpush1.msra.mxu0 0.0
    %2595 = vmatprep.subr.mxu0 0.0
    %2596 = vmatpush1.msra.mxu0 0.0
    %2597 = vmatprep.subr.mxu0 0.0
    %2598 = vmatpush1.msra.mxu0 0.0
    %2599 = vmatprep.subr.mxu0 0.0
    %2600 = vmatpush1.msra.mxu0 0.0
    %2601 = vmatprep.subr.mxu0 0.0
    %2602 = vmatpush1.msra.mxu0 0.0
    %2603 = vmatprep.subr.mxu0 0.0
    %2604 = vmatpush1.msra.mxu0 0.0
    %2605 = vmatprep.subr.mxu0 0.0
    %2606 = vmatpush1.msra.mxu0 0.0
    %2607 = vmatprep.subr.mxu0 0.0
    %2608 = vmatpush1.msra.mxu0 0.0
    %2609 = vmatprep.subr.mxu0 0.0
    %2610 = vmatpush1.msra.mxu0 0.0
    %2611 = vmatprep.subr.mxu0 0.0
    %2612 = vmatpush1.msra.mxu0 0.0
    %2613 = vmatprep.subr.mxu0 0.0
    %2614 = vmatpush1.msra.mxu0 0.0
    %2615 = vmatprep.subr.mxu0 0.0
    %2616 = vmatpush1.msra.mxu0 0.0
    %2617 = vmatprep.subr.mxu0 0.0
    %2618 = vmatpush1.msra.mxu0 0.0
    %2619 = vmatprep.subr.mxu0 0.0
    %2620 = vmatpush1.msra.mxu0 0.0
    %2621 = vmatprep.subr.mxu0 0.0
    %2622 = vmatpush1.msra.mxu0 0.0
    %2623 = vmatprep.mubr.f32.mxu0 0.0
    %2624 = vmatmul.mubr.f32.gmra.mrb[0].mxu0 %v2557
    %v2625 = vpop.f32.mrb[0].mxu0
    %v2626 = vadd.f32 0.0, %v2625
    %v2627 = vpop.f32.mrb[0].mxu0
    %v2628 = vadd.f32 0.0, %v2627
    %2629 = vdwg.mxu0
    %v2630 = vadd.f32 %v2550, %v2626
    %v2631 = vadd.f32 %v2552, %v2628
    %v2632 = vadd.f32 %v2630, %v1733
    %v2633 = vadd.f32 %v2631, %v1737
    %v2634 = vxor.u32 %v2632, 2147483648
    %v2635 = vmul.f32 %v2634, 1.442695
    %v2636 = vpow.pop %v2635
    %v2637 = vadd.f32 %v2636, 1.0
    %v2638 = vrcp.pop %v2637
    %v2639 = vmul.f32 1.0, %v2638
    %v2640 = vtanh.pop %v2633
    %v2641 = vxor.u32 %v2633, 2147483648
    %v2642 = vmul.f32 %v2641, 1.442695
    %v2643 = vpow.pop %v2642
    %v2644 = vadd.f32 %v2643, 1.0
    %v2645 = vrcp.pop %v2644
    %v2646 = vmul.f32 1.0, %v2645
    %v2647 = vmul.f32 %v2639, %v2209
    %v2648 = vmul.f32 %v2639, %v2640
    %2650 = vrot.lane.b32.xlu0 %v2648, 64
    %v2651 = vpop.permute.xlu0 %2650
    %v2653 = vadd.f32 %v2647, %v2651
    %v2654 = vtanh.pop %v2653
    %v2655 = vmul.f32 %v2646, %v2654
    %2656 = vmatprep.subr.mxu0 0.0
    %2657 = vmatpush1.msra.mxu0 %v1255
    %2658 = vmatprep.subr.mxu0 0.0
    %2659 = vmatpush1.msra.mxu0 %v1256
    %2660 = vmatprep.subr.mxu0 0.0
    %2661 = vmatpush1.msra.mxu0 %v1257
    %2662 = vmatprep.subr.mxu0 0.0
    %2663 = vmatpush1.msra.mxu0 %v1258
    %2664 = vmatprep.subr.mxu0 0.0
    %2665 = vmatpush1.msra.mxu0 0.0
    %2666 = vmatprep.subr.mxu0 0.0
    %2667 = vmatpush1.msra.mxu0 0.0
    %2668 = vmatprep.subr.mxu0 0.0
    %2669 = vmatpush1.msra.mxu0 0.0
    %2670 = vmatprep.subr.mxu0 0.0
    %2671 = vmatpush1.msra.mxu0 0.0
    %2672 = vmatprep.subr.mxu0 0.0
    %2673 = vmatpush1.msra.mxu0 0.0
    %2674 = vmatprep.subr.mxu0 0.0
    %2675 = vmatpush1.msra.mxu0 0.0
    %2676 = vmatprep.subr.mxu0 0.0
    %2677 = vmatpush1.msra.mxu0 0.0
    %2678 = vmatprep.subr.mxu0 0.0
    %2679 = vmatpush1.msra.mxu0 0.0
    %2680 = vmatprep.subr.mxu0 0.0
    %2681 = vmatpush1.msra.mxu0 0.0
    %2682 = vmatprep.subr.mxu0 0.0
    %2683 = vmatpush1.msra.mxu0 0.0
    %2684 = vmatprep.subr.mxu0 0.0
    %2685 = vmatpush1.msra.mxu0 0.0
    %2686 = vmatprep.subr.mxu0 0.0
    %2687 = vmatpush1.msra.mxu0 0.0
    %2688 = vmatprep.subr.mxu0 0.0
    %2689 = vmatpush1.msra.mxu0 0.0
    %2690 = vmatprep.subr.mxu0 0.0
    %2691 = vmatpush1.msra.mxu0 0.0
    %2692 = vmatprep.subr.mxu0 0.0
    %2693 = vmatpush1.msra.mxu0 0.0
    %2694 = vmatprep.subr.mxu0 0.0
    %2695 = vmatpush1.msra.mxu0 0.0
    %2696 = vmatprep.subr.mxu0 0.0
    %2697 = vmatpush1.msra.mxu0 0.0
    %2698 = vmatprep.subr.mxu0 0.0
    %2699 = vmatpush1.msra.mxu0 0.0
    %2700 = vmatprep.subr.mxu0 0.0
    %2701 = vmatpush1.msra.mxu0 0.0
    %2702 = vmatprep.subr.mxu0 0.0
    %2703 = vmatpush1.msra.mxu0 0.0
    %2704 = vmatprep.subr.mxu0 0.0
    %2705 = vmatpush1.msra.mxu0 0.0
    %2706 = vmatprep.subr.mxu0 0.0
    %2707 = vmatpush1.msra.mxu0 0.0
    %2708 = vmatprep.subr.mxu0 0.0
    %2709 = vmatpush1.msra.mxu0 0.0
    %2710 = vmatprep.subr.mxu0 0.0
    %2711 = vmatpush1.msra.mxu0 0.0
    %2712 = vmatprep.subr.mxu0 0.0
    %2713 = vmatpush1.msra.mxu0 0.0
    %2714 = vmatprep.subr.mxu0 0.0
    %2715 = vmatpush1.msra.mxu0 0.0
    %2716 = vmatprep.subr.mxu0 0.0
    %2717 = vmatpush1.msra.mxu0 0.0
    %2718 = vmatprep.subr.mxu0 0.0
    %2719 = vmatpush1.msra.mxu0 0.0
    %2720 = vmatprep.mubr.f32.mxu0 0.0
    %2721 = vmatmul.mubr.f32.gmra.mrb[0].mxu0 %v2481
    %v2722 = vpop.f32.mrb[0].mxu0
    %v2723 = vadd.f32 0.0, %v2722
    %v2724 = vpop.f32.mrb[0].mxu0
    %2725 = vdwg.mxu0
    %v2726 = vadd.f32 %v1088, %v2723
    %v2727 = vxor.u32 %v2726, 2147483648
    %v2728 = vmul.f32 %v2727, 1.442695
    %v2729 = vpow.pop %v2728
    %v2730 = vadd.f32 %v2729, 1.0
    %v2731 = vrcp.pop %v2730
    %v2732 = vmul.f32 1.0, %v2731
    %v2733 = vtanh.pop %v2726
    %v2734 = vmul.f32 %v2732, %v2300
    %2736 = vrot.lane.b32.xlu0 %v2733, 64
    %v2737 = vpop.permute.xlu0 %2736
    %v2739 = vmul.f32 %v2732, %v2737
    %2741 = vrot.lane.b32.xlu0 %v2739, 32
    %v2742 = vpop.permute.xlu0 %2741
    %v2744 = vadd.f32 %v2734, %v2742
    %v2745 = vtanh.pop %v2744
    %2747 = vrot.lane.b32.xlu0 %v2745, 64
    %v2748 = vpop.permute.xlu0 %2747
    %v2750 = vmul.f32 %v2732, %v2748
    %2751 = vmatprep.subr.mxu0 0.0
    %2752 = vmatpush1.msra.mxu0 %v1361
    %2753 = vmatprep.subr.mxu0 0.0
    %2754 = vmatpush1.msra.mxu0 %v1362
    %2755 = vmatprep.subr.mxu0 0.0
    %2756 = vmatpush1.msra.mxu0 %v1363
    %2757 = vmatprep.subr.mxu0 0.0
    %2758 = vmatpush1.msra.mxu0 %v1364
    %2759 = vmatprep.subr.mxu0 0.0
    %2760 = vmatpush1.msra.mxu0 0.0
    %2761 = vmatprep.subr.mxu0 0.0
    %2762 = vmatpush1.msra.mxu0 0.0
    %2763 = vmatprep.subr.mxu0 0.0
    %2764 = vmatpush1.msra.mxu0 0.0
    %2765 = vmatprep.subr.mxu0 0.0
    %2766 = vmatpush1.msra.mxu0 0.0
    %2767 = vmatprep.subr.mxu0 0.0
    %2768 = vmatpush1.msra.mxu0 0.0
    %2769 = vmatprep.subr.mxu0 0.0
    %2770 = vmatpush1.msra.mxu0 0.0
    %2771 = vmatprep.subr.mxu0 0.0
    %2772 = vmatpush1.msra.mxu0 0.0
    %2773 = vmatprep.subr.mxu0 0.0
    %2774 = vmatpush1.msra.mxu0 0.0
    %2775 = vmatprep.subr.mxu0 0.0
    %2776 = vmatpush1.msra.mxu0 0.0
    %2777 = vmatprep.subr.mxu0 0.0
    %2778 = vmatpush1.msra.mxu0 0.0
    %2779 = vmatprep.subr.mxu0 0.0
    %2780 = vmatpush1.msra.mxu0 0.0
    %2781 = vmatprep.subr.mxu0 0.0
    %2782 = vmatpush1.msra.mxu0 0.0
    %2783 = vmatprep.subr.mxu0 0.0
    %2784 = vmatpush1.msra.mxu0 0.0
    %2785 = vmatprep.subr.mxu0 0.0
    %2786 = vmatpush1.msra.mxu0 0.0
    %2787 = vmatprep.subr.mxu0 0.0
    %2788 = vmatpush1.msra.mxu0 0.0
    %2789 = vmatprep.subr.mxu0 0.0
    %2790 = vmatpush1.msra.mxu0 0.0
    %2791 = vmatprep.subr.mxu0 0.0
    %2792 = vmatpush1.msra.mxu0 0.0
    %2793 = vmatprep.subr.mxu0 0.0
    %2794 = vmatpush1.msra.mxu0 0.0
    %2795 = vmatprep.subr.mxu0 0.0
    %2796 = vmatpush1.msra.mxu0 0.0
    %2797 = vmatprep.subr.mxu0 0.0
    %2798 = vmatpush1.msra.mxu0 0.0
    %2799 = vmatprep.subr.mxu0 0.0
    %2800 = vmatpush1.msra.mxu0 0.0
    %2801 = vmatprep.subr.mxu0 0.0
    %2802 = vmatpush1.msra.mxu0 0.0
    %2803 = vmatprep.subr.mxu0 0.0
    %2804 = vmatpush1.msra.mxu0 0.0
    %2805 = vmatprep.subr.mxu0 0.0
    %2806 = vmatpush1.msra.mxu0 0.0
    %2807 = vmatprep.subr.mxu0 0.0
    %2808 = vmatpush1.msra.mxu0 0.0
    %2809 = vmatprep.subr.mxu0 0.0
    %2810 = vmatpush1.msra.mxu0 0.0
    %2811 = vmatprep.subr.mxu0 0.0
    %2812 = vmatpush1.msra.mxu0 0.0
    %2813 = vmatprep.subr.mxu0 0.0
    %2814 = vmatpush1.msra.mxu0 0.0
    %2815 = vmatprep.mubr.f32.mxu0 0.0
    %2816 = vmatmul.mubr.f32.gmra.mrb[0].mxu0 %v2405
    %v2817 = vpop.f32.mrb[0].mxu0
    %v2818 = vadd.f32 0.0, %v2817
    %v2819 = vpop.f32.mrb[0].mxu0
    %2820 = vdwg.mxu0
    %v2821 = vadd.f32 %v1226, %v2818
    %v2822 = vxor.u32 %v2821, 2147483648
    %v2823 = vmul.f32 %v2822, 1.442695
    %v2824 = vpow.pop %v2823
    %v2825 = vadd.f32 %v2824, 1.0
    %v2826 = vrcp.pop %v2825
    %v2827 = vmul.f32 1.0, %v2826
    %v2828 = vtanh.pop %v2821
    %v2829 = vmul.f32 %v2827, %v2395
    %2831 = vrot.lane.b32.xlu0 %v2828, 64
    %v2832 = vpop.permute.xlu0 %2831
    %v2834 = vmul.f32 %v2827, %v2832
    %2836 = vrot.lane.b32.xlu0 %v2834, 32
    %v2837 = vpop.permute.xlu0 %2836
    %v2839 = vadd.f32 %v2829, %v2837
    %v2840 = vtanh.pop %v2839
    %2842 = vrot.lane.b32.xlu0 %v2840, 64
    %v2843 = vpop.permute.xlu0 %2842
    %v2845 = vmul.f32 %v2827, %v2843
    %2847 = vrot.lane.b32.xlu0 %v2845, 32
    %v2848 = vpop.permute.xlu0 %2847
    %v2849 = vsel %vm490, %v2848, 0
    %2851 = vmatprep.subr.mxu0 %v1476
    %2852 = vmatpush1.msra.mxu0 %v1475
    %2853 = vmatprep.subr.mxu0 %v1478
    %2854 = vmatpush1.msra.mxu0 %v1477
    %2855 = vmatprep.subr.mxu0 %v1480
    %2856 = vmatpush1.msra.mxu0 %v1479
    %2857 = vmatprep.subr.mxu0 %v1482
    %2858 = vmatpush1.msra.mxu0 %v1481
    %2859 = vmatprep.subr.mxu0 0.0
    %2860 = vmatpush1.msra.mxu0 0.0
    %2861 = vmatprep.subr.mxu0 0.0
    %2862 = vmatpush1.msra.mxu0 0.0
    %2863 = vmatprep.subr.mxu0 0.0
    %2864 = vmatpush1.msra.mxu0 0.0
    %2865 = vmatprep.subr.mxu0 0.0
    %2866 = vmatpush1.msra.mxu0 0.0
    %2867 = vmatprep.subr.mxu0 0.0
    %2868 = vmatpush1.msra.mxu0 0.0
    %2869 = vmatprep.subr.mxu0 0.0
    %2870 = vmatpush1.msra.mxu0 0.0
    %2871 = vmatprep.subr.mxu0 0.0
    %2872 = vmatpush1.msra.mxu0 0.0
    %2873 = vmatprep.subr.mxu0 0.0
    %2874 = vmatpush1.msra.mxu0 0.0
    %2875 = vmatprep.subr.mxu0 0.0
    %2876 = vmatpush1.msra.mxu0 0.0
    %2877 = vmatprep.subr.mxu0 0.0
    %2878 = vmatpush1.msra.mxu0 0.0
    %2879 = vmatprep.subr.mxu0 0.0
    %2880 = vmatpush1.msra.mxu0 0.0
    %2881 = vmatprep.subr.mxu0 0.0
    %2882 = vmatpush1.msra.mxu0 0.0
    %2883 = vmatprep.subr.mxu0 0.0
    %2884 = vmatpush1.msra.mxu0 0.0
    %2885 = vmatprep.subr.mxu0 0.0
    %2886 = vmatpush1.msra.mxu0 0.0
    %2887 = vmatprep.subr.mxu0 0.0
    %2888 = vmatpush1.msra.mxu0 0.0
    %2889 = vmatprep.subr.mxu0 0.0
    %2890 = vmatpush1.msra.mxu0 0.0
    %2891 = vmatprep.subr.mxu0 0.0
    %2892 = vmatpush1.msra.mxu0 0.0
    %2893 = vmatprep.subr.mxu0 0.0
    %2894 = vmatpush1.msra.mxu0 0.0
    %2895 = vmatprep.subr.mxu0 0.0
    %2896 = vmatpush1.msra.mxu0 0.0
    %2897 = vmatprep.subr.mxu0 0.0
    %2898 = vmatpush1.msra.mxu0 0.0
    %2899 = vmatprep.subr.mxu0 0.0
    %2900 = vmatpush1.msra.mxu0 0.0
    %2901 = vmatprep.subr.mxu0 0.0
    %2902 = vmatpush1.msra.mxu0 0.0
    %2903 = vmatprep.subr.mxu0 0.0
    %2904 = vmatpush1.msra.mxu0 0.0
    %2905 = vmatprep.subr.mxu0 0.0
    %2906 = vmatpush1.msra.mxu0 0.0
    %2907 = vmatprep.subr.mxu0 0.0
    %2908 = vmatpush1.msra.mxu0 0.0
    %2909 = vmatprep.subr.mxu0 0.0
    %2910 = vmatpush1.msra.mxu0 0.0
    %2911 = vmatprep.subr.mxu0 0.0
    %2912 = vmatpush1.msra.mxu0 0.0
    %2913 = vmatprep.subr.mxu0 0.0
    %2914 = vmatpush1.msra.mxu0 0.0
    %2915 = vmatprep.mubr.f32.mxu0 0.0
    %2916 = vmatmul.mubr.f32.gmra.mrb[0].mxu0 %v2849
    %v2917 = vpop.f32.mrb[0].mxu0
    %v2918 = vadd.f32 0.0, %v2917
    %v2919 = vpop.f32.mrb[0].mxu0
    %v2920 = vadd.f32 0.0, %v2919
    %2921 = vdwg.mxu0
    %2923 = vrot.lane.b32.xlu0 %v2750, 32
    %v2924 = vpop.permute.xlu0 %2923
    %v2925 = vsel %vm490, %v2924, 0
    %2927 = vmatprep.subr.mxu0 %v1468
    %2928 = vmatpush1.msra.mxu0 %v1467
    %2929 = vmatprep.subr.mxu0 %v1470
    %2930 = vmatpush1.msra.mxu0 %v1469
    %2931 = vmatprep.subr.mxu0 %v1472
    %2932 = vmatpush1.msra.mxu0 %v1471
    %2933 = vmatprep.subr.mxu0 %v1474
    %2934 = vmatpush1.msra.mxu0 %v1473
    %2935 = vmatprep.subr.mxu0 0.0
    %2936 = vmatpush1.msra.mxu0 0.0
    %2937 = vmatprep.subr.mxu0 0.0
    %2938 = vmatpush1.msra.mxu0 0.0
    %2939 = vmatprep.subr.mxu0 0.0
    %2940 = vmatpush1.msra.mxu0 0.0
    %2941 = vmatprep.subr.mxu0 0.0
    %2942 = vmatpush1.msra.mxu0 0.0
    %2943 = vmatprep.subr.mxu0 0.0
    %2944 = vmatpush1.msra.mxu0 0.0
    %2945 = vmatprep.subr.mxu0 0.0
    %2946 = vmatpush1.msra.mxu0 0.0
    %2947 = vmatprep.subr.mxu0 0.0
    %2948 = vmatpush1.msra.mxu0 0.0
    %2949 = vmatprep.subr.mxu0 0.0
    %2950 = vmatpush1.msra.mxu0 0.0
    %2951 = vmatprep.subr.mxu0 0.0
    %2952 = vmatpush1.msra.mxu0 0.0
    %2953 = vmatprep.subr.mxu0 0.0
    %2954 = vmatpush1.msra.mxu0 0.0
    %2955 = vmatprep.subr.mxu0 0.0
    %2956 = vmatpush1.msra.mxu0 0.0
    %2957 = vmatprep.subr.mxu0 0.0
    %2958 = vmatpush1.msra.mxu0 0.0
    %2959 = vmatprep.subr.mxu0 0.0
    %2960 = vmatpush1.msra.mxu0 0.0
    %2961 = vmatprep.subr.mxu0 0.0
    %2962 = vmatpush1.msra.mxu0 0.0
    %2963 = vmatprep.subr.mxu0 0.0
    %2964 = vmatpush1.msra.mxu0 0.0
    %2965 = vmatprep.subr.mxu0 0.0
    %2966 = vmatpush1.msra.mxu0 0.0
    %2967 = vmatprep.subr.mxu0 0.0
    %2968 = vmatpush1.msra.mxu0 0.0
    %2969 = vmatprep.subr.mxu0 0.0
    %2970 = vmatpush1.msra.mxu0 0.0
    %2971 = vmatprep.subr.mxu0 0.0
    %2972 = vmatpush1.msra.mxu0 0.0
    %2973 = vmatprep.subr.mxu0 0.0
    %2974 = vmatpush1.msra.mxu0 0.0
    %2975 = vmatprep.subr.mxu0 0.0
    %2976 = vmatpush1.msra.mxu0 0.0
    %2977 = vmatprep.subr.mxu0 0.0
    %2978 = vmatpush1.msra.mxu0 0.0
    %2979 = vmatprep.subr.mxu0 0.0
    %2980 = vmatpush1.msra.mxu0 0.0
    %2981 = vmatprep.subr.mxu0 0.0
    %2982 = vmatpush1.msra.mxu0 0.0
    %2983 = vmatprep.subr.mxu0 0.0
    %2984 = vmatpush1.msra.mxu0 0.0
    %2985 = vmatprep.subr.mxu0 0.0
    %2986 = vmatpush1.msra.mxu0 0.0
    %2987 = vmatprep.subr.mxu0 0.0
    %2988 = vmatpush1.msra.mxu0 0.0
    %2989 = vmatprep.subr.mxu0 0.0
    %2990 = vmatpush1.msra.mxu0 0.0
    %2991 = vmatprep.mubr.f32.mxu0 0.0
    %2992 = vmatmul.mubr.f32.gmra.mrb[0].mxu0 %v2925
    %v2993 = vpop.f32.mrb[0].mxu0
    %v2994 = vadd.f32 %v2918, %v2993
    %v2995 = vpop.f32.mrb[0].mxu0
    %v2996 = vadd.f32 %v2920, %v2995
    %2997 = vdwg.mxu0
    %2999 = vrot.lane.b32.xlu0 %v2655, 64
    %v3000 = vpop.permute.xlu0 %2999
    %v3001 = vsel %vm1651, %v3000, 0
    %3003 = vmatprep.subr.mxu0 %v1636
    %3004 = vmatpush1.msra.mxu0 %v1635
    %3005 = vmatprep.subr.mxu0 %v1638
    %3006 = vmatpush1.msra.mxu0 %v1637
    %3007 = vmatprep.subr.mxu0 %v1640
    %3008 = vmatpush1.msra.mxu0 %v1639
    %3009 = vmatprep.subr.mxu0 %v1642
    %3010 = vmatpush1.msra.mxu0 %v1641
    %3011 = vmatprep.subr.mxu0 %v1644
    %3012 = vmatpush1.msra.mxu0 %v1643
    %3013 = vmatprep.subr.mxu0 %v1646
    %3014 = vmatpush1.msra.mxu0 %v1645
    %3015 = vmatprep.subr.mxu0 %v1648
    %3016 = vmatpush1.msra.mxu0 %v1647
    %3017 = vmatprep.subr.mxu0 %v1650
    %3018 = vmatpush1.msra.mxu0 %v1649
    %3019 = vmatprep.subr.mxu0 0.0
    %3020 = vmatpush1.msra.mxu0 0.0
    %3021 = vmatprep.subr.mxu0 0.0
    %3022 = vmatpush1.msra.mxu0 0.0
    %3023 = vmatprep.subr.mxu0 0.0
    %3024 = vmatpush1.msra.mxu0 0.0
    %3025 = vmatprep.subr.mxu0 0.0
    %3026 = vmatpush1.msra.mxu0 0.0
    %3027 = vmatprep.subr.mxu0 0.0
    %3028 = vmatpush1.msra.mxu0 0.0
    %3029 = vmatprep.subr.mxu0 0.0
    %3030 = vmatpush1.msra.mxu0 0.0
    %3031 = vmatprep.subr.mxu0 0.0
    %3032 = vmatpush1.msra.mxu0 0.0
    %3033 = vmatprep.subr.mxu0 0.0
    %3034 = vmatpush1.msra.mxu0 0.0
    %3035 = vmatprep.subr.mxu0 0.0
    %3036 = vmatpush1.msra.mxu0 0.0
    %3037 = vmatprep.subr.mxu0 0.0
    %3038 = vmatpush1.msra.mxu0 0.0
    %3039 = vmatprep.subr.mxu0 0.0
    %3040 = vmatpush1.msra.mxu0 0.0
    %3041 = vmatprep.subr.mxu0 0.0
    %3042 = vmatpush1.msra.mxu0 0.0
    %3043 = vmatprep.subr.mxu0 0.0
    %3044 = vmatpush1.msra.mxu0 0.0
    %3045 = vmatprep.subr.mxu0 0.0
    %3046 = vmatpush1.msra.mxu0 0.0
    %3047 = vmatprep.subr.mxu0 0.0
    %3048 = vmatpush1.msra.mxu0 0.0
    %3049 = vmatprep.subr.mxu0 0.0
    %3050 = vmatpush1.msra.mxu0 0.0
    %3051 = vmatprep.subr.mxu0 0.0
    %3052 = vmatpush1.msra.mxu0 0.0
    %3053 = vmatprep.subr.mxu0 0.0
    %3054 = vmatpush1.msra.mxu0 0.0
    %3055 = vmatprep.subr.mxu0 0.0
    %3056 = vmatpush1.msra.mxu0 0.0
    %3057 = vmatprep.subr.mxu0 0.0
    %3058 = vmatpush1.msra.mxu0 0.0
    %3059 = vmatprep.subr.mxu0 0.0
    %3060 = vmatpush1.msra.mxu0 0.0
    %3061 = vmatprep.subr.mxu0 0.0
    %3062 = vmatpush1.msra.mxu0 0.0
    %3063 = vmatprep.subr.mxu0 0.0
    %3064 = vmatpush1.msra.mxu0 0.0
    %3065 = vmatprep.subr.mxu0 0.0
    %3066 = vmatpush1.msra.mxu0 0.0
    %3067 = vmatprep.mubr.f32.mxu0 0.0
    %3068 = vmatmul.mubr.f32.gmra.mrb[0].mxu0 %v3001
    %v3069 = vpop.f32.mrb[0].mxu0
    %v3070 = vadd.f32 0.0, %v3069
    %v3071 = vpop.f32.mrb[0].mxu0
    %v3072 = vadd.f32 0.0, %v3071
    %3073 = vdwg.mxu0
    %v3074 = vadd.f32 %v2994, %v3070
    %v3075 = vadd.f32 %v2996, %v3072
    %v3076 = vadd.f32 %v3074, %v1733
    %v3077 = vadd.f32 %v3075, %v1737
    %v3078 = vxor.u32 %v3076, 2147483648
    %v3079 = vmul.f32 %v3078, 1.442695
    %v3080 = vpow.pop %v3079
    %v3081 = vadd.f32 %v3080, 1.0
    %v3082 = vrcp.pop %v3081
    %v3083 = vmul.f32 1.0, %v3082
    %v3084 = vtanh.pop %v3077
    %v3085 = vxor.u32 %v3077, 2147483648
    %v3086 = vmul.f32 %v3085, 1.442695
    %v3087 = vpow.pop %v3086
    %v3088 = vadd.f32 %v3087, 1.0
    %v3089 = vrcp.pop %v3088
    %v3090 = vmul.f32 1.0, %v3089
    %v3091 = vmul.f32 %v3083, %v2653
    %v3092 = vmul.f32 %v3083, %v3084
    %3094 = vrot.lane.b32.xlu0 %v3092, 64
    %v3095 = vpop.permute.xlu0 %3094
    %v3097 = vadd.f32 %v3091, %v3095
    %v3098 = vtanh.pop %v3097
    %v3099 = vmul.f32 %v3090, %v3098
    %3100 = vmatprep.subr.mxu0 0.0
    %3101 = vmatpush1.msra.mxu0 %v1255
    %3102 = vmatprep.subr.mxu0 0.0
    %3103 = vmatpush1.msra.mxu0 %v1256
    %3104 = vmatprep.subr.mxu0 0.0
    %3105 = vmatpush1.msra.mxu0 %v1257
    %3106 = vmatprep.subr.mxu0 0.0
    %3107 = vmatpush1.msra.mxu0 %v1258
    %3108 = vmatprep.subr.mxu0 0.0
    %3109 = vmatpush1.msra.mxu0 0.0
    %3110 = vmatprep.subr.mxu0 0.0
    %3111 = vmatpush1.msra.mxu0 0.0
    %3112 = vmatprep.subr.mxu0 0.0
    %3113 = vmatpush1.msra.mxu0 0.0
    %3114 = vmatprep.subr.mxu0 0.0
    %3115 = vmatpush1.msra.mxu0 0.0
    %3116 = vmatprep.subr.mxu0 0.0
    %3117 = vmatpush1.msra.mxu0 0.0
    %3118 = vmatprep.subr.mxu0 0.0
    %3119 = vmatpush1.msra.mxu0 0.0
    %3120 = vmatprep.subr.mxu0 0.0
    %3121 = vmatpush1.msra.mxu0 0.0
    %3122 = vmatprep.subr.mxu0 0.0
    %3123 = vmatpush1.msra.mxu0 0.0
    %3124 = vmatprep.subr.mxu0 0.0
    %3125 = vmatpush1.msra.mxu0 0.0
    %3126 = vmatprep.subr.mxu0 0.0
    %3127 = vmatpush1.msra.mxu0 0.0
    %3128 = vmatprep.subr.mxu0 0.0
    %3129 = vmatpush1.msra.mxu0 0.0
    %3130 = vmatprep.subr.mxu0 0.0
    %3131 = vmatpush1.msra.mxu0 0.0
    %3132 = vmatprep.subr.mxu0 0.0
    %3133 = vmatpush1.msra.mxu0 0.0
    %3134 = vmatprep.subr.mxu0 0.0
    %3135 = vmatpush1.msra.mxu0 0.0
    %3136 = vmatprep.subr.mxu0 0.0
    %3137 = vmatpush1.msra.mxu0 0.0
    %3138 = vmatprep.subr.mxu0 0.0
    %3139 = vmatpush1.msra.mxu0 0.0
    %3140 = vmatprep.subr.mxu0 0.0
    %3141 = vmatpush1.msra.mxu0 0.0
    %3142 = vmatprep.subr.mxu0 0.0
    %3143 = vmatpush1.msra.mxu0 0.0
    %3144 = vmatprep.subr.mxu0 0.0
    %3145 = vmatpush1.msra.mxu0 0.0
    %3146 = vmatprep.subr.mxu0 0.0
    %3147 = vmatpush1.msra.mxu0 0.0
    %3148 = vmatprep.subr.mxu0 0.0
    %3149 = vmatpush1.msra.mxu0 0.0
    %3150 = vmatprep.subr.mxu0 0.0
    %3151 = vmatpush1.msra.mxu0 0.0
    %3152 = vmatprep.subr.mxu0 0.0
    %3153 = vmatpush1.msra.mxu0 0.0
    %3154 = vmatprep.subr.mxu0 0.0
    %3155 = vmatpush1.msra.mxu0 0.0
    %3156 = vmatprep.subr.mxu0 0.0
    %3157 = vmatpush1.msra.mxu0 0.0
    %3158 = vmatprep.subr.mxu0 0.0
    %3159 = vmatpush1.msra.mxu0 0.0
    %3160 = vmatprep.subr.mxu0 0.0
    %3161 = vmatpush1.msra.mxu0 0.0
    %3162 = vmatprep.subr.mxu0 0.0
    %3163 = vmatpush1.msra.mxu0 0.0
    %3164 = vmatprep.mubr.f32.mxu0 0.0
    %3165 = vmatmul.mubr.f32.gmra.mrb[0].mxu0 %v2925
    %v3166 = vpop.f32.mrb[0].mxu0
    %v3167 = vadd.f32 0.0, %v3166
    %v3168 = vpop.f32.mrb[0].mxu0
    %3169 = vdwg.mxu0
    %v3170 = vadd.f32 %v1093, %v3167
    %v3171 = vxor.u32 %v3170, 2147483648
    %v3172 = vmul.f32 %v3171, 1.442695
    %v3173 = vpow.pop %v3172
    %v3174 = vadd.f32 %v3173, 1.0
    %v3175 = vrcp.pop %v3174
    %v3176 = vmul.f32 1.0, %v3175
    %v3177 = vtanh.pop %v3170
    %v3178 = vmul.f32 %v3176, %v2744
    %3180 = vrot.lane.b32.xlu0 %v3177, 64
    %v3181 = vpop.permute.xlu0 %3180
    %v3183 = vmul.f32 %v3176, %v3181
    %3185 = vrot.lane.b32.xlu0 %v3183, 32
    %v3186 = vpop.permute.xlu0 %3185
    %v3188 = vadd.f32 %v3178, %v3186
    %v3189 = vtanh.pop %v3188
    %3191 = vrot.lane.b32.xlu0 %v3189, 64
    %v3192 = vpop.permute.xlu0 %3191
    %v3194 = vmul.f32 %v3176, %v3192
    %3195 = vmatprep.subr.mxu0 0.0
    %3196 = vmatpush1.msra.mxu0 %v1361
    %3197 = vmatprep.subr.mxu0 0.0
    %3198 = vmatpush1.msra.mxu0 %v1362
    %3199 = vmatprep.subr.mxu0 0.0
    %3200 = vmatpush1.msra.mxu0 %v1363
    %3201 = vmatprep.subr.mxu0 0.0
    %3202 = vmatpush1.msra.mxu0 %v1364
    %3203 = vmatprep.subr.mxu0 0.0
    %3204 = vmatpush1.msra.mxu0 0.0
    %3205 = vmatprep.subr.mxu0 0.0
    %3206 = vmatpush1.msra.mxu0 0.0
    %3207 = vmatprep.subr.mxu0 0.0
    %3208 = vmatpush1.msra.mxu0 0.0
    %3209 = vmatprep.subr.mxu0 0.0
    %3210 = vmatpush1.msra.mxu0 0.0
    %3211 = vmatprep.subr.mxu0 0.0
    %3212 = vmatpush1.msra.mxu0 0.0
    %3213 = vmatprep.subr.mxu0 0.0
    %3214 = vmatpush1.msra.mxu0 0.0
    %3215 = vmatprep.subr.mxu0 0.0
    %3216 = vmatpush1.msra.mxu0 0.0
    %3217 = vmatprep.subr.mxu0 0.0
    %3218 = vmatpush1.msra.mxu0 0.0
    %3219 = vmatprep.subr.mxu0 0.0
    %3220 = vmatpush1.msra.mxu0 0.0
    %3221 = vmatprep.subr.mxu0 0.0
    %3222 = vmatpush1.msra.mxu0 0.0
    %3223 = vmatprep.subr.mxu0 0.0
    %3224 = vmatpush1.msra.mxu0 0.0
    %3225 = vmatprep.subr.mxu0 0.0
    %3226 = vmatpush1.msra.mxu0 0.0
    %3227 = vmatprep.subr.mxu0 0.0
    %3228 = vmatpush1.msra.mxu0 0.0
    %3229 = vmatprep.subr.mxu0 0.0
    %3230 = vmatpush1.msra.mxu0 0.0
    %3231 = vmatprep.subr.mxu0 0.0
    %3232 = vmatpush1.msra.mxu0 0.0
    %3233 = vmatprep.subr.mxu0 0.0
    %3234 = vmatpush1.msra.mxu0 0.0
    %3235 = vmatprep.subr.mxu0 0.0
    %3236 = vmatpush1.msra.mxu0 0.0
    %3237 = vmatprep.subr.mxu0 0.0
    %3238 = vmatpush1.msra.mxu0 0.0
    %3239 = vmatprep.subr.mxu0 0.0
    %3240 = vmatpush1.msra.mxu0 0.0
    %3241 = vmatprep.subr.mxu0 0.0
    %3242 = vmatpush1.msra.mxu0 0.0
    %3243 = vmatprep.subr.mxu0 0.0
    %3244 = vmatpush1.msra.mxu0 0.0
    %3245 = vmatprep.subr.mxu0 0.0
    %3246 = vmatpush1.msra.mxu0 0.0
    %3247 = vmatprep.subr.mxu0 0.0
    %3248 = vmatpush1.msra.mxu0 0.0
    %3249 = vmatprep.subr.mxu0 0.0
    %3250 = vmatpush1.msra.mxu0 0.0
    %3251 = vmatprep.subr.mxu0 0.0
    %3252 = vmatpush1.msra.mxu0 0.0
    %3253 = vmatprep.subr.mxu0 0.0
    %3254 = vmatpush1.msra.mxu0 0.0
    %3255 = vmatprep.subr.mxu0 0.0
    %3256 = vmatpush1.msra.mxu0 0.0
    %3257 = vmatprep.subr.mxu0 0.0
    %3258 = vmatpush1.msra.mxu0 0.0
    %3259 = vmatprep.mubr.f32.mxu0 0.0
    %3260 = vmatmul.mubr.f32.gmra.mrb[0].mxu0 %v2849
    %v3261 = vpop.f32.mrb[0].mxu0
    %v3262 = vadd.f32 0.0, %v3261
    %v3263 = vpop.f32.mrb[0].mxu0
    %3264 = vdwg.mxu0
    %v3265 = vadd.f32 %v1231, %v3262
    %v3266 = vxor.u32 %v3265, 2147483648
    %v3267 = vmul.f32 %v3266, 1.442695
    %v3268 = vpow.pop %v3267
    %v3269 = vadd.f32 %v3268, 1.0
    %v3270 = vrcp.pop %v3269
    %v3271 = vmul.f32 1.0, %v3270
    %v3272 = vtanh.pop %v3265
    %v3273 = vmul.f32 %v3271, %v2839
    %3275 = vrot.lane.b32.xlu0 %v3272, 64
    %v3276 = vpop.permute.xlu0 %3275
    %v3278 = vmul.f32 %v3271, %v3276
    %3280 = vrot.lane.b32.xlu0 %v3278, 32
    %v3281 = vpop.permute.xlu0 %3280
    %v3283 = vadd.f32 %v3273, %v3281
    %v3284 = vtanh.pop %v3283
    %3286 = vrot.lane.b32.xlu0 %v3284, 64
    %v3287 = vpop.permute.xlu0 %3286
    %v3289 = vmul.f32 %v3271, %v3287
    %3291 = vrot.lane.b32.xlu0 %v3289, 32
    %v3292 = vpop.permute.xlu0 %3291
    %v3293 = vsel %vm490, %v3292, 0
    %3295 = vmatprep.subr.mxu0 %v1476
    %3296 = vmatpush1.msra.mxu0 %v1475
    %3297 = vmatprep.subr.mxu0 %v1478
    %3298 = vmatpush1.msra.mxu0 %v1477
    %3299 = vmatprep.subr.mxu0 %v1480
    %3300 = vmatpush1.msra.mxu0 %v1479
    %3301 = vmatprep.subr.mxu0 %v1482
    %3302 = vmatpush1.msra.mxu0 %v1481
    %3303 = vmatprep.subr.mxu0 0.0
    %3304 = vmatpush1.msra.mxu0 0.0
    %3305 = vmatprep.subr.mxu0 0.0
    %3306 = vmatpush1.msra.mxu0 0.0
    %3307 = vmatprep.subr.mxu0 0.0
    %3308 = vmatpush1.msra.mxu0 0.0
    %3309 = vmatprep.subr.mxu0 0.0
    %3310 = vmatpush1.msra.mxu0 0.0
    %3311 = vmatprep.subr.mxu0 0.0
    %3312 = vmatpush1.msra.mxu0 0.0
    %3313 = vmatprep.subr.mxu0 0.0
    %3314 = vmatpush1.msra.mxu0 0.0
    %3315 = vmatprep.subr.mxu0 0.0
    %3316 = vmatpush1.msra.mxu0 0.0
    %3317 = vmatprep.subr.mxu0 0.0
    %3318 = vmatpush1.msra.mxu0 0.0
    %3319 = vmatprep.subr.mxu0 0.0
    %3320 = vmatpush1.msra.mxu0 0.0
    %3321 = vmatprep.subr.mxu0 0.0
    %3322 = vmatpush1.msra.mxu0 0.0
    %3323 = vmatprep.subr.mxu0 0.0
    %3324 = vmatpush1.msra.mxu0 0.0
    %3325 = vmatprep.subr.mxu0 0.0
    %3326 = vmatpush1.msra.mxu0 0.0
    %3327 = vmatprep.subr.mxu0 0.0
    %3328 = vmatpush1.msra.mxu0 0.0
    %3329 = vmatprep.subr.mxu0 0.0
    %3330 = vmatpush1.msra.mxu0 0.0
    %3331 = vmatprep.subr.mxu0 0.0
    %3332 = vmatpush1.msra.mxu0 0.0
    %3333 = vmatprep.subr.mxu0 0.0
    %3334 = vmatpush1.msra.mxu0 0.0
    %3335 = vmatprep.subr.mxu0 0.0
    %3336 = vmatpush1.msra.mxu0 0.0
    %3337 = vmatprep.subr.mxu0 0.0
    %3338 = vmatpush1.msra.mxu0 0.0
    %3339 = vmatprep.subr.mxu0 0.0
    %3340 = vmatpush1.msra.mxu0 0.0
    %3341 = vmatprep.subr.mxu0 0.0
    %3342 = vmatpush1.msra.mxu0 0.0
    %3343 = vmatprep.subr.mxu0 0.0
    %3344 = vmatpush1.msra.mxu0 0.0
    %3345 = vmatprep.subr.mxu0 0.0
    %3346 = vmatpush1.msra.mxu0 0.0
    %3347 = vmatprep.subr.mxu0 0.0
    %3348 = vmatpush1.msra.mxu0 0.0
    %3349 = vmatprep.subr.mxu0 0.0
    %3350 = vmatpush1.msra.mxu0 0.0
    %3351 = vmatprep.subr.mxu0 0.0
    %3352 = vmatpush1.msra.mxu0 0.0
    %3353 = vmatprep.subr.mxu0 0.0
    %3354 = vmatpush1.msra.mxu0 0.0
    %3355 = vmatprep.subr.mxu0 0.0
    %3356 = vmatpush1.msra.mxu0 0.0
    %3357 = vmatprep.subr.mxu0 0.0
    %3358 = vmatpush1.msra.mxu0 0.0
    %3359 = vmatprep.mubr.f32.mxu0 0.0
    %3360 = vmatmul.mubr.f32.gmra.mrb[0].mxu0 %v3293
    %v3361 = vpop.f32.mrb[0].mxu0
    %v3362 = vadd.f32 0.0, %v3361
    %v3363 = vpop.f32.mrb[0].mxu0
    %v3364 = vadd.f32 0.0, %v3363
    %3365 = vdwg.mxu0
    %3367 = vrot.lane.b32.xlu0 %v3194, 32
    %v3368 = vpop.permute.xlu0 %3367
    %v3369 = vsel %vm490, %v3368, 0
    %3371 = vmatprep.subr.mxu0 %v1468
    %3372 = vmatpush1.msra.mxu0 %v1467
    %3373 = vmatprep.subr.mxu0 %v1470
    %3374 = vmatpush1.msra.mxu0 %v1469
    %3375 = vmatprep.subr.mxu0 %v1472
    %3376 = vmatpush1.msra.mxu0 %v1471
    %3377 = vmatprep.subr.mxu0 %v1474
    %3378 = vmatpush1.msra.mxu0 %v1473
    %3379 = vmatprep.subr.mxu0 0.0
    %3380 = vmatpush1.msra.mxu0 0.0
    %3381 = vmatprep.subr.mxu0 0.0
    %3382 = vmatpush1.msra.mxu0 0.0
    %3383 = vmatprep.subr.mxu0 0.0
    %3384 = vmatpush1.msra.mxu0 0.0
    %3385 = vmatprep.subr.mxu0 0.0
    %3386 = vmatpush1.msra.mxu0 0.0
    %3387 = vmatprep.subr.mxu0 0.0
    %3388 = vmatpush1.msra.mxu0 0.0
    %3389 = vmatprep.subr.mxu0 0.0
    %3390 = vmatpush1.msra.mxu0 0.0
    %3391 = vmatprep.subr.mxu0 0.0
    %3392 = vmatpush1.msra.mxu0 0.0
    %3393 = vmatprep.subr.mxu0 0.0
    %3394 = vmatpush1.msra.mxu0 0.0
    %3395 = vmatprep.subr.mxu0 0.0
    %3396 = vmatpush1.msra.mxu0 0.0
    %3397 = vmatprep.subr.mxu0 0.0
    %3398 = vmatpush1.msra.mxu0 0.0
    %3399 = vmatprep.subr.mxu0 0.0
    %3400 = vmatpush1.msra.mxu0 0.0
    %3401 = vmatprep.subr.mxu0 0.0
    %3402 = vmatpush1.msra.mxu0 0.0
    %3403 = vmatprep.subr.mxu0 0.0
    %3404 = vmatpush1.msra.mxu0 0.0
    %3405 = vmatprep.subr.mxu0 0.0
    %3406 = vmatpush1.msra.mxu0 0.0
    %3407 = vmatprep.subr.mxu0 0.0
    %3408 = vmatpush1.msra.mxu0 0.0
    %3409 = vmatprep.subr.mxu0 0.0
    %3410 = vmatpush1.msra.mxu0 0.0
    %3411 = vmatprep.subr.mxu0 0.0
    %3412 = vmatpush1.msra.mxu0 0.0
    %3413 = vmatprep.subr.mxu0 0.0
    %3414 = vmatpush1.msra.mxu0 0.0
    %3415 = vmatprep.subr.mxu0 0.0
    %3416 = vmatpush1.msra.mxu0 0.0
    %3417 = vmatprep.subr.mxu0 0.0
    %3418 = vmatpush1.msra.mxu0 0.0
    %3419 = vmatprep.subr.mxu0 0.0
    %3420 = vmatpush1.msra.mxu0 0.0
    %3421 = vmatprep.subr.mxu0 0.0
    %3422 = vmatpush1.msra.mxu0 0.0
    %3423 = vmatprep.subr.mxu0 0.0
    %3424 = vmatpush1.msra.mxu0 0.0
    %3425 = vmatprep.subr.mxu0 0.0
    %3426 = vmatpush1.msra.mxu0 0.0
    %3427 = vmatprep.subr.mxu0 0.0
    %3428 = vmatpush1.msra.mxu0 0.0
    %3429 = vmatprep.subr.mxu0 0.0
    %3430 = vmatpush1.msra.mxu0 0.0
    %3431 = vmatprep.subr.mxu0 0.0
    %3432 = vmatpush1.msra.mxu0 0.0
    %3433 = vmatprep.subr.mxu0 0.0
    %3434 = vmatpush1.msra.mxu0 0.0
    %3435 = vmatprep.mubr.f32.mxu0 0.0
    %3436 = vmatmul.mubr.f32.gmra.mrb[0].mxu0 %v3369
    %v3437 = vpop.f32.mrb[0].mxu0
    %v3438 = vadd.f32 %v3362, %v3437
    %v3439 = vpop.f32.mrb[0].mxu0
    %v3440 = vadd.f32 %v3364, %v3439
    %3441 = vdwg.mxu0
    %3443 = vrot.lane.b32.xlu0 %v3099, 64
    %v3444 = vpop.permute.xlu0 %3443
    %v3445 = vsel %vm1651, %v3444, 0
    %3447 = vmatprep.subr.mxu0 %v1636
    %3448 = vmatpush1.msra.mxu0 %v1635
    %3449 = vmatprep.subr.mxu0 %v1638
    %3450 = vmatpush1.msra.mxu0 %v1637
    %3451 = vmatprep.subr.mxu0 %v1640
    %3452 = vmatpush1.msra.mxu0 %v1639
    %3453 = vmatprep.subr.mxu0 %v1642
    %3454 = vmatpush1.msra.mxu0 %v1641
    %3455 = vmatprep.subr.mxu0 %v1644
    %3456 = vmatpush1.msra.mxu0 %v1643
    %3457 = vmatprep.subr.mxu0 %v1646
    %3458 = vmatpush1.msra.mxu0 %v1645
    %3459 = vmatprep.subr.mxu0 %v1648
    %3460 = vmatpush1.msra.mxu0 %v1647
    %3461 = vmatprep.subr.mxu0 %v1650
    %3462 = vmatpush1.msra.mxu0 %v1649
    %3463 = vmatprep.subr.mxu0 0.0
    %3464 = vmatpush1.msra.mxu0 0.0
    %3465 = vmatprep.subr.mxu0 0.0
    %3466 = vmatpush1.msra.mxu0 0.0
    %3467 = vmatprep.subr.mxu0 0.0
    %3468 = vmatpush1.msra.mxu0 0.0
    %3469 = vmatprep.subr.mxu0 0.0
    %3470 = vmatpush1.msra.mxu0 0.0
    %3471 = vmatprep.subr.mxu0 0.0
    %3472 = vmatpush1.msra.mxu0 0.0
    %3473 = vmatprep.subr.mxu0 0.0
    %3474 = vmatpush1.msra.mxu0 0.0
    %3475 = vmatprep.subr.mxu0 0.0
    %3476 = vmatpush1.msra.mxu0 0.0
    %3477 = vmatprep.subr.mxu0 0.0
    %3478 = vmatpush1.msra.mxu0 0.0
    %3479 = vmatprep.subr.mxu0 0.0
    %3480 = vmatpush1.msra.mxu0 0.0
    %3481 = vmatprep.subr.mxu0 0.0
    %3482 = vmatpush1.msra.mxu0 0.0
    %3483 = vmatprep.subr.mxu0 0.0
    %3484 = vmatpush1.msra.mxu0 0.0
    %3485 = vmatprep.subr.mxu0 0.0
    %3486 = vmatpush1.msra.mxu0 0.0
    %3487 = vmatprep.subr.mxu0 0.0
    %3488 = vmatpush1.msra.mxu0 0.0
    %3489 = vmatprep.subr.mxu0 0.0
    %3490 = vmatpush1.msra.mxu0 0.0
    %3491 = vmatprep.subr.mxu0 0.0
    %3492 = vmatpush1.msra.mxu0 0.0
    %3493 = vmatprep.subr.mxu0 0.0
    %3494 = vmatpush1.msra.mxu0 0.0
    %3495 = vmatprep.subr.mxu0 0.0
    %3496 = vmatpush1.msra.mxu0 0.0
    %3497 = vmatprep.subr.mxu0 0.0
    %3498 = vmatpush1.msra.mxu0 0.0
    %3499 = vmatprep.subr.mxu0 0.0
    %3500 = vmatpush1.msra.mxu0 0.0
    %3501 = vmatprep.subr.mxu0 0.0
    %3502 = vmatpush1.msra.mxu0 0.0
    %3503 = vmatprep.subr.mxu0 0.0
    %3504 = vmatpush1.msra.mxu0 0.0
    %3505 = vmatprep.subr.mxu0 0.0
    %3506 = vmatpush1.msra.mxu0 0.0
    %3507 = vmatprep.subr.mxu0 0.0
    %3508 = vmatpush1.msra.mxu0 0.0
    %3509 = vmatprep.subr.mxu0 0.0
    %3510 = vmatpush1.msra.mxu0 0.0
    %3511 = vmatprep.mubr.f32.mxu0 0.0
    %3512 = vmatmul.mubr.f32.gmra.mrb[0].mxu0 %v3445
    %v3513 = vpop.f32.mrb[0].mxu0
    %v3514 = vadd.f32 0.0, %v3513
    %v3515 = vpop.f32.mrb[0].mxu0
    %v3516 = vadd.f32 0.0, %v3515
    %3517 = vdwg.mxu0
    %v3518 = vadd.f32 %v3438, %v3514
    %v3519 = vadd.f32 %v3440, %v3516
    %v3520 = vadd.f32 %v3518, %v1733
    %v3521 = vadd.f32 %v3519, %v1737
    %v3522 = vxor.u32 %v3520, 2147483648
    %v3523 = vmul.f32 %v3522, 1.442695
    %v3524 = vpow.pop %v3523
    %v3525 = vadd.f32 %v3524, 1.0
    %v3526 = vrcp.pop %v3525
    %v3527 = vmul.f32 1.0, %v3526
    %v3528 = vtanh.pop %v3521
    %v3529 = vxor.u32 %v3521, 2147483648
    %v3530 = vmul.f32 %v3529, 1.442695
    %v3531 = vpow.pop %v3530
    %v3532 = vadd.f32 %v3531, 1.0
    %v3533 = vrcp.pop %v3532
    %v3534 = vmul.f32 1.0, %v3533
    %v3535 = vmul.f32 %v3527, %v3097
    %v3536 = vmul.f32 %v3527, %v3528
    %3538 = vrot.lane.b32.xlu0 %v3536, 64
    %v3539 = vpop.permute.xlu0 %3538
    %v3541 = vadd.f32 %v3535, %v3539
    %v3542 = vtanh.pop %v3541
    %v3543 = vmul.f32 %v3534, %v3542
    %3544 = vmatprep.subr.mxu0 0.0
    %3545 = vmatpush1.msra.mxu0 %v1255
    %3546 = vmatprep.subr.mxu0 0.0
    %3547 = vmatpush1.msra.mxu0 %v1256
    %3548 = vmatprep.subr.mxu0 0.0
    %3549 = vmatpush1.msra.mxu0 %v1257
    %3550 = vmatprep.subr.mxu0 0.0
    %3551 = vmatpush1.msra.mxu0 %v1258
    %3552 = vmatprep.subr.mxu0 0.0
    %3553 = vmatpush1.msra.mxu0 0.0
    %3554 = vmatprep.subr.mxu0 0.0
    %3555 = vmatpush1.msra.mxu0 0.0
    %3556 = vmatprep.subr.mxu0 0.0
    %3557 = vmatpush1.msra.mxu0 0.0
    %3558 = vmatprep.subr.mxu0 0.0
    %3559 = vmatpush1.msra.mxu0 0.0
    %3560 = vmatprep.subr.mxu0 0.0
    %3561 = vmatpush1.msra.mxu0 0.0
    %3562 = vmatprep.subr.mxu0 0.0
    %3563 = vmatpush1.msra.mxu0 0.0
    %3564 = vmatprep.subr.mxu0 0.0
    %3565 = vmatpush1.msra.mxu0 0.0
    %3566 = vmatprep.subr.mxu0 0.0
    %3567 = vmatpush1.msra.mxu0 0.0
    %3568 = vmatprep.subr.mxu0 0.0
    %3569 = vmatpush1.msra.mxu0 0.0
    %3570 = vmatprep.subr.mxu0 0.0
    %3571 = vmatpush1.msra.mxu0 0.0
    %3572 = vmatprep.subr.mxu0 0.0
    %3573 = vmatpush1.msra.mxu0 0.0
    %3574 = vmatprep.subr.mxu0 0.0
    %3575 = vmatpush1.msra.mxu0 0.0
    %3576 = vmatprep.subr.mxu0 0.0
    %3577 = vmatpush1.msra.mxu0 0.0
    %3578 = vmatprep.subr.mxu0 0.0
    %3579 = vmatpush1.msra.mxu0 0.0
    %3580 = vmatprep.subr.mxu0 0.0
    %3581 = vmatpush1.msra.mxu0 0.0
    %3582 = vmatprep.subr.mxu0 0.0
    %3583 = vmatpush1.msra.mxu0 0.0
    %3584 = vmatprep.subr.mxu0 0.0
    %3585 = vmatpush1.msra.mxu0 0.0
    %3586 = vmatprep.subr.mxu0 0.0
    %3587 = vmatpush1.msra.mxu0 0.0
    %3588 = vmatprep.subr.mxu0 0.0
    %3589 = vmatpush1.msra.mxu0 0.0
    %3590 = vmatprep.subr.mxu0 0.0
    %3591 = vmatpush1.msra.mxu0 0.0
    %3592 = vmatprep.subr.mxu0 0.0
    %3593 = vmatpush1.msra.mxu0 0.0
    %3594 = vmatprep.subr.mxu0 0.0
    %3595 = vmatpush1.msra.mxu0 0.0
    %3596 = vmatprep.subr.mxu0 0.0
    %3597 = vmatpush1.msra.mxu0 0.0
    %3598 = vmatprep.subr.mxu0 0.0
    %3599 = vmatpush1.msra.mxu0 0.0
    %3600 = vmatprep.subr.mxu0 0.0
    %3601 = vmatpush1.msra.mxu0 0.0
    %3602 = vmatprep.subr.mxu0 0.0
    %3603 = vmatpush1.msra.mxu0 0.0
    %3604 = vmatprep.subr.mxu0 0.0
    %3605 = vmatpush1.msra.mxu0 0.0
    %3606 = vmatprep.subr.mxu0 0.0
    %3607 = vmatpush1.msra.mxu0 0.0
    %3608 = vmatprep.mubr.f32.mxu0 0.0
    %3609 = vmatmul.mubr.f32.gmra.mrb[0].mxu0 %v3369
    %v3610 = vpop.f32.mrb[0].mxu0
    %v3611 = vadd.f32 0.0, %v3610
    %v3612 = vpop.f32.mrb[0].mxu0
    %3613 = vdwg.mxu0
    %v3614 = vadd.f32 %v1098, %v3611
    %v3615 = vxor.u32 %v3614, 2147483648
    %v3616 = vmul.f32 %v3615, 1.442695
    %v3617 = vpow.pop %v3616
    %v3618 = vadd.f32 %v3617, 1.0
    %v3619 = vrcp.pop %v3618
    %v3620 = vmul.f32 1.0, %v3619
    %v3621 = vtanh.pop %v3614
    %v3622 = vmul.f32 %v3620, %v3188
    %3624 = vrot.lane.b32.xlu0 %v3621, 64
    %v3625 = vpop.permute.xlu0 %3624
    %v3627 = vmul.f32 %v3620, %v3625
    %3629 = vrot.lane.b32.xlu0 %v3627, 32
    %v3630 = vpop.permute.xlu0 %3629
    %v3632 = vadd.f32 %v3622, %v3630
    %v3633 = vtanh.pop %v3632
    %3635 = vrot.lane.b32.xlu0 %v3633, 64
    %v3636 = vpop.permute.xlu0 %3635
    %v3638 = vmul.f32 %v3620, %v3636
    %3639 = vmatprep.subr.mxu0 0.0
    %3640 = vmatpush1.msra.mxu0 %v1361
    %3641 = vmatprep.subr.mxu0 0.0
    %3642 = vmatpush1.msra.mxu0 %v1362
    %3643 = vmatprep.subr.mxu0 0.0
    %3644 = vmatpush1.msra.mxu0 %v1363
    %3645 = vmatprep.subr.mxu0 0.0
    %3646 = vmatpush1.msra.mxu0 %v1364
    %3647 = vmatprep.subr.mxu0 0.0
    %3648 = vmatpush1.msra.mxu0 0.0
    %3649 = vmatprep.subr.mxu0 0.0
    %3650 = vmatpush1.msra.mxu0 0.0
    %3651 = vmatprep.subr.mxu0 0.0
    %3652 = vmatpush1.msra.mxu0 0.0
    %3653 = vmatprep.subr.mxu0 0.0
    %3654 = vmatpush1.msra.mxu0 0.0
    %3655 = vmatprep.subr.mxu0 0.0
    %3656 = vmatpush1.msra.mxu0 0.0
    %3657 = vmatprep.subr.mxu0 0.0
    %3658 = vmatpush1.msra.mxu0 0.0
    %3659 = vmatprep.subr.mxu0 0.0
    %3660 = vmatpush1.msra.mxu0 0.0
    %3661 = vmatprep.subr.mxu0 0.0
    %3662 = vmatpush1.msra.mxu0 0.0
    %3663 = vmatprep.subr.mxu0 0.0
    %3664 = vmatpush1.msra.mxu0 0.0
    %3665 = vmatprep.subr.mxu0 0.0
    %3666 = vmatpush1.msra.mxu0 0.0
    %3667 = vmatprep.subr.mxu0 0.0
    %3668 = vmatpush1.msra.mxu0 0.0
    %3669 = vmatprep.subr.mxu0 0.0
    %3670 = vmatpush1.msra.mxu0 0.0
    %3671 = vmatprep.subr.mxu0 0.0
    %3672 = vmatpush1.msra.mxu0 0.0
    %3673 = vmatprep.subr.mxu0 0.0
    %3674 = vmatpush1.msra.mxu0 0.0
    %3675 = vmatprep.subr.mxu0 0.0
    %3676 = vmatpush1.msra.mxu0 0.0
    %3677 = vmatprep.subr.mxu0 0.0
    %3678 = vmatpush1.msra.mxu0 0.0
    %3679 = vmatprep.subr.mxu0 0.0
    %3680 = vmatpush1.msra.mxu0 0.0
    %3681 = vmatprep.subr.mxu0 0.0
    %3682 = vmatpush1.msra.mxu0 0.0
    %3683 = vmatprep.subr.mxu0 0.0
    %3684 = vmatpush1.msra.mxu0 0.0
    %3685 = vmatprep.subr.mxu0 0.0
    %3686 = vmatpush1.msra.mxu0 0.0
    %3687 = vmatprep.subr.mxu0 0.0
    %3688 = vmatpush1.msra.mxu0 0.0
    %3689 = vmatprep.subr.mxu0 0.0
    %3690 = vmatpush1.msra.mxu0 0.0
    %3691 = vmatprep.subr.mxu0 0.0
    %3692 = vmatpush1.msra.mxu0 0.0
    %3693 = vmatprep.subr.mxu0 0.0
    %3694 = vmatpush1.msra.mxu0 0.0
    %3695 = vmatprep.subr.mxu0 0.0
    %3696 = vmatpush1.msra.mxu0 0.0
    %3697 = vmatprep.subr.mxu0 0.0
    %3698 = vmatpush1.msra.mxu0 0.0
    %3699 = vmatprep.subr.mxu0 0.0
    %3700 = vmatpush1.msra.mxu0 0.0
    %3701 = vmatprep.subr.mxu0 0.0
    %3702 = vmatpush1.msra.mxu0 0.0
    %3703 = vmatprep.mubr.f32.mxu0 0.0
    %3704 = vmatmul.mubr.f32.gmra.mrb[0].mxu0 %v3293
    %v3705 = vpop.f32.mrb[0].mxu0
    %v3706 = vadd.f32 0.0, %v3705
    %v3707 = vpop.f32.mrb[0].mxu0
    %3708 = vdwg.mxu0
    %v3709 = vadd.f32 %v1236, %v3706
    %v3710 = vxor.u32 %v3709, 2147483648
    %v3711 = vmul.f32 %v3710, 1.442695
    %v3712 = vpow.pop %v3711
    %v3713 = vadd.f32 %v3712, 1.0
    %v3714 = vrcp.pop %v3713
    %v3715 = vmul.f32 1.0, %v3714
    %v3716 = vtanh.pop %v3709
    %v3717 = vmul.f32 %v3715, %v3283
    %3719 = vrot.lane.b32.xlu0 %v3716, 64
    %v3720 = vpop.permute.xlu0 %3719
    %v3722 = vmul.f32 %v3715, %v3720
    %3724 = vrot.lane.b32.xlu0 %v3722, 32
    %v3725 = vpop.permute.xlu0 %3724
    %v3727 = vadd.f32 %v3717, %v3725
    %v3728 = vtanh.pop %v3727
    %3730 = vrot.lane.b32.xlu0 %v3728, 64
    %v3731 = vpop.permute.xlu0 %3730
    %v3733 = vmul.f32 %v3715, %v3731
    %3735 = vrot.lane.b32.xlu0 %v3733, 32
    %v3736 = vpop.permute.xlu0 %3735
    %v3737 = vsel %vm490, %v3736, 0
    %3739 = vmatprep.subr.mxu0 %v1476
    %3740 = vmatpush1.msra.mxu0 %v1475
    %3741 = vmatprep.subr.mxu0 %v1478
    %3742 = vmatpush1.msra.mxu0 %v1477
    %3743 = vmatprep.subr.mxu0 %v1480
    %3744 = vmatpush1.msra.mxu0 %v1479
    %3745 = vmatprep.subr.mxu0 %v1482
    %3746 = vmatpush1.msra.mxu0 %v1481
    %3747 = vmatprep.subr.mxu0 0.0
    %3748 = vmatpush1.msra.mxu0 0.0
    %3749 = vmatprep.subr.mxu0 0.0
    %3750 = vmatpush1.msra.mxu0 0.0
    %3751 = vmatprep.subr.mxu0 0.0
    %3752 = vmatpush1.msra.mxu0 0.0
    %3753 = vmatprep.subr.mxu0 0.0
    %3754 = vmatpush1.msra.mxu0 0.0
    %3755 = vmatprep.subr.mxu0 0.0
    %3756 = vmatpush1.msra.mxu0 0.0
    %3757 = vmatprep.subr.mxu0 0.0
    %3758 = vmatpush1.msra.mxu0 0.0
    %3759 = vmatprep.subr.mxu0 0.0
    %3760 = vmatpush1.msra.mxu0 0.0
    %3761 = vmatprep.subr.mxu0 0.0
    %3762 = vmatpush1.msra.mxu0 0.0
    %3763 = vmatprep.subr.mxu0 0.0
    %3764 = vmatpush1.msra.mxu0 0.0
    %3765 = vmatprep.subr.mxu0 0.0
    %3766 = vmatpush1.msra.mxu0 0.0
    %3767 = vmatprep.subr.mxu0 0.0
    %3768 = vmatpush1.msra.mxu0 0.0
    %3769 = vmatprep.subr.mxu0 0.0
    %3770 = vmatpush1.msra.mxu0 0.0
    %3771 = vmatprep.subr.mxu0 0.0
    %3772 = vmatpush1.msra.mxu0 0.0
    %3773 = vmatprep.subr.mxu0 0.0
    %3774 = vmatpush1.msra.mxu0 0.0
    %3775 = vmatprep.subr.mxu0 0.0
    %3776 = vmatpush1.msra.mxu0 0.0
    %3777 = vmatprep.subr.mxu0 0.0
    %3778 = vmatpush1.msra.mxu0 0.0
    %3779 = vmatprep.subr.mxu0 0.0
    %3780 = vmatpush1.msra.mxu0 0.0
    %3781 = vmatprep.subr.mxu0 0.0
    %3782 = vmatpush1.msra.mxu0 0.0
    %3783 = vmatprep.subr.mxu0 0.0
    %3784 = vmatpush1.msra.mxu0 0.0
    %3785 = vmatprep.subr.mxu0 0.0
    %3786 = vmatpush1.msra.mxu0 0.0
    %3787 = vmatprep.subr.mxu0 0.0
    %3788 = vmatpush1.msra.mxu0 0.0
    %3789 = vmatprep.subr.mxu0 0.0
    %3790 = vmatpush1.msra.mxu0 0.0
    %3791 = vmatprep.subr.mxu0 0.0
    %3792 = vmatpush1.msra.mxu0 0.0
    %3793 = vmatprep.subr.mxu0 0.0
    %3794 = vmatpush1.msra.mxu0 0.0
    %3795 = vmatprep.subr.mxu0 0.0
    %3796 = vmatpush1.msra.mxu0 0.0
    %3797 = vmatprep.subr.mxu0 0.0
    %3798 = vmatpush1.msra.mxu0 0.0
    %3799 = vmatprep.subr.mxu0 0.0
    %3800 = vmatpush1.msra.mxu0 0.0
    %3801 = vmatprep.subr.mxu0 0.0
    %3802 = vmatpush1.msra.mxu0 0.0
    %3803 = vmatprep.mubr.f32.mxu0 0.0
    %3804 = vmatmul.mubr.f32.gmra.mrb[0].mxu0 %v3737
    %v3805 = vpop.f32.mrb[0].mxu0
    %v3806 = vadd.f32 0.0, %v3805
    %v3807 = vpop.f32.mrb[0].mxu0
    %v3808 = vadd.f32 0.0, %v3807
    %3809 = vdwg.mxu0
    %3811 = vrot.lane.b32.xlu0 %v3638, 32
    %v3812 = vpop.permute.xlu0 %3811
    %v3813 = vsel %vm490, %v3812, 0
    %3815 = vmatprep.subr.mxu0 %v1468
    %3816 = vmatpush1.msra.mxu0 %v1467
    %3817 = vmatprep.subr.mxu0 %v1470
    %3818 = vmatpush1.msra.mxu0 %v1469
    %3819 = vmatprep.subr.mxu0 %v1472
    %3820 = vmatpush1.msra.mxu0 %v1471
    %3821 = vmatprep.subr.mxu0 %v1474
    %3822 = vmatpush1.msra.mxu0 %v1473
    %3823 = vmatprep.subr.mxu0 0.0
    %3824 = vmatpush1.msra.mxu0 0.0
    %3825 = vmatprep.subr.mxu0 0.0
    %3826 = vmatpush1.msra.mxu0 0.0
    %3827 = vmatprep.subr.mxu0 0.0
    %3828 = vmatpush1.msra.mxu0 0.0
    %3829 = vmatprep.subr.mxu0 0.0
    %3830 = vmatpush1.msra.mxu0 0.0
    %3831 = vmatprep.subr.mxu0 0.0
    %3832 = vmatpush1.msra.mxu0 0.0
    %3833 = vmatprep.subr.mxu0 0.0
    %3834 = vmatpush1.msra.mxu0 0.0
    %3835 = vmatprep.subr.mxu0 0.0
    %3836 = vmatpush1.msra.mxu0 0.0
    %3837 = vmatprep.subr.mxu0 0.0
    %3838 = vmatpush1.msra.mxu0 0.0
    %3839 = vmatprep.subr.mxu0 0.0
    %3840 = vmatpush1.msra.mxu0 0.0
    %3841 = vmatprep.subr.mxu0 0.0
    %3842 = vmatpush1.msra.mxu0 0.0
    %3843 = vmatprep.subr.mxu0 0.0
    %3844 = vmatpush1.msra.mxu0 0.0
    %3845 = vmatprep.subr.mxu0 0.0
    %3846 = vmatpush1.msra.mxu0 0.0
    %3847 = vmatprep.subr.mxu0 0.0
    %3848 = vmatpush1.msra.mxu0 0.0
    %3849 = vmatprep.subr.mxu0 0.0
    %3850 = vmatpush1.msra.mxu0 0.0
    %3851 = vmatprep.subr.mxu0 0.0
    %3852 = vmatpush1.msra.mxu0 0.0
    %3853 = vmatprep.subr.mxu0 0.0
    %3854 = vmatpush1.msra.mxu0 0.0
    %3855 = vmatprep.subr.mxu0 0.0
    %3856 = vmatpush1.msra.mxu0 0.0
    %3857 = vmatprep.subr.mxu0 0.0
    %3858 = vmatpush1.msra.mxu0 0.0
    %3859 = vmatprep.subr.mxu0 0.0
    %3860 = vmatpush1.msra.mxu0 0.0
    %3861 = vmatprep.subr.mxu0 0.0
    %3862 = vmatpush1.msra.mxu0 0.0
    %3863 = vmatprep.subr.mxu0 0.0
    %3864 = vmatpush1.msra.mxu0 0.0
    %3865 = vmatprep.subr.mxu0 0.0
    %3866 = vmatpush1.msra.mxu0 0.0
    %3867 = vmatprep.subr.mxu0 0.0
    %3868 = vmatpush1.msra.mxu0 0.0
    %3869 = vmatprep.subr.mxu0 0.0
    %3870 = vmatpush1.msra.mxu0 0.0
    %3871 = vmatprep.subr.mxu0 0.0
    %3872 = vmatpush1.msra.mxu0 0.0
    %3873 = vmatprep.subr.mxu0 0.0
    %3874 = vmatpush1.msra.mxu0 0.0
    %3875 = vmatprep.subr.mxu0 0.0
    %3876 = vmatpush1.msra.mxu0 0.0
    %3877 = vmatprep.subr.mxu0 0.0
    %3878 = vmatpush1.msra.mxu0 0.0
    %3879 = vmatprep.mubr.f32.mxu0 0.0
    %3880 = vmatmul.mubr.f32.gmra.mrb[0].mxu0 %v3813
    %v3881 = vpop.f32.mrb[0].mxu0
    %v3882 = vadd.f32 %v3806, %v3881
    %v3883 = vpop.f32.mrb[0].mxu0
    %v3884 = vadd.f32 %v3808, %v3883
    %3885 = vdwg.mxu0
    %3887 = vrot.lane.b32.xlu0 %v3543, 64
    %v3888 = vpop.permute.xlu0 %3887
    %v3889 = vsel %vm1651, %v3888, 0
    %3891 = vmatprep.subr.mxu0 %v1636
    %3892 = vmatpush1.msra.mxu0 %v1635
    %3893 = vmatprep.subr.mxu0 %v1638
    %3894 = vmatpush1.msra.mxu0 %v1637
    %3895 = vmatprep.subr.mxu0 %v1640
    %3896 = vmatpush1.msra.mxu0 %v1639
    %3897 = vmatprep.subr.mxu0 %v1642
    %3898 = vmatpush1.msra.mxu0 %v1641
    %3899 = vmatprep.subr.mxu0 %v1644
    %3900 = vmatpush1.msra.mxu0 %v1643
    %3901 = vmatprep.subr.mxu0 %v1646
    %3902 = vmatpush1.msra.mxu0 %v1645
    %3903 = vmatprep.subr.mxu0 %v1648
    %3904 = vmatpush1.msra.mxu0 %v1647
    %3905 = vmatprep.subr.mxu0 %v1650
    %3906 = vmatpush1.msra.mxu0 %v1649
    %3907 = vmatprep.subr.mxu0 0.0
    %3908 = vmatpush1.msra.mxu0 0.0
    %3909 = vmatprep.subr.mxu0 0.0
    %3910 = vmatpush1.msra.mxu0 0.0
    %3911 = vmatprep.subr.mxu0 0.0
    %3912 = vmatpush1.msra.mxu0 0.0
    %3913 = vmatprep.subr.mxu0 0.0
    %3914 = vmatpush1.msra.mxu0 0.0
    %3915 = vmatprep.subr.mxu0 0.0
    %3916 = vmatpush1.msra.mxu0 0.0
    %3917 = vmatprep.subr.mxu0 0.0
    %3918 = vmatpush1.msra.mxu0 0.0
    %3919 = vmatprep.subr.mxu0 0.0
    %3920 = vmatpush1.msra.mxu0 0.0
    %3921 = vmatprep.subr.mxu0 0.0
    %3922 = vmatpush1.msra.mxu0 0.0
    %3923 = vmatprep.subr.mxu0 0.0
    %3924 = vmatpush1.msra.mxu0 0.0
    %3925 = vmatprep.subr.mxu0 0.0
    %3926 = vmatpush1.msra.mxu0 0.0
    %3927 = vmatprep.subr.mxu0 0.0
    %3928 = vmatpush1.msra.mxu0 0.0
    %3929 = vmatprep.subr.mxu0 0.0
    %3930 = vmatpush1.msra.mxu0 0.0
    %3931 = vmatprep.subr.mxu0 0.0
    %3932 = vmatpush1.msra.mxu0 0.0
    %3933 = vmatprep.subr.mxu0 0.0
    %3934 = vmatpush1.msra.mxu0 0.0
    %3935 = vmatprep.subr.mxu0 0.0
    %3936 = vmatpush1.msra.mxu0 0.0
    %3937 = vmatprep.subr.mxu0 0.0
    %3938 = vmatpush1.msra.mxu0 0.0
    %3939 = vmatprep.subr.mxu0 0.0
    %3940 = vmatpush1.msra.mxu0 0.0
    %3941 = vmatprep.subr.mxu0 0.0
    %3942 = vmatpush1.msra.mxu0 0.0
    %3943 = vmatprep.subr.mxu0 0.0
    %3944 = vmatpush1.msra.mxu0 0.0
    %3945 = vmatprep.subr.mxu0 0.0
    %3946 = vmatpush1.msra.mxu0 0.0
    %3947 = vmatprep.subr.mxu0 0.0
    %3948 = vmatpush1.msra.mxu0 0.0
    %3949 = vmatprep.subr.mxu0 0.0
    %3950 = vmatpush1.msra.mxu0 0.0
    %3951 = vmatprep.subr.mxu0 0.0
    %3952 = vmatpush1.msra.mxu0 0.0
    %3953 = vmatprep.subr.mxu0 0.0
    %3954 = vmatpush1.msra.mxu0 0.0
    %3955 = vmatprep.mubr.f32.mxu0 0.0
    %3956 = vmatmul.mubr.f32.gmra.mrb[0].mxu0 %v3889
    %v3957 = vpop.f32.mrb[0].mxu0
    %v3958 = vadd.f32 0.0, %v3957
    %v3959 = vpop.f32.mrb[0].mxu0
    %v3960 = vadd.f32 0.0, %v3959
    %3961 = vdwg.mxu0
    %v3962 = vadd.f32 %v3882, %v3958
    %v3963 = vadd.f32 %v3884, %v3960
    %v3964 = vadd.f32 %v3962, %v1733
    %v3965 = vadd.f32 %v3963, %v1737
    %v3966 = vxor.u32 %v3964, 2147483648
    %v3967 = vmul.f32 %v3966, 1.442695
    %v3968 = vpow.pop %v3967
    %v3969 = vadd.f32 %v3968, 1.0
    %v3970 = vrcp.pop %v3969
    %v3971 = vmul.f32 1.0, %v3970
    %v3972 = vtanh.pop %v3965
    %v3973 = vxor.u32 %v3965, 2147483648
    %v3974 = vmul.f32 %v3973, 1.442695
    %v3975 = vpow.pop %v3974
    %v3976 = vadd.f32 %v3975, 1.0
    %v3977 = vrcp.pop %v3976
    %v3978 = vmul.f32 1.0, %v3977
    %v3979 = vmul.f32 %v3971, %v3541
    %v3980 = vmul.f32 %v3971, %v3972
    %3982 = vrot.lane.b32.xlu0 %v3980, 64
    %v3983 = vpop.permute.xlu0 %3982
    %v3985 = vadd.f32 %v3979, %v3983
    %v3986 = vtanh.pop %v3985
    %v3987 = vmul.f32 %v3978, %v3986
    %3988 = vmatprep.subr.mxu0 0.0
    %3989 = vmatpush1.msra.mxu0 %v1255
    %3990 = vmatprep.subr.mxu0 0.0
    %3991 = vmatpush1.msra.mxu0 %v1256
    %3992 = vmatprep.subr.mxu0 0.0
    %3993 = vmatpush1.msra.mxu0 %v1257
    %3994 = vmatprep.subr.mxu0 0.0
    %3995 = vmatpush1.msra.mxu0 %v1258
    %3996 = vmatprep.subr.mxu0 0.0
    %3997 = vmatpush1.msra.mxu0 0.0
    %3998 = vmatprep.subr.mxu0 0.0
    %3999 = vmatpush1.msra.mxu0 0.0
    %4000 = vmatprep.subr.mxu0 0.0
    %4001 = vmatpush1.msra.mxu0 0.0
    %4002 = vmatprep.subr.mxu0 0.0
    %4003 = vmatpush1.msra.mxu0 0.0
    %4004 = vmatprep.subr.mxu0 0.0
    %4005 = vmatpush1.msra.mxu0 0.0
    %4006 = vmatprep.subr.mxu0 0.0
    %4007 = vmatpush1.msra.mxu0 0.0
    %4008 = vmatprep.subr.mxu0 0.0
    %4009 = vmatpush1.msra.mxu0 0.0
    %4010 = vmatprep.subr.mxu0 0.0
    %4011 = vmatpush1.msra.mxu0 0.0
    %4012 = vmatprep.subr.mxu0 0.0
    %4013 = vmatpush1.msra.mxu0 0.0
    %4014 = vmatprep.subr.mxu0 0.0
    %4015 = vmatpush1.msra.mxu0 0.0
    %4016 = vmatprep.subr.mxu0 0.0
    %4017 = vmatpush1.msra.mxu0 0.0
    %4018 = vmatprep.subr.mxu0 0.0
    %4019 = vmatpush1.msra.mxu0 0.0
    %4020 = vmatprep.subr.mxu0 0.0
    %4021 = vmatpush1.msra.mxu0 0.0
    %4022 = vmatprep.subr.mxu0 0.0
    %4023 = vmatpush1.msra.mxu0 0.0
    %4024 = vmatprep.subr.mxu0 0.0
    %4025 = vmatpush1.msra.mxu0 0.0
    %4026 = vmatprep.subr.mxu0 0.0
    %4027 = vmatpush1.msra.mxu0 0.0
    %4028 = vmatprep.subr.mxu0 0.0
    %4029 = vmatpush1.msra.mxu0 0.0
    %4030 = vmatprep.subr.mxu0 0.0
    %4031 = vmatpush1.msra.mxu0 0.0
    %4032 = vmatprep.subr.mxu0 0.0
    %4033 = vmatpush1.msra.mxu0 0.0
    %4034 = vmatprep.subr.mxu0 0.0
    %4035 = vmatpush1.msra.mxu0 0.0
    %4036 = vmatprep.subr.mxu0 0.0
    %4037 = vmatpush1.msra.mxu0 0.0
    %4038 = vmatprep.subr.mxu0 0.0
    %4039 = vmatpush1.msra.mxu0 0.0
    %4040 = vmatprep.subr.mxu0 0.0
    %4041 = vmatpush1.msra.mxu0 0.0
    %4042 = vmatprep.subr.mxu0 0.0
    %4043 = vmatpush1.msra.mxu0 0.0
    %4044 = vmatprep.subr.mxu0 0.0
    %4045 = vmatpush1.msra.mxu0 0.0
    %4046 = vmatprep.subr.mxu0 0.0
    %4047 = vmatpush1.msra.mxu0 0.0
    %4048 = vmatprep.subr.mxu0 0.0
    %4049 = vmatpush1.msra.mxu0 0.0
    %4050 = vmatprep.subr.mxu0 0.0
    %4051 = vmatpush1.msra.mxu0 0.0
    %4052 = vmatprep.mubr.f32.mxu0 0.0
    %4053 = vmatmul.mubr.f32.gmra.mrb[0].mxu0 %v3813
    %v4054 = vpop.f32.mrb[0].mxu0
    %v4055 = vadd.f32 0.0, %v4054
    %v4056 = vpop.f32.mrb[0].mxu0
    %4057 = vdwg.mxu0
    %v4058 = vadd.f32 %v1103, %v4055
    %v4059 = vxor.u32 %v4058, 2147483648
    %v4060 = vmul.f32 %v4059, 1.442695
    %v4061 = vpow.pop %v4060
    %v4062 = vadd.f32 %v4061, 1.0
    %v4063 = vrcp.pop %v4062
    %v4064 = vmul.f32 1.0, %v4063
    %v4065 = vtanh.pop %v4058
    %v4066 = vmul.f32 %v4064, %v3632
    %4068 = vrot.lane.b32.xlu0 %v4065, 64
    %v4069 = vpop.permute.xlu0 %4068
    %v4071 = vmul.f32 %v4064, %v4069
    %4073 = vrot.lane.b32.xlu0 %v4071, 32
    %v4074 = vpop.permute.xlu0 %4073
    %v4076 = vadd.f32 %v4066, %v4074
    %v4077 = vtanh.pop %v4076
    %4079 = vrot.lane.b32.xlu0 %v4077, 64
    %v4080 = vpop.permute.xlu0 %4079
    %v4082 = vmul.f32 %v4064, %v4080
    %4083 = vmatprep.subr.mxu0 0.0
    %4084 = vmatpush1.msra.mxu0 %v1361
    %4085 = vmatprep.subr.mxu0 0.0
    %4086 = vmatpush1.msra.mxu0 %v1362
    %4087 = vmatprep.subr.mxu0 0.0
    %4088 = vmatpush1.msra.mxu0 %v1363
    %4089 = vmatprep.subr.mxu0 0.0
    %4090 = vmatpush1.msra.mxu0 %v1364
    %4091 = vmatprep.subr.mxu0 0.0
    %4092 = vmatpush1.msra.mxu0 0.0
    %4093 = vmatprep.subr.mxu0 0.0
    %4094 = vmatpush1.msra.mxu0 0.0
    %4095 = vmatprep.subr.mxu0 0.0
    %4096 = vmatpush1.msra.mxu0 0.0
    %4097 = vmatprep.subr.mxu0 0.0
    %4098 = vmatpush1.msra.mxu0 0.0
    %4099 = vmatprep.subr.mxu0 0.0
    %4100 = vmatpush1.msra.mxu0 0.0
    %4101 = vmatprep.subr.mxu0 0.0
    %4102 = vmatpush1.msra.mxu0 0.0
    %4103 = vmatprep.subr.mxu0 0.0
    %4104 = vmatpush1.msra.mxu0 0.0
    %4105 = vmatprep.subr.mxu0 0.0
    %4106 = vmatpush1.msra.mxu0 0.0
    %4107 = vmatprep.subr.mxu0 0.0
    %4108 = vmatpush1.msra.mxu0 0.0
    %4109 = vmatprep.subr.mxu0 0.0
    %4110 = vmatpush1.msra.mxu0 0.0
    %4111 = vmatprep.subr.mxu0 0.0
    %4112 = vmatpush1.msra.mxu0 0.0
    %4113 = vmatprep.subr.mxu0 0.0
    %4114 = vmatpush1.msra.mxu0 0.0
    %4115 = vmatprep.subr.mxu0 0.0
    %4116 = vmatpush1.msra.mxu0 0.0
    %4117 = vmatprep.subr.mxu0 0.0
    %4118 = vmatpush1.msra.mxu0 0.0
    %4119 = vmatprep.subr.mxu0 0.0
    %4120 = vmatpush1.msra.mxu0 0.0
    %4121 = vmatprep.subr.mxu0 0.0
    %4122 = vmatpush1.msra.mxu0 0.0
    %4123 = vmatprep.subr.mxu0 0.0
    %4124 = vmatpush1.msra.mxu0 0.0
    %4125 = vmatprep.subr.mxu0 0.0
    %4126 = vmatpush1.msra.mxu0 0.0
    %4127 = vmatprep.subr.mxu0 0.0
    %4128 = vmatpush1.msra.mxu0 0.0
    %4129 = vmatprep.subr.mxu0 0.0
    %4130 = vmatpush1.msra.mxu0 0.0
    %4131 = vmatprep.subr.mxu0 0.0
    %4132 = vmatpush1.msra.mxu0 0.0
    %4133 = vmatprep.subr.mxu0 0.0
    %4134 = vmatpush1.msra.mxu0 0.0
    %4135 = vmatprep.subr.mxu0 0.0
    %4136 = vmatpush1.msra.mxu0 0.0
    %4137 = vmatprep.subr.mxu0 0.0
    %4138 = vmatpush1.msra.mxu0 0.0
    %4139 = vmatprep.subr.mxu0 0.0
    %4140 = vmatpush1.msra.mxu0 0.0
    %4141 = vmatprep.subr.mxu0 0.0
    %4142 = vmatpush1.msra.mxu0 0.0
    %4143 = vmatprep.subr.mxu0 0.0
    %4144 = vmatpush1.msra.mxu0 0.0
    %4145 = vmatprep.subr.mxu0 0.0
    %4146 = vmatpush1.msra.mxu0 0.0
    %4147 = vmatprep.mubr.f32.mxu0 0.0
    %4148 = vmatmul.mubr.f32.gmra.mrb[0].mxu0 %v3737
    %v4149 = vpop.f32.mrb[0].mxu0
    %v4150 = vadd.f32 0.0, %v4149
    %v4151 = vpop.f32.mrb[0].mxu0
    %4152 = vdwg.mxu0
    %v4153 = vadd.f32 %v1241, %v4150
    %v4154 = vxor.u32 %v4153, 2147483648
    %v4155 = vmul.f32 %v4154, 1.442695
    %v4156 = vpow.pop %v4155
    %v4157 = vadd.f32 %v4156, 1.0
    %v4158 = vrcp.pop %v4157
    %v4159 = vmul.f32 1.0, %v4158
    %v4160 = vtanh.pop %v4153
    %v4161 = vmul.f32 %v4159, %v3727
    %4163 = vrot.lane.b32.xlu0 %v4160, 64
    %v4164 = vpop.permute.xlu0 %4163
    %v4166 = vmul.f32 %v4159, %v4164
    %4168 = vrot.lane.b32.xlu0 %v4166, 32
    %v4169 = vpop.permute.xlu0 %4168
    %v4171 = vadd.f32 %v4161, %v4169
    %v4172 = vtanh.pop %v4171
    %4174 = vrot.lane.b32.xlu0 %v4172, 64
    %v4175 = vpop.permute.xlu0 %4174
    %v4177 = vmul.f32 %v4159, %v4175
    %4179 = vrot.lane.b32.xlu0 %v4177, 32
    %v4180 = vpop.permute.xlu0 %4179
    %v4181 = vsel %vm490, %v4180, 0
    %4183 = vmatprep.subr.mxu0 %v1476
    %4184 = vmatpush1.msra.mxu0 %v1475
    %4185 = vmatprep.subr.mxu0 %v1478
    %4186 = vmatpush1.msra.mxu0 %v1477
    %4187 = vmatprep.subr.mxu0 %v1480
    %4188 = vmatpush1.msra.mxu0 %v1479
    %4189 = vmatprep.subr.mxu0 %v1482
    %4190 = vmatpush1.msra.mxu0 %v1481
    %4191 = vmatprep.subr.mxu0 0.0
    %4192 = vmatpush1.msra.mxu0 0.0
    %4193 = vmatprep.subr.mxu0 0.0
    %4194 = vmatpush1.msra.mxu0 0.0
    %4195 = vmatprep.subr.mxu0 0.0
    %4196 = vmatpush1.msra.mxu0 0.0
    %4197 = vmatprep.subr.mxu0 0.0
    %4198 = vmatpush1.msra.mxu0 0.0
    %4199 = vmatprep.subr.mxu0 0.0
    %4200 = vmatpush1.msra.mxu0 0.0
    %4201 = vmatprep.subr.mxu0 0.0
    %4202 = vmatpush1.msra.mxu0 0.0
    %4203 = vmatprep.subr.mxu0 0.0
    %4204 = vmatpush1.msra.mxu0 0.0
    %4205 = vmatprep.subr.mxu0 0.0
    %4206 = vmatpush1.msra.mxu0 0.0
    %4207 = vmatprep.subr.mxu0 0.0
    %4208 = vmatpush1.msra.mxu0 0.0
    %4209 = vmatprep.subr.mxu0 0.0
    %4210 = vmatpush1.msra.mxu0 0.0
    %4211 = vmatprep.subr.mxu0 0.0
    %4212 = vmatpush1.msra.mxu0 0.0
    %4213 = vmatprep.subr.mxu0 0.0
    %4214 = vmatpush1.msra.mxu0 0.0
    %4215 = vmatprep.subr.mxu0 0.0
    %4216 = vmatpush1.msra.mxu0 0.0
    %4217 = vmatprep.subr.mxu0 0.0
    %4218 = vmatpush1.msra.mxu0 0.0
    %4219 = vmatprep.subr.mxu0 0.0
    %4220 = vmatpush1.msra.mxu0 0.0
    %4221 = vmatprep.subr.mxu0 0.0
    %4222 = vmatpush1.msra.mxu0 0.0
    %4223 = vmatprep.subr.mxu0 0.0
    %4224 = vmatpush1.msra.mxu0 0.0
    %4225 = vmatprep.subr.mxu0 0.0
    %4226 = vmatpush1.msra.mxu0 0.0
    %4227 = vmatprep.subr.mxu0 0.0
    %4228 = vmatpush1.msra.mxu0 0.0
    %4229 = vmatprep.subr.mxu0 0.0
    %4230 = vmatpush1.msra.mxu0 0.0
    %4231 = vmatprep.subr.mxu0 0.0
    %4232 = vmatpush1.msra.mxu0 0.0
    %4233 = vmatprep.subr.mxu0 0.0
    %4234 = vmatpush1.msra.mxu0 0.0
    %4235 = vmatprep.subr.mxu0 0.0
    %4236 = vmatpush1.msra.mxu0 0.0
    %4237 = vmatprep.subr.mxu0 0.0
    %4238 = vmatpush1.msra.mxu0 0.0
    %4239 = vmatprep.subr.mxu0 0.0
    %4240 = vmatpush1.msra.mxu0 0.0
    %4241 = vmatprep.subr.mxu0 0.0
    %4242 = vmatpush1.msra.mxu0 0.0
    %4243 = vmatprep.subr.mxu0 0.0
    %4244 = vmatpush1.msra.mxu0 0.0
    %4245 = vmatprep.subr.mxu0 0.0
    %4246 = vmatpush1.msra.mxu0 0.0
    %4247 = vmatprep.mubr.f32.mxu0 0.0
    %4248 = vmatmul.mubr.f32.gmra.mrb[0].mxu0 %v4181
    %v4249 = vpop.f32.mrb[0].mxu0
    %v4250 = vadd.f32 0.0, %v4249
    %v4251 = vpop.f32.mrb[0].mxu0
    %v4252 = vadd.f32 0.0, %v4251
    %4253 = vdwg.mxu0
    %4255 = vrot.lane.b32.xlu0 %v4082, 32
    %v4256 = vpop.permute.xlu0 %4255
    %v4257 = vsel %vm490, %v4256, 0
    %4259 = vmatprep.subr.mxu0 %v1468
    %4260 = vmatpush1.msra.mxu0 %v1467
    %4261 = vmatprep.subr.mxu0 %v1470
    %4262 = vmatpush1.msra.mxu0 %v1469
    %4263 = vmatprep.subr.mxu0 %v1472
    %4264 = vmatpush1.msra.mxu0 %v1471
    %4265 = vmatprep.subr.mxu0 %v1474
    %4266 = vmatpush1.msra.mxu0 %v1473
    %4267 = vmatprep.subr.mxu0 0.0
    %4268 = vmatpush1.msra.mxu0 0.0
    %4269 = vmatprep.subr.mxu0 0.0
    %4270 = vmatpush1.msra.mxu0 0.0
    %4271 = vmatprep.subr.mxu0 0.0
    %4272 = vmatpush1.msra.mxu0 0.0
    %4273 = vmatprep.subr.mxu0 0.0
    %4274 = vmatpush1.msra.mxu0 0.0
    %4275 = vmatprep.subr.mxu0 0.0
    %4276 = vmatpush1.msra.mxu0 0.0
    %4277 = vmatprep.subr.mxu0 0.0
    %4278 = vmatpush1.msra.mxu0 0.0
    %4279 = vmatprep.subr.mxu0 0.0
    %4280 = vmatpush1.msra.mxu0 0.0
    %4281 = vmatprep.subr.mxu0 0.0
    %4282 = vmatpush1.msra.mxu0 0.0
    %4283 = vmatprep.subr.mxu0 0.0
    %4284 = vmatpush1.msra.mxu0 0.0
    %4285 = vmatprep.subr.mxu0 0.0
    %4286 = vmatpush1.msra.mxu0 0.0
    %4287 = vmatprep.subr.mxu0 0.0
    %4288 = vmatpush1.msra.mxu0 0.0
    %4289 = vmatprep.subr.mxu0 0.0
    %4290 = vmatpush1.msra.mxu0 0.0
    %4291 = vmatprep.subr.mxu0 0.0
    %4292 = vmatpush1.msra.mxu0 0.0
    %4293 = vmatprep.subr.mxu0 0.0
    %4294 = vmatpush1.msra.mxu0 0.0
    %4295 = vmatprep.subr.mxu0 0.0
    %4296 = vmatpush1.msra.mxu0 0.0
    %4297 = vmatprep.subr.mxu0 0.0
    %4298 = vmatpush1.msra.mxu0 0.0
    %4299 = vmatprep.subr.mxu0 0.0
    %4300 = vmatpush1.msra.mxu0 0.0
    %4301 = vmatprep.subr.mxu0 0.0
    %4302 = vmatpush1.msra.mxu0 0.0
    %4303 = vmatprep.subr.mxu0 0.0
    %4304 = vmatpush1.msra.mxu0 0.0
    %4305 = vmatprep.subr.mxu0 0.0
    %4306 = vmatpush1.msra.mxu0 0.0
    %4307 = vmatprep.subr.mxu0 0.0
    %4308 = vmatpush1.msra.mxu0 0.0
    %4309 = vmatprep.subr.mxu0 0.0
    %4310 = vmatpush1.msra.mxu0 0.0
    %4311 = vmatprep.subr.mxu0 0.0
    %4312 = vmatpush1.msra.mxu0 0.0
    %4313 = vmatprep.subr.mxu0 0.0
    %4314 = vmatpush1.msra.mxu0 0.0
    %4315 = vmatprep.subr.mxu0 0.0
    %4316 = vmatpush1.msra.mxu0 0.0
    %4317 = vmatprep.subr.mxu0 0.0
    %4318 = vmatpush1.msra.mxu0 0.0
    %4319 = vmatprep.subr.mxu0 0.0
    %4320 = vmatpush1.msra.mxu0 0.0
    %4321 = vmatprep.subr.mxu0 0.0
    %4322 = vmatpush1.msra.mxu0 0.0
    %4323 = vmatprep.mubr.f32.mxu0 0.0
    %4324 = vmatmul.mubr.f32.gmra.mrb[0].mxu0 %v4257
    %v4325 = vpop.f32.mrb[0].mxu0
    %v4326 = vadd.f32 %v4250, %v4325
    %v4327 = vpop.f32.mrb[0].mxu0
    %v4328 = vadd.f32 %v4252, %v4327
    %4329 = vdwg.mxu0
    %4331 = vrot.lane.b32.xlu0 %v3987, 64
    %v4332 = vpop.permute.xlu0 %4331
    %v4333 = vsel %vm1651, %v4332, 0
    %4335 = vmatprep.subr.mxu0 %v1636
    %4336 = vmatpush1.msra.mxu0 %v1635
    %4337 = vmatprep.subr.mxu0 %v1638
    %4338 = vmatpush1.msra.mxu0 %v1637
    %4339 = vmatprep.subr.mxu0 %v1640
    %4340 = vmatpush1.msra.mxu0 %v1639
    %4341 = vmatprep.subr.mxu0 %v1642
    %4342 = vmatpush1.msra.mxu0 %v1641
    %4343 = vmatprep.subr.mxu0 %v1644
    %4344 = vmatpush1.msra.mxu0 %v1643
    %4345 = vmatprep.subr.mxu0 %v1646
    %4346 = vmatpush1.msra.mxu0 %v1645
    %4347 = vmatprep.subr.mxu0 %v1648
    %4348 = vmatpush1.msra.mxu0 %v1647
    %4349 = vmatprep.subr.mxu0 %v1650
    %4350 = vmatpush1.msra.mxu0 %v1649
    %4351 = vmatprep.subr.mxu0 0.0
    %4352 = vmatpush1.msra.mxu0 0.0
    %4353 = vmatprep.subr.mxu0 0.0
    %4354 = vmatpush1.msra.mxu0 0.0
    %4355 = vmatprep.subr.mxu0 0.0
    %4356 = vmatpush1.msra.mxu0 0.0
    %4357 = vmatprep.subr.mxu0 0.0
    %4358 = vmatpush1.msra.mxu0 0.0
    %4359 = vmatprep.subr.mxu0 0.0
    %4360 = vmatpush1.msra.mxu0 0.0
    %4361 = vmatprep.subr.mxu0 0.0
    %4362 = vmatpush1.msra.mxu0 0.0
    %4363 = vmatprep.subr.mxu0 0.0
    %4364 = vmatpush1.msra.mxu0 0.0
    %4365 = vmatprep.subr.mxu0 0.0
    %4366 = vmatpush1.msra.mxu0 0.0
    %4367 = vmatprep.subr.mxu0 0.0
    %4368 = vmatpush1.msra.mxu0 0.0
    %4369 = vmatprep.subr.mxu0 0.0
    %4370 = vmatpush1.msra.mxu0 0.0
    %4371 = vmatprep.subr.mxu0 0.0
    %4372 = vmatpush1.msra.mxu0 0.0
    %4373 = vmatprep.subr.mxu0 0.0
    %4374 = vmatpush1.msra.mxu0 0.0
    %4375 = vmatprep.subr.mxu0 0.0
    %4376 = vmatpush1.msra.mxu0 0.0
    %4377 = vmatprep.subr.mxu0 0.0
    %4378 = vmatpush1.msra.mxu0 0.0
    %4379 = vmatprep.subr.mxu0 0.0
    %4380 = vmatpush1.msra.mxu0 0.0
    %4381 = vmatprep.subr.mxu0 0.0
    %4382 = vmatpush1.msra.mxu0 0.0
    %4383 = vmatprep.subr.mxu0 0.0
    %4384 = vmatpush1.msra.mxu0 0.0
    %4385 = vmatprep.subr.mxu0 0.0
    %4386 = vmatpush1.msra.mxu0 0.0
    %4387 = vmatprep.subr.mxu0 0.0
    %4388 = vmatpush1.msra.mxu0 0.0
    %4389 = vmatprep.subr.mxu0 0.0
    %4390 = vmatpush1.msra.mxu0 0.0
    %4391 = vmatprep.subr.mxu0 0.0
    %4392 = vmatpush1.msra.mxu0 0.0
    %4393 = vmatprep.subr.mxu0 0.0
    %4394 = vmatpush1.msra.mxu0 0.0
    %4395 = vmatprep.subr.mxu0 0.0
    %4396 = vmatpush1.msra.mxu0 0.0
    %4397 = vmatprep.subr.mxu0 0.0
    %4398 = vmatpush1.msra.mxu0 0.0
    %4399 = vmatprep.mubr.f32.mxu0 0.0
    %4400 = vmatmul.mubr.f32.gmra.mrb[0].mxu0 %v4333
    %v4401 = vpop.f32.mrb[0].mxu0
    %v4402 = vadd.f32 0.0, %v4401
    %v4403 = vpop.f32.mrb[0].mxu0
    %v4404 = vadd.f32 0.0, %v4403
    %4405 = vdwg.mxu0
    %v4406 = vadd.f32 %v4326, %v4402
    %v4407 = vadd.f32 %v4328, %v4404
    %v4408 = vadd.f32 %v4406, %v1733
    %v4409 = vadd.f32 %v4407, %v1737
    %v4410 = vxor.u32 %v4408, 2147483648
    %v4411 = vmul.f32 %v4410, 1.442695
    %v4412 = vpow.pop %v4411
    %v4413 = vadd.f32 %v4412, 1.0
    %v4414 = vrcp.pop %v4413
    %v4415 = vmul.f32 1.0, %v4414
    %v4416 = vtanh.pop %v4409
    %v4417 = vxor.u32 %v4409, 2147483648
    %v4418 = vmul.f32 %v4417, 1.442695
    %v4419 = vpow.pop %v4418
    %v4420 = vadd.f32 %v4419, 1.0
    %v4421 = vrcp.pop %v4420
    %v4422 = vmul.f32 1.0, %v4421
    %v4423 = vmul.f32 %v4415, %v3985
    %v4424 = vmul.f32 %v4415, %v4416
    %4426 = vrot.lane.b32.xlu0 %v4424, 64
    %v4427 = vpop.permute.xlu0 %4426
    %v4429 = vadd.f32 %v4423, %v4427
    %v4430 = vtanh.pop %v4429
    %v4431 = vmul.f32 %v4422, %v4430
    %4432 = vmatprep.subr.mxu0 0.0
    %4433 = vmatpush1.msra.mxu0 %v1255
    %4434 = vmatprep.subr.mxu0 0.0
    %4435 = vmatpush1.msra.mxu0 %v1256
    %4436 = vmatprep.subr.mxu0 0.0
    %4437 = vmatpush1.msra.mxu0 %v1257
    %4438 = vmatprep.subr.mxu0 0.0
    %4439 = vmatpush1.msra.mxu0 %v1258
    %4440 = vmatprep.subr.mxu0 0.0
    %4441 = vmatpush1.msra.mxu0 0.0
    %4442 = vmatprep.subr.mxu0 0.0
    %4443 = vmatpush1.msra.mxu0 0.0
    %4444 = vmatprep.subr.mxu0 0.0
    %4445 = vmatpush1.msra.mxu0 0.0
    %4446 = vmatprep.subr.mxu0 0.0
    %4447 = vmatpush1.msra.mxu0 0.0
    %4448 = vmatprep.subr.mxu0 0.0
    %4449 = vmatpush1.msra.mxu0 0.0
    %4450 = vmatprep.subr.mxu0 0.0
    %4451 = vmatpush1.msra.mxu0 0.0
    %4452 = vmatprep.subr.mxu0 0.0
    %4453 = vmatpush1.msra.mxu0 0.0
    %4454 = vmatprep.subr.mxu0 0.0
    %4455 = vmatpush1.msra.mxu0 0.0
    %4456 = vmatprep.subr.mxu0 0.0
    %4457 = vmatpush1.msra.mxu0 0.0
    %4458 = vmatprep.subr.mxu0 0.0
    %4459 = vmatpush1.msra.mxu0 0.0
    %4460 = vmatprep.subr.mxu0 0.0
    %4461 = vmatpush1.msra.mxu0 0.0
    %4462 = vmatprep.subr.mxu0 0.0
    %4463 = vmatpush1.msra.mxu0 0.0
    %4464 = vmatprep.subr.mxu0 0.0
    %4465 = vmatpush1.msra.mxu0 0.0
    %4466 = vmatprep.subr.mxu0 0.0
    %4467 = vmatpush1.msra.mxu0 0.0
    %4468 = vmatprep.subr.mxu0 0.0
    %4469 = vmatpush1.msra.mxu0 0.0
    %4470 = vmatprep.subr.mxu0 0.0
    %4471 = vmatpush1.msra.mxu0 0.0
    %4472 = vmatprep.subr.mxu0 0.0
    %4473 = vmatpush1.msra.mxu0 0.0
    %4474 = vmatprep.subr.mxu0 0.0
    %4475 = vmatpush1.msra.mxu0 0.0
    %4476 = vmatprep.subr.mxu0 0.0
    %4477 = vmatpush1.msra.mxu0 0.0
    %4478 = vmatprep.subr.mxu0 0.0
    %4479 = vmatpush1.msra.mxu0 0.0
    %4480 = vmatprep.subr.mxu0 0.0
    %4481 = vmatpush1.msra.mxu0 0.0
    %4482 = vmatprep.subr.mxu0 0.0
    %4483 = vmatpush1.msra.mxu0 0.0
    %4484 = vmatprep.subr.mxu0 0.0
    %4485 = vmatpush1.msra.mxu0 0.0
    %4486 = vmatprep.subr.mxu0 0.0
    %4487 = vmatpush1.msra.mxu0 0.0
    %4488 = vmatprep.subr.mxu0 0.0
    %4489 = vmatpush1.msra.mxu0 0.0
    %4490 = vmatprep.subr.mxu0 0.0
    %4491 = vmatpush1.msra.mxu0 0.0
    %4492 = vmatprep.subr.mxu0 0.0
    %4493 = vmatpush1.msra.mxu0 0.0
    %4494 = vmatprep.subr.mxu0 0.0
    %4495 = vmatpush1.msra.mxu0 0.0
    %4496 = vmatprep.mubr.f32.mxu0 0.0
    %4497 = vmatmul.mubr.f32.gmra.mrb[0].mxu0 %v4257
    %v4498 = vpop.f32.mrb[0].mxu0
    %v4499 = vadd.f32 0.0, %v4498
    %v4500 = vpop.f32.mrb[0].mxu0
    %4501 = vdwg.mxu0
    %v4502 = vadd.f32 %v1108, %v4499
    %v4503 = vxor.u32 %v4502, 2147483648
    %v4504 = vmul.f32 %v4503, 1.442695
    %v4505 = vpow.pop %v4504
    %v4506 = vadd.f32 %v4505, 1.0
    %v4507 = vrcp.pop %v4506
    %v4508 = vmul.f32 1.0, %v4507
    %v4509 = vtanh.pop %v4502
    %v4510 = vmul.f32 %v4508, %v4076
    %4512 = vrot.lane.b32.xlu0 %v4509, 64
    %v4513 = vpop.permute.xlu0 %4512
    %v4515 = vmul.f32 %v4508, %v4513
    %4517 = vrot.lane.b32.xlu0 %v4515, 32
    %v4518 = vpop.permute.xlu0 %4517
    %v4520 = vadd.f32 %v4510, %v4518
    %v4521 = vtanh.pop %v4520
    %4523 = vrot.lane.b32.xlu0 %v4521, 64
    %v4524 = vpop.permute.xlu0 %4523
    %v4526 = vmul.f32 %v4508, %v4524
    %4527 = vmatprep.subr.mxu0 0.0
    %4528 = vmatpush1.msra.mxu0 %v1361
    %4529 = vmatprep.subr.mxu0 0.0
    %4530 = vmatpush1.msra.mxu0 %v1362
    %4531 = vmatprep.subr.mxu0 0.0
    %4532 = vmatpush1.msra.mxu0 %v1363
    %4533 = vmatprep.subr.mxu0 0.0
    %4534 = vmatpush1.msra.mxu0 %v1364
    %4535 = vmatprep.subr.mxu0 0.0
    %4536 = vmatpush1.msra.mxu0 0.0
    %4537 = vmatprep.subr.mxu0 0.0
    %4538 = vmatpush1.msra.mxu0 0.0
    %4539 = vmatprep.subr.mxu0 0.0
    %4540 = vmatpush1.msra.mxu0 0.0
    %4541 = vmatprep.subr.mxu0 0.0
    %4542 = vmatpush1.msra.mxu0 0.0
    %4543 = vmatprep.subr.mxu0 0.0
    %4544 = vmatpush1.msra.mxu0 0.0
    %4545 = vmatprep.subr.mxu0 0.0
    %4546 = vmatpush1.msra.mxu0 0.0
    %4547 = vmatprep.subr.mxu0 0.0
    %4548 = vmatpush1.msra.mxu0 0.0
    %4549 = vmatprep.subr.mxu0 0.0
    %4550 = vmatpush1.msra.mxu0 0.0
    %4551 = vmatprep.subr.mxu0 0.0
    %4552 = vmatpush1.msra.mxu0 0.0
    %4553 = vmatprep.subr.mxu0 0.0
    %4554 = vmatpush1.msra.mxu0 0.0
    %4555 = vmatprep.subr.mxu0 0.0
    %4556 = vmatpush1.msra.mxu0 0.0
    %4557 = vmatprep.subr.mxu0 0.0
    %4558 = vmatpush1.msra.mxu0 0.0
    %4559 = vmatprep.subr.mxu0 0.0
    %4560 = vmatpush1.msra.mxu0 0.0
    %4561 = vmatprep.subr.mxu0 0.0
    %4562 = vmatpush1.msra.mxu0 0.0
    %4563 = vmatprep.subr.mxu0 0.0
    %4564 = vmatpush1.msra.mxu0 0.0
    %4565 = vmatprep.subr.mxu0 0.0
    %4566 = vmatpush1.msra.mxu0 0.0
    %4567 = vmatprep.subr.mxu0 0.0
    %4568 = vmatpush1.msra.mxu0 0.0
    %4569 = vmatprep.subr.mxu0 0.0
    %4570 = vmatpush1.msra.mxu0 0.0
    %4571 = vmatprep.subr.mxu0 0.0
    %4572 = vmatpush1.msra.mxu0 0.0
    %4573 = vmatprep.subr.mxu0 0.0
    %4574 = vmatpush1.msra.mxu0 0.0
    %4575 = vmatprep.subr.mxu0 0.0
    %4576 = vmatpush1.msra.mxu0 0.0
    %4577 = vmatprep.subr.mxu0 0.0
    %4578 = vmatpush1.msra.mxu0 0.0
    %4579 = vmatprep.subr.mxu0 0.0
    %4580 = vmatpush1.msra.mxu0 0.0
    %4581 = vmatprep.subr.mxu0 0.0
    %4582 = vmatpush1.msra.mxu0 0.0
    %4583 = vmatprep.subr.mxu0 0.0
    %4584 = vmatpush1.msra.mxu0 0.0
    %4585 = vmatprep.subr.mxu0 0.0
    %4586 = vmatpush1.msra.mxu0 0.0
    %4587 = vmatprep.subr.mxu0 0.0
    %4588 = vmatpush1.msra.mxu0 0.0
    %4589 = vmatprep.subr.mxu0 0.0
    %4590 = vmatpush1.msra.mxu0 0.0
    %4591 = vmatprep.mubr.f32.mxu0 0.0
    %4592 = vmatmul.mubr.f32.gmra.mrb[0].mxu0 %v4181
    %v4593 = vpop.f32.mrb[0].mxu0
    %v4594 = vadd.f32 0.0, %v4593
    %v4595 = vpop.f32.mrb[0].mxu0
    %4596 = vdwg.mxu0
    %v4597 = vadd.f32 %v1246, %v4594
    %v4598 = vxor.u32 %v4597, 2147483648
    %v4599 = vmul.f32 %v4598, 1.442695
    %v4600 = vpow.pop %v4599
    %v4601 = vadd.f32 %v4600, 1.0
    %v4602 = vrcp.pop %v4601
    %v4603 = vmul.f32 1.0, %v4602
    %v4604 = vtanh.pop %v4597
    %v4605 = vmul.f32 %v4603, %v4171
    %4607 = vrot.lane.b32.xlu0 %v4604, 64
    %v4608 = vpop.permute.xlu0 %4607
    %v4610 = vmul.f32 %v4603, %v4608
    %4612 = vrot.lane.b32.xlu0 %v4610, 32
    %v4613 = vpop.permute.xlu0 %4612
    %v4615 = vadd.f32 %v4605, %v4613
    %v4616 = vtanh.pop %v4615
    %4618 = vrot.lane.b32.xlu0 %v4616, 64
    %v4619 = vpop.permute.xlu0 %4618
    %v4621 = vmul.f32 %v4603, %v4619
    %4623 = vrot.lane.b32.xlu0 %v4621, 32
    %v4624 = vpop.permute.xlu0 %4623
    %v4625 = vsel %vm490, %v4624, 0
    %4627 = vmatprep.subr.mxu0 %v1476
    %4628 = vmatpush1.msra.mxu0 %v1475
    %4629 = vmatprep.subr.mxu0 %v1478
    %4630 = vmatpush1.msra.mxu0 %v1477
    %4631 = vmatprep.subr.mxu0 %v1480
    %4632 = vmatpush1.msra.mxu0 %v1479
    %4633 = vmatprep.subr.mxu0 %v1482
    %4634 = vmatpush1.msra.mxu0 %v1481
    %4635 = vmatprep.subr.mxu0 0.0
    %4636 = vmatpush1.msra.mxu0 0.0
    %4637 = vmatprep.subr.mxu0 0.0
    %4638 = vmatpush1.msra.mxu0 0.0
    %4639 = vmatprep.subr.mxu0 0.0
    %4640 = vmatpush1.msra.mxu0 0.0
    %4641 = vmatprep.subr.mxu0 0.0
    %4642 = vmatpush1.msra.mxu0 0.0
    %4643 = vmatprep.subr.mxu0 0.0
    %4644 = vmatpush1.msra.mxu0 0.0
    %4645 = vmatprep.subr.mxu0 0.0
    %4646 = vmatpush1.msra.mxu0 0.0
    %4647 = vmatprep.subr.mxu0 0.0
    %4648 = vmatpush1.msra.mxu0 0.0
    %4649 = vmatprep.subr.mxu0 0.0
    %4650 = vmatpush1.msra.mxu0 0.0
    %4651 = vmatprep.subr.mxu0 0.0
    %4652 = vmatpush1.msra.mxu0 0.0
    %4653 = vmatprep.subr.mxu0 0.0
    %4654 = vmatpush1.msra.mxu0 0.0
    %4655 = vmatprep.subr.mxu0 0.0
    %4656 = vmatpush1.msra.mxu0 0.0
    %4657 = vmatprep.subr.mxu0 0.0
    %4658 = vmatpush1.msra.mxu0 0.0
    %4659 = vmatprep.subr.mxu0 0.0
    %4660 = vmatpush1.msra.mxu0 0.0
    %4661 = vmatprep.subr.mxu0 0.0
    %4662 = vmatpush1.msra.mxu0 0.0
    %4663 = vmatprep.subr.mxu0 0.0
    %4664 = vmatpush1.msra.mxu0 0.0
    %4665 = vmatprep.subr.mxu0 0.0
    %4666 = vmatpush1.msra.mxu0 0.0
    %4667 = vmatprep.subr.mxu0 0.0
    %4668 = vmatpush1.msra.mxu0 0.0
    %4669 = vmatprep.subr.mxu0 0.0
    %4670 = vmatpush1.msra.mxu0 0.0
    %4671 = vmatprep.subr.mxu0 0.0
    %4672 = vmatpush1.msra.mxu0 0.0
    %4673 = vmatprep.subr.mxu0 0.0
    %4674 = vmatpush1.msra.mxu0 0.0
    %4675 = vmatprep.subr.mxu0 0.0
    %4676 = vmatpush1.msra.mxu0 0.0
    %4677 = vmatprep.subr.mxu0 0.0
    %4678 = vmatpush1.msra.mxu0 0.0
    %4679 = vmatprep.subr.mxu0 0.0
    %4680 = vmatpush1.msra.mxu0 0.0
    %4681 = vmatprep.subr.mxu0 0.0
    %4682 = vmatpush1.msra.mxu0 0.0
    %4683 = vmatprep.subr.mxu0 0.0
    %4684 = vmatpush1.msra.mxu0 0.0
    %4685 = vmatprep.subr.mxu0 0.0
    %4686 = vmatpush1.msra.mxu0 0.0
    %4687 = vmatprep.subr.mxu0 0.0
    %4688 = vmatpush1.msra.mxu0 0.0
    %4689 = vmatprep.subr.mxu0 0.0
    %4690 = vmatpush1.msra.mxu0 0.0
    %4691 = vmatprep.mubr.f32.mxu0 0.0
    %4692 = vmatmul.mubr.f32.gmra.mrb[0].mxu0 %v4625
    %v4693 = vpop.f32.mrb[0].mxu0
    %v4694 = vadd.f32 0.0, %v4693
    %v4695 = vpop.f32.mrb[0].mxu0
    %v4696 = vadd.f32 0.0, %v4695
    %4697 = vdwg.mxu0
    %4699 = vrot.lane.b32.xlu0 %v4526, 32
    %v4700 = vpop.permute.xlu0 %4699
    %v4701 = vsel %vm490, %v4700, 0
    %4703 = vmatprep.subr.mxu0 %v1468
    %4704 = vmatpush1.msra.mxu0 %v1467
    %4705 = vmatprep.subr.mxu0 %v1470
    %4706 = vmatpush1.msra.mxu0 %v1469
    %4707 = vmatprep.subr.mxu0 %v1472
    %4708 = vmatpush1.msra.mxu0 %v1471
    %4709 = vmatprep.subr.mxu0 %v1474
    %4710 = vmatpush1.msra.mxu0 %v1473
    %4711 = vmatprep.subr.mxu0 0.0
    %4712 = vmatpush1.msra.mxu0 0.0
    %4713 = vmatprep.subr.mxu0 0.0
    %4714 = vmatpush1.msra.mxu0 0.0
    %4715 = vmatprep.subr.mxu0 0.0
    %4716 = vmatpush1.msra.mxu0 0.0
    %4717 = vmatprep.subr.mxu0 0.0
    %4718 = vmatpush1.msra.mxu0 0.0
    %4719 = vmatprep.subr.mxu0 0.0
    %4720 = vmatpush1.msra.mxu0 0.0
    %4721 = vmatprep.subr.mxu0 0.0
    %4722 = vmatpush1.msra.mxu0 0.0
    %4723 = vmatprep.subr.mxu0 0.0
    %4724 = vmatpush1.msra.mxu0 0.0
    %4725 = vmatprep.subr.mxu0 0.0
    %4726 = vmatpush1.msra.mxu0 0.0
    %4727 = vmatprep.subr.mxu0 0.0
    %4728 = vmatpush1.msra.mxu0 0.0
    %4729 = vmatprep.subr.mxu0 0.0
    %4730 = vmatpush1.msra.mxu0 0.0
    %4731 = vmatprep.subr.mxu0 0.0
    %4732 = vmatpush1.msra.mxu0 0.0
    %4733 = vmatprep.subr.mxu0 0.0
    %4734 = vmatpush1.msra.mxu0 0.0
    %4735 = vmatprep.subr.mxu0 0.0
    %4736 = vmatpush1.msra.mxu0 0.0
    %4737 = vmatprep.subr.mxu0 0.0
    %4738 = vmatpush1.msra.mxu0 0.0
    %4739 = vmatprep.subr.mxu0 0.0
    %4740 = vmatpush1.msra.mxu0 0.0
    %4741 = vmatprep.subr.mxu0 0.0
    %4742 = vmatpush1.msra.mxu0 0.0
    %4743 = vmatprep.subr.mxu0 0.0
    %4744 = vmatpush1.msra.mxu0 0.0
    %4745 = vmatprep.subr.mxu0 0.0
    %4746 = vmatpush1.msra.mxu0 0.0
    %4747 = vmatprep.subr.mxu0 0.0
    %4748 = vmatpush1.msra.mxu0 0.0
    %4749 = vmatprep.subr.mxu0 0.0
    %4750 = vmatpush1.msra.mxu0 0.0
    %4751 = vmatprep.subr.mxu0 0.0
    %4752 = vmatpush1.msra.mxu0 0.0
    %4753 = vmatprep.subr.mxu0 0.0
    %4754 = vmatpush1.msra.mxu0 0.0
    %4755 = vmatprep.subr.mxu0 0.0
    %4756 = vmatpush1.msra.mxu0 0.0
    %4757 = vmatprep.subr.mxu0 0.0
    %4758 = vmatpush1.msra.mxu0 0.0
    %4759 = vmatprep.subr.mxu0 0.0
    %4760 = vmatpush1.msra.mxu0 0.0
    %4761 = vmatprep.subr.mxu0 0.0
    %4762 = vmatpush1.msra.mxu0 0.0
    %4763 = vmatprep.subr.mxu0 0.0
    %4764 = vmatpush1.msra.mxu0 0.0
    %4765 = vmatprep.subr.mxu0 0.0
    %4766 = vmatpush1.msra.mxu0 0.0
    %4767 = vmatprep.mubr.f32.mxu0 0.0
    %4768 = vmatmul.mubr.f32.gmra.mrb[0].mxu0 %v4701
    %v4769 = vpop.f32.mrb[0].mxu0
    %v4770 = vadd.f32 %v4694, %v4769
    %v4771 = vpop.f32.mrb[0].mxu0
    %v4772 = vadd.f32 %v4696, %v4771
    %4773 = vdwg.mxu0
    %4775 = vrot.lane.b32.xlu0 %v4431, 64
    %v4776 = vpop.permute.xlu0 %4775
    %v4777 = vsel %vm1651, %v4776, 0
    %4779 = vmatprep.subr.mxu0 %v1636
    %4780 = vmatpush1.msra.mxu0 %v1635
    %4781 = vmatprep.subr.mxu0 %v1638
    %4782 = vmatpush1.msra.mxu0 %v1637
    %4783 = vmatprep.subr.mxu0 %v1640
    %4784 = vmatpush1.msra.mxu0 %v1639
    %4785 = vmatprep.subr.mxu0 %v1642
    %4786 = vmatpush1.msra.mxu0 %v1641
    %4787 = vmatprep.subr.mxu0 %v1644
    %4788 = vmatpush1.msra.mxu0 %v1643
    %4789 = vmatprep.subr.mxu0 %v1646
    %4790 = vmatpush1.msra.mxu0 %v1645
    %4791 = vmatprep.subr.mxu0 %v1648
    %4792 = vmatpush1.msra.mxu0 %v1647
    %4793 = vmatprep.subr.mxu0 %v1650
    %4794 = vmatpush1.msra.mxu0 %v1649
    %4795 = vmatprep.subr.mxu0 0.0
    %4796 = vmatpush1.msra.mxu0 0.0
    %4797 = vmatprep.subr.mxu0 0.0
    %4798 = vmatpush1.msra.mxu0 0.0
    %4799 = vmatprep.subr.mxu0 0.0
    %4800 = vmatpush1.msra.mxu0 0.0
    %4801 = vmatprep.subr.mxu0 0.0
    %4802 = vmatpush1.msra.mxu0 0.0
    %4803 = vmatprep.subr.mxu0 0.0
    %4804 = vmatpush1.msra.mxu0 0.0
    %4805 = vmatprep.subr.mxu0 0.0
    %4806 = vmatpush1.msra.mxu0 0.0
    %4807 = vmatprep.subr.mxu0 0.0
    %4808 = vmatpush1.msra.mxu0 0.0
    %4809 = vmatprep.subr.mxu0 0.0
    %4810 = vmatpush1.msra.mxu0 0.0
    %4811 = vmatprep.subr.mxu0 0.0
    %4812 = vmatpush1.msra.mxu0 0.0
    %4813 = vmatprep.subr.mxu0 0.0
    %4814 = vmatpush1.msra.mxu0 0.0
    %4815 = vmatprep.subr.mxu0 0.0
    %4816 = vmatpush1.msra.mxu0 0.0
    %4817 = vmatprep.subr.mxu0 0.0
    %4818 = vmatpush1.msra.mxu0 0.0
    %4819 = vmatprep.subr.mxu0 0.0
    %4820 = vmatpush1.msra.mxu0 0.0
    %4821 = vmatprep.subr.mxu0 0.0
    %4822 = vmatpush1.msra.mxu0 0.0
    %4823 = vmatprep.subr.mxu0 0.0
    %4824 = vmatpush1.msra.mxu0 0.0
    %4825 = vmatprep.subr.mxu0 0.0
    %4826 = vmatpush1.msra.mxu0 0.0
    %4827 = vmatprep.subr.mxu0 0.0
    %4828 = vmatpush1.msra.mxu0 0.0
    %4829 = vmatprep.subr.mxu0 0.0
    %4830 = vmatpush1.msra.mxu0 0.0
    %4831 = vmatprep.subr.mxu0 0.0
    %4832 = vmatpush1.msra.mxu0 0.0
    %4833 = vmatprep.subr.mxu0 0.0
    %4834 = vmatpush1.msra.mxu0 0.0
    %4835 = vmatprep.subr.mxu0 0.0
    %4836 = vmatpush1.msra.mxu0 0.0
    %4837 = vmatprep.subr.mxu0 0.0
    %4838 = vmatpush1.msra.mxu0 0.0
    %4839 = vmatprep.subr.mxu0 0.0
    %4840 = vmatpush1.msra.mxu0 0.0
    %4841 = vmatprep.subr.mxu0 0.0
    %4842 = vmatpush1.msra.mxu0 0.0
    %4843 = vmatprep.mubr.f32.mxu0 0.0
    %4844 = vmatmul.mubr.f32.gmra.mrb[0].mxu0 %v4777
    %v4845 = vpop.f32.mrb[0].mxu0
    %v4846 = vadd.f32 0.0, %v4845
    %v4847 = vpop.f32.mrb[0].mxu0
    %v4848 = vadd.f32 0.0, %v4847
    %4849 = vdwg.mxu0
    %v4850 = vadd.f32 %v4770, %v4846
    %v4851 = vadd.f32 %v4772, %v4848
    %v4852 = vadd.f32 %v4850, %v1733
    %v4853 = vadd.f32 %v4851, %v1737
    %v4854 = vxor.u32 %v4852, 2147483648
    %v4855 = vmul.f32 %v4854, 1.442695
    %v4856 = vpow.pop %v4855
    %v4857 = vadd.f32 %v4856, 1.0
    %v4858 = vrcp.pop %v4857
    %v4859 = vmul.f32 1.0, %v4858
    %v4860 = vtanh.pop %v4853
    %v4861 = vxor.u32 %v4853, 2147483648
    %v4862 = vmul.f32 %v4861, 1.442695
    %v4863 = vpow.pop %v4862
    %v4864 = vadd.f32 %v4863, 1.0
    %v4865 = vrcp.pop %v4864
    %v4866 = vmul.f32 1.0, %v4865
    %v4867 = vmul.f32 %v4859, %v4429
    %v4868 = vmul.f32 %v4859, %v4860
    %4870 = vrot.lane.b32.xlu0 %v4868, 64
    %v4871 = vpop.permute.xlu0 %4870
    %v4873 = vadd.f32 %v4867, %v4871
    %v4874 = vtanh.pop %v4873
    %v4875 = vmul.f32 %v4866, %v4874
    %v4876 = vld [vmem:[%s61] sm:$0xff]
    %v4877 = vld [vmem:[%s61 + $0x8] sm:$0xff]
    %v4878 = vld [vmem:[%s61 + $0x10] sm:$0xff]
    %v4879 = vld [vmem:[%s61 + $0x18] sm:$0xff]
    %v4880 = vld [vmem:[%s61 + $0x20] sm:$0xff]
    %v4881 = vld [vmem:[%s61 + $0x28] sm:$0xff]
    %v4882 = vld [vmem:[%s61 + $0x30] sm:$0xff]
    %v4883 = vld [vmem:[%s61 + $0x38] sm:$0xff]
    %v4884 = vld [vmem:[%s63] sm:$0x1]
    %v4886 = vlaneseq
    %v4887 = vshrl.u32 %v4886, 7
    %v4888 = vsub.s32 0, %v4887
    %v4889 = vrot.slane %v4884, %v4888
    %4892 = vrot.lane.b32.xlu0 %v4875, 64
    %v4893 = vpop.permute.xlu0 %4892
    %v4894 = vsel %vm1651, %v4893, 0
    %4896 = vmatprep.subr.mxu0 0.0
    %4897 = vmatpush1.msra.mxu0 %v4876
    %4898 = vmatprep.subr.mxu0 0.0
    %4899 = vmatpush1.msra.mxu0 %v4877
    %4900 = vmatprep.subr.mxu0 0.0
    %4901 = vmatpush1.msra.mxu0 %v4878
    %4902 = vmatprep.subr.mxu0 0.0
    %4903 = vmatpush1.msra.mxu0 %v4879
    %4904 = vmatprep.subr.mxu0 0.0
    %4905 = vmatpush1.msra.mxu0 %v4880
    %4906 = vmatprep.subr.mxu0 0.0
    %4907 = vmatpush1.msra.mxu0 %v4881
    %4908 = vmatprep.subr.mxu0 0.0
    %4909 = vmatpush1.msra.mxu0 %v4882
    %4910 = vmatprep.subr.mxu0 0.0
    %4911 = vmatpush1.msra.mxu0 %v4883
    %4912 = vmatprep.subr.mxu0 0.0
    %4913 = vmatpush1.msra.mxu0 0.0
    %4914 = vmatprep.subr.mxu0 0.0
    %4915 = vmatpush1.msra.mxu0 0.0
    %4916 = vmatprep.subr.mxu0 0.0
    %4917 = vmatpush1.msra.mxu0 0.0
    %4918 = vmatprep.subr.mxu0 0.0
    %4919 = vmatpush1.msra.mxu0 0.0
    %4920 = vmatprep.subr.mxu0 0.0
    %4921 = vmatpush1.msra.mxu0 0.0
    %4922 = vmatprep.subr.mxu0 0.0
    %4923 = vmatpush1.msra.mxu0 0.0
    %4924 = vmatprep.subr.mxu0 0.0
    %4925 = vmatpush1.msra.mxu0 0.0
    %4926 = vmatprep.subr.mxu0 0.0
    %4927 = vmatpush1.msra.mxu0 0.0
    %4928 = vmatprep.subr.mxu0 0.0
    %4929 = vmatpush1.msra.mxu0 0.0
    %4930 = vmatprep.subr.mxu0 0.0
    %4931 = vmatpush1.msra.mxu0 0.0
    %4932 = vmatprep.subr.mxu0 0.0
    %4933 = vmatpush1.msra.mxu0 0.0
    %4934 = vmatprep.subr.mxu0 0.0
    %4935 = vmatpush1.msra.mxu0 0.0
    %4936 = vmatprep.subr.mxu0 0.0
    %4937 = vmatpush1.msra.mxu0 0.0
    %4938 = vmatprep.subr.mxu0 0.0
    %4939 = vmatpush1.msra.mxu0 0.0
    %4940 = vmatprep.subr.mxu0 0.0
    %4941 = vmatpush1.msra.mxu0 0.0
    %4942 = vmatprep.subr.mxu0 0.0
    %4943 = vmatpush1.msra.mxu0 0.0
    %4944 = vmatprep.subr.mxu0 0.0
    %4945 = vmatpush1.msra.mxu0 0.0
    %4946 = vmatprep.subr.mxu0 0.0
    %4947 = vmatpush1.msra.mxu0 0.0
    %4948 = vmatprep.subr.mxu0 0.0
    %4949 = vmatpush1.msra.mxu0 0.0
    %4950 = vmatprep.subr.mxu0 0.0
    %4951 = vmatpush1.msra.mxu0 0.0
    %4952 = vmatprep.subr.mxu0 0.0
    %4953 = vmatpush1.msra.mxu0 0.0
    %4954 = vmatprep.subr.mxu0 0.0
    %4955 = vmatpush1.msra.mxu0 0.0
    %4956 = vmatprep.subr.mxu0 0.0
    %4957 = vmatpush1.msra.mxu0 0.0
    %4958 = vmatprep.subr.mxu0 0.0
    %4959 = vmatpush1.msra.mxu0 0.0
    %4960 = vmatprep.mubr.f32.mxu0 0.0
    %4961 = vmatmul.mubr.f32.gmra.mrb[0].mxu0 %v4894
    %v4962 = vpop.f32.mrb[0].mxu0
    %v4963 = vadd.f32 %v4889, %v4962
    %v4964 = vpop.f32.mrb[0].mxu0
    %4965 = vdwg.mxu0
    %v4966 = vld [vmem:[%s65] sm:$0xff]
    %v4967 = vld [vmem:[%s65 + $0x8] sm:$0xff]
    %v4968 = vld [vmem:[%s65 + $0x10] sm:$0xff]
    %v4969 = vld [vmem:[%s65 + $0x18] sm:$0xff]
    %v4970 = vld [vmem:[#allocation2] sm:$0x1]
    %v4972 = vlaneseq
    %v4973 = vshrl.u32 %v4972, 7
    %v4974 = vsub.s32 0, %v4973
    %v4975 = vrot.slane %v4970, %v4974
    %v4978 = vsel %vm490, %v4963, 0
    %4980 = vmatprep.subr.mxu0 0.0
    %4981 = vmatpush1.msra.mxu0 %v4966
    %4982 = vmatprep.subr.mxu0 0.0
    %4983 = vmatpush1.msra.mxu0 %v4967
    %4984 = vmatprep.subr.mxu0 0.0
    %4985 = vmatpush1.msra.mxu0 %v4968
    %4986 = vmatprep.subr.mxu0 0.0
    %4987 = vmatpush1.msra.mxu0 %v4969
    %4988 = vmatprep.subr.mxu0 0.0
    %4989 = vmatpush1.msra.mxu0 0.0
    %4990 = vmatprep.subr.mxu0 0.0
    %4991 = vmatpush1.msra.mxu0 0.0
    %4992 = vmatprep.subr.mxu0 0.0
    %4993 = vmatpush1.msra.mxu0 0.0
    %4994 = vmatprep.subr.mxu0 0.0
    %4995 = vmatpush1.msra.mxu0 0.0
    %4996 = vmatprep.subr.mxu0 0.0
    %4997 = vmatpush1.msra.mxu0 0.0
    %4998 = vmatprep.subr.mxu0 0.0
    %4999 = vmatpush1.msra.mxu0 0.0
    %5000 = vmatprep.subr.mxu0 0.0
    %5001 = vmatpush1.msra.mxu0 0.0
    %5002 = vmatprep.subr.mxu0 0.0
    %5003 = vmatpush1.msra.mxu0 0.0
    %5004 = vmatprep.subr.mxu0 0.0
    %5005 = vmatpush1.msra.mxu0 0.0
    %5006 = vmatprep.subr.mxu0 0.0
    %5007 = vmatpush1.msra.mxu0 0.0
    %5008 = vmatprep.subr.mxu0 0.0
    %5009 = vmatpush1.msra.mxu0 0.0
    %5010 = vmatprep.subr.mxu0 0.0
    %5011 = vmatpush1.msra.mxu0 0.0
    %5012 = vmatprep.subr.mxu0 0.0
    %5013 = vmatpush1.msra.mxu0 0.0
    %5014 = vmatprep.subr.mxu0 0.0
    %5015 = vmatpush1.msra.mxu0 0.0
    %5016 = vmatprep.subr.mxu0 0.0
    %5017 = vmatpush1.msra.mxu0 0.0
    %5018 = vmatprep.subr.mxu0 0.0
    %5019 = vmatpush1.msra.mxu0 0.0
    %5020 = vmatprep.subr.mxu0 0.0
    %5021 = vmatpush1.msra.mxu0 0.0
    %5022 = vmatprep.subr.mxu0 0.0
    %5023 = vmatpush1.msra.mxu0 0.0
    %5024 = vmatprep.subr.mxu0 0.0
    %5025 = vmatpush1.msra.mxu0 0.0
    %5026 = vmatprep.subr.mxu0 0.0
    %5027 = vmatpush1.msra.mxu0 0.0
    %5028 = vmatprep.subr.mxu0 0.0
    %5029 = vmatpush1.msra.mxu0 0.0
    %5030 = vmatprep.subr.mxu0 0.0
    %5031 = vmatpush1.msra.mxu0 0.0
    %5032 = vmatprep.subr.mxu0 0.0
    %5033 = vmatpush1.msra.mxu0 0.0
    %5034 = vmatprep.subr.mxu0 0.0
    %5035 = vmatpush1.msra.mxu0 0.0
    %5036 = vmatprep.subr.mxu0 0.0
    %5037 = vmatpush1.msra.mxu0 0.0
    %5038 = vmatprep.subr.mxu0 0.0
    %5039 = vmatpush1.msra.mxu0 0.0
    %5040 = vmatprep.subr.mxu0 0.0
    %5041 = vmatpush1.msra.mxu0 0.0
    %5042 = vmatprep.subr.mxu0 0.0
    %5043 = vmatpush1.msra.mxu0 0.0
    %5044 = vmatprep.mubr.f32.mxu0 0.0
    %5045 = vmatmul.mubr.f32.gmra.mrb[0].mxu0 %v4978
    %v5046 = vpop.f32.mrb[0].mxu0
    %v5047 = vadd.f32 %v4975, %v5046
    %v5048 = vpop.f32.mrb[0].mxu0
    %5049 = vdwg.mxu0
    %vm5050 = vcmask 7168
    %5051 = vst.msk [vmem:[%s69] sm:$0xff] %vm5050, %v5047
    // Predicated region
    $region186: #{tpu_custom_call.1} parent=1 // pred_check
      _
    $region187: #{tpu_custom_call.1} parent=1 // pred_check_branch
      %5053 = sbr.rel (0) target = $region189
    $region188: #{tpu_custom_call.1} parent=1 // pred_region
      _
    $region189: #{tpu_custom_call.1} parent=1 // pred_fallthru
      _
    // Predicated region
    $region190: #{tpu_custom_call.1} parent=1 // pred_check
      _
    $region191: #{tpu_custom_call.1} parent=1 // pred_check_branch
      %5055 = sbr.rel (0) target = $region193
    $region192: #{tpu_custom_call.1} parent=1 // pred_region
      _
    $region193: #{tpu_custom_call.1} parent=1 // pred_fallthru
      _
    %5056 = vsyncpa [#allocation4], 1
    %5057 = vsyncpa [#allocation6], 1
    %5058 = vsyncpa [#allocation9], 1
    %5059 = vsyncpa [#allocation12], 1
    %5060 = vsyncpa [#allocation15], 1
    %5061 = vsyncpa [#allocation18], 1
    %5062 = vsyncpa [#allocation21], 1

</llo_original>
